<compile_context>
chip_gen: v7x
topology: tpu7x:2x2x1
jax: 0.10.0
libtpu: 0.0.40
codegen_flags: <defaults>
</compile_context>

<pallas_src>
import numpy as np

import jax
import jax.numpy as jnp
from jax.experimental import pallas as pl
from jax.experimental.pallas import tpu as pltpu


MATMUL_DTYPE = jnp.bfloat16   # MXU operand dtype; accumulation is always f32
ACC_DTYPE = jnp.float32


# ----------------------------------------------------------------------------
# In-kernel helpers
# ----------------------------------------------------------------------------
def _dot(a, b):
    """MXU matmul: bf16 operands, f32 accumulation."""
    return jnp.dot(a.astype(MATMUL_DTYPE), b.astype(MATMUL_DTYPE),
                   preferred_element_type=ACC_DTYPE)


def _conv3x3_taps(x, w_ref, gt_ref):
    """3x3 conv (pad=1, stride folded into gt) on a transposed activation.

    x:      (C_in, M_in)       activation, channels x flattened spatial
    w_ref:  (9, C_out, C_in)   per-tap conv weight (BN scale pre-folded)
    gt_ref: (9, M_in, M_out)   per-tap 0/1 selection matrix (padding + stride)
    returns (C_out, M_out) float32
    """
    c_out = w_ref.shape[1]
    m_out = gt_ref.shape[2]
    acc = jnp.zeros((c_out, m_out), ACC_DTYPE)
    for k in range(9):                        # statically unrolled, 9 taps
        shifted = _dot(x, gt_ref[k])          # (C_in, M_out) — exact 0/1 gather
        acc = acc + _dot(w_ref[k], shifted)   # (C_out, M_out)
    return acc


def _bottleneck_block(y, a1_ref, t1_ref, w2_ref, g2_ref, t2_ref, a3_ref, t3_ref):
    """conv1x1+bn+relu -> conv3x3(stride)+bn+relu -> conv1x1+bn+relu (BN folded)."""
    y = jnp.maximum(_dot(a1_ref[...], y) + t1_ref[...], 0.0)                 # (mid, M)
    y = jnp.maximum(_conv3x3_taps(y, w2_ref, g2_ref) + t2_ref[...], 0.0)     # (mid, M_out)
    y = jnp.maximum(_dot(a3_ref[...], y) + t3_ref[...], 0.0)                 # (cout, M_out)
    return y


def _fused_classifier_kernel(x_ref, wb1_ref, gb1_ref, *rest):
    out_ref = rest[-1]
    prm = rest[:-1]          # 5 blocks x 7 tensors, then (wlin, blin)

    # bottleneck1: pre-composed single 3x3 stride-2 conv (no BN / ReLU).
    y = _conv3x3_taps(x_ref[0], wb1_ref, gb1_ref)          # (32, (H/2)*(W/2))

    # bottleneck2..6
    for blk in range(5):
        y = _bottleneck_block(y, *prm[7 * blk: 7 * blk + 7])

    # global average pool + linear, fused:  mean_m(Wlin @ y) == Wlin @ mean_m(y)
    wlin_ref, blin_ref = prm[35], prm[36]
    t = _dot(wlin_ref[...], y)                             # (num_classes, M_last)
    m_last = t.shape[1]
    logits = jnp.sum(t, axis=1, keepdims=True) * (1.0 / m_last) + blin_ref[...]
    out_ref[0] = logits                                    # (num_classes, 1)


# ----------------------------------------------------------------------------
# Wrapper: one pallas_call for the whole network, grid = (batch,) "parallel"
# ----------------------------------------------------------------------------
def main_classifier_forward(x_nchw, flat_params):
    """x_nchw: (B, C, H, W) float32; flat_params: tuple of arrays from init_params."""
    B, C, H, W = x_nchw.shape
    # NCHW reshape -> per-sample transposed layout (C, H*W); free (contiguous) reshape.
    x = x_nchw.reshape(B, C, H * W).astype(jnp.float32)
    num_classes = flat_params[-1].shape[0]

    in_specs = [pl.BlockSpec((1, C, H * W), lambda b: (b, 0, 0))]
    for a in flat_params:
        # Weights / selection matrices: full-shape blocks, same block every grid step
        # (Pallas skips the re-DMA when the block index is unchanged).
        in_specs.append(pl.BlockSpec(a.shape, lambda b, _nd=a.ndim: (0,) * _nd))

    out = pl.pallas_call(
        _fused_classifier_kernel,
        grid=(B,),
        in_specs=in_specs,
        out_specs=pl.BlockSpec((1, num_classes, 1), lambda b: (b, 0, 0)),
        out_shape=jax.ShapeDtypeStruct((B, num_classes, 1), jnp.float32),
        compiler_params=pltpu.CompilerParams(
            # one independent grid step per sample -> both v7x TensorCores get work;
            # plain sequential loop on single-core v5e/v6e.
            dimension_semantics=("parallel",)),
    )(x, *flat_params)
    return out[:, :, 0]                                    # (B, num_classes)


# ----------------------------------------------------------------------------
# Init: selection matrices, BN folding, bottleneck1 composition
# ----------------------------------------------------------------------------
def _conv3x3_selection_T(h, w, stride):
    """Per-tap transposed 0/1 selection matrices for a 3x3 / pad=1 conv.

    Returns (9, h*w, ho*wo).  Column m' of tap k selects the input pixel that tap
    (ki, kj) reads for output position m'; an all-zero column encodes zero padding.
    """
    ho = (h + 2 - 3) // stride + 1
    wo = (w + 2 - 3) // stride + 1
    g = np.zeros((9, h * w, ho * wo), np.float32)
    for ki in range(3):
        for kj in range(3):
            k = ki * 3 + kj
            for oi in range(ho):
                ii = oi * stride + ki - 1
                if not 0 <= ii < h:
                    continue
                for oj in range(wo):
                    jj = oj * stride + kj - 1
                    if 0 <= jj < w:
                        g[k, ii * w + jj, oi * wo + oj] = 1.0
    return jnp.asarray(g)


def _bn_fold(c, eps=1e-5):
    # TODO(synk): BatchNorm uses eval-mode running stats (PyTorch default init:
    # gamma=1, beta=0, mean=0, var=1) folded into the conv weights; training-mode
    # batch statistics are not implemented.
    gamma = np.ones((c,), np.float32)
    beta = np.zeros((c,), np.float32)
    mean = np.zeros((c,), np.float32)
    var = np.ones((c,), np.float32)
    scale = gamma / np.sqrt(var + eps)
    shift = beta - mean * scale
    return jnp.asarray(scale), jnp.asarray(shift)


def init_params(key, image_size, input_channels, num_classes):
    """Deterministic synthetic params, pre-arranged in the fused kernel's layout."""
    keys = jax.random.split(key, 20)
    kit = iter(keys)

    def nrm(shape):
        return jax.random.normal(next(kit), shape, jnp.float32) * 0.1

    cdt = MATMUL_DTYPE
    flat = []

    # --- bottleneck1: Conv(Cin->1,1x1) -> Conv(1->1,3x3,s2,p1) -> Conv(1->32,1x1).
    # All linear (no BN/ReLU) => composed into one rank-1 3x3 stride-2 conv.
    w1 = nrm((1, input_channels))                      # torch (1, Cin, 1, 1)
    w2 = nrm((3, 3))                                   # torch (1, 1, 3, 3)
    w3 = nrm((32, 1))                                  # torch (32, 1, 1, 1)
    wb1 = w2.reshape(9, 1, 1) * (w3 @ w1)[None, :, :]  # (9, 32, Cin) per-tap weight
    gb1 = _conv3x3_selection_T(image_size, image_size, stride=2)
    flat += [wb1.astype(cdt), gb1.astype(cdt)]

    # --- bottleneck2..6: 32 -> (mid=4) -> 32, strides 1,2,1,1,2.
    h = image_size // 2
    cin = cout = 32
    mid = cout // 8
    for stride in (1, 2, 1, 1, 2):
        sc1, sh1 = _bn_fold(mid)
        sc2, sh2 = _bn_fold(mid)
        sc3, sh3 = _bn_fold(cout)
        a1 = nrm((mid, cin)) * sc1[:, None]                           # 1x1 conv, BN folded
        w2b = jnp.transpose(nrm((mid, mid, 3, 3)), (2, 3, 0, 1))      # (3,3,co,ci)
        w2taps = w2b.reshape(9, mid, mid) * sc2[None, :, None]        # BN folded
        a3 = nrm((cout, mid)) * sc3[:, None]                          # 1x1 conv, BN folded
        g = _conv3x3_selection_T(h, h, stride)
        flat += [a1.astype(cdt),
                 sh1.reshape(mid, 1).astype(jnp.float32),
                 w2taps.astype(cdt),
                 g.astype(cdt),
                 sh2.reshape(mid, 1).astype(jnp.float32),
                 a3.astype(cdt),
                 sh3.reshape(cout, 1).astype(jnp.float32)]
        h = (h + 2 - 3) // stride + 1

    # --- final linear: torch weight (num_classes, 32) + bias (num_classes,)
    wlin = nrm((num_classes, 32))
    blin = nrm((num_classes,))
    flat += [wlin.astype(cdt), blin.reshape(num_classes, 1).astype(jnp.float32)]
    return tuple(flat)


# ----------------------------------------------------------------------------
if __name__ == "__main__":
    B, C_IN, IMG, NUM_CLASSES = 2, 4, 16, 10
    key = jax.random.PRNGKey(0)
    k_x, k_p = jax.random.split(key)
    x = jax.random.normal(k_x, (B, C_IN, IMG, IMG), dtype=jnp.float32)
    params = init_params(k_p, IMG, C_IN, NUM_CLASSES)

    forward = jax.jit(main_classifier_forward)
    logits = jax.block_until_ready(forward(x, params))

    assert logits.shape == (B, NUM_CLASSES), logits.shape
    assert bool(jnp.all(jnp.isfinite(logits)))
    print("KERNEL_OK")
</pallas_src>

<mosaic_0001>
module attributes {stable_mosaic.version = 11 : i64} {
  func.func @_fused_classifier_kernel(%arg0: i32, %arg1: memref<1x4x256xf32, #tpu.memory_space<vmem>>, %arg2: memref<9x32x4xbf16, #tpu.memory_space<vmem>>, %arg3: memref<9x256x64xbf16, #tpu.memory_space<vmem>>, %arg4: memref<4x32xbf16, #tpu.memory_space<vmem>>, %arg5: memref<4x1xf32, #tpu.memory_space<vmem>>, %arg6: memref<9x4x4xbf16, #tpu.memory_space<vmem>>, %arg7: memref<9x64x64xbf16, #tpu.memory_space<vmem>>, %arg8: memref<4x1xf32, #tpu.memory_space<vmem>>, %arg9: memref<32x4xbf16, #tpu.memory_space<vmem>>, %arg10: memref<32x1xf32, #tpu.memory_space<vmem>>, %arg11: memref<4x32xbf16, #tpu.memory_space<vmem>>, %arg12: memref<4x1xf32, #tpu.memory_space<vmem>>, %arg13: memref<9x4x4xbf16, #tpu.memory_space<vmem>>, %arg14: memref<9x64x16xbf16, #tpu.memory_space<vmem>>, %arg15: memref<4x1xf32, #tpu.memory_space<vmem>>, %arg16: memref<32x4xbf16, #tpu.memory_space<vmem>>, %arg17: memref<32x1xf32, #tpu.memory_space<vmem>>, %arg18: memref<4x32xbf16, #tpu.memory_space<vmem>>, %arg19: memref<4x1xf32, #tpu.memory_space<vmem>>, %arg20: memref<9x4x4xbf16, #tpu.memory_space<vmem>>, %arg21: memref<9x16x16xbf16, #tpu.memory_space<vmem>>, %arg22: memref<4x1xf32, #tpu.memory_space<vmem>>, %arg23: memref<32x4xbf16, #tpu.memory_space<vmem>>, %arg24: memref<32x1xf32, #tpu.memory_space<vmem>>, %arg25: memref<4x32xbf16, #tpu.memory_space<vmem>>, %arg26: memref<4x1xf32, #tpu.memory_space<vmem>>, %arg27: memref<9x4x4xbf16, #tpu.memory_space<vmem>>, %arg28: memref<9x16x16xbf16, #tpu.memory_space<vmem>>, %arg29: memref<4x1xf32, #tpu.memory_space<vmem>>, %arg30: memref<32x4xbf16, #tpu.memory_space<vmem>>, %arg31: memref<32x1xf32, #tpu.memory_space<vmem>>, %arg32: memref<4x32xbf16, #tpu.memory_space<vmem>>, %arg33: memref<4x1xf32, #tpu.memory_space<vmem>>, %arg34: memref<9x4x4xbf16, #tpu.memory_space<vmem>>, %arg35: memref<9x16x4xbf16, #tpu.memory_space<vmem>>, %arg36: memref<4x1xf32, #tpu.memory_space<vmem>>, %arg37: memref<32x4xbf16, #tpu.memory_space<vmem>>, %arg38: memref<32x1xf32, #tpu.memory_space<vmem>>, %arg39: memref<10x32xbf16, #tpu.memory_space<vmem>>, %arg40: memref<10x1xf32, #tpu.memory_space<vmem>>, %arg41: memref<1x10x1xf32, #tpu.memory_space<vmem>>) attributes {dimension_semantics = [#tpu.dimension_semantics<parallel>], iteration_bounds = array<i64: 2>, scalar_prefetch = 0 : i64, scratch_operands = 0 : i64, tpu.core_type = #tpu.core_type<tc>, window_params = [{transform_indices = @transform_0, window_bounds = array<i64: 1, 4, 256>}, {pipeline_mode = #tpu.pipeline_mode<synchronous>, transform_indices = @transform_1, window_bounds = array<i64: 9, 32, 4>}, {pipeline_mode = #tpu.pipeline_mode<synchronous>, transform_indices = @transform_2, window_bounds = array<i64: 9, 256, 64>}, {pipeline_mode = #tpu.pipeline_mode<synchronous>, transform_indices = @transform_3, window_bounds = array<i64: 4, 32>}, {pipeline_mode = #tpu.pipeline_mode<synchronous>, transform_indices = @transform_4, window_bounds = array<i64: 4, 1>}, {pipeline_mode = #tpu.pipeline_mode<synchronous>, transform_indices = @transform_5, window_bounds = array<i64: 9, 4, 4>}, {pipeline_mode = #tpu.pipeline_mode<synchronous>, transform_indices = @transform_6, window_bounds = array<i64: 9, 64, 64>}, {pipeline_mode = #tpu.pipeline_mode<synchronous>, transform_indices = @transform_7, window_bounds = array<i64: 4, 1>}, {pipeline_mode = #tpu.pipeline_mode<synchronous>, transform_indices = @transform_8, window_bounds = array<i64: 32, 4>}, {pipeline_mode = #tpu.pipeline_mode<synchronous>, transform_indices = @transform_9, window_bounds = array<i64: 32, 1>}, {pipeline_mode = #tpu.pipeline_mode<synchronous>, transform_indices = @transform_10, window_bounds = array<i64: 4, 32>}, {pipeline_mode = #tpu.pipeline_mode<synchronous>, transform_indices = @transform_11, window_bounds = array<i64: 4, 1>}, {pipeline_mode = #tpu.pipeline_mode<synchronous>, transform_indices = @transform_12, window_bounds = array<i64: 9, 4, 4>}, {pipeline_mode = #tpu.pipeline_mode<synchronous>, transform_indices = @transform_13, window_bounds = array<i64: 9, 64, 16>}, {pipeline_mode = #tpu.pipeline_mode<synchronous>, transform_indices = @transform_14, window_bounds = array<i64: 4, 1>}, {pipeline_mode = #tpu.pipeline_mode<synchronous>, transform_indices = @transform_15, window_bounds = array<i64: 32, 4>}, {pipeline_mode = #tpu.pipeline_mode<synchronous>, transform_indices = @transform_16, window_bounds = array<i64: 32, 1>}, {pipeline_mode = #tpu.pipeline_mode<synchronous>, transform_indices = @transform_17, window_bounds = array<i64: 4, 32>}, {pipeline_mode = #tpu.pipeline_mode<synchronous>, transform_indices = @transform_18, window_bounds = array<i64: 4, 1>}, {pipeline_mode = #tpu.pipeline_mode<synchronous>, transform_indices = @transform_19, window_bounds = array<i64: 9, 4, 4>}, {pipeline_mode = #tpu.pipeline_mode<synchronous>, transform_indices = @transform_20, window_bounds = array<i64: 9, 16, 16>}, {pipeline_mode = #tpu.pipeline_mode<synchronous>, transform_indices = @transform_21, window_bounds = array<i64: 4, 1>}, {pipeline_mode = #tpu.pipeline_mode<synchronous>, transform_indices = @transform_22, window_bounds = array<i64: 32, 4>}, {pipeline_mode = #tpu.pipeline_mode<synchronous>, transform_indices = @transform_23, window_bounds = array<i64: 32, 1>}, {pipeline_mode = #tpu.pipeline_mode<synchronous>, transform_indices = @transform_24, window_bounds = array<i64: 4, 32>}, {pipeline_mode = #tpu.pipeline_mode<synchronous>, transform_indices = @transform_25, window_bounds = array<i64: 4, 1>}, {pipeline_mode = #tpu.pipeline_mode<synchronous>, transform_indices = @transform_26, window_bounds = array<i64: 9, 4, 4>}, {pipeline_mode = #tpu.pipeline_mode<synchronous>, transform_indices = @transform_27, window_bounds = array<i64: 9, 16, 16>}, {pipeline_mode = #tpu.pipeline_mode<synchronous>, transform_indices = @transform_28, window_bounds = array<i64: 4, 1>}, {pipeline_mode = #tpu.pipeline_mode<synchronous>, transform_indices = @transform_29, window_bounds = array<i64: 32, 4>}, {pipeline_mode = #tpu.pipeline_mode<synchronous>, transform_indices = @transform_30, window_bounds = array<i64: 32, 1>}, {pipeline_mode = #tpu.pipeline_mode<synchronous>, transform_indices = @transform_31, window_bounds = array<i64: 4, 32>}, {pipeline_mode = #tpu.pipeline_mode<synchronous>, transform_indices = @transform_32, window_bounds = array<i64: 4, 1>}, {pipeline_mode = #tpu.pipeline_mode<synchronous>, transform_indices = @transform_33, window_bounds = array<i64: 9, 4, 4>}, {pipeline_mode = #tpu.pipeline_mode<synchronous>, transform_indices = @transform_34, window_bounds = array<i64: 9, 16, 4>}, {pipeline_mode = #tpu.pipeline_mode<synchronous>, transform_indices = @transform_35, window_bounds = array<i64: 4, 1>}, {pipeline_mode = #tpu.pipeline_mode<synchronous>, transform_indices = @transform_36, window_bounds = array<i64: 32, 4>}, {pipeline_mode = #tpu.pipeline_mode<synchronous>, transform_indices = @transform_37, window_bounds = array<i64: 32, 1>}, {pipeline_mode = #tpu.pipeline_mode<synchronous>, transform_indices = @transform_38, window_bounds = array<i64: 10, 32>}, {pipeline_mode = #tpu.pipeline_mode<synchronous>, transform_indices = @transform_39, window_bounds = array<i64: 10, 1>}, {transform_indices = @transform_40, window_bounds = array<i64: 1, 10, 1>}]} {
    %c0 = arith.constant 0 : index
    %c0_0 = arith.constant 0 : index
    %c0_1 = arith.constant 0 : index
    %0 = vector.load %arg1[%c0, %c0_0, %c0_1] : memref<1x4x256xf32, #tpu.memory_space<vmem>>, vector<1x4x256xf32>
    %1 = vector.shape_cast %0 : vector<1x4x256xf32> to vector<4x256xf32>
    %cst = arith.constant 0.000000e+00 : f32
    %2 = vector.broadcast %cst : f32 to vector<32x64xf32>
    %c0_2 = arith.constant 0 : index
    %c0_3 = arith.constant 0 : index
    %c0_4 = arith.constant 0 : index
    %3 = vector.load %arg3[%c0_2, %c0_3, %c0_4] : memref<9x256x64xbf16, #tpu.memory_space<vmem>>, vector<1x256x64xbf16>
    %4 = vector.shape_cast %3 : vector<1x256x64xbf16> to vector<256x64xbf16>
    %5 = arith.truncf %1 : vector<4x256xf32> to vector<4x256xbf16>
    %cst_5 = arith.constant dense<0.000000e+00> : vector<4x64xf32>
    %6 = tpu.matmul %5, %4, %cst_5 {dimension_numbers = #tpu.dot_dimension_numbers<[1], [0], [0], [1], [0, 0, 1, 1], [], []>} : vector<4x256xbf16>, vector<256x64xbf16>, vector<4x64xf32> -> vector<4x64xf32>
    %c0_6 = arith.constant 0 : index
    %c0_7 = arith.constant 0 : index
    %c0_8 = arith.constant 0 : index
    %7 = vector.load %arg2[%c0_6, %c0_7, %c0_8] : memref<9x32x4xbf16, #tpu.memory_space<vmem>>, vector<1x32x4xbf16>
    %8 = vector.shape_cast %7 : vector<1x32x4xbf16> to vector<32x4xbf16>
    %9 = arith.truncf %6 : vector<4x64xf32> to vector<4x64xbf16>
    %cst_9 = arith.constant dense<0.000000e+00> : vector<32x64xf32>
    %10 = tpu.matmul %8, %9, %cst_9 {dimension_numbers = #tpu.dot_dimension_numbers<[1], [0], [0], [1], [0, 0, 1, 1], [], []>} : vector<32x4xbf16>, vector<4x64xbf16>, vector<32x64xf32> -> vector<32x64xf32>
    %11 = arith.addf %2, %10 : vector<32x64xf32>
    %c1 = arith.constant 1 : index
    %c0_10 = arith.constant 0 : index
    %c0_11 = arith.constant 0 : index
    %12 = vector.load %arg3[%c1, %c0_10, %c0_11] : memref<9x256x64xbf16, #tpu.memory_space<vmem>>, vector<1x256x64xbf16>
    %13 = vector.shape_cast %12 : vector<1x256x64xbf16> to vector<256x64xbf16>
    %14 = arith.truncf %1 : vector<4x256xf32> to vector<4x256xbf16>
    %cst_12 = arith.constant dense<0.000000e+00> : vector<4x64xf32>
    %15 = tpu.matmul %14, %13, %cst_12 {dimension_numbers = #tpu.dot_dimension_numbers<[1], [0], [0], [1], [0, 0, 1, 1], [], []>} : vector<4x256xbf16>, vector<256x64xbf16>, vector<4x64xf32> -> vector<4x64xf32>
    %c1_13 = arith.constant 1 : index
    %c0_14 = arith.constant 0 : index
    %c0_15 = arith.constant 0 : index
    %16 = vector.load %arg2[%c1_13, %c0_14, %c0_15] : memref<9x32x4xbf16, #tpu.memory_space<vmem>>, vector<1x32x4xbf16>
    %17 = vector.shape_cast %16 : vector<1x32x4xbf16> to vector<32x4xbf16>
    %18 = arith.truncf %15 : vector<4x64xf32> to vector<4x64xbf16>
    %cst_16 = arith.constant dense<0.000000e+00> : vector<32x64xf32>
    %19 = tpu.matmul %17, %18, %cst_16 {dimension_numbers = #tpu.dot_dimension_numbers<[1], [0], [0], [1], [0, 0, 1, 1], [], []>} : vector<32x4xbf16>, vector<4x64xbf16>, vector<32x64xf32> -> vector<32x64xf32>
    %20 = arith.addf %11, %19 : vector<32x64xf32>
    %c2 = arith.constant 2 : index
    %c0_17 = arith.constant 0 : index
    %c0_18 = arith.constant 0 : index
    %21 = vector.load %arg3[%c2, %c0_17, %c0_18] : memref<9x256x64xbf16, #tpu.memory_space<vmem>>, vector<1x256x64xbf16>
    %22 = vector.shape_cast %21 : vector<1x256x64xbf16> to vector<256x64xbf16>
    %23 = arith.truncf %1 : vector<4x256xf32> to vector<4x256xbf16>
    %cst_19 = arith.constant dense<0.000000e+00> : vector<4x64xf32>
    %24 = tpu.matmul %23, %22, %cst_19 {dimension_numbers = #tpu.dot_dimension_numbers<[1], [0], [0], [1], [0, 0, 1, 1], [], []>} : vector<4x256xbf16>, vector<256x64xbf16>, vector<4x64xf32> -> vector<4x64xf32>
    %c2_20 = arith.constant 2 : index
    %c0_21 = arith.constant 0 : index
    %c0_22 = arith.constant 0 : index
    %25 = vector.load %arg2[%c2_20, %c0_21, %c0_22] : memref<9x32x4xbf16, #tpu.memory_space<vmem>>, vector<1x32x4xbf16>
    %26 = vector.shape_cast %25 : vector<1x32x4xbf16> to vector<32x4xbf16>
    %27 = arith.truncf %24 : vector<4x64xf32> to vector<4x64xbf16>
    %cst_23 = arith.constant dense<0.000000e+00> : vector<32x64xf32>
    %28 = tpu.matmul %26, %27, %cst_23 {dimension_numbers = #tpu.dot_dimension_numbers<[1], [0], [0], [1], [0, 0, 1, 1], [], []>} : vector<32x4xbf16>, vector<4x64xbf16>, vector<32x64xf32> -> vector<32x64xf32>
    %29 = arith.addf %20, %28 : vector<32x64xf32>
    %c3 = arith.constant 3 : index
    %c0_24 = arith.constant 0 : index
    %c0_25 = arith.constant 0 : index
    %30 = vector.load %arg3[%c3, %c0_24, %c0_25] : memref<9x256x64xbf16, #tpu.memory_space<vmem>>, vector<1x256x64xbf16>
    %31 = vector.shape_cast %30 : vector<1x256x64xbf16> to vector<256x64xbf16>
    %32 = arith.truncf %1 : vector<4x256xf32> to vector<4x256xbf16>
    %cst_26 = arith.constant dense<0.000000e+00> : vector<4x64xf32>
    %33 = tpu.matmul %32, %31, %cst_26 {dimension_numbers = #tpu.dot_dimension_numbers<[1], [0], [0], [1], [0, 0, 1, 1], [], []>} : vector<4x256xbf16>, vector<256x64xbf16>, vector<4x64xf32> -> vector<4x64xf32>
    %c3_27 = arith.constant 3 : index
    %c0_28 = arith.constant 0 : index
    %c0_29 = arith.constant 0 : index
    %34 = vector.load %arg2[%c3_27, %c0_28, %c0_29] : memref<9x32x4xbf16, #tpu.memory_space<vmem>>, vector<1x32x4xbf16>
    %35 = vector.shape_cast %34 : vector<1x32x4xbf16> to vector<32x4xbf16>
    %36 = arith.truncf %33 : vector<4x64xf32> to vector<4x64xbf16>
    %cst_30 = arith.constant dense<0.000000e+00> : vector<32x64xf32>
    %37 = tpu.matmul %35, %36, %cst_30 {dimension_numbers = #tpu.dot_dimension_numbers<[1], [0], [0], [1], [0, 0, 1, 1], [], []>} : vector<32x4xbf16>, vector<4x64xbf16>, vector<32x64xf32> -> vector<32x64xf32>
    %38 = arith.addf %29, %37 : vector<32x64xf32>
    %c4 = arith.constant 4 : index
    %c0_31 = arith.constant 0 : index
    %c0_32 = arith.constant 0 : index
    %39 = vector.load %arg3[%c4, %c0_31, %c0_32] : memref<9x256x64xbf16, #tpu.memory_space<vmem>>, vector<1x256x64xbf16>
    %40 = vector.shape_cast %39 : vector<1x256x64xbf16> to vector<256x64xbf16>
    %41 = arith.truncf %1 : vector<4x256xf32> to vector<4x256xbf16>
    %cst_33 = arith.constant dense<0.000000e+00> : vector<4x64xf32>
    %42 = tpu.matmul %41, %40, %cst_33 {dimension_numbers = #tpu.dot_dimension_numbers<[1], [0], [0], [1], [0, 0, 1, 1], [], []>} : vector<4x256xbf16>, vector<256x64xbf16>, vector<4x64xf32> -> vector<4x64xf32>
    %c4_34 = arith.constant 4 : index
    %c0_35 = arith.constant 0 : index
    %c0_36 = arith.constant 0 : index
    %43 = vector.load %arg2[%c4_34, %c0_35, %c0_36] : memref<9x32x4xbf16, #tpu.memory_space<vmem>>, vector<1x32x4xbf16>
    %44 = vector.shape_cast %43 : vector<1x32x4xbf16> to vector<32x4xbf16>
    %45 = arith.truncf %42 : vector<4x64xf32> to vector<4x64xbf16>
    %cst_37 = arith.constant dense<0.000000e+00> : vector<32x64xf32>
    %46 = tpu.matmul %44, %45, %cst_37 {dimension_numbers = #tpu.dot_dimension_numbers<[1], [0], [0], [1], [0, 0, 1, 1], [], []>} : vector<32x4xbf16>, vector<4x64xbf16>, vector<32x64xf32> -> vector<32x64xf32>
    %47 = arith.addf %38, %46 : vector<32x64xf32>
    %c5 = arith.constant 5 : index
    %c0_38 = arith.constant 0 : index
    %c0_39 = arith.constant 0 : index
    %48 = vector.load %arg3[%c5, %c0_38, %c0_39] : memref<9x256x64xbf16, #tpu.memory_space<vmem>>, vector<1x256x64xbf16>
    %49 = vector.shape_cast %48 : vector<1x256x64xbf16> to vector<256x64xbf16>
    %50 = arith.truncf %1 : vector<4x256xf32> to vector<4x256xbf16>
    %cst_40 = arith.constant dense<0.000000e+00> : vector<4x64xf32>
    %51 = tpu.matmul %50, %49, %cst_40 {dimension_numbers = #tpu.dot_dimension_numbers<[1], [0], [0], [1], [0, 0, 1, 1], [], []>} : vector<4x256xbf16>, vector<256x64xbf16>, vector<4x64xf32> -> vector<4x64xf32>
    %c5_41 = arith.constant 5 : index
    %c0_42 = arith.constant 0 : index
    %c0_43 = arith.constant 0 : index
    %52 = vector.load %arg2[%c5_41, %c0_42, %c0_43] : memref<9x32x4xbf16, #tpu.memory_space<vmem>>, vector<1x32x4xbf16>
    %53 = vector.shape_cast %52 : vector<1x32x4xbf16> to vector<32x4xbf16>
    %54 = arith.truncf %51 : vector<4x64xf32> to vector<4x64xbf16>
    %cst_44 = arith.constant dense<0.000000e+00> : vector<32x64xf32>
    %55 = tpu.matmul %53, %54, %cst_44 {dimension_numbers = #tpu.dot_dimension_numbers<[1], [0], [0], [1], [0, 0, 1, 1], [], []>} : vector<32x4xbf16>, vector<4x64xbf16>, vector<32x64xf32> -> vector<32x64xf32>
    %56 = arith.addf %47, %55 : vector<32x64xf32>
    %c6 = arith.constant 6 : index
    %c0_45 = arith.constant 0 : index
    %c0_46 = arith.constant 0 : index
    %57 = vector.load %arg3[%c6, %c0_45, %c0_46] : memref<9x256x64xbf16, #tpu.memory_space<vmem>>, vector<1x256x64xbf16>
    %58 = vector.shape_cast %57 : vector<1x256x64xbf16> to vector<256x64xbf16>
    %59 = arith.truncf %1 : vector<4x256xf32> to vector<4x256xbf16>
    %cst_47 = arith.constant dense<0.000000e+00> : vector<4x64xf32>
    %60 = tpu.matmul %59, %58, %cst_47 {dimension_numbers = #tpu.dot_dimension_numbers<[1], [0], [0], [1], [0, 0, 1, 1], [], []>} : vector<4x256xbf16>, vector<256x64xbf16>, vector<4x64xf32> -> vector<4x64xf32>
    %c6_48 = arith.constant 6 : index
    %c0_49 = arith.constant 0 : index
    %c0_50 = arith.constant 0 : index
    %61 = vector.load %arg2[%c6_48, %c0_49, %c0_50] : memref<9x32x4xbf16, #tpu.memory_space<vmem>>, vector<1x32x4xbf16>
    %62 = vector.shape_cast %61 : vector<1x32x4xbf16> to vector<32x4xbf16>
    %63 = arith.truncf %60 : vector<4x64xf32> to vector<4x64xbf16>
    %cst_51 = arith.constant dense<0.000000e+00> : vector<32x64xf32>
    %64 = tpu.matmul %62, %63, %cst_51 {dimension_numbers = #tpu.dot_dimension_numbers<[1], [0], [0], [1], [0, 0, 1, 1], [], []>} : vector<32x4xbf16>, vector<4x64xbf16>, vector<32x64xf32> -> vector<32x64xf32>
    %65 = arith.addf %56, %64 : vector<32x64xf32>
    %c7 = arith.constant 7 : index
    %c0_52 = arith.constant 0 : index
    %c0_53 = arith.constant 0 : index
    %66 = vector.load %arg3[%c7, %c0_52, %c0_53] : memref<9x256x64xbf16, #tpu.memory_space<vmem>>, vector<1x256x64xbf16>
    %67 = vector.shape_cast %66 : vector<1x256x64xbf16> to vector<256x64xbf16>
    %68 = arith.truncf %1 : vector<4x256xf32> to vector<4x256xbf16>
    %cst_54 = arith.constant dense<0.000000e+00> : vector<4x64xf32>
    %69 = tpu.matmul %68, %67, %cst_54 {dimension_numbers = #tpu.dot_dimension_numbers<[1], [0], [0], [1], [0, 0, 1, 1], [], []>} : vector<4x256xbf16>, vector<256x64xbf16>, vector<4x64xf32> -> vector<4x64xf32>
    %c7_55 = arith.constant 7 : index
    %c0_56 = arith.constant 0 : index
    %c0_57 = arith.constant 0 : index
    %70 = vector.load %arg2[%c7_55, %c0_56, %c0_57] : memref<9x32x4xbf16, #tpu.memory_space<vmem>>, vector<1x32x4xbf16>
    %71 = vector.shape_cast %70 : vector<1x32x4xbf16> to vector<32x4xbf16>
    %72 = arith.truncf %69 : vector<4x64xf32> to vector<4x64xbf16>
    %cst_58 = arith.constant dense<0.000000e+00> : vector<32x64xf32>
    %73 = tpu.matmul %71, %72, %cst_58 {dimension_numbers = #tpu.dot_dimension_numbers<[1], [0], [0], [1], [0, 0, 1, 1], [], []>} : vector<32x4xbf16>, vector<4x64xbf16>, vector<32x64xf32> -> vector<32x64xf32>
    %74 = arith.addf %65, %73 : vector<32x64xf32>
    %c8 = arith.constant 8 : index
    %c0_59 = arith.constant 0 : index
    %c0_60 = arith.constant 0 : index
    %75 = vector.load %arg3[%c8, %c0_59, %c0_60] : memref<9x256x64xbf16, #tpu.memory_space<vmem>>, vector<1x256x64xbf16>
    %76 = vector.shape_cast %75 : vector<1x256x64xbf16> to vector<256x64xbf16>
    %77 = arith.truncf %1 : vector<4x256xf32> to vector<4x256xbf16>
    %cst_61 = arith.constant dense<0.000000e+00> : vector<4x64xf32>
    %78 = tpu.matmul %77, %76, %cst_61 {dimension_numbers = #tpu.dot_dimension_numbers<[1], [0], [0], [1], [0, 0, 1, 1], [], []>} : vector<4x256xbf16>, vector<256x64xbf16>, vector<4x64xf32> -> vector<4x64xf32>
    %c8_62 = arith.constant 8 : index
    %c0_63 = arith.constant 0 : index
    %c0_64 = arith.constant 0 : index
    %79 = vector.load %arg2[%c8_62, %c0_63, %c0_64] : memref<9x32x4xbf16, #tpu.memory_space<vmem>>, vector<1x32x4xbf16>
    %80 = vector.shape_cast %79 : vector<1x32x4xbf16> to vector<32x4xbf16>
    %81 = arith.truncf %78 : vector<4x64xf32> to vector<4x64xbf16>
    %cst_65 = arith.constant dense<0.000000e+00> : vector<32x64xf32>
    %82 = tpu.matmul %80, %81, %cst_65 {dimension_numbers = #tpu.dot_dimension_numbers<[1], [0], [0], [1], [0, 0, 1, 1], [], []>} : vector<32x4xbf16>, vector<4x64xbf16>, vector<32x64xf32> -> vector<32x64xf32>
    %83 = arith.addf %74, %82 : vector<32x64xf32>
    %c0_66 = arith.constant 0 : index
    %c0_67 = arith.constant 0 : index
    %84 = vector.load %arg4[%c0_66, %c0_67] : memref<4x32xbf16, #tpu.memory_space<vmem>>, vector<4x32xbf16>
    %85 = arith.truncf %83 : vector<32x64xf32> to vector<32x64xbf16>
    %cst_68 = arith.constant dense<0.000000e+00> : vector<4x64xf32>
    %86 = tpu.matmul %84, %85, %cst_68 {dimension_numbers = #tpu.dot_dimension_numbers<[1], [0], [0], [1], [0, 0, 1, 1], [], []>} : vector<4x32xbf16>, vector<32x64xbf16>, vector<4x64xf32> -> vector<4x64xf32>
    %c0_69 = arith.constant 0 : index
    %c0_70 = arith.constant 0 : index
    %87 = vector.load %arg5[%c0_69, %c0_70] : memref<4x1xf32, #tpu.memory_space<vmem>>, vector<4x1xf32>
    %88 = vector.broadcast %87 : vector<4x1xf32> to vector<4x64xf32>
    %89 = arith.addf %86, %88 : vector<4x64xf32>
    %cst_71 = arith.constant 0.000000e+00 : f32
    %90 = vector.broadcast %cst_71 : f32 to vector<4x64xf32>
    %91 = arith.maximumf %89, %90 : vector<4x64xf32>
    %cst_72 = arith.constant 0.000000e+00 : f32
    %92 = vector.broadcast %cst_72 : f32 to vector<4x64xf32>
    %c0_73 = arith.constant 0 : index
    %c0_74 = arith.constant 0 : index
    %c0_75 = arith.constant 0 : index
    %93 = vector.load %arg7[%c0_73, %c0_74, %c0_75] : memref<9x64x64xbf16, #tpu.memory_space<vmem>>, vector<1x64x64xbf16>
    %94 = vector.shape_cast %93 : vector<1x64x64xbf16> to vector<64x64xbf16>
    %95 = arith.truncf %91 : vector<4x64xf32> to vector<4x64xbf16>
    %cst_76 = arith.constant dense<0.000000e+00> : vector<4x64xf32>
    %96 = tpu.matmul %95, %94, %cst_76 {dimension_numbers = #tpu.dot_dimension_numbers<[1], [0], [0], [1], [0, 0, 1, 1], [], []>} : vector<4x64xbf16>, vector<64x64xbf16>, vector<4x64xf32> -> vector<4x64xf32>
    %c0_77 = arith.constant 0 : index
    %c0_78 = arith.constant 0 : index
    %c0_79 = arith.constant 0 : index
    %97 = vector.load %arg6[%c0_77, %c0_78, %c0_79] : memref<9x4x4xbf16, #tpu.memory_space<vmem>>, vector<1x4x4xbf16>
    %98 = vector.shape_cast %97 : vector<1x4x4xbf16> to vector<4x4xbf16>
    %99 = arith.truncf %96 : vector<4x64xf32> to vector<4x64xbf16>
    %cst_80 = arith.constant dense<0.000000e+00> : vector<4x64xf32>
    %100 = tpu.matmul %98, %99, %cst_80 {dimension_numbers = #tpu.dot_dimension_numbers<[1], [0], [0], [1], [0, 0, 1, 1], [], []>} : vector<4x4xbf16>, vector<4x64xbf16>, vector<4x64xf32> -> vector<4x64xf32>
    %101 = arith.addf %92, %100 : vector<4x64xf32>
    %c1_81 = arith.constant 1 : index
    %c0_82 = arith.constant 0 : index
    %c0_83 = arith.constant 0 : index
    %102 = vector.load %arg7[%c1_81, %c0_82, %c0_83] : memref<9x64x64xbf16, #tpu.memory_space<vmem>>, vector<1x64x64xbf16>
    %103 = vector.shape_cast %102 : vector<1x64x64xbf16> to vector<64x64xbf16>
    %104 = arith.truncf %91 : vector<4x64xf32> to vector<4x64xbf16>
    %cst_84 = arith.constant dense<0.000000e+00> : vector<4x64xf32>
    %105 = tpu.matmul %104, %103, %cst_84 {dimension_numbers = #tpu.dot_dimension_numbers<[1], [0], [0], [1], [0, 0, 1, 1], [], []>} : vector<4x64xbf16>, vector<64x64xbf16>, vector<4x64xf32> -> vector<4x64xf32>
    %c1_85 = arith.constant 1 : index
    %c0_86 = arith.constant 0 : index
    %c0_87 = arith.constant 0 : index
    %106 = vector.load %arg6[%c1_85, %c0_86, %c0_87] : memref<9x4x4xbf16, #tpu.memory_space<vmem>>, vector<1x4x4xbf16>
    %107 = vector.shape_cast %106 : vector<1x4x4xbf16> to vector<4x4xbf16>
    %108 = arith.truncf %105 : vector<4x64xf32> to vector<4x64xbf16>
    %cst_88 = arith.constant dense<0.000000e+00> : vector<4x64xf32>
    %109 = tpu.matmul %107, %108, %cst_88 {dimension_numbers = #tpu.dot_dimension_numbers<[1], [0], [0], [1], [0, 0, 1, 1], [], []>} : vector<4x4xbf16>, vector<4x64xbf16>, vector<4x64xf32> -> vector<4x64xf32>
    %110 = arith.addf %101, %109 : vector<4x64xf32>
    %c2_89 = arith.constant 2 : index
    %c0_90 = arith.constant 0 : index
    %c0_91 = arith.constant 0 : index
    %111 = vector.load %arg7[%c2_89, %c0_90, %c0_91] : memref<9x64x64xbf16, #tpu.memory_space<vmem>>, vector<1x64x64xbf16>
    %112 = vector.shape_cast %111 : vector<1x64x64xbf16> to vector<64x64xbf16>
    %113 = arith.truncf %91 : vector<4x64xf32> to vector<4x64xbf16>
    %cst_92 = arith.constant dense<0.000000e+00> : vector<4x64xf32>
    %114 = tpu.matmul %113, %112, %cst_92 {dimension_numbers = #tpu.dot_dimension_numbers<[1], [0], [0], [1], [0, 0, 1, 1], [], []>} : vector<4x64xbf16>, vector<64x64xbf16>, vector<4x64xf32> -> vector<4x64xf32>
    %c2_93 = arith.constant 2 : index
    %c0_94 = arith.constant 0 : index
    %c0_95 = arith.constant 0 : index
    %115 = vector.load %arg6[%c2_93, %c0_94, %c0_95] : memref<9x4x4xbf16, #tpu.memory_space<vmem>>, vector<1x4x4xbf16>
    %116 = vector.shape_cast %115 : vector<1x4x4xbf16> to vector<4x4xbf16>
    %117 = arith.truncf %114 : vector<4x64xf32> to vector<4x64xbf16>
    %cst_96 = arith.constant dense<0.000000e+00> : vector<4x64xf32>
    %118 = tpu.matmul %116, %117, %cst_96 {dimension_numbers = #tpu.dot_dimension_numbers<[1], [0], [0], [1], [0, 0, 1, 1], [], []>} : vector<4x4xbf16>, vector<4x64xbf16>, vector<4x64xf32> -> vector<4x64xf32>
    %119 = arith.addf %110, %118 : vector<4x64xf32>
    %c3_97 = arith.constant 3 : index
    %c0_98 = arith.constant 0 : index
    %c0_99 = arith.constant 0 : index
    %120 = vector.load %arg7[%c3_97, %c0_98, %c0_99] : memref<9x64x64xbf16, #tpu.memory_space<vmem>>, vector<1x64x64xbf16>
    %121 = vector.shape_cast %120 : vector<1x64x64xbf16> to vector<64x64xbf16>
    %122 = arith.truncf %91 : vector<4x64xf32> to vector<4x64xbf16>
    %cst_100 = arith.constant dense<0.000000e+00> : vector<4x64xf32>
    %123 = tpu.matmul %122, %121, %cst_100 {dimension_numbers = #tpu.dot_dimension_numbers<[1], [0], [0], [1], [0, 0, 1, 1], [], []>} : vector<4x64xbf16>, vector<64x64xbf16>, vector<4x64xf32> -> vector<4x64xf32>
    %c3_101 = arith.constant 3 : index
    %c0_102 = arith.constant 0 : index
    %c0_103 = arith.constant 0 : index
    %124 = vector.load %arg6[%c3_101, %c0_102, %c0_103] : memref<9x4x4xbf16, #tpu.memory_space<vmem>>, vector<1x4x4xbf16>
    %125 = vector.shape_cast %124 : vector<1x4x4xbf16> to vector<4x4xbf16>
    %126 = arith.truncf %123 : vector<4x64xf32> to vector<4x64xbf16>
    %cst_104 = arith.constant dense<0.000000e+00> : vector<4x64xf32>
    %127 = tpu.matmul %125, %126, %cst_104 {dimension_numbers = #tpu.dot_dimension_numbers<[1], [0], [0], [1], [0, 0, 1, 1], [], []>} : vector<4x4xbf16>, vector<4x64xbf16>, vector<4x64xf32> -> vector<4x64xf32>
    %128 = arith.addf %119, %127 : vector<4x64xf32>
    %c4_105 = arith.constant 4 : index
    %c0_106 = arith.constant 0 : index
    %c0_107 = arith.constant 0 : index
    %129 = vector.load %arg7[%c4_105, %c0_106, %c0_107] : memref<9x64x64xbf16, #tpu.memory_space<vmem>>, vector<1x64x64xbf16>
    %130 = vector.shape_cast %129 : vector<1x64x64xbf16> to vector<64x64xbf16>
    %131 = arith.truncf %91 : vector<4x64xf32> to vector<4x64xbf16>
    %cst_108 = arith.constant dense<0.000000e+00> : vector<4x64xf32>
    %132 = tpu.matmul %131, %130, %cst_108 {dimension_numbers = #tpu.dot_dimension_numbers<[1], [0], [0], [1], [0, 0, 1, 1], [], []>} : vector<4x64xbf16>, vector<64x64xbf16>, vector<4x64xf32> -> vector<4x64xf32>
    %c4_109 = arith.constant 4 : index
    %c0_110 = arith.constant 0 : index
    %c0_111 = arith.constant 0 : index
    %133 = vector.load %arg6[%c4_109, %c0_110, %c0_111] : memref<9x4x4xbf16, #tpu.memory_space<vmem>>, vector<1x4x4xbf16>
    %134 = vector.shape_cast %133 : vector<1x4x4xbf16> to vector<4x4xbf16>
    %135 = arith.truncf %132 : vector<4x64xf32> to vector<4x64xbf16>
    %cst_112 = arith.constant dense<0.000000e+00> : vector<4x64xf32>
    %136 = tpu.matmul %134, %135, %cst_112 {dimension_numbers = #tpu.dot_dimension_numbers<[1], [0], [0], [1], [0, 0, 1, 1], [], []>} : vector<4x4xbf16>, vector<4x64xbf16>, vector<4x64xf32> -> vector<4x64xf32>
    %137 = arith.addf %128, %136 : vector<4x64xf32>
    %c5_113 = arith.constant 5 : index
    %c0_114 = arith.constant 0 : index
    %c0_115 = arith.constant 0 : index
    %138 = vector.load %arg7[%c5_113, %c0_114, %c0_115] : memref<9x64x64xbf16, #tpu.memory_space<vmem>>, vector<1x64x64xbf16>
    %139 = vector.shape_cast %138 : vector<1x64x64xbf16> to vector<64x64xbf16>
    %140 = arith.truncf %91 : vector<4x64xf32> to vector<4x64xbf16>
    %cst_116 = arith.constant dense<0.000000e+00> : vector<4x64xf32>
    %141 = tpu.matmul %140, %139, %cst_116 {dimension_numbers = #tpu.dot_dimension_numbers<[1], [0], [0], [1], [0, 0, 1, 1], [], []>} : vector<4x64xbf16>, vector<64x64xbf16>, vector<4x64xf32> -> vector<4x64xf32>
    %c5_117 = arith.constant 5 : index
    %c0_118 = arith.constant 0 : index
    %c0_119 = arith.constant 0 : index
    %142 = vector.load %arg6[%c5_117, %c0_118, %c0_119] : memref<9x4x4xbf16, #tpu.memory_space<vmem>>, vector<1x4x4xbf16>
    %143 = vector.shape_cast %142 : vector<1x4x4xbf16> to vector<4x4xbf16>
    %144 = arith.truncf %141 : vector<4x64xf32> to vector<4x64xbf16>
    %cst_120 = arith.constant dense<0.000000e+00> : vector<4x64xf32>
    %145 = tpu.matmul %143, %144, %cst_120 {dimension_numbers = #tpu.dot_dimension_numbers<[1], [0], [0], [1], [0, 0, 1, 1], [], []>} : vector<4x4xbf16>, vector<4x64xbf16>, vector<4x64xf32> -> vector<4x64xf32>
    %146 = arith.addf %137, %145 : vector<4x64xf32>
    %c6_121 = arith.constant 6 : index
    %c0_122 = arith.constant 0 : index
    %c0_123 = arith.constant 0 : index
    %147 = vector.load %arg7[%c6_121, %c0_122, %c0_123] : memref<9x64x64xbf16, #tpu.memory_space<vmem>>, vector<1x64x64xbf16>
    %148 = vector.shape_cast %147 : vector<1x64x64xbf16> to vector<64x64xbf16>
    %149 = arith.truncf %91 : vector<4x64xf32> to vector<4x64xbf16>
    %cst_124 = arith.constant dense<0.000000e+00> : vector<4x64xf32>
    %150 = tpu.matmul %149, %148, %cst_124 {dimension_numbers = #tpu.dot_dimension_numbers<[1], [0], [0], [1], [0, 0, 1, 1], [], []>} : vector<4x64xbf16>, vector<64x64xbf16>, vector<4x64xf32> -> vector<4x64xf32>
    %c6_125 = arith.constant 6 : index
    %c0_126 = arith.constant 0 : index
    %c0_127 = arith.constant 0 : index
    %151 = vector.load %arg6[%c6_125, %c0_126, %c0_127] : memref<9x4x4xbf16, #tpu.memory_space<vmem>>, vector<1x4x4xbf16>
    %152 = vector.shape_cast %151 : vector<1x4x4xbf16> to vector<4x4xbf16>
    %153 = arith.truncf %150 : vector<4x64xf32> to vector<4x64xbf16>
    %cst_128 = arith.constant dense<0.000000e+00> : vector<4x64xf32>
    %154 = tpu.matmul %152, %153, %cst_128 {dimension_numbers = #tpu.dot_dimension_numbers<[1], [0], [0], [1], [0, 0, 1, 1], [], []>} : vector<4x4xbf16>, vector<4x64xbf16>, vector<4x64xf32> -> vector<4x64xf32>
    %155 = arith.addf %146, %154 : vector<4x64xf32>
    %c7_129 = arith.constant 7 : index
    %c0_130 = arith.constant 0 : index
    %c0_131 = arith.constant 0 : index
    %156 = vector.load %arg7[%c7_129, %c0_130, %c0_131] : memref<9x64x64xbf16, #tpu.memory_space<vmem>>, vector<1x64x64xbf16>
    %157 = vector.shape_cast %156 : vector<1x64x64xbf16> to vector<64x64xbf16>
    %158 = arith.truncf %91 : vector<4x64xf32> to vector<4x64xbf16>
    %cst_132 = arith.constant dense<0.000000e+00> : vector<4x64xf32>
    %159 = tpu.matmul %158, %157, %cst_132 {dimension_numbers = #tpu.dot_dimension_numbers<[1], [0], [0], [1], [0, 0, 1, 1], [], []>} : vector<4x64xbf16>, vector<64x64xbf16>, vector<4x64xf32> -> vector<4x64xf32>
    %c7_133 = arith.constant 7 : index
    %c0_134 = arith.constant 0 : index
    %c0_135 = arith.constant 0 : index
    %160 = vector.load %arg6[%c7_133, %c0_134, %c0_135] : memref<9x4x4xbf16, #tpu.memory_space<vmem>>, vector<1x4x4xbf16>
    %161 = vector.shape_cast %160 : vector<1x4x4xbf16> to vector<4x4xbf16>
    %162 = arith.truncf %159 : vector<4x64xf32> to vector<4x64xbf16>
    %cst_136 = arith.constant dense<0.000000e+00> : vector<4x64xf32>
    %163 = tpu.matmul %161, %162, %cst_136 {dimension_numbers = #tpu.dot_dimension_numbers<[1], [0], [0], [1], [0, 0, 1, 1], [], []>} : vector<4x4xbf16>, vector<4x64xbf16>, vector<4x64xf32> -> vector<4x64xf32>
    %164 = arith.addf %155, %163 : vector<4x64xf32>
    %c8_137 = arith.constant 8 : index
    %c0_138 = arith.constant 0 : index
    %c0_139 = arith.constant 0 : index
    %165 = vector.load %arg7[%c8_137, %c0_138, %c0_139] : memref<9x64x64xbf16, #tpu.memory_space<vmem>>, vector<1x64x64xbf16>
    %166 = vector.shape_cast %165 : vector<1x64x64xbf16> to vector<64x64xbf16>
    %167 = arith.truncf %91 : vector<4x64xf32> to vector<4x64xbf16>
    %cst_140 = arith.constant dense<0.000000e+00> : vector<4x64xf32>
    %168 = tpu.matmul %167, %166, %cst_140 {dimension_numbers = #tpu.dot_dimension_numbers<[1], [0], [0], [1], [0, 0, 1, 1], [], []>} : vector<4x64xbf16>, vector<64x64xbf16>, vector<4x64xf32> -> vector<4x64xf32>
    %c8_141 = arith.constant 8 : index
    %c0_142 = arith.constant 0 : index
    %c0_143 = arith.constant 0 : index
    %169 = vector.load %arg6[%c8_141, %c0_142, %c0_143] : memref<9x4x4xbf16, #tpu.memory_space<vmem>>, vector<1x4x4xbf16>
    %170 = vector.shape_cast %169 : vector<1x4x4xbf16> to vector<4x4xbf16>
    %171 = arith.truncf %168 : vector<4x64xf32> to vector<4x64xbf16>
    %cst_144 = arith.constant dense<0.000000e+00> : vector<4x64xf32>
    %172 = tpu.matmul %170, %171, %cst_144 {dimension_numbers = #tpu.dot_dimension_numbers<[1], [0], [0], [1], [0, 0, 1, 1], [], []>} : vector<4x4xbf16>, vector<4x64xbf16>, vector<4x64xf32> -> vector<4x64xf32>
    %173 = arith.addf %164, %172 : vector<4x64xf32>
    %c0_145 = arith.constant 0 : index
    %c0_146 = arith.constant 0 : index
    %174 = vector.load %arg8[%c0_145, %c0_146] : memref<4x1xf32, #tpu.memory_space<vmem>>, vector<4x1xf32>
    %175 = vector.broadcast %174 : vector<4x1xf32> to vector<4x64xf32>
    %176 = arith.addf %173, %175 : vector<4x64xf32>
    %cst_147 = arith.constant 0.000000e+00 : f32
    %177 = vector.broadcast %cst_147 : f32 to vector<4x64xf32>
    %178 = arith.maximumf %176, %177 : vector<4x64xf32>
    %c0_148 = arith.constant 0 : index
    %c0_149 = arith.constant 0 : index
    %179 = vector.load %arg9[%c0_148, %c0_149] : memref<32x4xbf16, #tpu.memory_space<vmem>>, vector<32x4xbf16>
    %180 = arith.truncf %178 : vector<4x64xf32> to vector<4x64xbf16>
    %cst_150 = arith.constant dense<0.000000e+00> : vector<32x64xf32>
    %181 = tpu.matmul %179, %180, %cst_150 {dimension_numbers = #tpu.dot_dimension_numbers<[1], [0], [0], [1], [0, 0, 1, 1], [], []>} : vector<32x4xbf16>, vector<4x64xbf16>, vector<32x64xf32> -> vector<32x64xf32>
    %c0_151 = arith.constant 0 : index
    %c0_152 = arith.constant 0 : index
    %182 = vector.load %arg10[%c0_151, %c0_152] : memref<32x1xf32, #tpu.memory_space<vmem>>, vector<32x1xf32>
    %183 = vector.broadcast %182 : vector<32x1xf32> to vector<32x64xf32>
    %184 = arith.addf %181, %183 : vector<32x64xf32>
    %cst_153 = arith.constant 0.000000e+00 : f32
    %185 = vector.broadcast %cst_153 : f32 to vector<32x64xf32>
    %186 = arith.maximumf %184, %185 : vector<32x64xf32>
    %c0_154 = arith.constant 0 : index
    %c0_155 = arith.constant 0 : index
    %187 = vector.load %arg11[%c0_154, %c0_155] : memref<4x32xbf16, #tpu.memory_space<vmem>>, vector<4x32xbf16>
    %188 = arith.truncf %186 : vector<32x64xf32> to vector<32x64xbf16>
    %cst_156 = arith.constant dense<0.000000e+00> : vector<4x64xf32>
    %189 = tpu.matmul %187, %188, %cst_156 {dimension_numbers = #tpu.dot_dimension_numbers<[1], [0], [0], [1], [0, 0, 1, 1], [], []>} : vector<4x32xbf16>, vector<32x64xbf16>, vector<4x64xf32> -> vector<4x64xf32>
    %c0_157 = arith.constant 0 : index
    %c0_158 = arith.constant 0 : index
    %190 = vector.load %arg12[%c0_157, %c0_158] : memref<4x1xf32, #tpu.memory_space<vmem>>, vector<4x1xf32>
    %191 = vector.broadcast %190 : vector<4x1xf32> to vector<4x64xf32>
    %192 = arith.addf %189, %191 : vector<4x64xf32>
    %cst_159 = arith.constant 0.000000e+00 : f32
    %193 = vector.broadcast %cst_159 : f32 to vector<4x64xf32>
    %194 = arith.maximumf %192, %193 : vector<4x64xf32>
    %cst_160 = arith.constant 0.000000e+00 : f32
    %195 = vector.broadcast %cst_160 : f32 to vector<4x16xf32>
    %c0_161 = arith.constant 0 : index
    %c0_162 = arith.constant 0 : index
    %c0_163 = arith.constant 0 : index
    %196 = vector.load %arg14[%c0_161, %c0_162, %c0_163] : memref<9x64x16xbf16, #tpu.memory_space<vmem>>, vector<1x64x16xbf16>
    %197 = vector.shape_cast %196 : vector<1x64x16xbf16> to vector<64x16xbf16>
    %198 = arith.truncf %194 : vector<4x64xf32> to vector<4x64xbf16>
    %cst_164 = arith.constant dense<0.000000e+00> : vector<4x16xf32>
    %199 = tpu.matmul %198, %197, %cst_164 {dimension_numbers = #tpu.dot_dimension_numbers<[1], [0], [0], [1], [0, 0, 1, 1], [], []>} : vector<4x64xbf16>, vector<64x16xbf16>, vector<4x16xf32> -> vector<4x16xf32>
    %c0_165 = arith.constant 0 : index
    %c0_166 = arith.constant 0 : index
    %c0_167 = arith.constant 0 : index
    %200 = vector.load %arg13[%c0_165, %c0_166, %c0_167] : memref<9x4x4xbf16, #tpu.memory_space<vmem>>, vector<1x4x4xbf16>
    %201 = vector.shape_cast %200 : vector<1x4x4xbf16> to vector<4x4xbf16>
    %202 = arith.truncf %199 : vector<4x16xf32> to vector<4x16xbf16>
    %cst_168 = arith.constant dense<0.000000e+00> : vector<4x16xf32>
    %203 = tpu.matmul %201, %202, %cst_168 {dimension_numbers = #tpu.dot_dimension_numbers<[1], [0], [0], [1], [0, 0, 1, 1], [], []>} : vector<4x4xbf16>, vector<4x16xbf16>, vector<4x16xf32> -> vector<4x16xf32>
    %204 = arith.addf %195, %203 : vector<4x16xf32>
    %c1_169 = arith.constant 1 : index
    %c0_170 = arith.constant 0 : index
    %c0_171 = arith.constant 0 : index
    %205 = vector.load %arg14[%c1_169, %c0_170, %c0_171] : memref<9x64x16xbf16, #tpu.memory_space<vmem>>, vector<1x64x16xbf16>
    %206 = vector.shape_cast %205 : vector<1x64x16xbf16> to vector<64x16xbf16>
    %207 = arith.truncf %194 : vector<4x64xf32> to vector<4x64xbf16>
    %cst_172 = arith.constant dense<0.000000e+00> : vector<4x16xf32>
    %208 = tpu.matmul %207, %206, %cst_172 {dimension_numbers = #tpu.dot_dimension_numbers<[1], [0], [0], [1], [0, 0, 1, 1], [], []>} : vector<4x64xbf16>, vector<64x16xbf16>, vector<4x16xf32> -> vector<4x16xf32>
    %c1_173 = arith.constant 1 : index
    %c0_174 = arith.constant 0 : index
    %c0_175 = arith.constant 0 : index
    %209 = vector.load %arg13[%c1_173, %c0_174, %c0_175] : memref<9x4x4xbf16, #tpu.memory_space<vmem>>, vector<1x4x4xbf16>
    %210 = vector.shape_cast %209 : vector<1x4x4xbf16> to vector<4x4xbf16>
    %211 = arith.truncf %208 : vector<4x16xf32> to vector<4x16xbf16>
    %cst_176 = arith.constant dense<0.000000e+00> : vector<4x16xf32>
    %212 = tpu.matmul %210, %211, %cst_176 {dimension_numbers = #tpu.dot_dimension_numbers<[1], [0], [0], [1], [0, 0, 1, 1], [], []>} : vector<4x4xbf16>, vector<4x16xbf16>, vector<4x16xf32> -> vector<4x16xf32>
    %213 = arith.addf %204, %212 : vector<4x16xf32>
    %c2_177 = arith.constant 2 : index
    %c0_178 = arith.constant 0 : index
    %c0_179 = arith.constant 0 : index
    %214 = vector.load %arg14[%c2_177, %c0_178, %c0_179] : memref<9x64x16xbf16, #tpu.memory_space<vmem>>, vector<1x64x16xbf16>
    %215 = vector.shape_cast %214 : vector<1x64x16xbf16> to vector<64x16xbf16>
    %216 = arith.truncf %194 : vector<4x64xf32> to vector<4x64xbf16>
    %cst_180 = arith.constant dense<0.000000e+00> : vector<4x16xf32>
    %217 = tpu.matmul %216, %215, %cst_180 {dimension_numbers = #tpu.dot_dimension_numbers<[1], [0], [0], [1], [0, 0, 1, 1], [], []>} : vector<4x64xbf16>, vector<64x16xbf16>, vector<4x16xf32> -> vector<4x16xf32>
    %c2_181 = arith.constant 2 : index
    %c0_182 = arith.constant 0 : index
    %c0_183 = arith.constant 0 : index
    %218 = vector.load %arg13[%c2_181, %c0_182, %c0_183] : memref<9x4x4xbf16, #tpu.memory_space<vmem>>, vector<1x4x4xbf16>
    %219 = vector.shape_cast %218 : vector<1x4x4xbf16> to vector<4x4xbf16>
    %220 = arith.truncf %217 : vector<4x16xf32> to vector<4x16xbf16>
    %cst_184 = arith.constant dense<0.000000e+00> : vector<4x16xf32>
    %221 = tpu.matmul %219, %220, %cst_184 {dimension_numbers = #tpu.dot_dimension_numbers<[1], [0], [0], [1], [0, 0, 1, 1], [], []>} : vector<4x4xbf16>, vector<4x16xbf16>, vector<4x16xf32> -> vector<4x16xf32>
    %222 = arith.addf %213, %221 : vector<4x16xf32>
    %c3_185 = arith.constant 3 : index
    %c0_186 = arith.constant 0 : index
    %c0_187 = arith.constant 0 : index
    %223 = vector.load %arg14[%c3_185, %c0_186, %c0_187] : memref<9x64x16xbf16, #tpu.memory_space<vmem>>, vector<1x64x16xbf16>
    %224 = vector.shape_cast %223 : vector<1x64x16xbf16> to vector<64x16xbf16>
    %225 = arith.truncf %194 : vector<4x64xf32> to vector<4x64xbf16>
    %cst_188 = arith.constant dense<0.000000e+00> : vector<4x16xf32>
    %226 = tpu.matmul %225, %224, %cst_188 {dimension_numbers = #tpu.dot_dimension_numbers<[1], [0], [0], [1], [0, 0, 1, 1], [], []>} : vector<4x64xbf16>, vector<64x16xbf16>, vector<4x16xf32> -> vector<4x16xf32>
    %c3_189 = arith.constant 3 : index
    %c0_190 = arith.constant 0 : index
    %c0_191 = arith.constant 0 : index
    %227 = vector.load %arg13[%c3_189, %c0_190, %c0_191] : memref<9x4x4xbf16, #tpu.memory_space<vmem>>, vector<1x4x4xbf16>
    %228 = vector.shape_cast %227 : vector<1x4x4xbf16> to vector<4x4xbf16>
    %229 = arith.truncf %226 : vector<4x16xf32> to vector<4x16xbf16>
    %cst_192 = arith.constant dense<0.000000e+00> : vector<4x16xf32>
    %230 = tpu.matmul %228, %229, %cst_192 {dimension_numbers = #tpu.dot_dimension_numbers<[1], [0], [0], [1], [0, 0, 1, 1], [], []>} : vector<4x4xbf16>, vector<4x16xbf16>, vector<4x16xf32> -> vector<4x16xf32>
    %231 = arith.addf %222, %230 : vector<4x16xf32>
    %c4_193 = arith.constant 4 : index
    %c0_194 = arith.constant 0 : index
    %c0_195 = arith.constant 0 : index
    %232 = vector.load %arg14[%c4_193, %c0_194, %c0_195] : memref<9x64x16xbf16, #tpu.memory_space<vmem>>, vector<1x64x16xbf16>
    %233 = vector.shape_cast %232 : vector<1x64x16xbf16> to vector<64x16xbf16>
    %234 = arith.truncf %194 : vector<4x64xf32> to vector<4x64xbf16>
    %cst_196 = arith.constant dense<0.000000e+00> : vector<4x16xf32>
    %235 = tpu.matmul %234, %233, %cst_196 {dimension_numbers = #tpu.dot_dimension_numbers<[1], [0], [0], [1], [0, 0, 1, 1], [], []>} : vector<4x64xbf16>, vector<64x16xbf16>, vector<4x16xf32> -> vector<4x16xf32>
    %c4_197 = arith.constant 4 : index
    %c0_198 = arith.constant 0 : index
    %c0_199 = arith.constant 0 : index
    %236 = vector.load %arg13[%c4_197, %c0_198, %c0_199] : memref<9x4x4xbf16, #tpu.memory_space<vmem>>, vector<1x4x4xbf16>
    %237 = vector.shape_cast %236 : vector<1x4x4xbf16> to vector<4x4xbf16>
    %238 = arith.truncf %235 : vector<4x16xf32> to vector<4x16xbf16>
    %cst_200 = arith.constant dense<0.000000e+00> : vector<4x16xf32>
    %239 = tpu.matmul %237, %238, %cst_200 {dimension_numbers = #tpu.dot_dimension_numbers<[1], [0], [0], [1], [0, 0, 1, 1], [], []>} : vector<4x4xbf16>, vector<4x16xbf16>, vector<4x16xf32> -> vector<4x16xf32>
    %240 = arith.addf %231, %239 : vector<4x16xf32>
    %c5_201 = arith.constant 5 : index
    %c0_202 = arith.constant 0 : index
    %c0_203 = arith.constant 0 : index
    %241 = vector.load %arg14[%c5_201, %c0_202, %c0_203] : memref<9x64x16xbf16, #tpu.memory_space<vmem>>, vector<1x64x16xbf16>
    %242 = vector.shape_cast %241 : vector<1x64x16xbf16> to vector<64x16xbf16>
    %243 = arith.truncf %194 : vector<4x64xf32> to vector<4x64xbf16>
    %cst_204 = arith.constant dense<0.000000e+00> : vector<4x16xf32>
    %244 = tpu.matmul %243, %242, %cst_204 {dimension_numbers = #tpu.dot_dimension_numbers<[1], [0], [0], [1], [0, 0, 1, 1], [], []>} : vector<4x64xbf16>, vector<64x16xbf16>, vector<4x16xf32> -> vector<4x16xf32>
    %c5_205 = arith.constant 5 : index
    %c0_206 = arith.constant 0 : index
    %c0_207 = arith.constant 0 : index
    %245 = vector.load %arg13[%c5_205, %c0_206, %c0_207] : memref<9x4x4xbf16, #tpu.memory_space<vmem>>, vector<1x4x4xbf16>
    %246 = vector.shape_cast %245 : vector<1x4x4xbf16> to vector<4x4xbf16>
    %247 = arith.truncf %244 : vector<4x16xf32> to vector<4x16xbf16>
    %cst_208 = arith.constant dense<0.000000e+00> : vector<4x16xf32>
    %248 = tpu.matmul %246, %247, %cst_208 {dimension_numbers = #tpu.dot_dimension_numbers<[1], [0], [0], [1], [0, 0, 1, 1], [], []>} : vector<4x4xbf16>, vector<4x16xbf16>, vector<4x16xf32> -> vector<4x16xf32>
    %249 = arith.addf %240, %248 : vector<4x16xf32>
    %c6_209 = arith.constant 6 : index
    %c0_210 = arith.constant 0 : index
    %c0_211 = arith.constant 0 : index
    %250 = vector.load %arg14[%c6_209, %c0_210, %c0_211] : memref<9x64x16xbf16, #tpu.memory_space<vmem>>, vector<1x64x16xbf16>
    %251 = vector.shape_cast %250 : vector<1x64x16xbf16> to vector<64x16xbf16>
    %252 = arith.truncf %194 : vector<4x64xf32> to vector<4x64xbf16>
    %cst_212 = arith.constant dense<0.000000e+00> : vector<4x16xf32>
    %253 = tpu.matmul %252, %251, %cst_212 {dimension_numbers = #tpu.dot_dimension_numbers<[1], [0], [0], [1], [0, 0, 1, 1], [], []>} : vector<4x64xbf16>, vector<64x16xbf16>, vector<4x16xf32> -> vector<4x16xf32>
    %c6_213 = arith.constant 6 : index
    %c0_214 = arith.constant 0 : index
    %c0_215 = arith.constant 0 : index
    %254 = vector.load %arg13[%c6_213, %c0_214, %c0_215] : memref<9x4x4xbf16, #tpu.memory_space<vmem>>, vector<1x4x4xbf16>
    %255 = vector.shape_cast %254 : vector<1x4x4xbf16> to vector<4x4xbf16>
    %256 = arith.truncf %253 : vector<4x16xf32> to vector<4x16xbf16>
    %cst_216 = arith.constant dense<0.000000e+00> : vector<4x16xf32>
    %257 = tpu.matmul %255, %256, %cst_216 {dimension_numbers = #tpu.dot_dimension_numbers<[1], [0], [0], [1], [0, 0, 1, 1], [], []>} : vector<4x4xbf16>, vector<4x16xbf16>, vector<4x16xf32> -> vector<4x16xf32>
    %258 = arith.addf %249, %257 : vector<4x16xf32>
    %c7_217 = arith.constant 7 : index
    %c0_218 = arith.constant 0 : index
    %c0_219 = arith.constant 0 : index
    %259 = vector.load %arg14[%c7_217, %c0_218, %c0_219] : memref<9x64x16xbf16, #tpu.memory_space<vmem>>, vector<1x64x16xbf16>
    %260 = vector.shape_cast %259 : vector<1x64x16xbf16> to vector<64x16xbf16>
    %261 = arith.truncf %194 : vector<4x64xf32> to vector<4x64xbf16>
    %cst_220 = arith.constant dense<0.000000e+00> : vector<4x16xf32>
    %262 = tpu.matmul %261, %260, %cst_220 {dimension_numbers = #tpu.dot_dimension_numbers<[1], [0], [0], [1], [0, 0, 1, 1], [], []>} : vector<4x64xbf16>, vector<64x16xbf16>, vector<4x16xf32> -> vector<4x16xf32>
    %c7_221 = arith.constant 7 : index
    %c0_222 = arith.constant 0 : index
    %c0_223 = arith.constant 0 : index
    %263 = vector.load %arg13[%c7_221, %c0_222, %c0_223] : memref<9x4x4xbf16, #tpu.memory_space<vmem>>, vector<1x4x4xbf16>
    %264 = vector.shape_cast %263 : vector<1x4x4xbf16> to vector<4x4xbf16>
    %265 = arith.truncf %262 : vector<4x16xf32> to vector<4x16xbf16>
    %cst_224 = arith.constant dense<0.000000e+00> : vector<4x16xf32>
    %266 = tpu.matmul %264, %265, %cst_224 {dimension_numbers = #tpu.dot_dimension_numbers<[1], [0], [0], [1], [0, 0, 1, 1], [], []>} : vector<4x4xbf16>, vector<4x16xbf16>, vector<4x16xf32> -> vector<4x16xf32>
    %267 = arith.addf %258, %266 : vector<4x16xf32>
    %c8_225 = arith.constant 8 : index
    %c0_226 = arith.constant 0 : index
    %c0_227 = arith.constant 0 : index
    %268 = vector.load %arg14[%c8_225, %c0_226, %c0_227] : memref<9x64x16xbf16, #tpu.memory_space<vmem>>, vector<1x64x16xbf16>
    %269 = vector.shape_cast %268 : vector<1x64x16xbf16> to vector<64x16xbf16>
    %270 = arith.truncf %194 : vector<4x64xf32> to vector<4x64xbf16>
    %cst_228 = arith.constant dense<0.000000e+00> : vector<4x16xf32>
    %271 = tpu.matmul %270, %269, %cst_228 {dimension_numbers = #tpu.dot_dimension_numbers<[1], [0], [0], [1], [0, 0, 1, 1], [], []>} : vector<4x64xbf16>, vector<64x16xbf16>, vector<4x16xf32> -> vector<4x16xf32>
    %c8_229 = arith.constant 8 : index
    %c0_230 = arith.constant 0 : index
    %c0_231 = arith.constant 0 : index
    %272 = vector.load %arg13[%c8_229, %c0_230, %c0_231] : memref<9x4x4xbf16, #tpu.memory_space<vmem>>, vector<1x4x4xbf16>
    %273 = vector.shape_cast %272 : vector<1x4x4xbf16> to vector<4x4xbf16>
    %274 = arith.truncf %271 : vector<4x16xf32> to vector<4x16xbf16>
    %cst_232 = arith.constant dense<0.000000e+00> : vector<4x16xf32>
    %275 = tpu.matmul %273, %274, %cst_232 {dimension_numbers = #tpu.dot_dimension_numbers<[1], [0], [0], [1], [0, 0, 1, 1], [], []>} : vector<4x4xbf16>, vector<4x16xbf16>, vector<4x16xf32> -> vector<4x16xf32>
    %276 = arith.addf %267, %275 : vector<4x16xf32>
    %c0_233 = arith.constant 0 : index
    %c0_234 = arith.constant 0 : index
    %277 = vector.load %arg15[%c0_233, %c0_234] : memref<4x1xf32, #tpu.memory_space<vmem>>, vector<4x1xf32>
    %278 = vector.broadcast %277 : vector<4x1xf32> to vector<4x16xf32>
    %279 = arith.addf %276, %278 : vector<4x16xf32>
    %cst_235 = arith.constant 0.000000e+00 : f32
    %280 = vector.broadcast %cst_235 : f32 to vector<4x16xf32>
    %281 = arith.maximumf %279, %280 : vector<4x16xf32>
    %c0_236 = arith.constant 0 : index
    %c0_237 = arith.constant 0 : index
    %282 = vector.load %arg16[%c0_236, %c0_237] : memref<32x4xbf16, #tpu.memory_space<vmem>>, vector<32x4xbf16>
    %283 = arith.truncf %281 : vector<4x16xf32> to vector<4x16xbf16>
    %cst_238 = arith.constant dense<0.000000e+00> : vector<32x16xf32>
    %284 = tpu.matmul %282, %283, %cst_238 {dimension_numbers = #tpu.dot_dimension_numbers<[1], [0], [0], [1], [0, 0, 1, 1], [], []>} : vector<32x4xbf16>, vector<4x16xbf16>, vector<32x16xf32> -> vector<32x16xf32>
    %c0_239 = arith.constant 0 : index
    %c0_240 = arith.constant 0 : index
    %285 = vector.load %arg17[%c0_239, %c0_240] : memref<32x1xf32, #tpu.memory_space<vmem>>, vector<32x1xf32>
    %286 = vector.broadcast %285 : vector<32x1xf32> to vector<32x16xf32>
    %287 = arith.addf %284, %286 : vector<32x16xf32>
    %cst_241 = arith.constant 0.000000e+00 : f32
    %288 = vector.broadcast %cst_241 : f32 to vector<32x16xf32>
    %289 = arith.maximumf %287, %288 : vector<32x16xf32>
    %c0_242 = arith.constant 0 : index
    %c0_243 = arith.constant 0 : index
    %290 = vector.load %arg18[%c0_242, %c0_243] : memref<4x32xbf16, #tpu.memory_space<vmem>>, vector<4x32xbf16>
    %291 = arith.truncf %289 : vector<32x16xf32> to vector<32x16xbf16>
    %cst_244 = arith.constant dense<0.000000e+00> : vector<4x16xf32>
    %292 = tpu.matmul %290, %291, %cst_244 {dimension_numbers = #tpu.dot_dimension_numbers<[1], [0], [0], [1], [0, 0, 1, 1], [], []>} : vector<4x32xbf16>, vector<32x16xbf16>, vector<4x16xf32> -> vector<4x16xf32>
    %c0_245 = arith.constant 0 : index
    %c0_246 = arith.constant 0 : index
    %293 = vector.load %arg19[%c0_245, %c0_246] : memref<4x1xf32, #tpu.memory_space<vmem>>, vector<4x1xf32>
    %294 = vector.broadcast %293 : vector<4x1xf32> to vector<4x16xf32>
    %295 = arith.addf %292, %294 : vector<4x16xf32>
    %cst_247 = arith.constant 0.000000e+00 : f32
    %296 = vector.broadcast %cst_247 : f32 to vector<4x16xf32>
    %297 = arith.maximumf %295, %296 : vector<4x16xf32>
    %cst_248 = arith.constant 0.000000e+00 : f32
    %298 = vector.broadcast %cst_248 : f32 to vector<4x16xf32>
    %c0_249 = arith.constant 0 : index
    %c0_250 = arith.constant 0 : index
    %c0_251 = arith.constant 0 : index
    %299 = vector.load %arg21[%c0_249, %c0_250, %c0_251] : memref<9x16x16xbf16, #tpu.memory_space<vmem>>, vector<1x16x16xbf16>
    %300 = vector.shape_cast %299 : vector<1x16x16xbf16> to vector<16x16xbf16>
    %301 = arith.truncf %297 : vector<4x16xf32> to vector<4x16xbf16>
    %cst_252 = arith.constant dense<0.000000e+00> : vector<4x16xf32>
    %302 = tpu.matmul %301, %300, %cst_252 {dimension_numbers = #tpu.dot_dimension_numbers<[1], [0], [0], [1], [0, 0, 1, 1], [], []>} : vector<4x16xbf16>, vector<16x16xbf16>, vector<4x16xf32> -> vector<4x16xf32>
    %c0_253 = arith.constant 0 : index
    %c0_254 = arith.constant 0 : index
    %c0_255 = arith.constant 0 : index
    %303 = vector.load %arg20[%c0_253, %c0_254, %c0_255] : memref<9x4x4xbf16, #tpu.memory_space<vmem>>, vector<1x4x4xbf16>
    %304 = vector.shape_cast %303 : vector<1x4x4xbf16> to vector<4x4xbf16>
    %305 = arith.truncf %302 : vector<4x16xf32> to vector<4x16xbf16>
    %cst_256 = arith.constant dense<0.000000e+00> : vector<4x16xf32>
    %306 = tpu.matmul %304, %305, %cst_256 {dimension_numbers = #tpu.dot_dimension_numbers<[1], [0], [0], [1], [0, 0, 1, 1], [], []>} : vector<4x4xbf16>, vector<4x16xbf16>, vector<4x16xf32> -> vector<4x16xf32>
    %307 = arith.addf %298, %306 : vector<4x16xf32>
    %c1_257 = arith.constant 1 : index
    %c0_258 = arith.constant 0 : index
    %c0_259 = arith.constant 0 : index
    %308 = vector.load %arg21[%c1_257, %c0_258, %c0_259] : memref<9x16x16xbf16, #tpu.memory_space<vmem>>, vector<1x16x16xbf16>
    %309 = vector.shape_cast %308 : vector<1x16x16xbf16> to vector<16x16xbf16>
    %310 = arith.truncf %297 : vector<4x16xf32> to vector<4x16xbf16>
    %cst_260 = arith.constant dense<0.000000e+00> : vector<4x16xf32>
    %311 = tpu.matmul %310, %309, %cst_260 {dimension_numbers = #tpu.dot_dimension_numbers<[1], [0], [0], [1], [0, 0, 1, 1], [], []>} : vector<4x16xbf16>, vector<16x16xbf16>, vector<4x16xf32> -> vector<4x16xf32>
    %c1_261 = arith.constant 1 : index
    %c0_262 = arith.constant 0 : index
    %c0_263 = arith.constant 0 : index
    %312 = vector.load %arg20[%c1_261, %c0_262, %c0_263] : memref<9x4x4xbf16, #tpu.memory_space<vmem>>, vector<1x4x4xbf16>
    %313 = vector.shape_cast %312 : vector<1x4x4xbf16> to vector<4x4xbf16>
    %314 = arith.truncf %311 : vector<4x16xf32> to vector<4x16xbf16>
    %cst_264 = arith.constant dense<0.000000e+00> : vector<4x16xf32>
    %315 = tpu.matmul %313, %314, %cst_264 {dimension_numbers = #tpu.dot_dimension_numbers<[1], [0], [0], [1], [0, 0, 1, 1], [], []>} : vector<4x4xbf16>, vector<4x16xbf16>, vector<4x16xf32> -> vector<4x16xf32>
    %316 = arith.addf %307, %315 : vector<4x16xf32>
    %c2_265 = arith.constant 2 : index
    %c0_266 = arith.constant 0 : index
    %c0_267 = arith.constant 0 : index
    %317 = vector.load %arg21[%c2_265, %c0_266, %c0_267] : memref<9x16x16xbf16, #tpu.memory_space<vmem>>, vector<1x16x16xbf16>
    %318 = vector.shape_cast %317 : vector<1x16x16xbf16> to vector<16x16xbf16>
    %319 = arith.truncf %297 : vector<4x16xf32> to vector<4x16xbf16>
    %cst_268 = arith.constant dense<0.000000e+00> : vector<4x16xf32>
    %320 = tpu.matmul %319, %318, %cst_268 {dimension_numbers = #tpu.dot_dimension_numbers<[1], [0], [0], [1], [0, 0, 1, 1], [], []>} : vector<4x16xbf16>, vector<16x16xbf16>, vector<4x16xf32> -> vector<4x16xf32>
    %c2_269 = arith.constant 2 : index
    %c0_270 = arith.constant 0 : index
    %c0_271 = arith.constant 0 : index
    %321 = vector.load %arg20[%c2_269, %c0_270, %c0_271] : memref<9x4x4xbf16, #tpu.memory_space<vmem>>, vector<1x4x4xbf16>
    %322 = vector.shape_cast %321 : vector<1x4x4xbf16> to vector<4x4xbf16>
    %323 = arith.truncf %320 : vector<4x16xf32> to vector<4x16xbf16>
    %cst_272 = arith.constant dense<0.000000e+00> : vector<4x16xf32>
    %324 = tpu.matmul %322, %323, %cst_272 {dimension_numbers = #tpu.dot_dimension_numbers<[1], [0], [0], [1], [0, 0, 1, 1], [], []>} : vector<4x4xbf16>, vector<4x16xbf16>, vector<4x16xf32> -> vector<4x16xf32>
    %325 = arith.addf %316, %324 : vector<4x16xf32>
    %c3_273 = arith.constant 3 : index
    %c0_274 = arith.constant 0 : index
    %c0_275 = arith.constant 0 : index
    %326 = vector.load %arg21[%c3_273, %c0_274, %c0_275] : memref<9x16x16xbf16, #tpu.memory_space<vmem>>, vector<1x16x16xbf16>
    %327 = vector.shape_cast %326 : vector<1x16x16xbf16> to vector<16x16xbf16>
    %328 = arith.truncf %297 : vector<4x16xf32> to vector<4x16xbf16>
    %cst_276 = arith.constant dense<0.000000e+00> : vector<4x16xf32>
    %329 = tpu.matmul %328, %327, %cst_276 {dimension_numbers = #tpu.dot_dimension_numbers<[1], [0], [0], [1], [0, 0, 1, 1], [], []>} : vector<4x16xbf16>, vector<16x16xbf16>, vector<4x16xf32> -> vector<4x16xf32>
    %c3_277 = arith.constant 3 : index
    %c0_278 = arith.constant 0 : index
    %c0_279 = arith.constant 0 : index
    %330 = vector.load %arg20[%c3_277, %c0_278, %c0_279] : memref<9x4x4xbf16, #tpu.memory_space<vmem>>, vector<1x4x4xbf16>
    %331 = vector.shape_cast %330 : vector<1x4x4xbf16> to vector<4x4xbf16>
    %332 = arith.truncf %329 : vector<4x16xf32> to vector<4x16xbf16>
    %cst_280 = arith.constant dense<0.000000e+00> : vector<4x16xf32>
    %333 = tpu.matmul %331, %332, %cst_280 {dimension_numbers = #tpu.dot_dimension_numbers<[1], [0], [0], [1], [0, 0, 1, 1], [], []>} : vector<4x4xbf16>, vector<4x16xbf16>, vector<4x16xf32> -> vector<4x16xf32>
    %334 = arith.addf %325, %333 : vector<4x16xf32>
    %c4_281 = arith.constant 4 : index
    %c0_282 = arith.constant 0 : index
    %c0_283 = arith.constant 0 : index
    %335 = vector.load %arg21[%c4_281, %c0_282, %c0_283] : memref<9x16x16xbf16, #tpu.memory_space<vmem>>, vector<1x16x16xbf16>
    %336 = vector.shape_cast %335 : vector<1x16x16xbf16> to vector<16x16xbf16>
    %337 = arith.truncf %297 : vector<4x16xf32> to vector<4x16xbf16>
    %cst_284 = arith.constant dense<0.000000e+00> : vector<4x16xf32>
    %338 = tpu.matmul %337, %336, %cst_284 {dimension_numbers = #tpu.dot_dimension_numbers<[1], [0], [0], [1], [0, 0, 1, 1], [], []>} : vector<4x16xbf16>, vector<16x16xbf16>, vector<4x16xf32> -> vector<4x16xf32>
    %c4_285 = arith.constant 4 : index
    %c0_286 = arith.constant 0 : index
    %c0_287 = arith.constant 0 : index
    %339 = vector.load %arg20[%c4_285, %c0_286, %c0_287] : memref<9x4x4xbf16, #tpu.memory_space<vmem>>, vector<1x4x4xbf16>
    %340 = vector.shape_cast %339 : vector<1x4x4xbf16> to vector<4x4xbf16>
    %341 = arith.truncf %338 : vector<4x16xf32> to vector<4x16xbf16>
    %cst_288 = arith.constant dense<0.000000e+00> : vector<4x16xf32>
    %342 = tpu.matmul %340, %341, %cst_288 {dimension_numbers = #tpu.dot_dimension_numbers<[1], [0], [0], [1], [0, 0, 1, 1], [], []>} : vector<4x4xbf16>, vector<4x16xbf16>, vector<4x16xf32> -> vector<4x16xf32>
    %343 = arith.addf %334, %342 : vector<4x16xf32>
    %c5_289 = arith.constant 5 : index
    %c0_290 = arith.constant 0 : index
    %c0_291 = arith.constant 0 : index
    %344 = vector.load %arg21[%c5_289, %c0_290, %c0_291] : memref<9x16x16xbf16, #tpu.memory_space<vmem>>, vector<1x16x16xbf16>
    %345 = vector.shape_cast %344 : vector<1x16x16xbf16> to vector<16x16xbf16>
    %346 = arith.truncf %297 : vector<4x16xf32> to vector<4x16xbf16>
    %cst_292 = arith.constant dense<0.000000e+00> : vector<4x16xf32>
    %347 = tpu.matmul %346, %345, %cst_292 {dimension_numbers = #tpu.dot_dimension_numbers<[1], [0], [0], [1], [0, 0, 1, 1], [], []>} : vector<4x16xbf16>, vector<16x16xbf16>, vector<4x16xf32> -> vector<4x16xf32>
    %c5_293 = arith.constant 5 : index
    %c0_294 = arith.constant 0 : index
    %c0_295 = arith.constant 0 : index
    %348 = vector.load %arg20[%c5_293, %c0_294, %c0_295] : memref<9x4x4xbf16, #tpu.memory_space<vmem>>, vector<1x4x4xbf16>
    %349 = vector.shape_cast %348 : vector<1x4x4xbf16> to vector<4x4xbf16>
    %350 = arith.truncf %347 : vector<4x16xf32> to vector<4x16xbf16>
    %cst_296 = arith.constant dense<0.000000e+00> : vector<4x16xf32>
    %351 = tpu.matmul %349, %350, %cst_296 {dimension_numbers = #tpu.dot_dimension_numbers<[1], [0], [0], [1], [0, 0, 1, 1], [], []>} : vector<4x4xbf16>, vector<4x16xbf16>, vector<4x16xf32> -> vector<4x16xf32>
    %352 = arith.addf %343, %351 : vector<4x16xf32>
    %c6_297 = arith.constant 6 : index
    %c0_298 = arith.constant 0 : index
    %c0_299 = arith.constant 0 : index
    %353 = vector.load %arg21[%c6_297, %c0_298, %c0_299] : memref<9x16x16xbf16, #tpu.memory_space<vmem>>, vector<1x16x16xbf16>
    %354 = vector.shape_cast %353 : vector<1x16x16xbf16> to vector<16x16xbf16>
    %355 = arith.truncf %297 : vector<4x16xf32> to vector<4x16xbf16>
    %cst_300 = arith.constant dense<0.000000e+00> : vector<4x16xf32>
    %356 = tpu.matmul %355, %354, %cst_300 {dimension_numbers = #tpu.dot_dimension_numbers<[1], [0], [0], [1], [0, 0, 1, 1], [], []>} : vector<4x16xbf16>, vector<16x16xbf16>, vector<4x16xf32> -> vector<4x16xf32>
    %c6_301 = arith.constant 6 : index
    %c0_302 = arith.constant 0 : index
    %c0_303 = arith.constant 0 : index
    %357 = vector.load %arg20[%c6_301, %c0_302, %c0_303] : memref<9x4x4xbf16, #tpu.memory_space<vmem>>, vector<1x4x4xbf16>
    %358 = vector.shape_cast %357 : vector<1x4x4xbf16> to vector<4x4xbf16>
    %359 = arith.truncf %356 : vector<4x16xf32> to vector<4x16xbf16>
    %cst_304 = arith.constant dense<0.000000e+00> : vector<4x16xf32>
    %360 = tpu.matmul %358, %359, %cst_304 {dimension_numbers = #tpu.dot_dimension_numbers<[1], [0], [0], [1], [0, 0, 1, 1], [], []>} : vector<4x4xbf16>, vector<4x16xbf16>, vector<4x16xf32> -> vector<4x16xf32>
    %361 = arith.addf %352, %360 : vector<4x16xf32>
    %c7_305 = arith.constant 7 : index
    %c0_306 = arith.constant 0 : index
    %c0_307 = arith.constant 0 : index
    %362 = vector.load %arg21[%c7_305, %c0_306, %c0_307] : memref<9x16x16xbf16, #tpu.memory_space<vmem>>, vector<1x16x16xbf16>
    %363 = vector.shape_cast %362 : vector<1x16x16xbf16> to vector<16x16xbf16>
    %364 = arith.truncf %297 : vector<4x16xf32> to vector<4x16xbf16>
    %cst_308 = arith.constant dense<0.000000e+00> : vector<4x16xf32>
    %365 = tpu.matmul %364, %363, %cst_308 {dimension_numbers = #tpu.dot_dimension_numbers<[1], [0], [0], [1], [0, 0, 1, 1], [], []>} : vector<4x16xbf16>, vector<16x16xbf16>, vector<4x16xf32> -> vector<4x16xf32>
    %c7_309 = arith.constant 7 : index
    %c0_310 = arith.constant 0 : index
    %c0_311 = arith.constant 0 : index
    %366 = vector.load %arg20[%c7_309, %c0_310, %c0_311] : memref<9x4x4xbf16, #tpu.memory_space<vmem>>, vector<1x4x4xbf16>
    %367 = vector.shape_cast %366 : vector<1x4x4xbf16> to vector<4x4xbf16>
    %368 = arith.truncf %365 : vector<4x16xf32> to vector<4x16xbf16>
    %cst_312 = arith.constant dense<0.000000e+00> : vector<4x16xf32>
    %369 = tpu.matmul %367, %368, %cst_312 {dimension_numbers = #tpu.dot_dimension_numbers<[1], [0], [0], [1], [0, 0, 1, 1], [], []>} : vector<4x4xbf16>, vector<4x16xbf16>, vector<4x16xf32> -> vector<4x16xf32>
    %370 = arith.addf %361, %369 : vector<4x16xf32>
    %c8_313 = arith.constant 8 : index
    %c0_314 = arith.constant 0 : index
    %c0_315 = arith.constant 0 : index
    %371 = vector.load %arg21[%c8_313, %c0_314, %c0_315] : memref<9x16x16xbf16, #tpu.memory_space<vmem>>, vector<1x16x16xbf16>
    %372 = vector.shape_cast %371 : vector<1x16x16xbf16> to vector<16x16xbf16>
    %373 = arith.truncf %297 : vector<4x16xf32> to vector<4x16xbf16>
    %cst_316 = arith.constant dense<0.000000e+00> : vector<4x16xf32>
    %374 = tpu.matmul %373, %372, %cst_316 {dimension_numbers = #tpu.dot_dimension_numbers<[1], [0], [0], [1], [0, 0, 1, 1], [], []>} : vector<4x16xbf16>, vector<16x16xbf16>, vector<4x16xf32> -> vector<4x16xf32>
    %c8_317 = arith.constant 8 : index
    %c0_318 = arith.constant 0 : index
    %c0_319 = arith.constant 0 : index
    %375 = vector.load %arg20[%c8_317, %c0_318, %c0_319] : memref<9x4x4xbf16, #tpu.memory_space<vmem>>, vector<1x4x4xbf16>
    %376 = vector.shape_cast %375 : vector<1x4x4xbf16> to vector<4x4xbf16>
    %377 = arith.truncf %374 : vector<4x16xf32> to vector<4x16xbf16>
    %cst_320 = arith.constant dense<0.000000e+00> : vector<4x16xf32>
    %378 = tpu.matmul %376, %377, %cst_320 {dimension_numbers = #tpu.dot_dimension_numbers<[1], [0], [0], [1], [0, 0, 1, 1], [], []>} : vector<4x4xbf16>, vector<4x16xbf16>, vector<4x16xf32> -> vector<4x16xf32>
    %379 = arith.addf %370, %378 : vector<4x16xf32>
    %c0_321 = arith.constant 0 : index
    %c0_322 = arith.constant 0 : index
    %380 = vector.load %arg22[%c0_321, %c0_322] : memref<4x1xf32, #tpu.memory_space<vmem>>, vector<4x1xf32>
    %381 = vector.broadcast %380 : vector<4x1xf32> to vector<4x16xf32>
    %382 = arith.addf %379, %381 : vector<4x16xf32>
    %cst_323 = arith.constant 0.000000e+00 : f32
    %383 = vector.broadcast %cst_323 : f32 to vector<4x16xf32>
    %384 = arith.maximumf %382, %383 : vector<4x16xf32>
    %c0_324 = arith.constant 0 : index
    %c0_325 = arith.constant 0 : index
    %385 = vector.load %arg23[%c0_324, %c0_325] : memref<32x4xbf16, #tpu.memory_space<vmem>>, vector<32x4xbf16>
    %386 = arith.truncf %384 : vector<4x16xf32> to vector<4x16xbf16>
    %cst_326 = arith.constant dense<0.000000e+00> : vector<32x16xf32>
    %387 = tpu.matmul %385, %386, %cst_326 {dimension_numbers = #tpu.dot_dimension_numbers<[1], [0], [0], [1], [0, 0, 1, 1], [], []>} : vector<32x4xbf16>, vector<4x16xbf16>, vector<32x16xf32> -> vector<32x16xf32>
    %c0_327 = arith.constant 0 : index
    %c0_328 = arith.constant 0 : index
    %388 = vector.load %arg24[%c0_327, %c0_328] : memref<32x1xf32, #tpu.memory_space<vmem>>, vector<32x1xf32>
    %389 = vector.broadcast %388 : vector<32x1xf32> to vector<32x16xf32>
    %390 = arith.addf %387, %389 : vector<32x16xf32>
    %cst_329 = arith.constant 0.000000e+00 : f32
    %391 = vector.broadcast %cst_329 : f32 to vector<32x16xf32>
    %392 = arith.maximumf %390, %391 : vector<32x16xf32>
    %c0_330 = arith.constant 0 : index
    %c0_331 = arith.constant 0 : index
    %393 = vector.load %arg25[%c0_330, %c0_331] : memref<4x32xbf16, #tpu.memory_space<vmem>>, vector<4x32xbf16>
    %394 = arith.truncf %392 : vector<32x16xf32> to vector<32x16xbf16>
    %cst_332 = arith.constant dense<0.000000e+00> : vector<4x16xf32>
    %395 = tpu.matmul %393, %394, %cst_332 {dimension_numbers = #tpu.dot_dimension_numbers<[1], [0], [0], [1], [0, 0, 1, 1], [], []>} : vector<4x32xbf16>, vector<32x16xbf16>, vector<4x16xf32> -> vector<4x16xf32>
    %c0_333 = arith.constant 0 : index
    %c0_334 = arith.constant 0 : index
    %396 = vector.load %arg26[%c0_333, %c0_334] : memref<4x1xf32, #tpu.memory_space<vmem>>, vector<4x1xf32>
    %397 = vector.broadcast %396 : vector<4x1xf32> to vector<4x16xf32>
    %398 = arith.addf %395, %397 : vector<4x16xf32>
    %cst_335 = arith.constant 0.000000e+00 : f32
    %399 = vector.broadcast %cst_335 : f32 to vector<4x16xf32>
    %400 = arith.maximumf %398, %399 : vector<4x16xf32>
    %cst_336 = arith.constant 0.000000e+00 : f32
    %401 = vector.broadcast %cst_336 : f32 to vector<4x16xf32>
    %c0_337 = arith.constant 0 : index
    %c0_338 = arith.constant 0 : index
    %c0_339 = arith.constant 0 : index
    %402 = vector.load %arg28[%c0_337, %c0_338, %c0_339] : memref<9x16x16xbf16, #tpu.memory_space<vmem>>, vector<1x16x16xbf16>
    %403 = vector.shape_cast %402 : vector<1x16x16xbf16> to vector<16x16xbf16>
    %404 = arith.truncf %400 : vector<4x16xf32> to vector<4x16xbf16>
    %cst_340 = arith.constant dense<0.000000e+00> : vector<4x16xf32>
    %405 = tpu.matmul %404, %403, %cst_340 {dimension_numbers = #tpu.dot_dimension_numbers<[1], [0], [0], [1], [0, 0, 1, 1], [], []>} : vector<4x16xbf16>, vector<16x16xbf16>, vector<4x16xf32> -> vector<4x16xf32>
    %c0_341 = arith.constant 0 : index
    %c0_342 = arith.constant 0 : index
    %c0_343 = arith.constant 0 : index
    %406 = vector.load %arg27[%c0_341, %c0_342, %c0_343] : memref<9x4x4xbf16, #tpu.memory_space<vmem>>, vector<1x4x4xbf16>
    %407 = vector.shape_cast %406 : vector<1x4x4xbf16> to vector<4x4xbf16>
    %408 = arith.truncf %405 : vector<4x16xf32> to vector<4x16xbf16>
    %cst_344 = arith.constant dense<0.000000e+00> : vector<4x16xf32>
    %409 = tpu.matmul %407, %408, %cst_344 {dimension_numbers = #tpu.dot_dimension_numbers<[1], [0], [0], [1], [0, 0, 1, 1], [], []>} : vector<4x4xbf16>, vector<4x16xbf16>, vector<4x16xf32> -> vector<4x16xf32>
    %410 = arith.addf %401, %409 : vector<4x16xf32>
    %c1_345 = arith.constant 1 : index
    %c0_346 = arith.constant 0 : index
    %c0_347 = arith.constant 0 : index
    %411 = vector.load %arg28[%c1_345, %c0_346, %c0_347] : memref<9x16x16xbf16, #tpu.memory_space<vmem>>, vector<1x16x16xbf16>
    %412 = vector.shape_cast %411 : vector<1x16x16xbf16> to vector<16x16xbf16>
    %413 = arith.truncf %400 : vector<4x16xf32> to vector<4x16xbf16>
    %cst_348 = arith.constant dense<0.000000e+00> : vector<4x16xf32>
    %414 = tpu.matmul %413, %412, %cst_348 {dimension_numbers = #tpu.dot_dimension_numbers<[1], [0], [0], [1], [0, 0, 1, 1], [], []>} : vector<4x16xbf16>, vector<16x16xbf16>, vector<4x16xf32> -> vector<4x16xf32>
    %c1_349 = arith.constant 1 : index
    %c0_350 = arith.constant 0 : index
    %c0_351 = arith.constant 0 : index
    %415 = vector.load %arg27[%c1_349, %c0_350, %c0_351] : memref<9x4x4xbf16, #tpu.memory_space<vmem>>, vector<1x4x4xbf16>
    %416 = vector.shape_cast %415 : vector<1x4x4xbf16> to vector<4x4xbf16>
    %417 = arith.truncf %414 : vector<4x16xf32> to vector<4x16xbf16>
    %cst_352 = arith.constant dense<0.000000e+00> : vector<4x16xf32>
    %418 = tpu.matmul %416, %417, %cst_352 {dimension_numbers = #tpu.dot_dimension_numbers<[1], [0], [0], [1], [0, 0, 1, 1], [], []>} : vector<4x4xbf16>, vector<4x16xbf16>, vector<4x16xf32> -> vector<4x16xf32>
    %419 = arith.addf %410, %418 : vector<4x16xf32>
    %c2_353 = arith.constant 2 : index
    %c0_354 = arith.constant 0 : index
    %c0_355 = arith.constant 0 : index
    %420 = vector.load %arg28[%c2_353, %c0_354, %c0_355] : memref<9x16x16xbf16, #tpu.memory_space<vmem>>, vector<1x16x16xbf16>
    %421 = vector.shape_cast %420 : vector<1x16x16xbf16> to vector<16x16xbf16>
    %422 = arith.truncf %400 : vector<4x16xf32> to vector<4x16xbf16>
    %cst_356 = arith.constant dense<0.000000e+00> : vector<4x16xf32>
    %423 = tpu.matmul %422, %421, %cst_356 {dimension_numbers = #tpu.dot_dimension_numbers<[1], [0], [0], [1], [0, 0, 1, 1], [], []>} : vector<4x16xbf16>, vector<16x16xbf16>, vector<4x16xf32> -> vector<4x16xf32>
    %c2_357 = arith.constant 2 : index
    %c0_358 = arith.constant 0 : index
    %c0_359 = arith.constant 0 : index
    %424 = vector.load %arg27[%c2_357, %c0_358, %c0_359] : memref<9x4x4xbf16, #tpu.memory_space<vmem>>, vector<1x4x4xbf16>
    %425 = vector.shape_cast %424 : vector<1x4x4xbf16> to vector<4x4xbf16>
    %426 = arith.truncf %423 : vector<4x16xf32> to vector<4x16xbf16>
    %cst_360 = arith.constant dense<0.000000e+00> : vector<4x16xf32>
    %427 = tpu.matmul %425, %426, %cst_360 {dimension_numbers = #tpu.dot_dimension_numbers<[1], [0], [0], [1], [0, 0, 1, 1], [], []>} : vector<4x4xbf16>, vector<4x16xbf16>, vector<4x16xf32> -> vector<4x16xf32>
    %428 = arith.addf %419, %427 : vector<4x16xf32>
    %c3_361 = arith.constant 3 : index
    %c0_362 = arith.constant 0 : index
    %c0_363 = arith.constant 0 : index
    %429 = vector.load %arg28[%c3_361, %c0_362, %c0_363] : memref<9x16x16xbf16, #tpu.memory_space<vmem>>, vector<1x16x16xbf16>
    %430 = vector.shape_cast %429 : vector<1x16x16xbf16> to vector<16x16xbf16>
    %431 = arith.truncf %400 : vector<4x16xf32> to vector<4x16xbf16>
    %cst_364 = arith.constant dense<0.000000e+00> : vector<4x16xf32>
    %432 = tpu.matmul %431, %430, %cst_364 {dimension_numbers = #tpu.dot_dimension_numbers<[1], [0], [0], [1], [0, 0, 1, 1], [], []>} : vector<4x16xbf16>, vector<16x16xbf16>, vector<4x16xf32> -> vector<4x16xf32>
    %c3_365 = arith.constant 3 : index
    %c0_366 = arith.constant 0 : index
    %c0_367 = arith.constant 0 : index
    %433 = vector.load %arg27[%c3_365, %c0_366, %c0_367] : memref<9x4x4xbf16, #tpu.memory_space<vmem>>, vector<1x4x4xbf16>
    %434 = vector.shape_cast %433 : vector<1x4x4xbf16> to vector<4x4xbf16>
    %435 = arith.truncf %432 : vector<4x16xf32> to vector<4x16xbf16>
    %cst_368 = arith.constant dense<0.000000e+00> : vector<4x16xf32>
    %436 = tpu.matmul %434, %435, %cst_368 {dimension_numbers = #tpu.dot_dimension_numbers<[1], [0], [0], [1], [0, 0, 1, 1], [], []>} : vector<4x4xbf16>, vector<4x16xbf16>, vector<4x16xf32> -> vector<4x16xf32>
    %437 = arith.addf %428, %436 : vector<4x16xf32>
    %c4_369 = arith.constant 4 : index
    %c0_370 = arith.constant 0 : index
    %c0_371 = arith.constant 0 : index
    %438 = vector.load %arg28[%c4_369, %c0_370, %c0_371] : memref<9x16x16xbf16, #tpu.memory_space<vmem>>, vector<1x16x16xbf16>
    %439 = vector.shape_cast %438 : vector<1x16x16xbf16> to vector<16x16xbf16>
    %440 = arith.truncf %400 : vector<4x16xf32> to vector<4x16xbf16>
    %cst_372 = arith.constant dense<0.000000e+00> : vector<4x16xf32>
    %441 = tpu.matmul %440, %439, %cst_372 {dimension_numbers = #tpu.dot_dimension_numbers<[1], [0], [0], [1], [0, 0, 1, 1], [], []>} : vector<4x16xbf16>, vector<16x16xbf16>, vector<4x16xf32> -> vector<4x16xf32>
    %c4_373 = arith.constant 4 : index
    %c0_374 = arith.constant 0 : index
    %c0_375 = arith.constant 0 : index
    %442 = vector.load %arg27[%c4_373, %c0_374, %c0_375] : memref<9x4x4xbf16, #tpu.memory_space<vmem>>, vector<1x4x4xbf16>
    %443 = vector.shape_cast %442 : vector<1x4x4xbf16> to vector<4x4xbf16>
    %444 = arith.truncf %441 : vector<4x16xf32> to vector<4x16xbf16>
    %cst_376 = arith.constant dense<0.000000e+00> : vector<4x16xf32>
    %445 = tpu.matmul %443, %444, %cst_376 {dimension_numbers = #tpu.dot_dimension_numbers<[1], [0], [0], [1], [0, 0, 1, 1], [], []>} : vector<4x4xbf16>, vector<4x16xbf16>, vector<4x16xf32> -> vector<4x16xf32>
    %446 = arith.addf %437, %445 : vector<4x16xf32>
    %c5_377 = arith.constant 5 : index
    %c0_378 = arith.constant 0 : index
    %c0_379 = arith.constant 0 : index
    %447 = vector.load %arg28[%c5_377, %c0_378, %c0_379] : memref<9x16x16xbf16, #tpu.memory_space<vmem>>, vector<1x16x16xbf16>
    %448 = vector.shape_cast %447 : vector<1x16x16xbf16> to vector<16x16xbf16>
    %449 = arith.truncf %400 : vector<4x16xf32> to vector<4x16xbf16>
    %cst_380 = arith.constant dense<0.000000e+00> : vector<4x16xf32>
    %450 = tpu.matmul %449, %448, %cst_380 {dimension_numbers = #tpu.dot_dimension_numbers<[1], [0], [0], [1], [0, 0, 1, 1], [], []>} : vector<4x16xbf16>, vector<16x16xbf16>, vector<4x16xf32> -> vector<4x16xf32>
    %c5_381 = arith.constant 5 : index
    %c0_382 = arith.constant 0 : index
    %c0_383 = arith.constant 0 : index
    %451 = vector.load %arg27[%c5_381, %c0_382, %c0_383] : memref<9x4x4xbf16, #tpu.memory_space<vmem>>, vector<1x4x4xbf16>
    %452 = vector.shape_cast %451 : vector<1x4x4xbf16> to vector<4x4xbf16>
    %453 = arith.truncf %450 : vector<4x16xf32> to vector<4x16xbf16>
    %cst_384 = arith.constant dense<0.000000e+00> : vector<4x16xf32>
    %454 = tpu.matmul %452, %453, %cst_384 {dimension_numbers = #tpu.dot_dimension_numbers<[1], [0], [0], [1], [0, 0, 1, 1], [], []>} : vector<4x4xbf16>, vector<4x16xbf16>, vector<4x16xf32> -> vector<4x16xf32>
    %455 = arith.addf %446, %454 : vector<4x16xf32>
    %c6_385 = arith.constant 6 : index
    %c0_386 = arith.constant 0 : index
    %c0_387 = arith.constant 0 : index
    %456 = vector.load %arg28[%c6_385, %c0_386, %c0_387] : memref<9x16x16xbf16, #tpu.memory_space<vmem>>, vector<1x16x16xbf16>
    %457 = vector.shape_cast %456 : vector<1x16x16xbf16> to vector<16x16xbf16>
    %458 = arith.truncf %400 : vector<4x16xf32> to vector<4x16xbf16>
    %cst_388 = arith.constant dense<0.000000e+00> : vector<4x16xf32>
    %459 = tpu.matmul %458, %457, %cst_388 {dimension_numbers = #tpu.dot_dimension_numbers<[1], [0], [0], [1], [0, 0, 1, 1], [], []>} : vector<4x16xbf16>, vector<16x16xbf16>, vector<4x16xf32> -> vector<4x16xf32>
    %c6_389 = arith.constant 6 : index
    %c0_390 = arith.constant 0 : index
    %c0_391 = arith.constant 0 : index
    %460 = vector.load %arg27[%c6_389, %c0_390, %c0_391] : memref<9x4x4xbf16, #tpu.memory_space<vmem>>, vector<1x4x4xbf16>
    %461 = vector.shape_cast %460 : vector<1x4x4xbf16> to vector<4x4xbf16>
    %462 = arith.truncf %459 : vector<4x16xf32> to vector<4x16xbf16>
    %cst_392 = arith.constant dense<0.000000e+00> : vector<4x16xf32>
    %463 = tpu.matmul %461, %462, %cst_392 {dimension_numbers = #tpu.dot_dimension_numbers<[1], [0], [0], [1], [0, 0, 1, 1], [], []>} : vector<4x4xbf16>, vector<4x16xbf16>, vector<4x16xf32> -> vector<4x16xf32>
    %464 = arith.addf %455, %463 : vector<4x16xf32>
    %c7_393 = arith.constant 7 : index
    %c0_394 = arith.constant 0 : index
    %c0_395 = arith.constant 0 : index
    %465 = vector.load %arg28[%c7_393, %c0_394, %c0_395] : memref<9x16x16xbf16, #tpu.memory_space<vmem>>, vector<1x16x16xbf16>
    %466 = vector.shape_cast %465 : vector<1x16x16xbf16> to vector<16x16xbf16>
    %467 = arith.truncf %400 : vector<4x16xf32> to vector<4x16xbf16>
    %cst_396 = arith.constant dense<0.000000e+00> : vector<4x16xf32>
    %468 = tpu.matmul %467, %466, %cst_396 {dimension_numbers = #tpu.dot_dimension_numbers<[1], [0], [0], [1], [0, 0, 1, 1], [], []>} : vector<4x16xbf16>, vector<16x16xbf16>, vector<4x16xf32> -> vector<4x16xf32>
    %c7_397 = arith.constant 7 : index
    %c0_398 = arith.constant 0 : index
    %c0_399 = arith.constant 0 : index
    %469 = vector.load %arg27[%c7_397, %c0_398, %c0_399] : memref<9x4x4xbf16, #tpu.memory_space<vmem>>, vector<1x4x4xbf16>
    %470 = vector.shape_cast %469 : vector<1x4x4xbf16> to vector<4x4xbf16>
    %471 = arith.truncf %468 : vector<4x16xf32> to vector<4x16xbf16>
    %cst_400 = arith.constant dense<0.000000e+00> : vector<4x16xf32>
    %472 = tpu.matmul %470, %471, %cst_400 {dimension_numbers = #tpu.dot_dimension_numbers<[1], [0], [0], [1], [0, 0, 1, 1], [], []>} : vector<4x4xbf16>, vector<4x16xbf16>, vector<4x16xf32> -> vector<4x16xf32>
    %473 = arith.addf %464, %472 : vector<4x16xf32>
    %c8_401 = arith.constant 8 : index
    %c0_402 = arith.constant 0 : index
    %c0_403 = arith.constant 0 : index
    %474 = vector.load %arg28[%c8_401, %c0_402, %c0_403] : memref<9x16x16xbf16, #tpu.memory_space<vmem>>, vector<1x16x16xbf16>
    %475 = vector.shape_cast %474 : vector<1x16x16xbf16> to vector<16x16xbf16>
    %476 = arith.truncf %400 : vector<4x16xf32> to vector<4x16xbf16>
    %cst_404 = arith.constant dense<0.000000e+00> : vector<4x16xf32>
    %477 = tpu.matmul %476, %475, %cst_404 {dimension_numbers = #tpu.dot_dimension_numbers<[1], [0], [0], [1], [0, 0, 1, 1], [], []>} : vector<4x16xbf16>, vector<16x16xbf16>, vector<4x16xf32> -> vector<4x16xf32>
    %c8_405 = arith.constant 8 : index
    %c0_406 = arith.constant 0 : index
    %c0_407 = arith.constant 0 : index
    %478 = vector.load %arg27[%c8_405, %c0_406, %c0_407] : memref<9x4x4xbf16, #tpu.memory_space<vmem>>, vector<1x4x4xbf16>
    %479 = vector.shape_cast %478 : vector<1x4x4xbf16> to vector<4x4xbf16>
    %480 = arith.truncf %477 : vector<4x16xf32> to vector<4x16xbf16>
    %cst_408 = arith.constant dense<0.000000e+00> : vector<4x16xf32>
    %481 = tpu.matmul %479, %480, %cst_408 {dimension_numbers = #tpu.dot_dimension_numbers<[1], [0], [0], [1], [0, 0, 1, 1], [], []>} : vector<4x4xbf16>, vector<4x16xbf16>, vector<4x16xf32> -> vector<4x16xf32>
    %482 = arith.addf %473, %481 : vector<4x16xf32>
    %c0_409 = arith.constant 0 : index
    %c0_410 = arith.constant 0 : index
    %483 = vector.load %arg29[%c0_409, %c0_410] : memref<4x1xf32, #tpu.memory_space<vmem>>, vector<4x1xf32>
    %484 = vector.broadcast %483 : vector<4x1xf32> to vector<4x16xf32>
    %485 = arith.addf %482, %484 : vector<4x16xf32>
    %cst_411 = arith.constant 0.000000e+00 : f32
    %486 = vector.broadcast %cst_411 : f32 to vector<4x16xf32>
    %487 = arith.maximumf %485, %486 : vector<4x16xf32>
    %c0_412 = arith.constant 0 : index
    %c0_413 = arith.constant 0 : index
    %488 = vector.load %arg30[%c0_412, %c0_413] : memref<32x4xbf16, #tpu.memory_space<vmem>>, vector<32x4xbf16>
    %489 = arith.truncf %487 : vector<4x16xf32> to vector<4x16xbf16>
    %cst_414 = arith.constant dense<0.000000e+00> : vector<32x16xf32>
    %490 = tpu.matmul %488, %489, %cst_414 {dimension_numbers = #tpu.dot_dimension_numbers<[1], [0], [0], [1], [0, 0, 1, 1], [], []>} : vector<32x4xbf16>, vector<4x16xbf16>, vector<32x16xf32> -> vector<32x16xf32>
    %c0_415 = arith.constant 0 : index
    %c0_416 = arith.constant 0 : index
    %491 = vector.load %arg31[%c0_415, %c0_416] : memref<32x1xf32, #tpu.memory_space<vmem>>, vector<32x1xf32>
    %492 = vector.broadcast %491 : vector<32x1xf32> to vector<32x16xf32>
    %493 = arith.addf %490, %492 : vector<32x16xf32>
    %cst_417 = arith.constant 0.000000e+00 : f32
    %494 = vector.broadcast %cst_417 : f32 to vector<32x16xf32>
    %495 = arith.maximumf %493, %494 : vector<32x16xf32>
    %c0_418 = arith.constant 0 : index
    %c0_419 = arith.constant 0 : index
    %496 = vector.load %arg32[%c0_418, %c0_419] : memref<4x32xbf16, #tpu.memory_space<vmem>>, vector<4x32xbf16>
    %497 = arith.truncf %495 : vector<32x16xf32> to vector<32x16xbf16>
    %cst_420 = arith.constant dense<0.000000e+00> : vector<4x16xf32>
    %498 = tpu.matmul %496, %497, %cst_420 {dimension_numbers = #tpu.dot_dimension_numbers<[1], [0], [0], [1], [0, 0, 1, 1], [], []>} : vector<4x32xbf16>, vector<32x16xbf16>, vector<4x16xf32> -> vector<4x16xf32>
    %c0_421 = arith.constant 0 : index
    %c0_422 = arith.constant 0 : index
    %499 = vector.load %arg33[%c0_421, %c0_422] : memref<4x1xf32, #tpu.memory_space<vmem>>, vector<4x1xf32>
    %500 = vector.broadcast %499 : vector<4x1xf32> to vector<4x16xf32>
    %501 = arith.addf %498, %500 : vector<4x16xf32>
    %cst_423 = arith.constant 0.000000e+00 : f32
    %502 = vector.broadcast %cst_423 : f32 to vector<4x16xf32>
    %503 = arith.maximumf %501, %502 : vector<4x16xf32>
    %cst_424 = arith.constant 0.000000e+00 : f32
    %504 = vector.broadcast %cst_424 : f32 to vector<4x4xf32>
    %c0_425 = arith.constant 0 : index
    %c0_426 = arith.constant 0 : index
    %c0_427 = arith.constant 0 : index
    %505 = vector.load %arg35[%c0_425, %c0_426, %c0_427] : memref<9x16x4xbf16, #tpu.memory_space<vmem>>, vector<1x16x4xbf16>
    %506 = vector.shape_cast %505 : vector<1x16x4xbf16> to vector<16x4xbf16>
    %507 = arith.truncf %503 : vector<4x16xf32> to vector<4x16xbf16>
    %cst_428 = arith.constant dense<0.000000e+00> : vector<4x4xf32>
    %508 = tpu.matmul %507, %506, %cst_428 {dimension_numbers = #tpu.dot_dimension_numbers<[1], [0], [0], [1], [0, 0, 1, 1], [], []>} : vector<4x16xbf16>, vector<16x4xbf16>, vector<4x4xf32> -> vector<4x4xf32>
    %c0_429 = arith.constant 0 : index
    %c0_430 = arith.constant 0 : index
    %c0_431 = arith.constant 0 : index
    %509 = vector.load %arg34[%c0_429, %c0_430, %c0_431] : memref<9x4x4xbf16, #tpu.memory_space<vmem>>, vector<1x4x4xbf16>
    %510 = vector.shape_cast %509 : vector<1x4x4xbf16> to vector<4x4xbf16>
    %511 = arith.truncf %508 : vector<4x4xf32> to vector<4x4xbf16>
    %cst_432 = arith.constant dense<0.000000e+00> : vector<4x4xf32>
    %512 = tpu.matmul %510, %511, %cst_432 {dimension_numbers = #tpu.dot_dimension_numbers<[1], [0], [0], [1], [0, 0, 1, 1], [], []>} : vector<4x4xbf16>, vector<4x4xbf16>, vector<4x4xf32> -> vector<4x4xf32>
    %513 = arith.addf %504, %512 : vector<4x4xf32>
    %c1_433 = arith.constant 1 : index
    %c0_434 = arith.constant 0 : index
    %c0_435 = arith.constant 0 : index
    %514 = vector.load %arg35[%c1_433, %c0_434, %c0_435] : memref<9x16x4xbf16, #tpu.memory_space<vmem>>, vector<1x16x4xbf16>
    %515 = vector.shape_cast %514 : vector<1x16x4xbf16> to vector<16x4xbf16>
    %516 = arith.truncf %503 : vector<4x16xf32> to vector<4x16xbf16>
    %cst_436 = arith.constant dense<0.000000e+00> : vector<4x4xf32>
    %517 = tpu.matmul %516, %515, %cst_436 {dimension_numbers = #tpu.dot_dimension_numbers<[1], [0], [0], [1], [0, 0, 1, 1], [], []>} : vector<4x16xbf16>, vector<16x4xbf16>, vector<4x4xf32> -> vector<4x4xf32>
    %c1_437 = arith.constant 1 : index
    %c0_438 = arith.constant 0 : index
    %c0_439 = arith.constant 0 : index
    %518 = vector.load %arg34[%c1_437, %c0_438, %c0_439] : memref<9x4x4xbf16, #tpu.memory_space<vmem>>, vector<1x4x4xbf16>
    %519 = vector.shape_cast %518 : vector<1x4x4xbf16> to vector<4x4xbf16>
    %520 = arith.truncf %517 : vector<4x4xf32> to vector<4x4xbf16>
    %cst_440 = arith.constant dense<0.000000e+00> : vector<4x4xf32>
    %521 = tpu.matmul %519, %520, %cst_440 {dimension_numbers = #tpu.dot_dimension_numbers<[1], [0], [0], [1], [0, 0, 1, 1], [], []>} : vector<4x4xbf16>, vector<4x4xbf16>, vector<4x4xf32> -> vector<4x4xf32>
    %522 = arith.addf %513, %521 : vector<4x4xf32>
    %c2_441 = arith.constant 2 : index
    %c0_442 = arith.constant 0 : index
    %c0_443 = arith.constant 0 : index
    %523 = vector.load %arg35[%c2_441, %c0_442, %c0_443] : memref<9x16x4xbf16, #tpu.memory_space<vmem>>, vector<1x16x4xbf16>
    %524 = vector.shape_cast %523 : vector<1x16x4xbf16> to vector<16x4xbf16>
    %525 = arith.truncf %503 : vector<4x16xf32> to vector<4x16xbf16>
    %cst_444 = arith.constant dense<0.000000e+00> : vector<4x4xf32>
    %526 = tpu.matmul %525, %524, %cst_444 {dimension_numbers = #tpu.dot_dimension_numbers<[1], [0], [0], [1], [0, 0, 1, 1], [], []>} : vector<4x16xbf16>, vector<16x4xbf16>, vector<4x4xf32> -> vector<4x4xf32>
    %c2_445 = arith.constant 2 : index
    %c0_446 = arith.constant 0 : index
    %c0_447 = arith.constant 0 : index
    %527 = vector.load %arg34[%c2_445, %c0_446, %c0_447] : memref<9x4x4xbf16, #tpu.memory_space<vmem>>, vector<1x4x4xbf16>
    %528 = vector.shape_cast %527 : vector<1x4x4xbf16> to vector<4x4xbf16>
    %529 = arith.truncf %526 : vector<4x4xf32> to vector<4x4xbf16>
    %cst_448 = arith.constant dense<0.000000e+00> : vector<4x4xf32>
    %530 = tpu.matmul %528, %529, %cst_448 {dimension_numbers = #tpu.dot_dimension_numbers<[1], [0], [0], [1], [0, 0, 1, 1], [], []>} : vector<4x4xbf16>, vector<4x4xbf16>, vector<4x4xf32> -> vector<4x4xf32>
    %531 = arith.addf %522, %530 : vector<4x4xf32>
    %c3_449 = arith.constant 3 : index
    %c0_450 = arith.constant 0 : index
    %c0_451 = arith.constant 0 : index
    %532 = vector.load %arg35[%c3_449, %c0_450, %c0_451] : memref<9x16x4xbf16, #tpu.memory_space<vmem>>, vector<1x16x4xbf16>
    %533 = vector.shape_cast %532 : vector<1x16x4xbf16> to vector<16x4xbf16>
    %534 = arith.truncf %503 : vector<4x16xf32> to vector<4x16xbf16>
    %cst_452 = arith.constant dense<0.000000e+00> : vector<4x4xf32>
    %535 = tpu.matmul %534, %533, %cst_452 {dimension_numbers = #tpu.dot_dimension_numbers<[1], [0], [0], [1], [0, 0, 1, 1], [], []>} : vector<4x16xbf16>, vector<16x4xbf16>, vector<4x4xf32> -> vector<4x4xf32>
    %c3_453 = arith.constant 3 : index
    %c0_454 = arith.constant 0 : index
    %c0_455 = arith.constant 0 : index
    %536 = vector.load %arg34[%c3_453, %c0_454, %c0_455] : memref<9x4x4xbf16, #tpu.memory_space<vmem>>, vector<1x4x4xbf16>
    %537 = vector.shape_cast %536 : vector<1x4x4xbf16> to vector<4x4xbf16>
    %538 = arith.truncf %535 : vector<4x4xf32> to vector<4x4xbf16>
    %cst_456 = arith.constant dense<0.000000e+00> : vector<4x4xf32>
    %539 = tpu.matmul %537, %538, %cst_456 {dimension_numbers = #tpu.dot_dimension_numbers<[1], [0], [0], [1], [0, 0, 1, 1], [], []>} : vector<4x4xbf16>, vector<4x4xbf16>, vector<4x4xf32> -> vector<4x4xf32>
    %540 = arith.addf %531, %539 : vector<4x4xf32>
    %c4_457 = arith.constant 4 : index
    %c0_458 = arith.constant 0 : index
    %c0_459 = arith.constant 0 : index
    %541 = vector.load %arg35[%c4_457, %c0_458, %c0_459] : memref<9x16x4xbf16, #tpu.memory_space<vmem>>, vector<1x16x4xbf16>
    %542 = vector.shape_cast %541 : vector<1x16x4xbf16> to vector<16x4xbf16>
    %543 = arith.truncf %503 : vector<4x16xf32> to vector<4x16xbf16>
    %cst_460 = arith.constant dense<0.000000e+00> : vector<4x4xf32>
    %544 = tpu.matmul %543, %542, %cst_460 {dimension_numbers = #tpu.dot_dimension_numbers<[1], [0], [0], [1], [0, 0, 1, 1], [], []>} : vector<4x16xbf16>, vector<16x4xbf16>, vector<4x4xf32> -> vector<4x4xf32>
    %c4_461 = arith.constant 4 : index
    %c0_462 = arith.constant 0 : index
    %c0_463 = arith.constant 0 : index
    %545 = vector.load %arg34[%c4_461, %c0_462, %c0_463] : memref<9x4x4xbf16, #tpu.memory_space<vmem>>, vector<1x4x4xbf16>
    %546 = vector.shape_cast %545 : vector<1x4x4xbf16> to vector<4x4xbf16>
    %547 = arith.truncf %544 : vector<4x4xf32> to vector<4x4xbf16>
    %cst_464 = arith.constant dense<0.000000e+00> : vector<4x4xf32>
    %548 = tpu.matmul %546, %547, %cst_464 {dimension_numbers = #tpu.dot_dimension_numbers<[1], [0], [0], [1], [0, 0, 1, 1], [], []>} : vector<4x4xbf16>, vector<4x4xbf16>, vector<4x4xf32> -> vector<4x4xf32>
    %549 = arith.addf %540, %548 : vector<4x4xf32>
    %c5_465 = arith.constant 5 : index
    %c0_466 = arith.constant 0 : index
    %c0_467 = arith.constant 0 : index
    %550 = vector.load %arg35[%c5_465, %c0_466, %c0_467] : memref<9x16x4xbf16, #tpu.memory_space<vmem>>, vector<1x16x4xbf16>
    %551 = vector.shape_cast %550 : vector<1x16x4xbf16> to vector<16x4xbf16>
    %552 = arith.truncf %503 : vector<4x16xf32> to vector<4x16xbf16>
    %cst_468 = arith.constant dense<0.000000e+00> : vector<4x4xf32>
    %553 = tpu.matmul %552, %551, %cst_468 {dimension_numbers = #tpu.dot_dimension_numbers<[1], [0], [0], [1], [0, 0, 1, 1], [], []>} : vector<4x16xbf16>, vector<16x4xbf16>, vector<4x4xf32> -> vector<4x4xf32>
    %c5_469 = arith.constant 5 : index
    %c0_470 = arith.constant 0 : index
    %c0_471 = arith.constant 0 : index
    %554 = vector.load %arg34[%c5_469, %c0_470, %c0_471] : memref<9x4x4xbf16, #tpu.memory_space<vmem>>, vector<1x4x4xbf16>
    %555 = vector.shape_cast %554 : vector<1x4x4xbf16> to vector<4x4xbf16>
    %556 = arith.truncf %553 : vector<4x4xf32> to vector<4x4xbf16>
    %cst_472 = arith.constant dense<0.000000e+00> : vector<4x4xf32>
    %557 = tpu.matmul %555, %556, %cst_472 {dimension_numbers = #tpu.dot_dimension_numbers<[1], [0], [0], [1], [0, 0, 1, 1], [], []>} : vector<4x4xbf16>, vector<4x4xbf16>, vector<4x4xf32> -> vector<4x4xf32>
    %558 = arith.addf %549, %557 : vector<4x4xf32>
    %c6_473 = arith.constant 6 : index
    %c0_474 = arith.constant 0 : index
    %c0_475 = arith.constant 0 : index
    %559 = vector.load %arg35[%c6_473, %c0_474, %c0_475] : memref<9x16x4xbf16, #tpu.memory_space<vmem>>, vector<1x16x4xbf16>
    %560 = vector.shape_cast %559 : vector<1x16x4xbf16> to vector<16x4xbf16>
    %561 = arith.truncf %503 : vector<4x16xf32> to vector<4x16xbf16>
    %cst_476 = arith.constant dense<0.000000e+00> : vector<4x4xf32>
    %562 = tpu.matmul %561, %560, %cst_476 {dimension_numbers = #tpu.dot_dimension_numbers<[1], [0], [0], [1], [0, 0, 1, 1], [], []>} : vector<4x16xbf16>, vector<16x4xbf16>, vector<4x4xf32> -> vector<4x4xf32>
    %c6_477 = arith.constant 6 : index
    %c0_478 = arith.constant 0 : index
    %c0_479 = arith.constant 0 : index
    %563 = vector.load %arg34[%c6_477, %c0_478, %c0_479] : memref<9x4x4xbf16, #tpu.memory_space<vmem>>, vector<1x4x4xbf16>
    %564 = vector.shape_cast %563 : vector<1x4x4xbf16> to vector<4x4xbf16>
    %565 = arith.truncf %562 : vector<4x4xf32> to vector<4x4xbf16>
    %cst_480 = arith.constant dense<0.000000e+00> : vector<4x4xf32>
    %566 = tpu.matmul %564, %565, %cst_480 {dimension_numbers = #tpu.dot_dimension_numbers<[1], [0], [0], [1], [0, 0, 1, 1], [], []>} : vector<4x4xbf16>, vector<4x4xbf16>, vector<4x4xf32> -> vector<4x4xf32>
    %567 = arith.addf %558, %566 : vector<4x4xf32>
    %c7_481 = arith.constant 7 : index
    %c0_482 = arith.constant 0 : index
    %c0_483 = arith.constant 0 : index
    %568 = vector.load %arg35[%c7_481, %c0_482, %c0_483] : memref<9x16x4xbf16, #tpu.memory_space<vmem>>, vector<1x16x4xbf16>
    %569 = vector.shape_cast %568 : vector<1x16x4xbf16> to vector<16x4xbf16>
    %570 = arith.truncf %503 : vector<4x16xf32> to vector<4x16xbf16>
    %cst_484 = arith.constant dense<0.000000e+00> : vector<4x4xf32>
    %571 = tpu.matmul %570, %569, %cst_484 {dimension_numbers = #tpu.dot_dimension_numbers<[1], [0], [0], [1], [0, 0, 1, 1], [], []>} : vector<4x16xbf16>, vector<16x4xbf16>, vector<4x4xf32> -> vector<4x4xf32>
    %c7_485 = arith.constant 7 : index
    %c0_486 = arith.constant 0 : index
    %c0_487 = arith.constant 0 : index
    %572 = vector.load %arg34[%c7_485, %c0_486, %c0_487] : memref<9x4x4xbf16, #tpu.memory_space<vmem>>, vector<1x4x4xbf16>
    %573 = vector.shape_cast %572 : vector<1x4x4xbf16> to vector<4x4xbf16>
    %574 = arith.truncf %571 : vector<4x4xf32> to vector<4x4xbf16>
    %cst_488 = arith.constant dense<0.000000e+00> : vector<4x4xf32>
    %575 = tpu.matmul %573, %574, %cst_488 {dimension_numbers = #tpu.dot_dimension_numbers<[1], [0], [0], [1], [0, 0, 1, 1], [], []>} : vector<4x4xbf16>, vector<4x4xbf16>, vector<4x4xf32> -> vector<4x4xf32>
    %576 = arith.addf %567, %575 : vector<4x4xf32>
    %c8_489 = arith.constant 8 : index
    %c0_490 = arith.constant 0 : index
    %c0_491 = arith.constant 0 : index
    %577 = vector.load %arg35[%c8_489, %c0_490, %c0_491] : memref<9x16x4xbf16, #tpu.memory_space<vmem>>, vector<1x16x4xbf16>
    %578 = vector.shape_cast %577 : vector<1x16x4xbf16> to vector<16x4xbf16>
    %579 = arith.truncf %503 : vector<4x16xf32> to vector<4x16xbf16>
    %cst_492 = arith.constant dense<0.000000e+00> : vector<4x4xf32>
    %580 = tpu.matmul %579, %578, %cst_492 {dimension_numbers = #tpu.dot_dimension_numbers<[1], [0], [0], [1], [0, 0, 1, 1], [], []>} : vector<4x16xbf16>, vector<16x4xbf16>, vector<4x4xf32> -> vector<4x4xf32>
    %c8_493 = arith.constant 8 : index
    %c0_494 = arith.constant 0 : index
    %c0_495 = arith.constant 0 : index
    %581 = vector.load %arg34[%c8_493, %c0_494, %c0_495] : memref<9x4x4xbf16, #tpu.memory_space<vmem>>, vector<1x4x4xbf16>
    %582 = vector.shape_cast %581 : vector<1x4x4xbf16> to vector<4x4xbf16>
    %583 = arith.truncf %580 : vector<4x4xf32> to vector<4x4xbf16>
    %cst_496 = arith.constant dense<0.000000e+00> : vector<4x4xf32>
    %584 = tpu.matmul %582, %583, %cst_496 {dimension_numbers = #tpu.dot_dimension_numbers<[1], [0], [0], [1], [0, 0, 1, 1], [], []>} : vector<4x4xbf16>, vector<4x4xbf16>, vector<4x4xf32> -> vector<4x4xf32>
    %585 = arith.addf %576, %584 : vector<4x4xf32>
    %c0_497 = arith.constant 0 : index
    %c0_498 = arith.constant 0 : index
    %586 = vector.load %arg36[%c0_497, %c0_498] : memref<4x1xf32, #tpu.memory_space<vmem>>, vector<4x1xf32>
    %587 = vector.broadcast %586 : vector<4x1xf32> to vector<4x4xf32>
    %588 = arith.addf %585, %587 : vector<4x4xf32>
    %cst_499 = arith.constant 0.000000e+00 : f32
    %589 = vector.broadcast %cst_499 : f32 to vector<4x4xf32>
    %590 = arith.maximumf %588, %589 : vector<4x4xf32>
    %c0_500 = arith.constant 0 : index
    %c0_501 = arith.constant 0 : index
    %591 = vector.load %arg37[%c0_500, %c0_501] : memref<32x4xbf16, #tpu.memory_space<vmem>>, vector<32x4xbf16>
    %592 = arith.truncf %590 : vector<4x4xf32> to vector<4x4xbf16>
    %cst_502 = arith.constant dense<0.000000e+00> : vector<32x4xf32>
    %593 = tpu.matmul %591, %592, %cst_502 {dimension_numbers = #tpu.dot_dimension_numbers<[1], [0], [0], [1], [0, 0, 1, 1], [], []>} : vector<32x4xbf16>, vector<4x4xbf16>, vector<32x4xf32> -> vector<32x4xf32>
    %c0_503 = arith.constant 0 : index
    %c0_504 = arith.constant 0 : index
    %594 = vector.load %arg38[%c0_503, %c0_504] : memref<32x1xf32, #tpu.memory_space<vmem>>, vector<32x1xf32>
    %595 = vector.broadcast %594 : vector<32x1xf32> to vector<32x4xf32>
    %596 = arith.addf %593, %595 : vector<32x4xf32>
    %cst_505 = arith.constant 0.000000e+00 : f32
    %597 = vector.broadcast %cst_505 : f32 to vector<32x4xf32>
    %598 = arith.maximumf %596, %597 : vector<32x4xf32>
    %c0_506 = arith.constant 0 : index
    %c0_507 = arith.constant 0 : index
    %599 = vector.load %arg39[%c0_506, %c0_507] : memref<10x32xbf16, #tpu.memory_space<vmem>>, vector<10x32xbf16>
    %600 = arith.truncf %598 : vector<32x4xf32> to vector<32x4xbf16>
    %cst_508 = arith.constant dense<0.000000e+00> : vector<10x4xf32>
    %601 = tpu.matmul %599, %600, %cst_508 {dimension_numbers = #tpu.dot_dimension_numbers<[1], [0], [0], [1], [0, 0, 1, 1], [], []>} : vector<10x32xbf16>, vector<32x4xbf16>, vector<10x4xf32> -> vector<10x4xf32>
    %cst_509 = arith.constant dense<0.000000e+00> : vector<10xf32>
    %602 = vector.multi_reduction <add>, %601, %cst_509 [1] : vector<10x4xf32> to vector<10xf32>
    %603 = vector.shape_cast %602 : vector<10xf32> to vector<10x1xf32>
    %cst_510 = arith.constant 2.500000e-01 : f32
    %604 = vector.broadcast %cst_510 : f32 to vector<10x1xf32>
    %605 = arith.mulf %603, %604 : vector<10x1xf32>
    %c0_511 = arith.constant 0 : index
    %c0_512 = arith.constant 0 : index
    %606 = vector.load %arg40[%c0_511, %c0_512] : memref<10x1xf32, #tpu.memory_space<vmem>>, vector<10x1xf32>
    %607 = arith.addf %605, %606 : vector<10x1xf32>
    %c0_513 = arith.constant 0 : index
    %c0_514 = arith.constant 0 : index
    %c0_515 = arith.constant 0 : index
    %608 = vector.load %arg41[%c0_513, %c0_514, %c0_515] : memref<1x10x1xf32, #tpu.memory_space<vmem>>, vector<1x10x1xf32>
    %609 = vector.shape_cast %608 : vector<1x10x1xf32> to vector<10x1xf32>
    %610 = vector.shape_cast %607 : vector<10x1xf32> to vector<1x10x1xf32>
    tpu.vector_store %arg41[%c0_513, %c0_514, %c0_515], %610 {strides = array<i32>} : memref<1x10x1xf32, #tpu.memory_space<vmem>>, vector<1x10x1xf32>,
    return
  }
  func.func @transform_0(%arg0: i32) -> (i32, i32, i32) {
    %c0_i32 = arith.constant 0 : i32
    %c0_i32_0 = arith.constant 0 : i32
    %c0_i32_1 = arith.constant 0 : i32
    return %arg0, %c0_i32, %c0_i32_0 : i32, i32, i32
  }
  func.func @transform_1(%arg0: i32) -> (i32, i32, i32) {
    %c0_i32 = arith.constant 0 : i32
    %c0_i32_0 = arith.constant 0 : i32
    %c0_i32_1 = arith.constant 0 : i32
    %c0_i32_2 = arith.constant 0 : i32
    return %c0_i32, %c0_i32_0, %c0_i32_1 : i32, i32, i32
  }
  func.func @transform_2(%arg0: i32) -> (i32, i32, i32) {
    %c0_i32 = arith.constant 0 : i32
    %c0_i32_0 = arith.constant 0 : i32
    %c0_i32_1 = arith.constant 0 : i32
    %c0_i32_2 = arith.constant 0 : i32
    return %c0_i32, %c0_i32_0, %c0_i32_1 : i32, i32, i32
  }
  func.func @transform_3(%arg0: i32) -> (i32, i32) {
    %c0_i32 = arith.constant 0 : i32
    %c0_i32_0 = arith.constant 0 : i32
    %c0_i32_1 = arith.constant 0 : i32
    return %c0_i32, %c0_i32_0 : i32, i32
  }
  func.func @transform_4(%arg0: i32) -> (i32, i32) {
    %c0_i32 = arith.constant 0 : i32
    %c0_i32_0 = arith.constant 0 : i32
    %c0_i32_1 = arith.constant 0 : i32
    return %c0_i32, %c0_i32_0 : i32, i32
  }
  func.func @transform_5(%arg0: i32) -> (i32, i32, i32) {
    %c0_i32 = arith.constant 0 : i32
    %c0_i32_0 = arith.constant 0 : i32
    %c0_i32_1 = arith.constant 0 : i32
    %c0_i32_2 = arith.constant 0 : i32
    return %c0_i32, %c0_i32_0, %c0_i32_1 : i32, i32, i32
  }
  func.func @transform_6(%arg0: i32) -> (i32, i32, i32) {
    %c0_i32 = arith.constant 0 : i32
    %c0_i32_0 = arith.constant 0 : i32
    %c0_i32_1 = arith.constant 0 : i32
    %c0_i32_2 = arith.constant 0 : i32
    return %c0_i32, %c0_i32_0, %c0_i32_1 : i32, i32, i32
  }
  func.func @transform_7(%arg0: i32) -> (i32, i32) {
    %c0_i32 = arith.constant 0 : i32
    %c0_i32_0 = arith.constant 0 : i32
    %c0_i32_1 = arith.constant 0 : i32
    return %c0_i32, %c0_i32_0 : i32, i32
  }
  func.func @transform_8(%arg0: i32) -> (i32, i32) {
    %c0_i32 = arith.constant 0 : i32
    %c0_i32_0 = arith.constant 0 : i32
    %c0_i32_1 = arith.constant 0 : i32
    return %c0_i32, %c0_i32_0 : i32, i32
  }
  func.func @transform_9(%arg0: i32) -> (i32, i32) {
    %c0_i32 = arith.constant 0 : i32
    %c0_i32_0 = arith.constant 0 : i32
    %c0_i32_1 = arith.constant 0 : i32
    return %c0_i32, %c0_i32_0 : i32, i32
  }
  func.func @transform_10(%arg0: i32) -> (i32, i32) {
    %c0_i32 = arith.constant 0 : i32
    %c0_i32_0 = arith.constant 0 : i32
    %c0_i32_1 = arith.constant 0 : i32
    return %c0_i32, %c0_i32_0 : i32, i32
  }
  func.func @transform_11(%arg0: i32) -> (i32, i32) {
    %c0_i32 = arith.constant 0 : i32
    %c0_i32_0 = arith.constant 0 : i32
    %c0_i32_1 = arith.constant 0 : i32
    return %c0_i32, %c0_i32_0 : i32, i32
  }
  func.func @transform_12(%arg0: i32) -> (i32, i32, i32) {
    %c0_i32 = arith.constant 0 : i32
    %c0_i32_0 = arith.constant 0 : i32
    %c0_i32_1 = arith.constant 0 : i32
    %c0_i32_2 = arith.constant 0 : i32
    return %c0_i32, %c0_i32_0, %c0_i32_1 : i32, i32, i32
  }
  func.func @transform_13(%arg0: i32) -> (i32, i32, i32) {
    %c0_i32 = arith.constant 0 : i32
    %c0_i32_0 = arith.constant 0 : i32
    %c0_i32_1 = arith.constant 0 : i32
    %c0_i32_2 = arith.constant 0 : i32
    return %c0_i32, %c0_i32_0, %c0_i32_1 : i32, i32, i32
  }
  func.func @transform_14(%arg0: i32) -> (i32, i32) {
    %c0_i32 = arith.constant 0 : i32
    %c0_i32_0 = arith.constant 0 : i32
    %c0_i32_1 = arith.constant 0 : i32
    return %c0_i32, %c0_i32_0 : i32, i32
  }
  func.func @transform_15(%arg0: i32) -> (i32, i32) {
    %c0_i32 = arith.constant 0 : i32
    %c0_i32_0 = arith.constant 0 : i32
    %c0_i32_1 = arith.constant 0 : i32
    return %c0_i32, %c0_i32_0 : i32, i32
  }
  func.func @transform_16(%arg0: i32) -> (i32, i32) {
    %c0_i32 = arith.constant 0 : i32
    %c0_i32_0 = arith.constant 0 : i32
    %c0_i32_1 = arith.constant 0 : i32
    return %c0_i32, %c0_i32_0 : i32, i32
  }
  func.func @transform_17(%arg0: i32) -> (i32, i32) {
    %c0_i32 = arith.constant 0 : i32
    %c0_i32_0 = arith.constant 0 : i32
    %c0_i32_1 = arith.constant 0 : i32
    return %c0_i32, %c0_i32_0 : i32, i32
  }
  func.func @transform_18(%arg0: i32) -> (i32, i32) {
    %c0_i32 = arith.constant 0 : i32
    %c0_i32_0 = arith.constant 0 : i32
    %c0_i32_1 = arith.constant 0 : i32
    return %c0_i32, %c0_i32_0 : i32, i32
  }
  func.func @transform_19(%arg0: i32) -> (i32, i32, i32) {
    %c0_i32 = arith.constant 0 : i32
    %c0_i32_0 = arith.constant 0 : i32
    %c0_i32_1 = arith.constant 0 : i32
    %c0_i32_2 = arith.constant 0 : i32
    return %c0_i32, %c0_i32_0, %c0_i32_1 : i32, i32, i32
  }
  func.func @transform_20(%arg0: i32) -> (i32, i32, i32) {
    %c0_i32 = arith.constant 0 : i32
    %c0_i32_0 = arith.constant 0 : i32
    %c0_i32_1 = arith.constant 0 : i32
    %c0_i32_2 = arith.constant 0 : i32
    return %c0_i32, %c0_i32_0, %c0_i32_1 : i32, i32, i32
  }
  func.func @transform_21(%arg0: i32) -> (i32, i32) {
    %c0_i32 = arith.constant 0 : i32
    %c0_i32_0 = arith.constant 0 : i32
    %c0_i32_1 = arith.constant 0 : i32
    return %c0_i32, %c0_i32_0 : i32, i32
  }
  func.func @transform_22(%arg0: i32) -> (i32, i32) {
    %c0_i32 = arith.constant 0 : i32
    %c0_i32_0 = arith.constant 0 : i32
    %c0_i32_1 = arith.constant 0 : i32
    return %c0_i32, %c0_i32_0 : i32, i32
  }
  func.func @transform_23(%arg0: i32) -> (i32, i32) {
    %c0_i32 = arith.constant 0 : i32
    %c0_i32_0 = arith.constant 0 : i32
    %c0_i32_1 = arith.constant 0 : i32
    return %c0_i32, %c0_i32_0 : i32, i32
  }
  func.func @transform_24(%arg0: i32) -> (i32, i32) {
    %c0_i32 = arith.constant 0 : i32
    %c0_i32_0 = arith.constant 0 : i32
    %c0_i32_1 = arith.constant 0 : i32
    return %c0_i32, %c0_i32_0 : i32, i32
  }
  func.func @transform_25(%arg0: i32) -> (i32, i32) {
    %c0_i32 = arith.constant 0 : i32
    %c0_i32_0 = arith.constant 0 : i32
    %c0_i32_1 = arith.constant 0 : i32
    return %c0_i32, %c0_i32_0 : i32, i32
  }
  func.func @transform_26(%arg0: i32) -> (i32, i32, i32) {
    %c0_i32 = arith.constant 0 : i32
    %c0_i32_0 = arith.constant 0 : i32
    %c0_i32_1 = arith.constant 0 : i32
    %c0_i32_2 = arith.constant 0 : i32
    return %c0_i32, %c0_i32_0, %c0_i32_1 : i32, i32, i32
  }
  func.func @transform_27(%arg0: i32) -> (i32, i32, i32) {
    %c0_i32 = arith.constant 0 : i32
    %c0_i32_0 = arith.constant 0 : i32
    %c0_i32_1 = arith.constant 0 : i32
    %c0_i32_2 = arith.constant 0 : i32
    return %c0_i32, %c0_i32_0, %c0_i32_1 : i32, i32, i32
  }
  func.func @transform_28(%arg0: i32) -> (i32, i32) {
    %c0_i32 = arith.constant 0 : i32
    %c0_i32_0 = arith.constant 0 : i32
    %c0_i32_1 = arith.constant 0 : i32
    return %c0_i32, %c0_i32_0 : i32, i32
  }
  func.func @transform_29(%arg0: i32) -> (i32, i32) {
    %c0_i32 = arith.constant 0 : i32
    %c0_i32_0 = arith.constant 0 : i32
    %c0_i32_1 = arith.constant 0 : i32
    return %c0_i32, %c0_i32_0 : i32, i32
  }
  func.func @transform_30(%arg0: i32) -> (i32, i32) {
    %c0_i32 = arith.constant 0 : i32
    %c0_i32_0 = arith.constant 0 : i32
    %c0_i32_1 = arith.constant 0 : i32
    return %c0_i32, %c0_i32_0 : i32, i32
  }
  func.func @transform_31(%arg0: i32) -> (i32, i32) {
    %c0_i32 = arith.constant 0 : i32
    %c0_i32_0 = arith.constant 0 : i32
    %c0_i32_1 = arith.constant 0 : i32
    return %c0_i32, %c0_i32_0 : i32, i32
  }
  func.func @transform_32(%arg0: i32) -> (i32, i32) {
    %c0_i32 = arith.constant 0 : i32
    %c0_i32_0 = arith.constant 0 : i32
    %c0_i32_1 = arith.constant 0 : i32
    return %c0_i32, %c0_i32_0 : i32, i32
  }
  func.func @transform_33(%arg0: i32) -> (i32, i32, i32) {
    %c0_i32 = arith.constant 0 : i32
    %c0_i32_0 = arith.constant 0 : i32
    %c0_i32_1 = arith.constant 0 : i32
    %c0_i32_2 = arith.constant 0 : i32
    return %c0_i32, %c0_i32_0, %c0_i32_1 : i32, i32, i32
  }
  func.func @transform_34(%arg0: i32) -> (i32, i32, i32) {
    %c0_i32 = arith.constant 0 : i32
    %c0_i32_0 = arith.constant 0 : i32
    %c0_i32_1 = arith.constant 0 : i32
    %c0_i32_2 = arith.constant 0 : i32
    return %c0_i32, %c0_i32_0, %c0_i32_1 : i32, i32, i32
  }
  func.func @transform_35(%arg0: i32) -> (i32, i32) {
    %c0_i32 = arith.constant 0 : i32
    %c0_i32_0 = arith.constant 0 : i32
    %c0_i32_1 = arith.constant 0 : i32
    return %c0_i32, %c0_i32_0 : i32, i32
  }
  func.func @transform_36(%arg0: i32) -> (i32, i32) {
    %c0_i32 = arith.constant 0 : i32
    %c0_i32_0 = arith.constant 0 : i32
    %c0_i32_1 = arith.constant 0 : i32
    return %c0_i32, %c0_i32_0 : i32, i32
  }
  func.func @transform_37(%arg0: i32) -> (i32, i32) {
    %c0_i32 = arith.constant 0 : i32
    %c0_i32_0 = arith.constant 0 : i32
    %c0_i32_1 = arith.constant 0 : i32
    return %c0_i32, %c0_i32_0 : i32, i32
  }
  func.func @transform_38(%arg0: i32) -> (i32, i32) {
    %c0_i32 = arith.constant 0 : i32
    %c0_i32_0 = arith.constant 0 : i32
    %c0_i32_1 = arith.constant 0 : i32
    return %c0_i32, %c0_i32_0 : i32, i32
  }
  func.func @transform_39(%arg0: i32) -> (i32, i32) {
    %c0_i32 = arith.constant 0 : i32
    %c0_i32_0 = arith.constant 0 : i32
    %c0_i32_1 = arith.constant 0 : i32
    return %c0_i32, %c0_i32_0 : i32, i32
  }
  func.func @transform_40(%arg0: i32) -> (i32, i32, i32) {
    %c0_i32 = arith.constant 0 : i32
    %c0_i32_0 = arith.constant 0 : i32
    %c0_i32_1 = arith.constant 0 : i32
    return %arg0, %c0_i32, %c0_i32_0 : i32, i32, i32
  }
}

</mosaic_0001>

<llo_original>
// kernel: main_classifier_forward.1
$region0: #{main_classifier_forward.1}
  #allocation0 [shape = 'u32[]', space=smem, size = 0x4, offset = 0x4, fixed_abs, tag = 'smem constant byte address 0x4 - core index']
  #allocation1 [shape = 'u32[144,128]{1,0:T(1,128)}', space=vmem, size = 0x12000, scoped, tag = 'internal scratch']
  %s0 = inlined_call_operand.smem [shape: u32[41], index: -1, kind: input, shape index: {}]
  %s1 = sld [smem:[%s0]]
  %s2 = scalar_lea.smem %s0, 1
  %s3 = sld [smem:[%s2]]
  %s4 = scalar_lea.smem %s0, 2
  %s5 = sld [smem:[%s4]]
  %s6 = scalar_lea.smem %s0, 3
  %s7 = sld [smem:[%s6]]
  %s8 = scalar_lea.smem %s0, 4
  %s9 = sld [smem:[%s8]]
  %s10 = scalar_lea.smem %s0, 5
  %s11 = sld [smem:[%s10]]
  %s12 = scalar_lea.smem %s0, 6
  %s13 = sld [smem:[%s12]]
  %s14 = scalar_lea.smem %s0, 7
  %s15 = sld [smem:[%s14]]
  %s16 = scalar_lea.smem %s0, 8
  %s17 = sld [smem:[%s16]]
  %s18 = scalar_lea.smem %s0, 9
  %s19 = sld [smem:[%s18]]
  %s20 = scalar_lea.smem %s0, 10
  %s21 = sld [smem:[%s20]]
  %s22 = scalar_lea.smem %s0, 11
  %s23 = sld [smem:[%s22]]
  %s24 = scalar_lea.smem %s0, 12
  %s25 = sld [smem:[%s24]]
  %s26 = scalar_lea.smem %s0, 13
  %s27 = sld [smem:[%s26]]
  %s28 = scalar_lea.smem %s0, 14
  %s29 = sld [smem:[%s28]]
  %s30 = scalar_lea.smem %s0, 15
  %s31 = sld [smem:[%s30]]
  %s32 = scalar_lea.smem %s0, 16
  %s33 = sld [smem:[%s32]]
  %s34 = scalar_lea.smem %s0, 17
  %s35 = sld [smem:[%s34]]
  %s36 = scalar_lea.smem %s0, 18
  %s37 = sld [smem:[%s36]]
  %s38 = scalar_lea.smem %s0, 19
  %s39 = sld [smem:[%s38]]
  %s40 = scalar_lea.smem %s0, 20
  %s41 = sld [smem:[%s40]]
  %s42 = scalar_lea.smem %s0, 21
  %s43 = sld [smem:[%s42]]
  %s44 = scalar_lea.smem %s0, 22
  %s45 = sld [smem:[%s44]]
  %s46 = scalar_lea.smem %s0, 23
  %s47 = sld [smem:[%s46]]
  %s48 = scalar_lea.smem %s0, 24
  %s49 = sld [smem:[%s48]]
  %s50 = scalar_lea.smem %s0, 25
  %s51 = sld [smem:[%s50]]
  %s52 = scalar_lea.smem %s0, 26
  %s53 = sld [smem:[%s52]]
  %s54 = scalar_lea.smem %s0, 27
  %s55 = sld [smem:[%s54]]
  %s56 = scalar_lea.smem %s0, 28
  %s57 = sld [smem:[%s56]]
  %s58 = scalar_lea.smem %s0, 29
  %s59 = sld [smem:[%s58]]
  %s60 = scalar_lea.smem %s0, 30
  %s61 = sld [smem:[%s60]]
  %s62 = scalar_lea.smem %s0, 31
  %s63 = sld [smem:[%s62]]
  %s64 = scalar_lea.smem %s0, 32
  %s65 = sld [smem:[%s64]]
  %s66 = scalar_lea.smem %s0, 33
  %s67 = sld [smem:[%s66]]
  %s68 = scalar_lea.smem %s0, 34
  %s69 = sld [smem:[%s68]]
  %s70 = scalar_lea.smem %s0, 35
  %s71 = sld [smem:[%s70]]
  %s72 = scalar_lea.smem %s0, 36
  %s73 = sld [smem:[%s72]]
  %s74 = scalar_lea.smem %s0, 37
  %s75 = sld [smem:[%s74]]
  %s76 = scalar_lea.smem %s0, 38
  %s77 = sld [smem:[%s76]]
  %s78 = scalar_lea.smem %s0, 39
  %s79 = sld [smem:[%s78]]
  %s80 = scalar_lea.smem %s0, 40
  %s81 = sld [smem:[%s80]]
  %s82 = sld [smem:[#allocation0]]
  $region193: #{main_classifier_forward.1} parent=0
    _
  %s84 = ssub.s32 1, %s82
  %s85 = scalar_select 0, %s84, %s82
  loop: start=0, step=1, limit=4
  $region2: #{main_classifier_forward.1} parent=0 // loop_pre_header
    _
  $region3: #{main_classifier_forward.1} parent=0 // loop_header
    %s87 = sphi 0, %s91
    %p88 = scmp.ge.s32.totalorder %s87, 4
    %s97 = sphi 0, %s99
    %s100 = sphi 0, %s97
    %s101 = sphi 0, %s100
    %s117 = sphi 0, %s101
    %s121 = sphi 0, %s121
    %s123 = sphi 0, %s121
    %s124 = sphi 0, %s123
    %s138 = sphi 0, %s124
    %s142 = sphi 0, %s142
    %s144 = sphi 0, %s142
    %s145 = sphi 0, %s144
    %s159 = sphi 0, %s145
    %s163 = sphi 0, %s163
    %s165 = sphi 0, %s163
    %s166 = sphi 0, %s165
    %s180 = sphi 0, %s166
    %s184 = sphi 0, %s184
    %s186 = sphi 0, %s184
    %s187 = sphi 0, %s186
    %s201 = sphi 0, %s187
    %s205 = sphi 0, %s205
    %s207 = sphi 0, %s205
    %s208 = sphi 0, %s207
    %s222 = sphi 0, %s208
    %s226 = sphi 0, %s226
    %s228 = sphi 0, %s226
    %s229 = sphi 0, %s228
    %s243 = sphi 0, %s229
    %s247 = sphi 0, %s247
    %s249 = sphi 0, %s247
    %s250 = sphi 0, %s249
    %s264 = sphi 0, %s250
    %s268 = sphi 0, %s268
    %s270 = sphi 0, %s268
    %s271 = sphi 0, %s270
    %s285 = sphi 0, %s271
    %s289 = sphi 0, %s289
    %s291 = sphi 0, %s289
    %s292 = sphi 0, %s291
    %s306 = sphi 0, %s292
    %s310 = sphi 0, %s310
    %s312 = sphi 0, %s310
    %s313 = sphi 0, %s312
    %s327 = sphi 0, %s313
    %s331 = sphi 0, %s331
    %s333 = sphi 0, %s331
    %s334 = sphi 0, %s333
    %s348 = sphi 0, %s334
    %s352 = sphi 0, %s352
    %s354 = sphi 0, %s352
    %s355 = sphi 0, %s354
    %s369 = sphi 0, %s355
    %s373 = sphi 0, %s373
    %s375 = sphi 0, %s373
    %s376 = sphi 0, %s375
    %s390 = sphi 0, %s376
    %s394 = sphi 0, %s394
    %s396 = sphi 0, %s394
    %s397 = sphi 0, %s396
    %s411 = sphi 0, %s397
    %s415 = sphi 0, %s415
    %s417 = sphi 0, %s415
    %s418 = sphi 0, %s417
    %s432 = sphi 0, %s418
    %s436 = sphi 0, %s436
    %s438 = sphi 0, %s436
    %s439 = sphi 0, %s438
    %s453 = sphi 0, %s439
    %s457 = sphi 0, %s457
    %s459 = sphi 0, %s457
    %s460 = sphi 0, %s459
    %s474 = sphi 0, %s460
    %s478 = sphi 0, %s478
    %s480 = sphi 0, %s478
    %s481 = sphi 0, %s480
    %s495 = sphi 0, %s481
    %s499 = sphi 0, %s499
    %s501 = sphi 0, %s499
    %s502 = sphi 0, %s501
    %s516 = sphi 0, %s502
    %s520 = sphi 0, %s520
    %s522 = sphi 0, %s520
    %s523 = sphi 0, %s522
    %s537 = sphi 0, %s523
    %s541 = sphi 0, %s541
    %s543 = sphi 0, %s541
    %s544 = sphi 0, %s543
    %s558 = sphi 0, %s544
    %s562 = sphi 0, %s562
    %s564 = sphi 0, %s562
    %s565 = sphi 0, %s564
    %s579 = sphi 0, %s565
    %s583 = sphi 0, %s583
    %s585 = sphi 0, %s583
    %s586 = sphi 0, %s585
    %s600 = sphi 0, %s586
    %s604 = sphi 0, %s604
    %s606 = sphi 0, %s604
    %s607 = sphi 0, %s606
    %s621 = sphi 0, %s607
    %s625 = sphi 0, %s625
    %s627 = sphi 0, %s625
    %s628 = sphi 0, %s627
    %s642 = sphi 0, %s628
    %s646 = sphi 0, %s646
    %s648 = sphi 0, %s646
    %s649 = sphi 0, %s648
    %s663 = sphi 0, %s649
    %s667 = sphi 0, %s667
    %s669 = sphi 0, %s667
    %s670 = sphi 0, %s669
    %s684 = sphi 0, %s670
    %s688 = sphi 0, %s688
    %s690 = sphi 0, %s688
    %s691 = sphi 0, %s690
    %s705 = sphi 0, %s691
    %s709 = sphi 0, %s709
    %s711 = sphi 0, %s709
    %s712 = sphi 0, %s711
    %s726 = sphi 0, %s712
    %s730 = sphi 0, %s730
    %s732 = sphi 0, %s730
    %s733 = sphi 0, %s732
    %s747 = sphi 0, %s733
    %s751 = sphi 0, %s751
    %s753 = sphi 0, %s751
    %s754 = sphi 0, %s753
    %s768 = sphi 0, %s754
    %s772 = sphi 0, %s772
    %s774 = sphi 0, %s772
    %s775 = sphi 0, %s774
    %s789 = sphi 0, %s775
    %s793 = sphi 0, %s793
    %s795 = sphi 0, %s793
    %s796 = sphi 0, %s795
    %s810 = sphi 0, %s796
    %s814 = sphi 0, %s814
    %s816 = sphi 0, %s814
    %s817 = sphi 0, %s816
    %s831 = sphi 0, %s817
    %s835 = sphi 0, %s835
    %s837 = sphi 0, %s835
    %s838 = sphi 0, %s837
    %s852 = sphi 0, %s838
    %s856 = sphi 0, %s856
    %s858 = sphi 0, %s856
    %s859 = sphi 0, %s858
    %s873 = sphi 0, %s859
    %s877 = sphi 0, %s877
    %s879 = sphi 0, %s877
    %s880 = sphi 0, %s879
    %s894 = sphi 0, %s880
    %s898 = sphi 0, %s898
    %s900 = sphi 0, %s898
    %s901 = sphi 0, %s900
    %s915 = sphi 0, %s901
    %s919 = sphi 0, %s919
    %s921 = sphi 0, %s919
    %s922 = sphi 0, %s921
    %s936 = sphi 0, %s922
    %s942 = sphi 0, %s944
    %s945 = sphi 0, %s942
    %s946 = sphi 0, %s945
    %s962 = sphi 0, %s946
  $region4: #{main_classifier_forward.1} parent=0 // loop_header_branch
    %90 = sbr.rel (%p88) target = $region8
  $region5: #{main_classifier_forward.1} parent=0 // loop_body
    %s92 = ssub.s32 %s87, 1
    %s93 = ssub.s32 %s87, 2
    %s94 = sadd.s32 %s87, 1
    %s95 = ssub.s32 %s87, %s94
    %p96 = scmp.eq.s32.totalorder %s95, 0
    %s98 = sadd.s32 %s97, 1
    %s99 = scalar_select %p96, %s97, %s98
    %p102 = pneg %p96
    %p103 = scmp.eq.s32.totalorder %s87, 1
    %p104 = por %p102, %p103
    %p105 = scmp.ne.s32.totalorder %s97, %s100
    %p106 = scmp.eq.s32.totalorder %s87, 0
    %p107 = por %p105, %p106
    %p108 = scmp.ne.s32.totalorder %s97, %s100
    %p109 = scmp.eq.s32.totalorder %s92, 1
    %p110 = por %p108, %p109
    %p111 = scmp.ne.s32.totalorder %s100, %s101
    %p112 = scmp.eq.s32.totalorder %s92, 0
    %p113 = por %p111, %p112
    %p114 = scmp.ne.s32.totalorder %s100, %s101
    %p115 = scmp.eq.s32.totalorder %s93, 1
    %p116 = por %p114, %p115
    %p118 = scmp.ne.s32.totalorder %s101, %s117
    %p119 = scmp.eq.s32.totalorder %s93, 0
    %p120 = por %p118, %p119
    %s122 = sadd.s32 %s121, 1
    %p125 = scmp.eq.s32.totalorder %s87, 1
    %p126 = scmp.ne.s32.totalorder %s121, %s123
    %p127 = scmp.eq.s32.totalorder %s87, 0
    %p128 = por %p126, %p127
    %p129 = scmp.ne.s32.totalorder %s121, %s123
    %p130 = scmp.eq.s32.totalorder %s92, 1
    %p131 = por %p129, %p130
    %p132 = scmp.ne.s32.totalorder %s123, %s124
    %p133 = scmp.eq.s32.totalorder %s92, 0
    %p134 = por %p132, %p133
    %p135 = scmp.ne.s32.totalorder %s123, %s124
    %p136 = scmp.eq.s32.totalorder %s93, 1
    %p137 = por %p135, %p136
    %p139 = scmp.ne.s32.totalorder %s124, %s138
    %p140 = scmp.eq.s32.totalorder %s93, 0
    %p141 = por %p139, %p140
    %s143 = sadd.s32 %s142, 1
    %p146 = scmp.eq.s32.totalorder %s87, 1
    %p147 = scmp.ne.s32.totalorder %s142, %s144
    %p148 = scmp.eq.s32.totalorder %s87, 0
    %p149 = por %p147, %p148
    %p150 = scmp.ne.s32.totalorder %s142, %s144
    %p151 = scmp.eq.s32.totalorder %s92, 1
    %p152 = por %p150, %p151
    %p153 = scmp.ne.s32.totalorder %s144, %s145
    %p154 = scmp.eq.s32.totalorder %s92, 0
    %p155 = por %p153, %p154
    %p156 = scmp.ne.s32.totalorder %s144, %s145
    %p157 = scmp.eq.s32.totalorder %s93, 1
    %p158 = por %p156, %p157
    %p160 = scmp.ne.s32.totalorder %s145, %s159
    %p161 = scmp.eq.s32.totalorder %s93, 0
    %p162 = por %p160, %p161
    %s164 = sadd.s32 %s163, 1
    %p167 = scmp.eq.s32.totalorder %s87, 1
    %p168 = scmp.ne.s32.totalorder %s163, %s165
    %p169 = scmp.eq.s32.totalorder %s87, 0
    %p170 = por %p168, %p169
    %p171 = scmp.ne.s32.totalorder %s163, %s165
    %p172 = scmp.eq.s32.totalorder %s92, 1
    %p173 = por %p171, %p172
    %p174 = scmp.ne.s32.totalorder %s165, %s166
    %p175 = scmp.eq.s32.totalorder %s92, 0
    %p176 = por %p174, %p175
    %p177 = scmp.ne.s32.totalorder %s165, %s166
    %p178 = scmp.eq.s32.totalorder %s93, 1
    %p179 = por %p177, %p178
    %p181 = scmp.ne.s32.totalorder %s166, %s180
    %p182 = scmp.eq.s32.totalorder %s93, 0
    %p183 = por %p181, %p182
    %s185 = sadd.s32 %s184, 1
    %p188 = scmp.eq.s32.totalorder %s87, 1
    %p189 = scmp.ne.s32.totalorder %s184, %s186
    %p190 = scmp.eq.s32.totalorder %s87, 0
    %p191 = por %p189, %p190
    %p192 = scmp.ne.s32.totalorder %s184, %s186
    %p193 = scmp.eq.s32.totalorder %s92, 1
    %p194 = por %p192, %p193
    %p195 = scmp.ne.s32.totalorder %s186, %s187
    %p196 = scmp.eq.s32.totalorder %s92, 0
    %p197 = por %p195, %p196
    %p198 = scmp.ne.s32.totalorder %s186, %s187
    %p199 = scmp.eq.s32.totalorder %s93, 1
    %p200 = por %p198, %p199
    %p202 = scmp.ne.s32.totalorder %s187, %s201
    %p203 = scmp.eq.s32.totalorder %s93, 0
    %p204 = por %p202, %p203
    %s206 = sadd.s32 %s205, 1
    %p209 = scmp.eq.s32.totalorder %s87, 1
    %p210 = scmp.ne.s32.totalorder %s205, %s207
    %p211 = scmp.eq.s32.totalorder %s87, 0
    %p212 = por %p210, %p211
    %p213 = scmp.ne.s32.totalorder %s205, %s207
    %p214 = scmp.eq.s32.totalorder %s92, 1
    %p215 = por %p213, %p214
    %p216 = scmp.ne.s32.totalorder %s207, %s208
    %p217 = scmp.eq.s32.totalorder %s92, 0
    %p218 = por %p216, %p217
    %p219 = scmp.ne.s32.totalorder %s207, %s208
    %p220 = scmp.eq.s32.totalorder %s93, 1
    %p221 = por %p219, %p220
    %p223 = scmp.ne.s32.totalorder %s208, %s222
    %p224 = scmp.eq.s32.totalorder %s93, 0
    %p225 = por %p223, %p224
    %s227 = sadd.s32 %s226, 1
    %p230 = scmp.eq.s32.totalorder %s87, 1
    %p231 = scmp.ne.s32.totalorder %s226, %s228
    %p232 = scmp.eq.s32.totalorder %s87, 0
    %p233 = por %p231, %p232
    %p234 = scmp.ne.s32.totalorder %s226, %s228
    %p235 = scmp.eq.s32.totalorder %s92, 1
    %p236 = por %p234, %p235
    %p237 = scmp.ne.s32.totalorder %s228, %s229
    %p238 = scmp.eq.s32.totalorder %s92, 0
    %p239 = por %p237, %p238
    %p240 = scmp.ne.s32.totalorder %s228, %s229
    %p241 = scmp.eq.s32.totalorder %s93, 1
    %p242 = por %p240, %p241
    %p244 = scmp.ne.s32.totalorder %s229, %s243
    %p245 = scmp.eq.s32.totalorder %s93, 0
    %p246 = por %p244, %p245
    %s248 = sadd.s32 %s247, 1
    %p251 = scmp.eq.s32.totalorder %s87, 1
    %p252 = scmp.ne.s32.totalorder %s247, %s249
    %p253 = scmp.eq.s32.totalorder %s87, 0
    %p254 = por %p252, %p253
    %p255 = scmp.ne.s32.totalorder %s247, %s249
    %p256 = scmp.eq.s32.totalorder %s92, 1
    %p257 = por %p255, %p256
    %p258 = scmp.ne.s32.totalorder %s249, %s250
    %p259 = scmp.eq.s32.totalorder %s92, 0
    %p260 = por %p258, %p259
    %p261 = scmp.ne.s32.totalorder %s249, %s250
    %p262 = scmp.eq.s32.totalorder %s93, 1
    %p263 = por %p261, %p262
    %p265 = scmp.ne.s32.totalorder %s250, %s264
    %p266 = scmp.eq.s32.totalorder %s93, 0
    %p267 = por %p265, %p266
    %s269 = sadd.s32 %s268, 1
    %p272 = scmp.eq.s32.totalorder %s87, 1
    %p273 = scmp.ne.s32.totalorder %s268, %s270
    %p274 = scmp.eq.s32.totalorder %s87, 0
    %p275 = por %p273, %p274
    %p276 = scmp.ne.s32.totalorder %s268, %s270
    %p277 = scmp.eq.s32.totalorder %s92, 1
    %p278 = por %p276, %p277
    %p279 = scmp.ne.s32.totalorder %s270, %s271
    %p280 = scmp.eq.s32.totalorder %s92, 0
    %p281 = por %p279, %p280
    %p282 = scmp.ne.s32.totalorder %s270, %s271
    %p283 = scmp.eq.s32.totalorder %s93, 1
    %p284 = por %p282, %p283
    %p286 = scmp.ne.s32.totalorder %s271, %s285
    %p287 = scmp.eq.s32.totalorder %s93, 0
    %p288 = por %p286, %p287
    %s290 = sadd.s32 %s289, 1
    %p293 = scmp.eq.s32.totalorder %s87, 1
    %p294 = scmp.ne.s32.totalorder %s289, %s291
    %p295 = scmp.eq.s32.totalorder %s87, 0
    %p296 = por %p294, %p295
    %p297 = scmp.ne.s32.totalorder %s289, %s291
    %p298 = scmp.eq.s32.totalorder %s92, 1
    %p299 = por %p297, %p298
    %p300 = scmp.ne.s32.totalorder %s291, %s292
    %p301 = scmp.eq.s32.totalorder %s92, 0
    %p302 = por %p300, %p301
    %p303 = scmp.ne.s32.totalorder %s291, %s292
    %p304 = scmp.eq.s32.totalorder %s93, 1
    %p305 = por %p303, %p304
    %p307 = scmp.ne.s32.totalorder %s292, %s306
    %p308 = scmp.eq.s32.totalorder %s93, 0
    %p309 = por %p307, %p308
    %s311 = sadd.s32 %s310, 1
    %p314 = scmp.eq.s32.totalorder %s87, 1
    %p315 = scmp.ne.s32.totalorder %s310, %s312
    %p316 = scmp.eq.s32.totalorder %s87, 0
    %p317 = por %p315, %p316
    %p318 = scmp.ne.s32.totalorder %s310, %s312
    %p319 = scmp.eq.s32.totalorder %s92, 1
    %p320 = por %p318, %p319
    %p321 = scmp.ne.s32.totalorder %s312, %s313
    %p322 = scmp.eq.s32.totalorder %s92, 0
    %p323 = por %p321, %p322
    %p324 = scmp.ne.s32.totalorder %s312, %s313
    %p325 = scmp.eq.s32.totalorder %s93, 1
    %p326 = por %p324, %p325
    %p328 = scmp.ne.s32.totalorder %s313, %s327
    %p329 = scmp.eq.s32.totalorder %s93, 0
    %p330 = por %p328, %p329
    %s332 = sadd.s32 %s331, 1
    %p335 = scmp.eq.s32.totalorder %s87, 1
    %p336 = scmp.ne.s32.totalorder %s331, %s333
    %p337 = scmp.eq.s32.totalorder %s87, 0
    %p338 = por %p336, %p337
    %p339 = scmp.ne.s32.totalorder %s331, %s333
    %p340 = scmp.eq.s32.totalorder %s92, 1
    %p341 = por %p339, %p340
    %p342 = scmp.ne.s32.totalorder %s333, %s334
    %p343 = scmp.eq.s32.totalorder %s92, 0
    %p344 = por %p342, %p343
    %p345 = scmp.ne.s32.totalorder %s333, %s334
    %p346 = scmp.eq.s32.totalorder %s93, 1
    %p347 = por %p345, %p346
    %p349 = scmp.ne.s32.totalorder %s334, %s348
    %p350 = scmp.eq.s32.totalorder %s93, 0
    %p351 = por %p349, %p350
    %s353 = sadd.s32 %s352, 1
    %p356 = scmp.eq.s32.totalorder %s87, 1
    %p357 = scmp.ne.s32.totalorder %s352, %s354
    %p358 = scmp.eq.s32.totalorder %s87, 0
    %p359 = por %p357, %p358
    %p360 = scmp.ne.s32.totalorder %s352, %s354
    %p361 = scmp.eq.s32.totalorder %s92, 1
    %p362 = por %p360, %p361
    %p363 = scmp.ne.s32.totalorder %s354, %s355
    %p364 = scmp.eq.s32.totalorder %s92, 0
    %p365 = por %p363, %p364
    %p366 = scmp.ne.s32.totalorder %s354, %s355
    %p367 = scmp.eq.s32.totalorder %s93, 1
    %p368 = por %p366, %p367
    %p370 = scmp.ne.s32.totalorder %s355, %s369
    %p371 = scmp.eq.s32.totalorder %s93, 0
    %p372 = por %p370, %p371
    %s374 = sadd.s32 %s373, 1
    %p377 = scmp.eq.s32.totalorder %s87, 1
    %p378 = scmp.ne.s32.totalorder %s373, %s375
    %p379 = scmp.eq.s32.totalorder %s87, 0
    %p380 = por %p378, %p379
    %p381 = scmp.ne.s32.totalorder %s373, %s375
    %p382 = scmp.eq.s32.totalorder %s92, 1
    %p383 = por %p381, %p382
    %p384 = scmp.ne.s32.totalorder %s375, %s376
    %p385 = scmp.eq.s32.totalorder %s92, 0
    %p386 = por %p384, %p385
    %p387 = scmp.ne.s32.totalorder %s375, %s376
    %p388 = scmp.eq.s32.totalorder %s93, 1
    %p389 = por %p387, %p388
    %p391 = scmp.ne.s32.totalorder %s376, %s390
    %p392 = scmp.eq.s32.totalorder %s93, 0
    %p393 = por %p391, %p392
    %s395 = sadd.s32 %s394, 1
    %p398 = scmp.eq.s32.totalorder %s87, 1
    %p399 = scmp.ne.s32.totalorder %s394, %s396
    %p400 = scmp.eq.s32.totalorder %s87, 0
    %p401 = por %p399, %p400
    %p402 = scmp.ne.s32.totalorder %s394, %s396
    %p403 = scmp.eq.s32.totalorder %s92, 1
    %p404 = por %p402, %p403
    %p405 = scmp.ne.s32.totalorder %s396, %s397
    %p406 = scmp.eq.s32.totalorder %s92, 0
    %p407 = por %p405, %p406
    %p408 = scmp.ne.s32.totalorder %s396, %s397
    %p409 = scmp.eq.s32.totalorder %s93, 1
    %p410 = por %p408, %p409
    %p412 = scmp.ne.s32.totalorder %s397, %s411
    %p413 = scmp.eq.s32.totalorder %s93, 0
    %p414 = por %p412, %p413
    %s416 = sadd.s32 %s415, 1
    %p419 = scmp.eq.s32.totalorder %s87, 1
    %p420 = scmp.ne.s32.totalorder %s415, %s417
    %p421 = scmp.eq.s32.totalorder %s87, 0
    %p422 = por %p420, %p421
    %p423 = scmp.ne.s32.totalorder %s415, %s417
    %p424 = scmp.eq.s32.totalorder %s92, 1
    %p425 = por %p423, %p424
    %p426 = scmp.ne.s32.totalorder %s417, %s418
    %p427 = scmp.eq.s32.totalorder %s92, 0
    %p428 = por %p426, %p427
    %p429 = scmp.ne.s32.totalorder %s417, %s418
    %p430 = scmp.eq.s32.totalorder %s93, 1
    %p431 = por %p429, %p430
    %p433 = scmp.ne.s32.totalorder %s418, %s432
    %p434 = scmp.eq.s32.totalorder %s93, 0
    %p435 = por %p433, %p434
    %s437 = sadd.s32 %s436, 1
    %p440 = scmp.eq.s32.totalorder %s87, 1
    %p441 = scmp.ne.s32.totalorder %s436, %s438
    %p442 = scmp.eq.s32.totalorder %s87, 0
    %p443 = por %p441, %p442
    %p444 = scmp.ne.s32.totalorder %s436, %s438
    %p445 = scmp.eq.s32.totalorder %s92, 1
    %p446 = por %p444, %p445
    %p447 = scmp.ne.s32.totalorder %s438, %s439
    %p448 = scmp.eq.s32.totalorder %s92, 0
    %p449 = por %p447, %p448
    %p450 = scmp.ne.s32.totalorder %s438, %s439
    %p451 = scmp.eq.s32.totalorder %s93, 1
    %p452 = por %p450, %p451
    %p454 = scmp.ne.s32.totalorder %s439, %s453
    %p455 = scmp.eq.s32.totalorder %s93, 0
    %p456 = por %p454, %p455
    %s458 = sadd.s32 %s457, 1
    %p461 = scmp.eq.s32.totalorder %s87, 1
    %p462 = scmp.ne.s32.totalorder %s457, %s459
    %p463 = scmp.eq.s32.totalorder %s87, 0
    %p464 = por %p462, %p463
    %p465 = scmp.ne.s32.totalorder %s457, %s459
    %p466 = scmp.eq.s32.totalorder %s92, 1
    %p467 = por %p465, %p466
    %p468 = scmp.ne.s32.totalorder %s459, %s460
    %p469 = scmp.eq.s32.totalorder %s92, 0
    %p470 = por %p468, %p469
    %p471 = scmp.ne.s32.totalorder %s459, %s460
    %p472 = scmp.eq.s32.totalorder %s93, 1
    %p473 = por %p471, %p472
    %p475 = scmp.ne.s32.totalorder %s460, %s474
    %p476 = scmp.eq.s32.totalorder %s93, 0
    %p477 = por %p475, %p476
    %s479 = sadd.s32 %s478, 1
    %p482 = scmp.eq.s32.totalorder %s87, 1
    %p483 = scmp.ne.s32.totalorder %s478, %s480
    %p484 = scmp.eq.s32.totalorder %s87, 0
    %p485 = por %p483, %p484
    %p486 = scmp.ne.s32.totalorder %s478, %s480
    %p487 = scmp.eq.s32.totalorder %s92, 1
    %p488 = por %p486, %p487
    %p489 = scmp.ne.s32.totalorder %s480, %s481
    %p490 = scmp.eq.s32.totalorder %s92, 0
    %p491 = por %p489, %p490
    %p492 = scmp.ne.s32.totalorder %s480, %s481
    %p493 = scmp.eq.s32.totalorder %s93, 1
    %p494 = por %p492, %p493
    %p496 = scmp.ne.s32.totalorder %s481, %s495
    %p497 = scmp.eq.s32.totalorder %s93, 0
    %p498 = por %p496, %p497
    %s500 = sadd.s32 %s499, 1
    %p503 = scmp.eq.s32.totalorder %s87, 1
    %p504 = scmp.ne.s32.totalorder %s499, %s501
    %p505 = scmp.eq.s32.totalorder %s87, 0
    %p506 = por %p504, %p505
    %p507 = scmp.ne.s32.totalorder %s499, %s501
    %p508 = scmp.eq.s32.totalorder %s92, 1
    %p509 = por %p507, %p508
    %p510 = scmp.ne.s32.totalorder %s501, %s502
    %p511 = scmp.eq.s32.totalorder %s92, 0
    %p512 = por %p510, %p511
    %p513 = scmp.ne.s32.totalorder %s501, %s502
    %p514 = scmp.eq.s32.totalorder %s93, 1
    %p515 = por %p513, %p514
    %p517 = scmp.ne.s32.totalorder %s502, %s516
    %p518 = scmp.eq.s32.totalorder %s93, 0
    %p519 = por %p517, %p518
    %s521 = sadd.s32 %s520, 1
    %p524 = scmp.eq.s32.totalorder %s87, 1
    %p525 = scmp.ne.s32.totalorder %s520, %s522
    %p526 = scmp.eq.s32.totalorder %s87, 0
    %p527 = por %p525, %p526
    %p528 = scmp.ne.s32.totalorder %s520, %s522
    %p529 = scmp.eq.s32.totalorder %s92, 1
    %p530 = por %p528, %p529
    %p531 = scmp.ne.s32.totalorder %s522, %s523
    %p532 = scmp.eq.s32.totalorder %s92, 0
    %p533 = por %p531, %p532
    %p534 = scmp.ne.s32.totalorder %s522, %s523
    %p535 = scmp.eq.s32.totalorder %s93, 1
    %p536 = por %p534, %p535
    %p538 = scmp.ne.s32.totalorder %s523, %s537
    %p539 = scmp.eq.s32.totalorder %s93, 0
    %p540 = por %p538, %p539
    %s542 = sadd.s32 %s541, 1
    %p545 = scmp.eq.s32.totalorder %s87, 1
    %p546 = scmp.ne.s32.totalorder %s541, %s543
    %p547 = scmp.eq.s32.totalorder %s87, 0
    %p548 = por %p546, %p547
    %p549 = scmp.ne.s32.totalorder %s541, %s543
    %p550 = scmp.eq.s32.totalorder %s92, 1
    %p551 = por %p549, %p550
    %p552 = scmp.ne.s32.totalorder %s543, %s544
    %p553 = scmp.eq.s32.totalorder %s92, 0
    %p554 = por %p552, %p553
    %p555 = scmp.ne.s32.totalorder %s543, %s544
    %p556 = scmp.eq.s32.totalorder %s93, 1
    %p557 = por %p555, %p556
    %p559 = scmp.ne.s32.totalorder %s544, %s558
    %p560 = scmp.eq.s32.totalorder %s93, 0
    %p561 = por %p559, %p560
    %s563 = sadd.s32 %s562, 1
    %p566 = scmp.eq.s32.totalorder %s87, 1
    %p567 = scmp.ne.s32.totalorder %s562, %s564
    %p568 = scmp.eq.s32.totalorder %s87, 0
    %p569 = por %p567, %p568
    %p570 = scmp.ne.s32.totalorder %s562, %s564
    %p571 = scmp.eq.s32.totalorder %s92, 1
    %p572 = por %p570, %p571
    %p573 = scmp.ne.s32.totalorder %s564, %s565
    %p574 = scmp.eq.s32.totalorder %s92, 0
    %p575 = por %p573, %p574
    %p576 = scmp.ne.s32.totalorder %s564, %s565
    %p577 = scmp.eq.s32.totalorder %s93, 1
    %p578 = por %p576, %p577
    %p580 = scmp.ne.s32.totalorder %s565, %s579
    %p581 = scmp.eq.s32.totalorder %s93, 0
    %p582 = por %p580, %p581
    %s584 = sadd.s32 %s583, 1
    %p587 = scmp.eq.s32.totalorder %s87, 1
    %p588 = scmp.ne.s32.totalorder %s583, %s585
    %p589 = scmp.eq.s32.totalorder %s87, 0
    %p590 = por %p588, %p589
    %p591 = scmp.ne.s32.totalorder %s583, %s585
    %p592 = scmp.eq.s32.totalorder %s92, 1
    %p593 = por %p591, %p592
    %p594 = scmp.ne.s32.totalorder %s585, %s586
    %p595 = scmp.eq.s32.totalorder %s92, 0
    %p596 = por %p594, %p595
    %p597 = scmp.ne.s32.totalorder %s585, %s586
    %p598 = scmp.eq.s32.totalorder %s93, 1
    %p599 = por %p597, %p598
    %p601 = scmp.ne.s32.totalorder %s586, %s600
    %p602 = scmp.eq.s32.totalorder %s93, 0
    %p603 = por %p601, %p602
    %s605 = sadd.s32 %s604, 1
    %p608 = scmp.eq.s32.totalorder %s87, 1
    %p609 = scmp.ne.s32.totalorder %s604, %s606
    %p610 = scmp.eq.s32.totalorder %s87, 0
    %p611 = por %p609, %p610
    %p612 = scmp.ne.s32.totalorder %s604, %s606
    %p613 = scmp.eq.s32.totalorder %s92, 1
    %p614 = por %p612, %p613
    %p615 = scmp.ne.s32.totalorder %s606, %s607
    %p616 = scmp.eq.s32.totalorder %s92, 0
    %p617 = por %p615, %p616
    %p618 = scmp.ne.s32.totalorder %s606, %s607
    %p619 = scmp.eq.s32.totalorder %s93, 1
    %p620 = por %p618, %p619
    %p622 = scmp.ne.s32.totalorder %s607, %s621
    %p623 = scmp.eq.s32.totalorder %s93, 0
    %p624 = por %p622, %p623
    %s626 = sadd.s32 %s625, 1
    %p629 = scmp.eq.s32.totalorder %s87, 1
    %p630 = scmp.ne.s32.totalorder %s625, %s627
    %p631 = scmp.eq.s32.totalorder %s87, 0
    %p632 = por %p630, %p631
    %p633 = scmp.ne.s32.totalorder %s625, %s627
    %p634 = scmp.eq.s32.totalorder %s92, 1
    %p635 = por %p633, %p634
    %p636 = scmp.ne.s32.totalorder %s627, %s628
    %p637 = scmp.eq.s32.totalorder %s92, 0
    %p638 = por %p636, %p637
    %p639 = scmp.ne.s32.totalorder %s627, %s628
    %p640 = scmp.eq.s32.totalorder %s93, 1
    %p641 = por %p639, %p640
    %p643 = scmp.ne.s32.totalorder %s628, %s642
    %p644 = scmp.eq.s32.totalorder %s93, 0
    %p645 = por %p643, %p644
    %s647 = sadd.s32 %s646, 1
    %p650 = scmp.eq.s32.totalorder %s87, 1
    %p651 = scmp.ne.s32.totalorder %s646, %s648
    %p652 = scmp.eq.s32.totalorder %s87, 0
    %p653 = por %p651, %p652
    %p654 = scmp.ne.s32.totalorder %s646, %s648
    %p655 = scmp.eq.s32.totalorder %s92, 1
    %p656 = por %p654, %p655
    %p657 = scmp.ne.s32.totalorder %s648, %s649
    %p658 = scmp.eq.s32.totalorder %s92, 0
    %p659 = por %p657, %p658
    %p660 = scmp.ne.s32.totalorder %s648, %s649
    %p661 = scmp.eq.s32.totalorder %s93, 1
    %p662 = por %p660, %p661
    %p664 = scmp.ne.s32.totalorder %s649, %s663
    %p665 = scmp.eq.s32.totalorder %s93, 0
    %p666 = por %p664, %p665
    %s668 = sadd.s32 %s667, 1
    %p671 = scmp.eq.s32.totalorder %s87, 1
    %p672 = scmp.ne.s32.totalorder %s667, %s669
    %p673 = scmp.eq.s32.totalorder %s87, 0
    %p674 = por %p672, %p673
    %p675 = scmp.ne.s32.totalorder %s667, %s669
    %p676 = scmp.eq.s32.totalorder %s92, 1
    %p677 = por %p675, %p676
    %p678 = scmp.ne.s32.totalorder %s669, %s670
    %p679 = scmp.eq.s32.totalorder %s92, 0
    %p680 = por %p678, %p679
    %p681 = scmp.ne.s32.totalorder %s669, %s670
    %p682 = scmp.eq.s32.totalorder %s93, 1
    %p683 = por %p681, %p682
    %p685 = scmp.ne.s32.totalorder %s670, %s684
    %p686 = scmp.eq.s32.totalorder %s93, 0
    %p687 = por %p685, %p686
    %s689 = sadd.s32 %s688, 1
    %p692 = scmp.eq.s32.totalorder %s87, 1
    %p693 = scmp.ne.s32.totalorder %s688, %s690
    %p694 = scmp.eq.s32.totalorder %s87, 0
    %p695 = por %p693, %p694
    %p696 = scmp.ne.s32.totalorder %s688, %s690
    %p697 = scmp.eq.s32.totalorder %s92, 1
    %p698 = por %p696, %p697
    %p699 = scmp.ne.s32.totalorder %s690, %s691
    %p700 = scmp.eq.s32.totalorder %s92, 0
    %p701 = por %p699, %p700
    %p702 = scmp.ne.s32.totalorder %s690, %s691
    %p703 = scmp.eq.s32.totalorder %s93, 1
    %p704 = por %p702, %p703
    %p706 = scmp.ne.s32.totalorder %s691, %s705
    %p707 = scmp.eq.s32.totalorder %s93, 0
    %p708 = por %p706, %p707
    %s710 = sadd.s32 %s709, 1
    %p713 = scmp.eq.s32.totalorder %s87, 1
    %p714 = scmp.ne.s32.totalorder %s709, %s711
    %p715 = scmp.eq.s32.totalorder %s87, 0
    %p716 = por %p714, %p715
    %p717 = scmp.ne.s32.totalorder %s709, %s711
    %p718 = scmp.eq.s32.totalorder %s92, 1
    %p719 = por %p717, %p718
    %p720 = scmp.ne.s32.totalorder %s711, %s712
    %p721 = scmp.eq.s32.totalorder %s92, 0
    %p722 = por %p720, %p721
    %p723 = scmp.ne.s32.totalorder %s711, %s712
    %p724 = scmp.eq.s32.totalorder %s93, 1
    %p725 = por %p723, %p724
    %p727 = scmp.ne.s32.totalorder %s712, %s726
    %p728 = scmp.eq.s32.totalorder %s93, 0
    %p729 = por %p727, %p728
    %s731 = sadd.s32 %s730, 1
    %p734 = scmp.eq.s32.totalorder %s87, 1
    %p735 = scmp.ne.s32.totalorder %s730, %s732
    %p736 = scmp.eq.s32.totalorder %s87, 0
    %p737 = por %p735, %p736
    %p738 = scmp.ne.s32.totalorder %s730, %s732
    %p739 = scmp.eq.s32.totalorder %s92, 1
    %p740 = por %p738, %p739
    %p741 = scmp.ne.s32.totalorder %s732, %s733
    %p742 = scmp.eq.s32.totalorder %s92, 0
    %p743 = por %p741, %p742
    %p744 = scmp.ne.s32.totalorder %s732, %s733
    %p745 = scmp.eq.s32.totalorder %s93, 1
    %p746 = por %p744, %p745
    %p748 = scmp.ne.s32.totalorder %s733, %s747
    %p749 = scmp.eq.s32.totalorder %s93, 0
    %p750 = por %p748, %p749
    %s752 = sadd.s32 %s751, 1
    %p755 = scmp.eq.s32.totalorder %s87, 1
    %p756 = scmp.ne.s32.totalorder %s751, %s753
    %p757 = scmp.eq.s32.totalorder %s87, 0
    %p758 = por %p756, %p757
    %p759 = scmp.ne.s32.totalorder %s751, %s753
    %p760 = scmp.eq.s32.totalorder %s92, 1
    %p761 = por %p759, %p760
    %p762 = scmp.ne.s32.totalorder %s753, %s754
    %p763 = scmp.eq.s32.totalorder %s92, 0
    %p764 = por %p762, %p763
    %p765 = scmp.ne.s32.totalorder %s753, %s754
    %p766 = scmp.eq.s32.totalorder %s93, 1
    %p767 = por %p765, %p766
    %p769 = scmp.ne.s32.totalorder %s754, %s768
    %p770 = scmp.eq.s32.totalorder %s93, 0
    %p771 = por %p769, %p770
    %s773 = sadd.s32 %s772, 1
    %p776 = scmp.eq.s32.totalorder %s87, 1
    %p777 = scmp.ne.s32.totalorder %s772, %s774
    %p778 = scmp.eq.s32.totalorder %s87, 0
    %p779 = por %p777, %p778
    %p780 = scmp.ne.s32.totalorder %s772, %s774
    %p781 = scmp.eq.s32.totalorder %s92, 1
    %p782 = por %p780, %p781
    %p783 = scmp.ne.s32.totalorder %s774, %s775
    %p784 = scmp.eq.s32.totalorder %s92, 0
    %p785 = por %p783, %p784
    %p786 = scmp.ne.s32.totalorder %s774, %s775
    %p787 = scmp.eq.s32.totalorder %s93, 1
    %p788 = por %p786, %p787
    %p790 = scmp.ne.s32.totalorder %s775, %s789
    %p791 = scmp.eq.s32.totalorder %s93, 0
    %p792 = por %p790, %p791
    %s794 = sadd.s32 %s793, 1
    %p797 = scmp.eq.s32.totalorder %s87, 1
    %p798 = scmp.ne.s32.totalorder %s793, %s795
    %p799 = scmp.eq.s32.totalorder %s87, 0
    %p800 = por %p798, %p799
    %p801 = scmp.ne.s32.totalorder %s793, %s795
    %p802 = scmp.eq.s32.totalorder %s92, 1
    %p803 = por %p801, %p802
    %p804 = scmp.ne.s32.totalorder %s795, %s796
    %p805 = scmp.eq.s32.totalorder %s92, 0
    %p806 = por %p804, %p805
    %p807 = scmp.ne.s32.totalorder %s795, %s796
    %p808 = scmp.eq.s32.totalorder %s93, 1
    %p809 = por %p807, %p808
    %p811 = scmp.ne.s32.totalorder %s796, %s810
    %p812 = scmp.eq.s32.totalorder %s93, 0
    %p813 = por %p811, %p812
    %s815 = sadd.s32 %s814, 1
    %p818 = scmp.eq.s32.totalorder %s87, 1
    %p819 = scmp.ne.s32.totalorder %s814, %s816
    %p820 = scmp.eq.s32.totalorder %s87, 0
    %p821 = por %p819, %p820
    %p822 = scmp.ne.s32.totalorder %s814, %s816
    %p823 = scmp.eq.s32.totalorder %s92, 1
    %p824 = por %p822, %p823
    %p825 = scmp.ne.s32.totalorder %s816, %s817
    %p826 = scmp.eq.s32.totalorder %s92, 0
    %p827 = por %p825, %p826
    %p828 = scmp.ne.s32.totalorder %s816, %s817
    %p829 = scmp.eq.s32.totalorder %s93, 1
    %p830 = por %p828, %p829
    %p832 = scmp.ne.s32.totalorder %s817, %s831
    %p833 = scmp.eq.s32.totalorder %s93, 0
    %p834 = por %p832, %p833
    %s836 = sadd.s32 %s835, 1
    %p839 = scmp.eq.s32.totalorder %s87, 1
    %p840 = scmp.ne.s32.totalorder %s835, %s837
    %p841 = scmp.eq.s32.totalorder %s87, 0
    %p842 = por %p840, %p841
    %p843 = scmp.ne.s32.totalorder %s835, %s837
    %p844 = scmp.eq.s32.totalorder %s92, 1
    %p845 = por %p843, %p844
    %p846 = scmp.ne.s32.totalorder %s837, %s838
    %p847 = scmp.eq.s32.totalorder %s92, 0
    %p848 = por %p846, %p847
    %p849 = scmp.ne.s32.totalorder %s837, %s838
    %p850 = scmp.eq.s32.totalorder %s93, 1
    %p851 = por %p849, %p850
    %p853 = scmp.ne.s32.totalorder %s838, %s852
    %p854 = scmp.eq.s32.totalorder %s93, 0
    %p855 = por %p853, %p854
    %s857 = sadd.s32 %s856, 1
    %p860 = scmp.eq.s32.totalorder %s87, 1
    %p861 = scmp.ne.s32.totalorder %s856, %s858
    %p862 = scmp.eq.s32.totalorder %s87, 0
    %p863 = por %p861, %p862
    %p864 = scmp.ne.s32.totalorder %s856, %s858
    %p865 = scmp.eq.s32.totalorder %s92, 1
    %p866 = por %p864, %p865
    %p867 = scmp.ne.s32.totalorder %s858, %s859
    %p868 = scmp.eq.s32.totalorder %s92, 0
    %p869 = por %p867, %p868
    %p870 = scmp.ne.s32.totalorder %s858, %s859
    %p871 = scmp.eq.s32.totalorder %s93, 1
    %p872 = por %p870, %p871
    %p874 = scmp.ne.s32.totalorder %s859, %s873
    %p875 = scmp.eq.s32.totalorder %s93, 0
    %p876 = por %p874, %p875
    %s878 = sadd.s32 %s877, 1
    %p881 = scmp.eq.s32.totalorder %s87, 1
    %p882 = scmp.ne.s32.totalorder %s877, %s879
    %p883 = scmp.eq.s32.totalorder %s87, 0
    %p884 = por %p882, %p883
    %p885 = scmp.ne.s32.totalorder %s877, %s879
    %p886 = scmp.eq.s32.totalorder %s92, 1
    %p887 = por %p885, %p886
    %p888 = scmp.ne.s32.totalorder %s879, %s880
    %p889 = scmp.eq.s32.totalorder %s92, 0
    %p890 = por %p888, %p889
    %p891 = scmp.ne.s32.totalorder %s879, %s880
    %p892 = scmp.eq.s32.totalorder %s93, 1
    %p893 = por %p891, %p892
    %p895 = scmp.ne.s32.totalorder %s880, %s894
    %p896 = scmp.eq.s32.totalorder %s93, 0
    %p897 = por %p895, %p896
    %s899 = sadd.s32 %s898, 1
    %p902 = scmp.eq.s32.totalorder %s87, 1
    %p903 = scmp.ne.s32.totalorder %s898, %s900
    %p904 = scmp.eq.s32.totalorder %s87, 0
    %p905 = por %p903, %p904
    %p906 = scmp.ne.s32.totalorder %s898, %s900
    %p907 = scmp.eq.s32.totalorder %s92, 1
    %p908 = por %p906, %p907
    %p909 = scmp.ne.s32.totalorder %s900, %s901
    %p910 = scmp.eq.s32.totalorder %s92, 0
    %p911 = por %p909, %p910
    %p912 = scmp.ne.s32.totalorder %s900, %s901
    %p913 = scmp.eq.s32.totalorder %s93, 1
    %p914 = por %p912, %p913
    %p916 = scmp.ne.s32.totalorder %s901, %s915
    %p917 = scmp.eq.s32.totalorder %s93, 0
    %p918 = por %p916, %p917
    %s920 = sadd.s32 %s919, 1
    %p923 = scmp.eq.s32.totalorder %s87, 1
    %p924 = scmp.ne.s32.totalorder %s919, %s921
    %p925 = scmp.eq.s32.totalorder %s87, 0
    %p926 = por %p924, %p925
    %p927 = scmp.ne.s32.totalorder %s919, %s921
    %p928 = scmp.eq.s32.totalorder %s92, 1
    %p929 = por %p927, %p928
    %p930 = scmp.ne.s32.totalorder %s921, %s922
    %p931 = scmp.eq.s32.totalorder %s92, 0
    %p932 = por %p930, %p931
    %p933 = scmp.ne.s32.totalorder %s921, %s922
    %p934 = scmp.eq.s32.totalorder %s93, 1
    %p935 = por %p933, %p934
    %p937 = scmp.ne.s32.totalorder %s922, %s936
    %p938 = scmp.eq.s32.totalorder %s93, 0
    %p939 = por %p937, %p938
    %s940 = ssub.s32 %s87, %s94
    %p941 = scmp.eq.s32.totalorder %s940, 0
    %s943 = sadd.s32 %s942, 1
    %s944 = scalar_select %p941, %s942, %s943
    %p947 = pneg %p941
    %p948 = scmp.eq.s32.totalorder %s87, 1
    %p949 = por %p947, %p948
    %p950 = scmp.ne.s32.totalorder %s942, %s945
    %p951 = scmp.eq.s32.totalorder %s87, 0
    %p952 = por %p950, %p951
    %p953 = scmp.ne.s32.totalorder %s942, %s945
    %p954 = scmp.eq.s32.totalorder %s92, 1
    %p955 = por %p953, %p954
    %p956 = scmp.ne.s32.totalorder %s945, %s946
    %p957 = scmp.eq.s32.totalorder %s92, 0
    %p958 = por %p956, %p957
    %p959 = scmp.ne.s32.totalorder %s945, %s946
    %p960 = scmp.eq.s32.totalorder %s93, 1
    %p961 = por %p959, %p960
    %p963 = scmp.ne.s32.totalorder %s946, %s962
    %p964 = scmp.eq.s32.totalorder %s93, 0
    %p965 = por %p963, %p964
    %p966 = scmp.le.s32.totalorder 1, %s87
    %p967 = scmp.lt.s32.totalorder %s87, 3
    %p968 = pnand %p966, %p967
    %p969 = pneg %p968
    // Predicated region
    $region9: #{main_classifier_forward.1} parent=5 // pred_check
      _
    $region10: #{main_classifier_forward.1} parent=5 // pred_check_branch
      %971 = sbr.rel (%p968) target = $region12
    $region11: #{main_classifier_forward.1} parent=5 // pred_region
      %s972 = ssub.s32 %s87, 1
      // Predicated region
      $region13: #{main_classifier_forward.1} parent=11 // pred_check
        %p973 = pneg %p134
      $region14: #{main_classifier_forward.1} parent=11 // pred_check_branch
        %975 = sbr.rel (%p973) target = $region16
      $region15: #{main_classifier_forward.1} parent=11 // pred_region
        _
      $region16: #{main_classifier_forward.1} parent=11 // pred_fallthru
        _
      // Predicated region
      $region17: #{main_classifier_forward.1} parent=11 // pred_check
        %p976 = pneg %p155
      $region18: #{main_classifier_forward.1} parent=11 // pred_check_branch
        %978 = sbr.rel (%p976) target = $region20
      $region19: #{main_classifier_forward.1} parent=11 // pred_region
        _
      $region20: #{main_classifier_forward.1} parent=11 // pred_fallthru
        _
      // Predicated region
      $region21: #{main_classifier_forward.1} parent=11 // pred_check
        %p979 = pneg %p176
      $region22: #{main_classifier_forward.1} parent=11 // pred_check_branch
        %981 = sbr.rel (%p979) target = $region24
      $region23: #{main_classifier_forward.1} parent=11 // pred_region
        _
      $region24: #{main_classifier_forward.1} parent=11 // pred_fallthru
        _
      // Predicated region
      $region25: #{main_classifier_forward.1} parent=11 // pred_check
        %p982 = pneg %p197
      $region26: #{main_classifier_forward.1} parent=11 // pred_check_branch
        %984 = sbr.rel (%p982) target = $region28
      $region27: #{main_classifier_forward.1} parent=11 // pred_region
        _
      $region28: #{main_classifier_forward.1} parent=11 // pred_fallthru
        _
      // Predicated region
      $region29: #{main_classifier_forward.1} parent=11 // pred_check
        %p985 = pneg %p218
      $region30: #{main_classifier_forward.1} parent=11 // pred_check_branch
        %987 = sbr.rel (%p985) target = $region32
      $region31: #{main_classifier_forward.1} parent=11 // pred_region
        _
      $region32: #{main_classifier_forward.1} parent=11 // pred_fallthru
        _
      // Predicated region
      $region33: #{main_classifier_forward.1} parent=11 // pred_check
        %p988 = pneg %p239
      $region34: #{main_classifier_forward.1} parent=11 // pred_check_branch
        %990 = sbr.rel (%p988) target = $region36
      $region35: #{main_classifier_forward.1} parent=11 // pred_region
        _
      $region36: #{main_classifier_forward.1} parent=11 // pred_fallthru
        _
      // Predicated region
      $region37: #{main_classifier_forward.1} parent=11 // pred_check
        %p991 = pneg %p260
      $region38: #{main_classifier_forward.1} parent=11 // pred_check_branch
        %993 = sbr.rel (%p991) target = $region40
      $region39: #{main_classifier_forward.1} parent=11 // pred_region
        _
      $region40: #{main_classifier_forward.1} parent=11 // pred_fallthru
        _
      // Predicated region
      $region41: #{main_classifier_forward.1} parent=11 // pred_check
        %p994 = pneg %p281
      $region42: #{main_classifier_forward.1} parent=11 // pred_check_branch
        %996 = sbr.rel (%p994) target = $region44
      $region43: #{main_classifier_forward.1} parent=11 // pred_region
        _
      $region44: #{main_classifier_forward.1} parent=11 // pred_fallthru
        _
      // Predicated region
      $region45: #{main_classifier_forward.1} parent=11 // pred_check
        %p997 = pneg %p302
      $region46: #{main_classifier_forward.1} parent=11 // pred_check_branch
        %999 = sbr.rel (%p997) target = $region48
      $region47: #{main_classifier_forward.1} parent=11 // pred_region
        _
      $region48: #{main_classifier_forward.1} parent=11 // pred_fallthru
        _
      // Predicated region
      $region49: #{main_classifier_forward.1} parent=11 // pred_check
        %p1000 = pneg %p323
      $region50: #{main_classifier_forward.1} parent=11 // pred_check_branch
        %1002 = sbr.rel (%p1000) target = $region52
      $region51: #{main_classifier_forward.1} parent=11 // pred_region
        _
      $region52: #{main_classifier_forward.1} parent=11 // pred_fallthru
        _
      // Predicated region
      $region53: #{main_classifier_forward.1} parent=11 // pred_check
        %p1003 = pneg %p344
      $region54: #{main_classifier_forward.1} parent=11 // pred_check_branch
        %1005 = sbr.rel (%p1003) target = $region56
      $region55: #{main_classifier_forward.1} parent=11 // pred_region
        _
      $region56: #{main_classifier_forward.1} parent=11 // pred_fallthru
        _
      // Predicated region
      $region57: #{main_classifier_forward.1} parent=11 // pred_check
        %p1006 = pneg %p365
      $region58: #{main_classifier_forward.1} parent=11 // pred_check_branch
        %1008 = sbr.rel (%p1006) target = $region60
      $region59: #{main_classifier_forward.1} parent=11 // pred_region
        _
      $region60: #{main_classifier_forward.1} parent=11 // pred_fallthru
        _
      // Predicated region
      $region61: #{main_classifier_forward.1} parent=11 // pred_check
        %p1009 = pneg %p386
      $region62: #{main_classifier_forward.1} parent=11 // pred_check_branch
        %1011 = sbr.rel (%p1009) target = $region64
      $region63: #{main_classifier_forward.1} parent=11 // pred_region
        _
      $region64: #{main_classifier_forward.1} parent=11 // pred_fallthru
        _
      // Predicated region
      $region65: #{main_classifier_forward.1} parent=11 // pred_check
        %p1012 = pneg %p407
      $region66: #{main_classifier_forward.1} parent=11 // pred_check_branch
        %1014 = sbr.rel (%p1012) target = $region68
      $region67: #{main_classifier_forward.1} parent=11 // pred_region
        _
      $region68: #{main_classifier_forward.1} parent=11 // pred_fallthru
        _
      // Predicated region
      $region69: #{main_classifier_forward.1} parent=11 // pred_check
        %p1015 = pneg %p428
      $region70: #{main_classifier_forward.1} parent=11 // pred_check_branch
        %1017 = sbr.rel (%p1015) target = $region72
      $region71: #{main_classifier_forward.1} parent=11 // pred_region
        _
      $region72: #{main_classifier_forward.1} parent=11 // pred_fallthru
        _
      // Predicated region
      $region73: #{main_classifier_forward.1} parent=11 // pred_check
        %p1018 = pneg %p449
      $region74: #{main_classifier_forward.1} parent=11 // pred_check_branch
        %1020 = sbr.rel (%p1018) target = $region76
      $region75: #{main_classifier_forward.1} parent=11 // pred_region
        _
      $region76: #{main_classifier_forward.1} parent=11 // pred_fallthru
        _
      // Predicated region
      $region77: #{main_classifier_forward.1} parent=11 // pred_check
        %p1021 = pneg %p470
      $region78: #{main_classifier_forward.1} parent=11 // pred_check_branch
        %1023 = sbr.rel (%p1021) target = $region80
      $region79: #{main_classifier_forward.1} parent=11 // pred_region
        _
      $region80: #{main_classifier_forward.1} parent=11 // pred_fallthru
        _
      // Predicated region
      $region81: #{main_classifier_forward.1} parent=11 // pred_check
        %p1024 = pneg %p491
      $region82: #{main_classifier_forward.1} parent=11 // pred_check_branch
        %1026 = sbr.rel (%p1024) target = $region84
      $region83: #{main_classifier_forward.1} parent=11 // pred_region
        _
      $region84: #{main_classifier_forward.1} parent=11 // pred_fallthru
        _
      // Predicated region
      $region85: #{main_classifier_forward.1} parent=11 // pred_check
        %p1027 = pneg %p512
      $region86: #{main_classifier_forward.1} parent=11 // pred_check_branch
        %1029 = sbr.rel (%p1027) target = $region88
      $region87: #{main_classifier_forward.1} parent=11 // pred_region
        _
      $region88: #{main_classifier_forward.1} parent=11 // pred_fallthru
        _
      // Predicated region
      $region89: #{main_classifier_forward.1} parent=11 // pred_check
        %p1030 = pneg %p533
      $region90: #{main_classifier_forward.1} parent=11 // pred_check_branch
        %1032 = sbr.rel (%p1030) target = $region92
      $region91: #{main_classifier_forward.1} parent=11 // pred_region
        _
      $region92: #{main_classifier_forward.1} parent=11 // pred_fallthru
        _
      // Predicated region
      $region93: #{main_classifier_forward.1} parent=11 // pred_check
        %p1033 = pneg %p554
      $region94: #{main_classifier_forward.1} parent=11 // pred_check_branch
        %1035 = sbr.rel (%p1033) target = $region96
      $region95: #{main_classifier_forward.1} parent=11 // pred_region
        _
      $region96: #{main_classifier_forward.1} parent=11 // pred_fallthru
        _
      // Predicated region
      $region97: #{main_classifier_forward.1} parent=11 // pred_check
        %p1036 = pneg %p575
      $region98: #{main_classifier_forward.1} parent=11 // pred_check_branch
        %1038 = sbr.rel (%p1036) target = $region100
      $region99: #{main_classifier_forward.1} parent=11 // pred_region
        _
      $region100: #{main_classifier_forward.1} parent=11 // pred_fallthru
        _
      // Predicated region
      $region101: #{main_classifier_forward.1} parent=11 // pred_check
        %p1039 = pneg %p596
      $region102: #{main_classifier_forward.1} parent=11 // pred_check_branch
        %1041 = sbr.rel (%p1039) target = $region104
      $region103: #{main_classifier_forward.1} parent=11 // pred_region
        _
      $region104: #{main_classifier_forward.1} parent=11 // pred_fallthru
        _
      // Predicated region
      $region105: #{main_classifier_forward.1} parent=11 // pred_check
        %p1042 = pneg %p617
      $region106: #{main_classifier_forward.1} parent=11 // pred_check_branch
        %1044 = sbr.rel (%p1042) target = $region108
      $region107: #{main_classifier_forward.1} parent=11 // pred_region
        _
      $region108: #{main_classifier_forward.1} parent=11 // pred_fallthru
        _
      // Predicated region
      $region109: #{main_classifier_forward.1} parent=11 // pred_check
        %p1045 = pneg %p638
      $region110: #{main_classifier_forward.1} parent=11 // pred_check_branch
        %1047 = sbr.rel (%p1045) target = $region112
      $region111: #{main_classifier_forward.1} parent=11 // pred_region
        _
      $region112: #{main_classifier_forward.1} parent=11 // pred_fallthru
        _
      // Predicated region
      $region113: #{main_classifier_forward.1} parent=11 // pred_check
        %p1048 = pneg %p659
      $region114: #{main_classifier_forward.1} parent=11 // pred_check_branch
        %1050 = sbr.rel (%p1048) target = $region116
      $region115: #{main_classifier_forward.1} parent=11 // pred_region
        _
      $region116: #{main_classifier_forward.1} parent=11 // pred_fallthru
        _
      // Predicated region
      $region117: #{main_classifier_forward.1} parent=11 // pred_check
        %p1051 = pneg %p680
      $region118: #{main_classifier_forward.1} parent=11 // pred_check_branch
        %1053 = sbr.rel (%p1051) target = $region120
      $region119: #{main_classifier_forward.1} parent=11 // pred_region
        _
      $region120: #{main_classifier_forward.1} parent=11 // pred_fallthru
        _
      // Predicated region
      $region121: #{main_classifier_forward.1} parent=11 // pred_check
        %p1054 = pneg %p701
      $region122: #{main_classifier_forward.1} parent=11 // pred_check_branch
        %1056 = sbr.rel (%p1054) target = $region124
      $region123: #{main_classifier_forward.1} parent=11 // pred_region
        _
      $region124: #{main_classifier_forward.1} parent=11 // pred_fallthru
        _
      // Predicated region
      $region125: #{main_classifier_forward.1} parent=11 // pred_check
        %p1057 = pneg %p722
      $region126: #{main_classifier_forward.1} parent=11 // pred_check_branch
        %1059 = sbr.rel (%p1057) target = $region128
      $region127: #{main_classifier_forward.1} parent=11 // pred_region
        _
      $region128: #{main_classifier_forward.1} parent=11 // pred_fallthru
        _
      // Predicated region
      $region129: #{main_classifier_forward.1} parent=11 // pred_check
        %p1060 = pneg %p743
      $region130: #{main_classifier_forward.1} parent=11 // pred_check_branch
        %1062 = sbr.rel (%p1060) target = $region132
      $region131: #{main_classifier_forward.1} parent=11 // pred_region
        _
      $region132: #{main_classifier_forward.1} parent=11 // pred_fallthru
        _
      // Predicated region
      $region133: #{main_classifier_forward.1} parent=11 // pred_check
        %p1063 = pneg %p764
      $region134: #{main_classifier_forward.1} parent=11 // pred_check_branch
        %1065 = sbr.rel (%p1063) target = $region136
      $region135: #{main_classifier_forward.1} parent=11 // pred_region
        _
      $region136: #{main_classifier_forward.1} parent=11 // pred_fallthru
        _
      // Predicated region
      $region137: #{main_classifier_forward.1} parent=11 // pred_check
        %p1066 = pneg %p785
      $region138: #{main_classifier_forward.1} parent=11 // pred_check_branch
        %1068 = sbr.rel (%p1066) target = $region140
      $region139: #{main_classifier_forward.1} parent=11 // pred_region
        _
      $region140: #{main_classifier_forward.1} parent=11 // pred_fallthru
        _
      // Predicated region
      $region141: #{main_classifier_forward.1} parent=11 // pred_check
        %p1069 = pneg %p806
      $region142: #{main_classifier_forward.1} parent=11 // pred_check_branch
        %1071 = sbr.rel (%p1069) target = $region144
      $region143: #{main_classifier_forward.1} parent=11 // pred_region
        _
      $region144: #{main_classifier_forward.1} parent=11 // pred_fallthru
        _
      // Predicated region
      $region145: #{main_classifier_forward.1} parent=11 // pred_check
        %p1072 = pneg %p827
      $region146: #{main_classifier_forward.1} parent=11 // pred_check_branch
        %1074 = sbr.rel (%p1072) target = $region148
      $region147: #{main_classifier_forward.1} parent=11 // pred_region
        _
      $region148: #{main_classifier_forward.1} parent=11 // pred_fallthru
        _
      // Predicated region
      $region149: #{main_classifier_forward.1} parent=11 // pred_check
        %p1075 = pneg %p848
      $region150: #{main_classifier_forward.1} parent=11 // pred_check_branch
        %1077 = sbr.rel (%p1075) target = $region152
      $region151: #{main_classifier_forward.1} parent=11 // pred_region
        _
      $region152: #{main_classifier_forward.1} parent=11 // pred_fallthru
        _
      // Predicated region
      $region153: #{main_classifier_forward.1} parent=11 // pred_check
        %p1078 = pneg %p869
      $region154: #{main_classifier_forward.1} parent=11 // pred_check_branch
        %1080 = sbr.rel (%p1078) target = $region156
      $region155: #{main_classifier_forward.1} parent=11 // pred_region
        _
      $region156: #{main_classifier_forward.1} parent=11 // pred_fallthru
        _
      // Predicated region
      $region157: #{main_classifier_forward.1} parent=11 // pred_check
        %p1081 = pneg %p890
      $region158: #{main_classifier_forward.1} parent=11 // pred_check_branch
        %1083 = sbr.rel (%p1081) target = $region160
      $region159: #{main_classifier_forward.1} parent=11 // pred_region
        _
      $region160: #{main_classifier_forward.1} parent=11 // pred_fallthru
        _
      // Predicated region
      $region161: #{main_classifier_forward.1} parent=11 // pred_check
        %p1084 = pneg %p911
      $region162: #{main_classifier_forward.1} parent=11 // pred_check_branch
        %1086 = sbr.rel (%p1084) target = $region164
      $region163: #{main_classifier_forward.1} parent=11 // pred_region
        _
      $region164: #{main_classifier_forward.1} parent=11 // pred_fallthru
        _
      // Predicated region
      $region165: #{main_classifier_forward.1} parent=11 // pred_check
        %p1087 = pneg %p932
      $region166: #{main_classifier_forward.1} parent=11 // pred_check_branch
        %1089 = sbr.rel (%p1087) target = $region168
      $region167: #{main_classifier_forward.1} parent=11 // pred_region
        _
      $region168: #{main_classifier_forward.1} parent=11 // pred_fallthru
        _
    $region12: #{main_classifier_forward.1} parent=5 // pred_fallthru
      _
    %p1090 = scmp.lt.s32.totalorder %s87, 2
    // Predicated region
    $region169: #{main_classifier_forward.1} parent=5 // pred_check
      %p1091 = pneg %p1090
    $region170: #{main_classifier_forward.1} parent=5 // pred_check_branch
      %1093 = sbr.rel (%p1091) target = $region172
    $region171: #{main_classifier_forward.1} parent=5 // pred_region
      // Predicated region
      $region173: #{main_classifier_forward.1} parent=171 // pred_check
        %p1094 = pneg %p107
      $region174: #{main_classifier_forward.1} parent=171 // pred_check_branch
        %1096 = sbr.rel (%p1094) target = $region176
      $region175: #{main_classifier_forward.1} parent=171 // pred_region
        %p1097 = scmp.lt.s32.totalorder %s87, 1
        %s1098 = scalar_select %p1097, %s87, 1
        %s1099 = smul.addr %s1098, 2
        %s1100 = smul.addr %s1099, 4
        %s1101 = scalar_lea.vmem %s1, %s1100
      $region176: #{main_classifier_forward.1} parent=171 // pred_fallthru
        _
    $region172: #{main_classifier_forward.1} parent=5 // pred_fallthru
      _
    %p1102 = scmp.le.s32.totalorder 1, %s87
    %p1103 = scmp.lt.s32.totalorder %s87, 3
    %p1104 = pnand %p1102, %p1103
    %p1105 = pneg %p1104
    // Predicated region
    $region177: #{main_classifier_forward.1} parent=5 // pred_check
      _
    $region178: #{main_classifier_forward.1} parent=5 // pred_check_branch
      %1107 = sbr.rel (%p1104) target = $region180
    $region179: #{main_classifier_forward.1} parent=5 // pred_region
      %s1108 = ssub.s32 %s87, 1
      %p1109 = scmp.lt.s32.totalorder %s92, 1
      %s1110 = scalar_select %p1109, %s92, 1
      %s1111 = smul.addr %s1110, 2
      %s1112 = smul.addr %s1111, 4
      %s1113 = scalar_lea.vmem %s1, %s1112
      %p1114 = pneg %p113
      %p1115 = pneg %p110
      %p1116 = pneg %p134
      %p1117 = pneg %p131
      %p1118 = pneg %p155
      %p1119 = pneg %p152
      %p1120 = pneg %p176
      %p1121 = pneg %p173
      %p1122 = pneg %p197
      %p1123 = pneg %p194
      %p1124 = pneg %p218
      %p1125 = pneg %p215
      %p1126 = pneg %p239
      %p1127 = pneg %p236
      %p1128 = pneg %p260
      %p1129 = pneg %p257
      %p1130 = pneg %p281
      %p1131 = pneg %p278
      %p1132 = pneg %p302
      %p1133 = pneg %p299
      %p1134 = pneg %p323
      %p1135 = pneg %p320
      %p1136 = pneg %p344
      %p1137 = pneg %p341
      %p1138 = pneg %p365
      %p1139 = pneg %p362
      %p1140 = pneg %p386
      %p1141 = pneg %p383
      %p1142 = pneg %p407
      %p1143 = pneg %p404
      %p1144 = pneg %p428
      %p1145 = pneg %p425
      %p1146 = pneg %p449
      %p1147 = pneg %p446
      %p1148 = pneg %p470
      %p1149 = pneg %p467
      %p1150 = pneg %p491
      %p1151 = pneg %p488
      %p1152 = pneg %p512
      %p1153 = pneg %p509
      %p1154 = pneg %p533
      %p1155 = pneg %p530
      %p1156 = pneg %p554
      %p1157 = pneg %p551
      %p1158 = pneg %p575
      %p1159 = pneg %p572
      %p1160 = pneg %p596
      %p1161 = pneg %p593
      %p1162 = pneg %p617
      %p1163 = pneg %p614
      %p1164 = pneg %p638
      %p1165 = pneg %p635
      %p1166 = pneg %p659
      %p1167 = pneg %p656
      %p1168 = pneg %p680
      %p1169 = pneg %p677
      %p1170 = pneg %p701
      %p1171 = pneg %p698
      %p1172 = pneg %p722
      %p1173 = pneg %p719
      %p1174 = pneg %p743
      %p1175 = pneg %p740
      %p1176 = pneg %p764
      %p1177 = pneg %p761
      %p1178 = pneg %p785
      %p1179 = pneg %p782
      %p1180 = pneg %p806
      %p1181 = pneg %p803
      %p1182 = pneg %p827
      %p1183 = pneg %p824
      %p1184 = pneg %p848
      %p1185 = pneg %p845
      %p1186 = pneg %p869
      %p1187 = pneg %p866
      %p1188 = pneg %p890
      %p1189 = pneg %p887
      %p1190 = pneg %p911
      %p1191 = pneg %p908
      %p1192 = pneg %p932
      %p1193 = pneg %p929
      %p1194 = pneg %p958
      %p1195 = pneg %p955
      %p1196 = scmp.lt.s32.totalorder %s92, 1
      %s1197 = scalar_select %p1196, %s92, 1
      %s1198 = smul.addr %s1197, 2
      %s1199 = smul.addr %s1198, 8
      %s1200 = scalar_lea.vmem %s81, %s1199
      %p1201 = scmp.lt.s32.totalorder %s92, 1
      %s1202 = scalar_select %p1201, %s92, 1
      %s1203 = smul.addr %s1202, 2
      %s1204 = smul.addr %s1203, 4
      %s1205 = scalar_lea.vmem %s1, %s1204
      %p1206 = scmp.lt.s32.totalorder %s92, 1
      %s1207 = scalar_select %p1206, %s92, 1
      %s1208 = smul.addr %s1207, 2
      %s1209 = smul.addr %s1208, 8
      %s1210 = scalar_lea.vmem %s81, %s1209
      %v1212 = vld [vmem:[%s1205] sm:$0xff]
      %v1213 = vld [vmem:[%s5] sm:$0xf]
      %v1214 = vld [vmem:[%s5 + $0x4] sm:$0xf]
      %v1215 = vld [vmem:[%s5 + $0x8] sm:$0xf]
      %v1216 = vld [vmem:[%s5 + $0xc] sm:$0xf]
      %v1217 = vld [vmem:[%s5 + $0x10] sm:$0xf]
      %v1218 = vld [vmem:[%s5 + $0x14] sm:$0xf]
      %v1219 = vld [vmem:[%s5 + $0x18] sm:$0xf]
      %v1220 = vld [vmem:[%s5 + $0x1c] sm:$0xf]
      %v1221 = vld [vmem:[%s5 + $0x20] sm:$0xf]
      %v1222 = vld [vmem:[%s5 + $0x24] sm:$0xf]
      %v1223 = vld [vmem:[%s5 + $0x28] sm:$0xf]
      %v1224 = vld [vmem:[%s5 + $0x2c] sm:$0xf]
      %v1225 = vld [vmem:[%s5 + $0x30] sm:$0xf]
      %v1226 = vld [vmem:[%s5 + $0x34] sm:$0xf]
      %v1227 = vld [vmem:[%s5 + $0x38] sm:$0xf]
      %v1228 = vld [vmem:[%s5 + $0x3c] sm:$0xf]
      %v1229 = vld [vmem:[%s5 + $0x40] sm:$0xf]
      %v1230 = vld [vmem:[%s5 + $0x44] sm:$0xf]
      %v1231 = vld [vmem:[%s5 + $0x48] sm:$0xf]
      %v1232 = vld [vmem:[%s5 + $0x4c] sm:$0xf]
      %v1233 = vld [vmem:[%s5 + $0x50] sm:$0xf]
      %v1234 = vld [vmem:[%s5 + $0x54] sm:$0xf]
      %v1235 = vld [vmem:[%s5 + $0x58] sm:$0xf]
      %v1236 = vld [vmem:[%s5 + $0x5c] sm:$0xf]
      %v1237 = vld [vmem:[%s5 + $0x60] sm:$0xf]
      %v1238 = vld [vmem:[%s5 + $0x64] sm:$0xf]
      %v1239 = vld [vmem:[%s5 + $0x68] sm:$0xf]
      %v1240 = vld [vmem:[%s5 + $0x6c] sm:$0xf]
      %v1241 = vld [vmem:[%s5 + $0x70] sm:$0xf]
      %v1242 = vld [vmem:[%s5 + $0x74] sm:$0xf]
      %v1243 = vld [vmem:[%s5 + $0x78] sm:$0xf]
      %v1244 = vld [vmem:[%s5 + $0x7c] sm:$0xf]
      %v1246 = vcombine.high %v1212, %v1212
      %v1248 = vpack.c.bf16 %v1212, %v1212
      %v1249 = vpack.c.bf16 %v1246, %v1246
      %v1282 = vunpack.c.l.b16 %v1213
      %v1283 = vunpack.c.l.b16 %v1214
      %v1284 = vunpack.c.l.b16 %v1215
      %v1285 = vunpack.c.l.b16 %v1216
      %v1286 = vunpack.c.l.b16 %v1217
      %v1287 = vunpack.c.l.b16 %v1218
      %v1288 = vunpack.c.l.b16 %v1219
      %v1289 = vunpack.c.l.b16 %v1220
      %v1290 = vunpack.c.l.b16 %v1221
      %v1291 = vunpack.c.l.b16 %v1222
      %v1292 = vunpack.c.l.b16 %v1223
      %v1293 = vunpack.c.l.b16 %v1224
      %v1294 = vunpack.c.l.b16 %v1225
      %v1295 = vunpack.c.l.b16 %v1226
      %v1296 = vunpack.c.l.b16 %v1227
      %v1297 = vunpack.c.l.b16 %v1228
      %v1298 = vunpack.c.l.b16 %v1229
      %v1299 = vunpack.c.l.b16 %v1230
      %v1300 = vunpack.c.l.b16 %v1231
      %v1301 = vunpack.c.l.b16 %v1232
      %v1302 = vunpack.c.l.b16 %v1233
      %v1303 = vunpack.c.l.b16 %v1234
      %v1304 = vunpack.c.l.b16 %v1235
      %v1305 = vunpack.c.l.b16 %v1236
      %v1306 = vunpack.c.l.b16 %v1237
      %v1307 = vunpack.c.l.b16 %v1238
      %v1308 = vunpack.c.l.b16 %v1239
      %v1309 = vunpack.c.l.b16 %v1240
      %v1310 = vunpack.c.l.b16 %v1241
      %v1311 = vunpack.c.l.b16 %v1242
      %v1312 = vunpack.c.l.b16 %v1243
      %v1313 = vunpack.c.l.b16 %v1244
      %v1314 = vpack.c.b16 %v1283, %v1282
      %v1315 = vpack.c.b16 %v1285, %v1284
      %v1316 = vpack.c.b16 %v1287, %v1286
      %v1317 = vpack.c.b16 %v1289, %v1288
      %v1318 = vpack.c.b16 %v1291, %v1290
      %v1319 = vpack.c.b16 %v1293, %v1292
      %v1320 = vpack.c.b16 %v1295, %v1294
      %v1321 = vpack.c.b16 %v1297, %v1296
      %v1322 = vpack.c.b16 %v1299, %v1298
      %v1323 = vpack.c.b16 %v1301, %v1300
      %v1324 = vpack.c.b16 %v1303, %v1302
      %v1325 = vpack.c.b16 %v1305, %v1304
      %v1326 = vpack.c.b16 %v1307, %v1306
      %v1327 = vpack.c.b16 %v1309, %v1308
      %v1328 = vpack.c.b16 %v1311, %v1310
      %v1329 = vpack.c.b16 %v1313, %v1312
      %1346 = vmatprep.subr.bf16.mxu0 0
      %1347 = vmatpush1.bf16.msra.mxu0 %v1314
      %1348 = vmatprep.subr.bf16.mxu0 0
      %1349 = vmatpush1.bf16.msra.mxu0 %v1315
      %1350 = vmatprep.subr.bf16.mxu0 0
      %1351 = vmatpush1.bf16.msra.mxu0 %v1316
      %1352 = vmatprep.subr.bf16.mxu0 0
      %1353 = vmatpush1.bf16.msra.mxu0 %v1317
      %1354 = vmatprep.subr.bf16.mxu0 0
      %1355 = vmatpush1.bf16.msra.mxu0 %v1318
      %1356 = vmatprep.subr.bf16.mxu0 0
      %1357 = vmatpush1.bf16.msra.mxu0 %v1319
      %1358 = vmatprep.subr.bf16.mxu0 0
      %1359 = vmatpush1.bf16.msra.mxu0 %v1320
      %1360 = vmatprep.subr.bf16.mxu0 0
      %1361 = vmatpush1.bf16.msra.mxu0 %v1321
      %1362 = vmatprep.subr.bf16.mxu0 0
      %1363 = vmatpush1.bf16.msra.mxu0 %v1322
      %1364 = vmatprep.subr.bf16.mxu0 0
      %1365 = vmatpush1.bf16.msra.mxu0 %v1323
      %1366 = vmatprep.subr.bf16.mxu0 0
      %1367 = vmatpush1.bf16.msra.mxu0 %v1324
      %1368 = vmatprep.subr.bf16.mxu0 0
      %1369 = vmatpush1.bf16.msra.mxu0 %v1325
      %1370 = vmatprep.subr.bf16.mxu0 0
      %1371 = vmatpush1.bf16.msra.mxu0 %v1326
      %1372 = vmatprep.subr.bf16.mxu0 0
      %1373 = vmatpush1.bf16.msra.mxu0 %v1327
      %1374 = vmatprep.subr.bf16.mxu0 0
      %1375 = vmatpush1.bf16.msra.mxu0 %v1328
      %1376 = vmatprep.subr.bf16.mxu0 0
      %1377 = vmatpush1.bf16.msra.mxu0 %v1329
      %1378 = vmatprep.mubr.bf16.mxu0 %v1249
      %1379 = vmatmul.mubr.bf16.gmra.mrb[0].mxu0 %v1248
      %v1380 = vpop.f32.mrb[0].mxu0
      %v1381 = vadd.f32 0.0, %v1380
      %v1382 = vpop.f32.mrb[0].mxu0
      %v1383 = vpop.f32.mrb[0].mxu0
      %v1384 = vpop.f32.mrb[0].mxu0
      %1385 = vdwg.mxu0
      %v1386 = vld [vmem:[%s3] sm:$0xf]
      %v1387 = vld [vmem:[%s3 + $0x4] sm:$0xf]
      %v1388 = vld [vmem:[%s3 + $0x8] sm:$0xf]
      %v1389 = vld [vmem:[%s3 + $0xc] sm:$0xf]
      %v1390 = vpack.c.bf16 %v1381, %v1381
      %s1391 = scalar_lea.vmem %s5, 128
      %v1392 = vld [vmem:[%s1391] sm:$0xf]
      %v1393 = vld [vmem:[%s1391 + $0x4] sm:$0xf]
      %v1394 = vld [vmem:[%s1391 + $0x8] sm:$0xf]
      %v1395 = vld [vmem:[%s1391 + $0xc] sm:$0xf]
      %v1396 = vld [vmem:[%s1391 + $0x10] sm:$0xf]
      %v1397 = vld [vmem:[%s1391 + $0x14] sm:$0xf]
      %v1398 = vld [vmem:[%s1391 + $0x18] sm:$0xf]
      %v1399 = vld [vmem:[%s1391 + $0x1c] sm:$0xf]
      %v1400 = vld [vmem:[%s1391 + $0x20] sm:$0xf]
      %v1401 = vld [vmem:[%s1391 + $0x24] sm:$0xf]
      %v1402 = vld [vmem:[%s1391 + $0x28] sm:$0xf]
      %v1403 = vld [vmem:[%s1391 + $0x2c] sm:$0xf]
      %v1404 = vld [vmem:[%s1391 + $0x30] sm:$0xf]
      %v1405 = vld [vmem:[%s1391 + $0x34] sm:$0xf]
      %v1406 = vld [vmem:[%s1391 + $0x38] sm:$0xf]
      %v1407 = vld [vmem:[%s1391 + $0x3c] sm:$0xf]
      %v1408 = vld [vmem:[%s1391 + $0x40] sm:$0xf]
      %v1409 = vld [vmem:[%s1391 + $0x44] sm:$0xf]
      %v1410 = vld [vmem:[%s1391 + $0x48] sm:$0xf]
      %v1411 = vld [vmem:[%s1391 + $0x4c] sm:$0xf]
      %v1412 = vld [vmem:[%s1391 + $0x50] sm:$0xf]
      %v1413 = vld [vmem:[%s1391 + $0x54] sm:$0xf]
      %v1414 = vld [vmem:[%s1391 + $0x58] sm:$0xf]
      %v1415 = vld [vmem:[%s1391 + $0x5c] sm:$0xf]
      %v1416 = vld [vmem:[%s1391 + $0x60] sm:$0xf]
      %v1417 = vld [vmem:[%s1391 + $0x64] sm:$0xf]
      %v1418 = vld [vmem:[%s1391 + $0x68] sm:$0xf]
      %v1419 = vld [vmem:[%s1391 + $0x6c] sm:$0xf]
      %v1420 = vld [vmem:[%s1391 + $0x70] sm:$0xf]
      %v1421 = vld [vmem:[%s1391 + $0x74] sm:$0xf]
      %v1422 = vld [vmem:[%s1391 + $0x78] sm:$0xf]
      %v1423 = vld [vmem:[%s1391 + $0x7c] sm:$0xf]
      %v1456 = vunpack.c.l.b16 %v1392
      %v1457 = vunpack.c.l.b16 %v1393
      %v1458 = vunpack.c.l.b16 %v1394
      %v1459 = vunpack.c.l.b16 %v1395
      %v1460 = vunpack.c.l.b16 %v1396
      %v1461 = vunpack.c.l.b16 %v1397
      %v1462 = vunpack.c.l.b16 %v1398
      %v1463 = vunpack.c.l.b16 %v1399
      %v1464 = vunpack.c.l.b16 %v1400
      %v1465 = vunpack.c.l.b16 %v1401
      %v1466 = vunpack.c.l.b16 %v1402
      %v1467 = vunpack.c.l.b16 %v1403
      %v1468 = vunpack.c.l.b16 %v1404
      %v1469 = vunpack.c.l.b16 %v1405
      %v1470 = vunpack.c.l.b16 %v1406
      %v1471 = vunpack.c.l.b16 %v1407
      %v1472 = vunpack.c.l.b16 %v1408
      %v1473 = vunpack.c.l.b16 %v1409
      %v1474 = vunpack.c.l.b16 %v1410
      %v1475 = vunpack.c.l.b16 %v1411
      %v1476 = vunpack.c.l.b16 %v1412
      %v1477 = vunpack.c.l.b16 %v1413
      %v1478 = vunpack.c.l.b16 %v1414
      %v1479 = vunpack.c.l.b16 %v1415
      %v1480 = vunpack.c.l.b16 %v1416
      %v1481 = vunpack.c.l.b16 %v1417
      %v1482 = vunpack.c.l.b16 %v1418
      %v1483 = vunpack.c.l.b16 %v1419
      %v1484 = vunpack.c.l.b16 %v1420
      %v1485 = vunpack.c.l.b16 %v1421
      %v1486 = vunpack.c.l.b16 %v1422
      %v1487 = vunpack.c.l.b16 %v1423
      %v1488 = vpack.c.b16 %v1457, %v1456
      %v1489 = vpack.c.b16 %v1459, %v1458
      %v1490 = vpack.c.b16 %v1461, %v1460
      %v1491 = vpack.c.b16 %v1463, %v1462
      %v1492 = vpack.c.b16 %v1465, %v1464
      %v1493 = vpack.c.b16 %v1467, %v1466
      %v1494 = vpack.c.b16 %v1469, %v1468
      %v1495 = vpack.c.b16 %v1471, %v1470
      %v1496 = vpack.c.b16 %v1473, %v1472
      %v1497 = vpack.c.b16 %v1475, %v1474
      %v1498 = vpack.c.b16 %v1477, %v1476
      %v1499 = vpack.c.b16 %v1479, %v1478
      %v1500 = vpack.c.b16 %v1481, %v1480
      %v1501 = vpack.c.b16 %v1483, %v1482
      %v1502 = vpack.c.b16 %v1485, %v1484
      %v1503 = vpack.c.b16 %v1487, %v1486
      %1520 = vmatprep.subr.bf16.mxu0 0
      %1521 = vmatpush1.bf16.msra.mxu0 %v1488
      %1522 = vmatprep.subr.bf16.mxu0 0
      %1523 = vmatpush1.bf16.msra.mxu0 %v1489
      %1524 = vmatprep.subr.bf16.mxu0 0
      %1525 = vmatpush1.bf16.msra.mxu0 %v1490
      %1526 = vmatprep.subr.bf16.mxu0 0
      %1527 = vmatpush1.bf16.msra.mxu0 %v1491
      %1528 = vmatprep.subr.bf16.mxu0 0
      %1529 = vmatpush1.bf16.msra.mxu0 %v1492
      %1530 = vmatprep.subr.bf16.mxu0 0
      %1531 = vmatpush1.bf16.msra.mxu0 %v1493
      %1532 = vmatprep.subr.bf16.mxu0 0
      %1533 = vmatpush1.bf16.msra.mxu0 %v1494
      %1534 = vmatprep.subr.bf16.mxu0 0
      %1535 = vmatpush1.bf16.msra.mxu0 %v1495
      %1536 = vmatprep.subr.bf16.mxu0 0
      %1537 = vmatpush1.bf16.msra.mxu0 %v1496
      %1538 = vmatprep.subr.bf16.mxu0 0
      %1539 = vmatpush1.bf16.msra.mxu0 %v1497
      %1540 = vmatprep.subr.bf16.mxu0 0
      %1541 = vmatpush1.bf16.msra.mxu0 %v1498
      %1542 = vmatprep.subr.bf16.mxu0 0
      %1543 = vmatpush1.bf16.msra.mxu0 %v1499
      %1544 = vmatprep.subr.bf16.mxu0 0
      %1545 = vmatpush1.bf16.msra.mxu0 %v1500
      %1546 = vmatprep.subr.bf16.mxu0 0
      %1547 = vmatpush1.bf16.msra.mxu0 %v1501
      %1548 = vmatprep.subr.bf16.mxu0 0
      %1549 = vmatpush1.bf16.msra.mxu0 %v1502
      %1550 = vmatprep.subr.bf16.mxu0 0
      %1551 = vmatpush1.bf16.msra.mxu0 %v1503
      %1552 = vmatprep.mubr.bf16.mxu0 %v1249
      %1553 = vmatmul.mubr.bf16.gmra.mrb[0].mxu0 %v1248
      %v1554 = vpop.f32.mrb[0].mxu0
      %v1555 = vadd.f32 0.0, %v1554
      %v1556 = vpop.f32.mrb[0].mxu0
      %v1557 = vpop.f32.mrb[0].mxu0
      %v1558 = vpop.f32.mrb[0].mxu0
      %1559 = vdwg.mxu0
      %s1560 = scalar_lea.vmem %s3, 16
      %v1561 = vld [vmem:[%s1560] sm:$0xf]
      %v1562 = vld [vmem:[%s1560 + $0x4] sm:$0xf]
      %v1563 = vld [vmem:[%s1560 + $0x8] sm:$0xf]
      %v1564 = vld [vmem:[%s1560 + $0xc] sm:$0xf]
      %v1565 = vpack.c.bf16 %v1555, %v1555
      %v1570 = vunpack.c.l.b16 %v1561
      %v1571 = vunpack.c.l.b16 %v1562
      %v1572 = vunpack.c.l.b16 %v1563
      %v1573 = vunpack.c.l.b16 %v1564
      %v1574 = vpack.c.b16 %v1571, %v1570
      %v1575 = vpack.c.b16 %v1573, %v1572
      %vm1576 = vcmask 31744
      %v1578 = vsel %vm1576, %v1574, 0
      %v1581 = vsel %vm1576, %v1575, 0
      %vm1583 = vcmask 1041408
      %v1585 = vsel %vm1583, %v1565, 0
      %1587 = vmatprep.subr.bf16.mxu0 0
      %1588 = vmatpush1.bf16.msra.mxu0 %v1585
      %1589 = vmatprep.subr.bf16.mxu0 0
      %1590 = vmatpush1.bf16.msra.mxu0 0
      %1591 = vmatprep.subr.bf16.mxu0 0
      %1592 = vmatpush1.bf16.msra.mxu0 0
      %1593 = vmatprep.subr.bf16.mxu0 0
      %1594 = vmatpush1.bf16.msra.mxu0 0
      %1595 = vmatprep.subr.bf16.mxu0 0
      %1596 = vmatpush1.bf16.msra.mxu0 0
      %1597 = vmatprep.subr.bf16.mxu0 0
      %1598 = vmatpush1.bf16.msra.mxu0 0
      %1599 = vmatprep.subr.bf16.mxu0 0
      %1600 = vmatpush1.bf16.msra.mxu0 0
      %1601 = vmatprep.subr.bf16.mxu0 0
      %1602 = vmatpush1.bf16.msra.mxu0 0
      %1603 = vmatprep.subr.bf16.mxu0 0
      %1604 = vmatpush1.bf16.msra.mxu0 0
      %1605 = vmatprep.subr.bf16.mxu0 0
      %1606 = vmatpush1.bf16.msra.mxu0 0
      %1607 = vmatprep.subr.bf16.mxu0 0
      %1608 = vmatpush1.bf16.msra.mxu0 0
      %1609 = vmatprep.subr.bf16.mxu0 0
      %1610 = vmatpush1.bf16.msra.mxu0 0
      %1611 = vmatprep.subr.bf16.mxu0 0
      %1612 = vmatpush1.bf16.msra.mxu0 0
      %1613 = vmatprep.subr.bf16.mxu0 0
      %1614 = vmatpush1.bf16.msra.mxu0 0
      %1615 = vmatprep.subr.bf16.mxu0 0
      %1616 = vmatpush1.bf16.msra.mxu0 0
      %1617 = vmatprep.subr.bf16.mxu0 0
      %1618 = vmatpush1.bf16.msra.mxu0 0
      %1619 = vmatprep.mubr.bf16.mxu0 0
      %1620 = vmatmul.mubr.bf16.gmra.mrb[0].mxu0 %v1578
      %v1621 = vpop.f32.mrb[0].mxu0
      %v1622 = vadd.f32 0.0, %v1621
      %v1623 = vpop.f32.mrb[0].mxu0
      %v1624 = vpop.f32.mrb[0].mxu0
      %v1625 = vadd.f32 0.0, %v1624
      %v1626 = vpop.f32.mrb[0].mxu0
      %1627 = vmatprep.mubr.bf16.mxu0 0
      %1628 = vmatmul.mubr.bf16.gmra.mrb[0].mxu0 %v1581
      %v1629 = vpop.f32.mrb[0].mxu0
      %v1630 = vadd.f32 0.0, %v1629
      %v1631 = vpop.f32.mrb[0].mxu0
      %v1632 = vpop.f32.mrb[0].mxu0
      %v1633 = vadd.f32 0.0, %v1632
      %v1634 = vpop.f32.mrb[0].mxu0
      %1635 = vdwg.mxu0
      %v1640 = vunpack.c.l.b16 %v1386
      %v1641 = vunpack.c.l.b16 %v1387
      %v1642 = vunpack.c.l.b16 %v1388
      %v1643 = vunpack.c.l.b16 %v1389
      %v1644 = vpack.c.b16 %v1641, %v1640
      %v1645 = vpack.c.b16 %v1643, %v1642
      %v1647 = vsel %vm1576, %v1644, 0
      %v1650 = vsel %vm1576, %v1645, 0
      %v1653 = vsel %vm1583, %v1390, 0
      %1655 = vmatprep.subr.bf16.mxu0 0
      %1656 = vmatpush1.bf16.msra.mxu0 %v1653
      %1657 = vmatprep.subr.bf16.mxu0 0
      %1658 = vmatpush1.bf16.msra.mxu0 0
      %1659 = vmatprep.subr.bf16.mxu0 0
      %1660 = vmatpush1.bf16.msra.mxu0 0
      %1661 = vmatprep.subr.bf16.mxu0 0
      %1662 = vmatpush1.bf16.msra.mxu0 0
      %1663 = vmatprep.subr.bf16.mxu0 0
      %1664 = vmatpush1.bf16.msra.mxu0 0
      %1665 = vmatprep.subr.bf16.mxu0 0
      %1666 = vmatpush1.bf16.msra.mxu0 0
      %1667 = vmatprep.subr.bf16.mxu0 0
      %1668 = vmatpush1.bf16.msra.mxu0 0
      %1669 = vmatprep.subr.bf16.mxu0 0
      %1670 = vmatpush1.bf16.msra.mxu0 0
      %1671 = vmatprep.subr.bf16.mxu0 0
      %1672 = vmatpush1.bf16.msra.mxu0 0
      %1673 = vmatprep.subr.bf16.mxu0 0
      %1674 = vmatpush1.bf16.msra.mxu0 0
      %1675 = vmatprep.subr.bf16.mxu0 0
      %1676 = vmatpush1.bf16.msra.mxu0 0
      %1677 = vmatprep.subr.bf16.mxu0 0
      %1678 = vmatpush1.bf16.msra.mxu0 0
      %1679 = vmatprep.subr.bf16.mxu0 0
      %1680 = vmatpush1.bf16.msra.mxu0 0
      %1681 = vmatprep.subr.bf16.mxu0 0
      %1682 = vmatpush1.bf16.msra.mxu0 0
      %1683 = vmatprep.subr.bf16.mxu0 0
      %1684 = vmatpush1.bf16.msra.mxu0 0
      %1685 = vmatprep.subr.bf16.mxu0 0
      %1686 = vmatpush1.bf16.msra.mxu0 0
      %1687 = vmatprep.mubr.bf16.mxu0 0
      %1688 = vmatmul.mubr.bf16.gmra.mrb[0].mxu0 %v1647
      %v1689 = vpop.f32.mrb[0].mxu0
      %v1690 = vadd.f32 %v1622, %v1689
      %v1691 = vpop.f32.mrb[0].mxu0
      %v1692 = vpop.f32.mrb[0].mxu0
      %v1693 = vadd.f32 %v1625, %v1692
      %v1694 = vpop.f32.mrb[0].mxu0
      %1695 = vmatprep.mubr.bf16.mxu0 0
      %1696 = vmatmul.mubr.bf16.gmra.mrb[0].mxu0 %v1650
      %v1697 = vpop.f32.mrb[0].mxu0
      %v1698 = vadd.f32 %v1630, %v1697
      %v1699 = vpop.f32.mrb[0].mxu0
      %v1700 = vpop.f32.mrb[0].mxu0
      %v1701 = vadd.f32 %v1633, %v1700
      %v1702 = vpop.f32.mrb[0].mxu0
      %1703 = vdwg.mxu0
      %s1704 = scalar_lea.vmem %s5, 256
      %v1705 = vld [vmem:[%s1704] sm:$0xf]
      %v1706 = vld [vmem:[%s1704 + $0x4] sm:$0xf]
      %v1707 = vld [vmem:[%s1704 + $0x8] sm:$0xf]
      %v1708 = vld [vmem:[%s1704 + $0xc] sm:$0xf]
      %v1709 = vld [vmem:[%s1704 + $0x10] sm:$0xf]
      %v1710 = vld [vmem:[%s1704 + $0x14] sm:$0xf]
      %v1711 = vld [vmem:[%s1704 + $0x18] sm:$0xf]
      %v1712 = vld [vmem:[%s1704 + $0x1c] sm:$0xf]
      %v1713 = vld [vmem:[%s1704 + $0x20] sm:$0xf]
      %v1714 = vld [vmem:[%s1704 + $0x24] sm:$0xf]
      %v1715 = vld [vmem:[%s1704 + $0x28] sm:$0xf]
      %v1716 = vld [vmem:[%s1704 + $0x2c] sm:$0xf]
      %v1717 = vld [vmem:[%s1704 + $0x30] sm:$0xf]
      %v1718 = vld [vmem:[%s1704 + $0x34] sm:$0xf]
      %v1719 = vld [vmem:[%s1704 + $0x38] sm:$0xf]
      %v1720 = vld [vmem:[%s1704 + $0x3c] sm:$0xf]
      %v1721 = vld [vmem:[%s1704 + $0x40] sm:$0xf]
      %v1722 = vld [vmem:[%s1704 + $0x44] sm:$0xf]
      %v1723 = vld [vmem:[%s1704 + $0x48] sm:$0xf]
      %v1724 = vld [vmem:[%s1704 + $0x4c] sm:$0xf]
      %v1725 = vld [vmem:[%s1704 + $0x50] sm:$0xf]
      %v1726 = vld [vmem:[%s1704 + $0x54] sm:$0xf]
      %v1727 = vld [vmem:[%s1704 + $0x58] sm:$0xf]
      %v1728 = vld [vmem:[%s1704 + $0x5c] sm:$0xf]
      %v1729 = vld [vmem:[%s1704 + $0x60] sm:$0xf]
      %v1730 = vld [vmem:[%s1704 + $0x64] sm:$0xf]
      %v1731 = vld [vmem:[%s1704 + $0x68] sm:$0xf]
      %v1732 = vld [vmem:[%s1704 + $0x6c] sm:$0xf]
      %v1733 = vld [vmem:[%s1704 + $0x70] sm:$0xf]
      %v1734 = vld [vmem:[%s1704 + $0x74] sm:$0xf]
      %v1735 = vld [vmem:[%s1704 + $0x78] sm:$0xf]
      %v1736 = vld [vmem:[%s1704 + $0x7c] sm:$0xf]
      %v1769 = vunpack.c.l.b16 %v1705
      %v1770 = vunpack.c.l.b16 %v1706
      %v1771 = vunpack.c.l.b16 %v1707
      %v1772 = vunpack.c.l.b16 %v1708
      %v1773 = vunpack.c.l.b16 %v1709
      %v1774 = vunpack.c.l.b16 %v1710
      %v1775 = vunpack.c.l.b16 %v1711
      %v1776 = vunpack.c.l.b16 %v1712
      %v1777 = vunpack.c.l.b16 %v1713
      %v1778 = vunpack.c.l.b16 %v1714
      %v1779 = vunpack.c.l.b16 %v1715
      %v1780 = vunpack.c.l.b16 %v1716
      %v1781 = vunpack.c.l.b16 %v1717
      %v1782 = vunpack.c.l.b16 %v1718
      %v1783 = vunpack.c.l.b16 %v1719
      %v1784 = vunpack.c.l.b16 %v1720
      %v1785 = vunpack.c.l.b16 %v1721
      %v1786 = vunpack.c.l.b16 %v1722
      %v1787 = vunpack.c.l.b16 %v1723
      %v1788 = vunpack.c.l.b16 %v1724
      %v1789 = vunpack.c.l.b16 %v1725
      %v1790 = vunpack.c.l.b16 %v1726
      %v1791 = vunpack.c.l.b16 %v1727
      %v1792 = vunpack.c.l.b16 %v1728
      %v1793 = vunpack.c.l.b16 %v1729
      %v1794 = vunpack.c.l.b16 %v1730
      %v1795 = vunpack.c.l.b16 %v1731
      %v1796 = vunpack.c.l.b16 %v1732
      %v1797 = vunpack.c.l.b16 %v1733
      %v1798 = vunpack.c.l.b16 %v1734
      %v1799 = vunpack.c.l.b16 %v1735
      %v1800 = vunpack.c.l.b16 %v1736
      %v1801 = vpack.c.b16 %v1770, %v1769
      %v1802 = vpack.c.b16 %v1772, %v1771
      %v1803 = vpack.c.b16 %v1774, %v1773
      %v1804 = vpack.c.b16 %v1776, %v1775
      %v1805 = vpack.c.b16 %v1778, %v1777
      %v1806 = vpack.c.b16 %v1780, %v1779
      %v1807 = vpack.c.b16 %v1782, %v1781
      %v1808 = vpack.c.b16 %v1784, %v1783
      %v1809 = vpack.c.b16 %v1786, %v1785
      %v1810 = vpack.c.b16 %v1788, %v1787
      %v1811 = vpack.c.b16 %v1790, %v1789
      %v1812 = vpack.c.b16 %v1792, %v1791
      %v1813 = vpack.c.b16 %v1794, %v1793
      %v1814 = vpack.c.b16 %v1796, %v1795
      %v1815 = vpack.c.b16 %v1798, %v1797
      %v1816 = vpack.c.b16 %v1800, %v1799
      %1833 = vmatprep.subr.bf16.mxu0 0
      %1834 = vmatpush1.bf16.msra.mxu0 %v1801
      %1835 = vmatprep.subr.bf16.mxu0 0
      %1836 = vmatpush1.bf16.msra.mxu0 %v1802
      %1837 = vmatprep.subr.bf16.mxu0 0
      %1838 = vmatpush1.bf16.msra.mxu0 %v1803
      %1839 = vmatprep.subr.bf16.mxu0 0
      %1840 = vmatpush1.bf16.msra.mxu0 %v1804
      %1841 = vmatprep.subr.bf16.mxu0 0
      %1842 = vmatpush1.bf16.msra.mxu0 %v1805
      %1843 = vmatprep.subr.bf16.mxu0 0
      %1844 = vmatpush1.bf16.msra.mxu0 %v1806
      %1845 = vmatprep.subr.bf16.mxu0 0
      %1846 = vmatpush1.bf16.msra.mxu0 %v1807
      %1847 = vmatprep.subr.bf16.mxu0 0
      %1848 = vmatpush1.bf16.msra.mxu0 %v1808
      %1849 = vmatprep.subr.bf16.mxu0 0
      %1850 = vmatpush1.bf16.msra.mxu0 %v1809
      %1851 = vmatprep.subr.bf16.mxu0 0
      %1852 = vmatpush1.bf16.msra.mxu0 %v1810
      %1853 = vmatprep.subr.bf16.mxu0 0
      %1854 = vmatpush1.bf16.msra.mxu0 %v1811
      %1855 = vmatprep.subr.bf16.mxu0 0
      %1856 = vmatpush1.bf16.msra.mxu0 %v1812
      %1857 = vmatprep.subr.bf16.mxu0 0
      %1858 = vmatpush1.bf16.msra.mxu0 %v1813
      %1859 = vmatprep.subr.bf16.mxu0 0
      %1860 = vmatpush1.bf16.msra.mxu0 %v1814
      %1861 = vmatprep.subr.bf16.mxu0 0
      %1862 = vmatpush1.bf16.msra.mxu0 %v1815
      %1863 = vmatprep.subr.bf16.mxu0 0
      %1864 = vmatpush1.bf16.msra.mxu0 %v1816
      %1865 = vmatprep.mubr.bf16.mxu0 %v1249
      %1866 = vmatmul.mubr.bf16.gmra.mrb[0].mxu0 %v1248
      %v1867 = vpop.f32.mrb[0].mxu0
      %v1868 = vadd.f32 0.0, %v1867
      %v1869 = vpop.f32.mrb[0].mxu0
      %v1870 = vpop.f32.mrb[0].mxu0
      %v1871 = vpop.f32.mrb[0].mxu0
      %1872 = vdwg.mxu0
      %s1873 = scalar_lea.vmem %s3, 32
      %v1874 = vld [vmem:[%s1873] sm:$0xf]
      %v1875 = vld [vmem:[%s1873 + $0x4] sm:$0xf]
      %v1876 = vld [vmem:[%s1873 + $0x8] sm:$0xf]
      %v1877 = vld [vmem:[%s1873 + $0xc] sm:$0xf]
      %v1878 = vpack.c.bf16 %v1868, %v1868
      %v1883 = vunpack.c.l.b16 %v1874
      %v1884 = vunpack.c.l.b16 %v1875
      %v1885 = vunpack.c.l.b16 %v1876
      %v1886 = vunpack.c.l.b16 %v1877
      %v1887 = vpack.c.b16 %v1884, %v1883
      %v1888 = vpack.c.b16 %v1886, %v1885
      %v1890 = vsel %vm1576, %v1887, 0
      %v1893 = vsel %vm1576, %v1888, 0
      %v1896 = vsel %vm1583, %v1878, 0
      %1898 = vmatprep.subr.bf16.mxu0 0
      %1899 = vmatpush1.bf16.msra.mxu0 %v1896
      %1900 = vmatprep.subr.bf16.mxu0 0
      %1901 = vmatpush1.bf16.msra.mxu0 0
      %1902 = vmatprep.subr.bf16.mxu0 0
      %1903 = vmatpush1.bf16.msra.mxu0 0
      %1904 = vmatprep.subr.bf16.mxu0 0
      %1905 = vmatpush1.bf16.msra.mxu0 0
      %1906 = vmatprep.subr.bf16.mxu0 0
      %1907 = vmatpush1.bf16.msra.mxu0 0
      %1908 = vmatprep.subr.bf16.mxu0 0
      %1909 = vmatpush1.bf16.msra.mxu0 0
      %1910 = vmatprep.subr.bf16.mxu0 0
      %1911 = vmatpush1.bf16.msra.mxu0 0
      %1912 = vmatprep.subr.bf16.mxu0 0
      %1913 = vmatpush1.bf16.msra.mxu0 0
      %1914 = vmatprep.subr.bf16.mxu0 0
      %1915 = vmatpush1.bf16.msra.mxu0 0
      %1916 = vmatprep.subr.bf16.mxu0 0
      %1917 = vmatpush1.bf16.msra.mxu0 0
      %1918 = vmatprep.subr.bf16.mxu0 0
      %1919 = vmatpush1.bf16.msra.mxu0 0
      %1920 = vmatprep.subr.bf16.mxu0 0
      %1921 = vmatpush1.bf16.msra.mxu0 0
      %1922 = vmatprep.subr.bf16.mxu0 0
      %1923 = vmatpush1.bf16.msra.mxu0 0
      %1924 = vmatprep.subr.bf16.mxu0 0
      %1925 = vmatpush1.bf16.msra.mxu0 0
      %1926 = vmatprep.subr.bf16.mxu0 0
      %1927 = vmatpush1.bf16.msra.mxu0 0
      %1928 = vmatprep.subr.bf16.mxu0 0
      %1929 = vmatpush1.bf16.msra.mxu0 0
      %1930 = vmatprep.mubr.bf16.mxu0 0
      %1931 = vmatmul.mubr.bf16.gmra.mrb[0].mxu0 %v1890
      %v1932 = vpop.f32.mrb[0].mxu0
      %v1933 = vadd.f32 0.0, %v1932
      %v1934 = vpop.f32.mrb[0].mxu0
      %v1935 = vpop.f32.mrb[0].mxu0
      %v1936 = vadd.f32 0.0, %v1935
      %v1937 = vpop.f32.mrb[0].mxu0
      %1938 = vmatprep.mubr.bf16.mxu0 0
      %1939 = vmatmul.mubr.bf16.gmra.mrb[0].mxu0 %v1893
      %v1940 = vpop.f32.mrb[0].mxu0
      %v1941 = vadd.f32 0.0, %v1940
      %v1942 = vpop.f32.mrb[0].mxu0
      %v1943 = vpop.f32.mrb[0].mxu0
      %v1944 = vadd.f32 0.0, %v1943
      %v1945 = vpop.f32.mrb[0].mxu0
      %1946 = vdwg.mxu0
      %v1947 = vadd.f32 %v1690, %v1933
      %v1948 = vadd.f32 %v1693, %v1936
      %v1949 = vadd.f32 %v1698, %v1941
      %v1950 = vadd.f32 %v1701, %v1944
      %s1951 = scalar_lea.vmem %s5, 384
      %v1952 = vld [vmem:[%s1951] sm:$0xf]
      %v1953 = vld [vmem:[%s1951 + $0x4] sm:$0xf]
      %v1954 = vld [vmem:[%s1951 + $0x8] sm:$0xf]
      %v1955 = vld [vmem:[%s1951 + $0xc] sm:$0xf]
      %v1956 = vld [vmem:[%s1951 + $0x10] sm:$0xf]
      %v1957 = vld [vmem:[%s1951 + $0x14] sm:$0xf]
      %v1958 = vld [vmem:[%s1951 + $0x18] sm:$0xf]
      %v1959 = vld [vmem:[%s1951 + $0x1c] sm:$0xf]
      %v1960 = vld [vmem:[%s1951 + $0x20] sm:$0xf]
      %v1961 = vld [vmem:[%s1951 + $0x24] sm:$0xf]
      %v1962 = vld [vmem:[%s1951 + $0x28] sm:$0xf]
      %v1963 = vld [vmem:[%s1951 + $0x2c] sm:$0xf]
      %v1964 = vld [vmem:[%s1951 + $0x30] sm:$0xf]
      %v1965 = vld [vmem:[%s1951 + $0x34] sm:$0xf]
      %v1966 = vld [vmem:[%s1951 + $0x38] sm:$0xf]
      %v1967 = vld [vmem:[%s1951 + $0x3c] sm:$0xf]
      %v1968 = vld [vmem:[%s1951 + $0x40] sm:$0xf]
      %v1969 = vld [vmem:[%s1951 + $0x44] sm:$0xf]
      %v1970 = vld [vmem:[%s1951 + $0x48] sm:$0xf]
      %v1971 = vld [vmem:[%s1951 + $0x4c] sm:$0xf]
      %v1972 = vld [vmem:[%s1951 + $0x50] sm:$0xf]
      %v1973 = vld [vmem:[%s1951 + $0x54] sm:$0xf]
      %v1974 = vld [vmem:[%s1951 + $0x58] sm:$0xf]
      %v1975 = vld [vmem:[%s1951 + $0x5c] sm:$0xf]
      %v1976 = vld [vmem:[%s1951 + $0x60] sm:$0xf]
      %v1977 = vld [vmem:[%s1951 + $0x64] sm:$0xf]
      %v1978 = vld [vmem:[%s1951 + $0x68] sm:$0xf]
      %v1979 = vld [vmem:[%s1951 + $0x6c] sm:$0xf]
      %v1980 = vld [vmem:[%s1951 + $0x70] sm:$0xf]
      %v1981 = vld [vmem:[%s1951 + $0x74] sm:$0xf]
      %v1982 = vld [vmem:[%s1951 + $0x78] sm:$0xf]
      %v1983 = vld [vmem:[%s1951 + $0x7c] sm:$0xf]
      %v2016 = vunpack.c.l.b16 %v1952
      %v2017 = vunpack.c.l.b16 %v1953
      %v2018 = vunpack.c.l.b16 %v1954
      %v2019 = vunpack.c.l.b16 %v1955
      %v2020 = vunpack.c.l.b16 %v1956
      %v2021 = vunpack.c.l.b16 %v1957
      %v2022 = vunpack.c.l.b16 %v1958
      %v2023 = vunpack.c.l.b16 %v1959
      %v2024 = vunpack.c.l.b16 %v1960
      %v2025 = vunpack.c.l.b16 %v1961
      %v2026 = vunpack.c.l.b16 %v1962
      %v2027 = vunpack.c.l.b16 %v1963
      %v2028 = vunpack.c.l.b16 %v1964
      %v2029 = vunpack.c.l.b16 %v1965
      %v2030 = vunpack.c.l.b16 %v1966
      %v2031 = vunpack.c.l.b16 %v1967
      %v2032 = vunpack.c.l.b16 %v1968
      %v2033 = vunpack.c.l.b16 %v1969
      %v2034 = vunpack.c.l.b16 %v1970
      %v2035 = vunpack.c.l.b16 %v1971
      %v2036 = vunpack.c.l.b16 %v1972
      %v2037 = vunpack.c.l.b16 %v1973
      %v2038 = vunpack.c.l.b16 %v1974
      %v2039 = vunpack.c.l.b16 %v1975
      %v2040 = vunpack.c.l.b16 %v1976
      %v2041 = vunpack.c.l.b16 %v1977
      %v2042 = vunpack.c.l.b16 %v1978
      %v2043 = vunpack.c.l.b16 %v1979
      %v2044 = vunpack.c.l.b16 %v1980
      %v2045 = vunpack.c.l.b16 %v1981
      %v2046 = vunpack.c.l.b16 %v1982
      %v2047 = vunpack.c.l.b16 %v1983
      %v2048 = vpack.c.b16 %v2017, %v2016
      %v2049 = vpack.c.b16 %v2019, %v2018
      %v2050 = vpack.c.b16 %v2021, %v2020
      %v2051 = vpack.c.b16 %v2023, %v2022
      %v2052 = vpack.c.b16 %v2025, %v2024
      %v2053 = vpack.c.b16 %v2027, %v2026
      %v2054 = vpack.c.b16 %v2029, %v2028
      %v2055 = vpack.c.b16 %v2031, %v2030
      %v2056 = vpack.c.b16 %v2033, %v2032
      %v2057 = vpack.c.b16 %v2035, %v2034
      %v2058 = vpack.c.b16 %v2037, %v2036
      %v2059 = vpack.c.b16 %v2039, %v2038
      %v2060 = vpack.c.b16 %v2041, %v2040
      %v2061 = vpack.c.b16 %v2043, %v2042
      %v2062 = vpack.c.b16 %v2045, %v2044
      %v2063 = vpack.c.b16 %v2047, %v2046
      %2080 = vmatprep.subr.bf16.mxu0 0
      %2081 = vmatpush1.bf16.msra.mxu0 %v2048
      %2082 = vmatprep.subr.bf16.mxu0 0
      %2083 = vmatpush1.bf16.msra.mxu0 %v2049
      %2084 = vmatprep.subr.bf16.mxu0 0
      %2085 = vmatpush1.bf16.msra.mxu0 %v2050
      %2086 = vmatprep.subr.bf16.mxu0 0
      %2087 = vmatpush1.bf16.msra.mxu0 %v2051
      %2088 = vmatprep.subr.bf16.mxu0 0
      %2089 = vmatpush1.bf16.msra.mxu0 %v2052
      %2090 = vmatprep.subr.bf16.mxu0 0
      %2091 = vmatpush1.bf16.msra.mxu0 %v2053
      %2092 = vmatprep.subr.bf16.mxu0 0
      %2093 = vmatpush1.bf16.msra.mxu0 %v2054
      %2094 = vmatprep.subr.bf16.mxu0 0
      %2095 = vmatpush1.bf16.msra.mxu0 %v2055
      %2096 = vmatprep.subr.bf16.mxu0 0
      %2097 = vmatpush1.bf16.msra.mxu0 %v2056
      %2098 = vmatprep.subr.bf16.mxu0 0
      %2099 = vmatpush1.bf16.msra.mxu0 %v2057
      %2100 = vmatprep.subr.bf16.mxu0 0
      %2101 = vmatpush1.bf16.msra.mxu0 %v2058
      %2102 = vmatprep.subr.bf16.mxu0 0
      %2103 = vmatpush1.bf16.msra.mxu0 %v2059
      %2104 = vmatprep.subr.bf16.mxu0 0
      %2105 = vmatpush1.bf16.msra.mxu0 %v2060
      %2106 = vmatprep.subr.bf16.mxu0 0
      %2107 = vmatpush1.bf16.msra.mxu0 %v2061
      %2108 = vmatprep.subr.bf16.mxu0 0
      %2109 = vmatpush1.bf16.msra.mxu0 %v2062
      %2110 = vmatprep.subr.bf16.mxu0 0
      %2111 = vmatpush1.bf16.msra.mxu0 %v2063
      %2112 = vmatprep.mubr.bf16.mxu0 %v1249
      %2113 = vmatmul.mubr.bf16.gmra.mrb[0].mxu0 %v1248
      %v2114 = vpop.f32.mrb[0].mxu0
      %v2115 = vadd.f32 0.0, %v2114
      %v2116 = vpop.f32.mrb[0].mxu0
      %v2117 = vpop.f32.mrb[0].mxu0
      %v2118 = vpop.f32.mrb[0].mxu0
      %2119 = vdwg.mxu0
      %s2120 = scalar_lea.vmem %s3, 48
      %v2121 = vld [vmem:[%s2120] sm:$0xf]
      %v2122 = vld [vmem:[%s2120 + $0x4] sm:$0xf]
      %v2123 = vld [vmem:[%s2120 + $0x8] sm:$0xf]
      %v2124 = vld [vmem:[%s2120 + $0xc] sm:$0xf]
      %v2125 = vpack.c.bf16 %v2115, %v2115
      %v2130 = vunpack.c.l.b16 %v2121
      %v2131 = vunpack.c.l.b16 %v2122
      %v2132 = vunpack.c.l.b16 %v2123
      %v2133 = vunpack.c.l.b16 %v2124
      %v2134 = vpack.c.b16 %v2131, %v2130
      %v2135 = vpack.c.b16 %v2133, %v2132
      %v2137 = vsel %vm1576, %v2134, 0
      %v2140 = vsel %vm1576, %v2135, 0
      %v2143 = vsel %vm1583, %v2125, 0
      %2145 = vmatprep.subr.bf16.mxu0 0
      %2146 = vmatpush1.bf16.msra.mxu0 %v2143
      %2147 = vmatprep.subr.bf16.mxu0 0
      %2148 = vmatpush1.bf16.msra.mxu0 0
      %2149 = vmatprep.subr.bf16.mxu0 0
      %2150 = vmatpush1.bf16.msra.mxu0 0
      %2151 = vmatprep.subr.bf16.mxu0 0
      %2152 = vmatpush1.bf16.msra.mxu0 0
      %2153 = vmatprep.subr.bf16.mxu0 0
      %2154 = vmatpush1.bf16.msra.mxu0 0
      %2155 = vmatprep.subr.bf16.mxu0 0
      %2156 = vmatpush1.bf16.msra.mxu0 0
      %2157 = vmatprep.subr.bf16.mxu0 0
      %2158 = vmatpush1.bf16.msra.mxu0 0
      %2159 = vmatprep.subr.bf16.mxu0 0
      %2160 = vmatpush1.bf16.msra.mxu0 0
      %2161 = vmatprep.subr.bf16.mxu0 0
      %2162 = vmatpush1.bf16.msra.mxu0 0
      %2163 = vmatprep.subr.bf16.mxu0 0
      %2164 = vmatpush1.bf16.msra.mxu0 0
      %2165 = vmatprep.subr.bf16.mxu0 0
      %2166 = vmatpush1.bf16.msra.mxu0 0
      %2167 = vmatprep.subr.bf16.mxu0 0
      %2168 = vmatpush1.bf16.msra.mxu0 0
      %2169 = vmatprep.subr.bf16.mxu0 0
      %2170 = vmatpush1.bf16.msra.mxu0 0
      %2171 = vmatprep.subr.bf16.mxu0 0
      %2172 = vmatpush1.bf16.msra.mxu0 0
      %2173 = vmatprep.subr.bf16.mxu0 0
      %2174 = vmatpush1.bf16.msra.mxu0 0
      %2175 = vmatprep.subr.bf16.mxu0 0
      %2176 = vmatpush1.bf16.msra.mxu0 0
      %2177 = vmatprep.mubr.bf16.mxu0 0
      %2178 = vmatmul.mubr.bf16.gmra.mrb[0].mxu0 %v2137
      %v2179 = vpop.f32.mrb[0].mxu0
      %v2180 = vadd.f32 0.0, %v2179
      %v2181 = vpop.f32.mrb[0].mxu0
      %v2182 = vpop.f32.mrb[0].mxu0
      %v2183 = vadd.f32 0.0, %v2182
      %v2184 = vpop.f32.mrb[0].mxu0
      %2185 = vmatprep.mubr.bf16.mxu0 0
      %2186 = vmatmul.mubr.bf16.gmra.mrb[0].mxu0 %v2140
      %v2187 = vpop.f32.mrb[0].mxu0
      %v2188 = vadd.f32 0.0, %v2187
      %v2189 = vpop.f32.mrb[0].mxu0
      %v2190 = vpop.f32.mrb[0].mxu0
      %v2191 = vadd.f32 0.0, %v2190
      %v2192 = vpop.f32.mrb[0].mxu0
      %2193 = vdwg.mxu0
      %v2194 = vadd.f32 %v1947, %v2180
      %v2195 = vadd.f32 %v1948, %v2183
      %v2196 = vadd.f32 %v1949, %v2188
      %v2197 = vadd.f32 %v1950, %v2191
      %s2198 = scalar_lea.vmem %s5, 512
      %v2199 = vld [vmem:[%s2198] sm:$0xf]
      %v2200 = vld [vmem:[%s2198 + $0x4] sm:$0xf]
      %v2201 = vld [vmem:[%s2198 + $0x8] sm:$0xf]
      %v2202 = vld [vmem:[%s2198 + $0xc] sm:$0xf]
      %v2203 = vld [vmem:[%s2198 + $0x10] sm:$0xf]
      %v2204 = vld [vmem:[%s2198 + $0x14] sm:$0xf]
      %v2205 = vld [vmem:[%s2198 + $0x18] sm:$0xf]
      %v2206 = vld [vmem:[%s2198 + $0x1c] sm:$0xf]
      %v2207 = vld [vmem:[%s2198 + $0x20] sm:$0xf]
      %v2208 = vld [vmem:[%s2198 + $0x24] sm:$0xf]
      %v2209 = vld [vmem:[%s2198 + $0x28] sm:$0xf]
      %v2210 = vld [vmem:[%s2198 + $0x2c] sm:$0xf]
      %v2211 = vld [vmem:[%s2198 + $0x30] sm:$0xf]
      %v2212 = vld [vmem:[%s2198 + $0x34] sm:$0xf]
      %v2213 = vld [vmem:[%s2198 + $0x38] sm:$0xf]
      %v2214 = vld [vmem:[%s2198 + $0x3c] sm:$0xf]
      %v2215 = vld [vmem:[%s2198 + $0x40] sm:$0xf]
      %v2216 = vld [vmem:[%s2198 + $0x44] sm:$0xf]
      %v2217 = vld [vmem:[%s2198 + $0x48] sm:$0xf]
      %v2218 = vld [vmem:[%s2198 + $0x4c] sm:$0xf]
      %v2219 = vld [vmem:[%s2198 + $0x50] sm:$0xf]
      %v2220 = vld [vmem:[%s2198 + $0x54] sm:$0xf]
      %v2221 = vld [vmem:[%s2198 + $0x58] sm:$0xf]
      %v2222 = vld [vmem:[%s2198 + $0x5c] sm:$0xf]
      %v2223 = vld [vmem:[%s2198 + $0x60] sm:$0xf]
      %v2224 = vld [vmem:[%s2198 + $0x64] sm:$0xf]
      %v2225 = vld [vmem:[%s2198 + $0x68] sm:$0xf]
      %v2226 = vld [vmem:[%s2198 + $0x6c] sm:$0xf]
      %v2227 = vld [vmem:[%s2198 + $0x70] sm:$0xf]
      %v2228 = vld [vmem:[%s2198 + $0x74] sm:$0xf]
      %v2229 = vld [vmem:[%s2198 + $0x78] sm:$0xf]
      %v2230 = vld [vmem:[%s2198 + $0x7c] sm:$0xf]
      %v2263 = vunpack.c.l.b16 %v2199
      %v2264 = vunpack.c.l.b16 %v2200
      %v2265 = vunpack.c.l.b16 %v2201
      %v2266 = vunpack.c.l.b16 %v2202
      %v2267 = vunpack.c.l.b16 %v2203
      %v2268 = vunpack.c.l.b16 %v2204
      %v2269 = vunpack.c.l.b16 %v2205
      %v2270 = vunpack.c.l.b16 %v2206
      %v2271 = vunpack.c.l.b16 %v2207
      %v2272 = vunpack.c.l.b16 %v2208
      %v2273 = vunpack.c.l.b16 %v2209
      %v2274 = vunpack.c.l.b16 %v2210
      %v2275 = vunpack.c.l.b16 %v2211
      %v2276 = vunpack.c.l.b16 %v2212
      %v2277 = vunpack.c.l.b16 %v2213
      %v2278 = vunpack.c.l.b16 %v2214
      %v2279 = vunpack.c.l.b16 %v2215
      %v2280 = vunpack.c.l.b16 %v2216
      %v2281 = vunpack.c.l.b16 %v2217
      %v2282 = vunpack.c.l.b16 %v2218
      %v2283 = vunpack.c.l.b16 %v2219
      %v2284 = vunpack.c.l.b16 %v2220
      %v2285 = vunpack.c.l.b16 %v2221
      %v2286 = vunpack.c.l.b16 %v2222
      %v2287 = vunpack.c.l.b16 %v2223
      %v2288 = vunpack.c.l.b16 %v2224
      %v2289 = vunpack.c.l.b16 %v2225
      %v2290 = vunpack.c.l.b16 %v2226
      %v2291 = vunpack.c.l.b16 %v2227
      %v2292 = vunpack.c.l.b16 %v2228
      %v2293 = vunpack.c.l.b16 %v2229
      %v2294 = vunpack.c.l.b16 %v2230
      %v2295 = vpack.c.b16 %v2264, %v2263
      %v2296 = vpack.c.b16 %v2266, %v2265
      %v2297 = vpack.c.b16 %v2268, %v2267
      %v2298 = vpack.c.b16 %v2270, %v2269
      %v2299 = vpack.c.b16 %v2272, %v2271
      %v2300 = vpack.c.b16 %v2274, %v2273
      %v2301 = vpack.c.b16 %v2276, %v2275
      %v2302 = vpack.c.b16 %v2278, %v2277
      %v2303 = vpack.c.b16 %v2280, %v2279
      %v2304 = vpack.c.b16 %v2282, %v2281
      %v2305 = vpack.c.b16 %v2284, %v2283
      %v2306 = vpack.c.b16 %v2286, %v2285
      %v2307 = vpack.c.b16 %v2288, %v2287
      %v2308 = vpack.c.b16 %v2290, %v2289
      %v2309 = vpack.c.b16 %v2292, %v2291
      %v2310 = vpack.c.b16 %v2294, %v2293
      %2327 = vmatprep.subr.bf16.mxu0 0
      %2328 = vmatpush1.bf16.msra.mxu0 %v2295
      %2329 = vmatprep.subr.bf16.mxu0 0
      %2330 = vmatpush1.bf16.msra.mxu0 %v2296
      %2331 = vmatprep.subr.bf16.mxu0 0
      %2332 = vmatpush1.bf16.msra.mxu0 %v2297
      %2333 = vmatprep.subr.bf16.mxu0 0
      %2334 = vmatpush1.bf16.msra.mxu0 %v2298
      %2335 = vmatprep.subr.bf16.mxu0 0
      %2336 = vmatpush1.bf16.msra.mxu0 %v2299
      %2337 = vmatprep.subr.bf16.mxu0 0
      %2338 = vmatpush1.bf16.msra.mxu0 %v2300
      %2339 = vmatprep.subr.bf16.mxu0 0
      %2340 = vmatpush1.bf16.msra.mxu0 %v2301
      %2341 = vmatprep.subr.bf16.mxu0 0
      %2342 = vmatpush1.bf16.msra.mxu0 %v2302
      %2343 = vmatprep.subr.bf16.mxu0 0
      %2344 = vmatpush1.bf16.msra.mxu0 %v2303
      %2345 = vmatprep.subr.bf16.mxu0 0
      %2346 = vmatpush1.bf16.msra.mxu0 %v2304
      %2347 = vmatprep.subr.bf16.mxu0 0
      %2348 = vmatpush1.bf16.msra.mxu0 %v2305
      %2349 = vmatprep.subr.bf16.mxu0 0
      %2350 = vmatpush1.bf16.msra.mxu0 %v2306
      %2351 = vmatprep.subr.bf16.mxu0 0
      %2352 = vmatpush1.bf16.msra.mxu0 %v2307
      %2353 = vmatprep.subr.bf16.mxu0 0
      %2354 = vmatpush1.bf16.msra.mxu0 %v2308
      %2355 = vmatprep.subr.bf16.mxu0 0
      %2356 = vmatpush1.bf16.msra.mxu0 %v2309
      %2357 = vmatprep.subr.bf16.mxu0 0
      %2358 = vmatpush1.bf16.msra.mxu0 %v2310
      %2359 = vmatprep.mubr.bf16.mxu0 %v1249
      %2360 = vmatmul.mubr.bf16.gmra.mrb[0].mxu0 %v1248
      %v2361 = vpop.f32.mrb[0].mxu0
      %v2362 = vadd.f32 0.0, %v2361
      %v2363 = vpop.f32.mrb[0].mxu0
      %v2364 = vpop.f32.mrb[0].mxu0
      %v2365 = vpop.f32.mrb[0].mxu0
      %2366 = vdwg.mxu0
      %s2367 = scalar_lea.vmem %s3, 64
      %v2368 = vld [vmem:[%s2367] sm:$0xf]
      %v2369 = vld [vmem:[%s2367 + $0x4] sm:$0xf]
      %v2370 = vld [vmem:[%s2367 + $0x8] sm:$0xf]
      %v2371 = vld [vmem:[%s2367 + $0xc] sm:$0xf]
      %v2372 = vpack.c.bf16 %v2362, %v2362
      %v2377 = vunpack.c.l.b16 %v2368
      %v2378 = vunpack.c.l.b16 %v2369
      %v2379 = vunpack.c.l.b16 %v2370
      %v2380 = vunpack.c.l.b16 %v2371
      %v2381 = vpack.c.b16 %v2378, %v2377
      %v2382 = vpack.c.b16 %v2380, %v2379
      %v2384 = vsel %vm1576, %v2381, 0
      %v2387 = vsel %vm1576, %v2382, 0
      %v2390 = vsel %vm1583, %v2372, 0
      %2392 = vmatprep.subr.bf16.mxu0 0
      %2393 = vmatpush1.bf16.msra.mxu0 %v2390
      %2394 = vmatprep.subr.bf16.mxu0 0
      %2395 = vmatpush1.bf16.msra.mxu0 0
      %2396 = vmatprep.subr.bf16.mxu0 0
      %2397 = vmatpush1.bf16.msra.mxu0 0
      %2398 = vmatprep.subr.bf16.mxu0 0
      %2399 = vmatpush1.bf16.msra.mxu0 0
      %2400 = vmatprep.subr.bf16.mxu0 0
      %2401 = vmatpush1.bf16.msra.mxu0 0
      %2402 = vmatprep.subr.bf16.mxu0 0
      %2403 = vmatpush1.bf16.msra.mxu0 0
      %2404 = vmatprep.subr.bf16.mxu0 0
      %2405 = vmatpush1.bf16.msra.mxu0 0
      %2406 = vmatprep.subr.bf16.mxu0 0
      %2407 = vmatpush1.bf16.msra.mxu0 0
      %2408 = vmatprep.subr.bf16.mxu0 0
      %2409 = vmatpush1.bf16.msra.mxu0 0
      %2410 = vmatprep.subr.bf16.mxu0 0
      %2411 = vmatpush1.bf16.msra.mxu0 0
      %2412 = vmatprep.subr.bf16.mxu0 0
      %2413 = vmatpush1.bf16.msra.mxu0 0
      %2414 = vmatprep.subr.bf16.mxu0 0
      %2415 = vmatpush1.bf16.msra.mxu0 0
      %2416 = vmatprep.subr.bf16.mxu0 0
      %2417 = vmatpush1.bf16.msra.mxu0 0
      %2418 = vmatprep.subr.bf16.mxu0 0
      %2419 = vmatpush1.bf16.msra.mxu0 0
      %2420 = vmatprep.subr.bf16.mxu0 0
      %2421 = vmatpush1.bf16.msra.mxu0 0
      %2422 = vmatprep.subr.bf16.mxu0 0
      %2423 = vmatpush1.bf16.msra.mxu0 0
      %2424 = vmatprep.mubr.bf16.mxu0 0
      %2425 = vmatmul.mubr.bf16.gmra.mrb[0].mxu0 %v2384
      %v2426 = vpop.f32.mrb[0].mxu0
      %v2427 = vadd.f32 0.0, %v2426
      %v2428 = vpop.f32.mrb[0].mxu0
      %v2429 = vpop.f32.mrb[0].mxu0
      %v2430 = vadd.f32 0.0, %v2429
      %v2431 = vpop.f32.mrb[0].mxu0
      %2432 = vmatprep.mubr.bf16.mxu0 0
      %2433 = vmatmul.mubr.bf16.gmra.mrb[0].mxu0 %v2387
      %v2434 = vpop.f32.mrb[0].mxu0
      %v2435 = vadd.f32 0.0, %v2434
      %v2436 = vpop.f32.mrb[0].mxu0
      %v2437 = vpop.f32.mrb[0].mxu0
      %v2438 = vadd.f32 0.0, %v2437
      %v2439 = vpop.f32.mrb[0].mxu0
      %2440 = vdwg.mxu0
      %v2441 = vadd.f32 %v2194, %v2427
      %v2442 = vadd.f32 %v2195, %v2430
      %v2443 = vadd.f32 %v2196, %v2435
      %v2444 = vadd.f32 %v2197, %v2438
      %s2445 = scalar_lea.vmem %s5, 640
      %v2446 = vld [vmem:[%s2445] sm:$0xf]
      %v2447 = vld [vmem:[%s2445 + $0x4] sm:$0xf]
      %v2448 = vld [vmem:[%s2445 + $0x8] sm:$0xf]
      %v2449 = vld [vmem:[%s2445 + $0xc] sm:$0xf]
      %v2450 = vld [vmem:[%s2445 + $0x10] sm:$0xf]
      %v2451 = vld [vmem:[%s2445 + $0x14] sm:$0xf]
      %v2452 = vld [vmem:[%s2445 + $0x18] sm:$0xf]
      %v2453 = vld [vmem:[%s2445 + $0x1c] sm:$0xf]
      %v2454 = vld [vmem:[%s2445 + $0x20] sm:$0xf]
      %v2455 = vld [vmem:[%s2445 + $0x24] sm:$0xf]
      %v2456 = vld [vmem:[%s2445 + $0x28] sm:$0xf]
      %v2457 = vld [vmem:[%s2445 + $0x2c] sm:$0xf]
      %v2458 = vld [vmem:[%s2445 + $0x30] sm:$0xf]
      %v2459 = vld [vmem:[%s2445 + $0x34] sm:$0xf]
      %v2460 = vld [vmem:[%s2445 + $0x38] sm:$0xf]
      %v2461 = vld [vmem:[%s2445 + $0x3c] sm:$0xf]
      %v2462 = vld [vmem:[%s2445 + $0x40] sm:$0xf]
      %v2463 = vld [vmem:[%s2445 + $0x44] sm:$0xf]
      %v2464 = vld [vmem:[%s2445 + $0x48] sm:$0xf]
      %v2465 = vld [vmem:[%s2445 + $0x4c] sm:$0xf]
      %v2466 = vld [vmem:[%s2445 + $0x50] sm:$0xf]
      %v2467 = vld [vmem:[%s2445 + $0x54] sm:$0xf]
      %v2468 = vld [vmem:[%s2445 + $0x58] sm:$0xf]
      %v2469 = vld [vmem:[%s2445 + $0x5c] sm:$0xf]
      %v2470 = vld [vmem:[%s2445 + $0x60] sm:$0xf]
      %v2471 = vld [vmem:[%s2445 + $0x64] sm:$0xf]
      %v2472 = vld [vmem:[%s2445 + $0x68] sm:$0xf]
      %v2473 = vld [vmem:[%s2445 + $0x6c] sm:$0xf]
      %v2474 = vld [vmem:[%s2445 + $0x70] sm:$0xf]
      %v2475 = vld [vmem:[%s2445 + $0x74] sm:$0xf]
      %v2476 = vld [vmem:[%s2445 + $0x78] sm:$0xf]
      %v2477 = vld [vmem:[%s2445 + $0x7c] sm:$0xf]
      %v2510 = vunpack.c.l.b16 %v2446
      %v2511 = vunpack.c.l.b16 %v2447
      %v2512 = vunpack.c.l.b16 %v2448
      %v2513 = vunpack.c.l.b16 %v2449
      %v2514 = vunpack.c.l.b16 %v2450
      %v2515 = vunpack.c.l.b16 %v2451
      %v2516 = vunpack.c.l.b16 %v2452
      %v2517 = vunpack.c.l.b16 %v2453
      %v2518 = vunpack.c.l.b16 %v2454
      %v2519 = vunpack.c.l.b16 %v2455
      %v2520 = vunpack.c.l.b16 %v2456
      %v2521 = vunpack.c.l.b16 %v2457
      %v2522 = vunpack.c.l.b16 %v2458
      %v2523 = vunpack.c.l.b16 %v2459
      %v2524 = vunpack.c.l.b16 %v2460
      %v2525 = vunpack.c.l.b16 %v2461
      %v2526 = vunpack.c.l.b16 %v2462
      %v2527 = vunpack.c.l.b16 %v2463
      %v2528 = vunpack.c.l.b16 %v2464
      %v2529 = vunpack.c.l.b16 %v2465
      %v2530 = vunpack.c.l.b16 %v2466
      %v2531 = vunpack.c.l.b16 %v2467
      %v2532 = vunpack.c.l.b16 %v2468
      %v2533 = vunpack.c.l.b16 %v2469
      %v2534 = vunpack.c.l.b16 %v2470
      %v2535 = vunpack.c.l.b16 %v2471
      %v2536 = vunpack.c.l.b16 %v2472
      %v2537 = vunpack.c.l.b16 %v2473
      %v2538 = vunpack.c.l.b16 %v2474
      %v2539 = vunpack.c.l.b16 %v2475
      %v2540 = vunpack.c.l.b16 %v2476
      %v2541 = vunpack.c.l.b16 %v2477
      %v2542 = vpack.c.b16 %v2511, %v2510
      %v2543 = vpack.c.b16 %v2513, %v2512
      %v2544 = vpack.c.b16 %v2515, %v2514
      %v2545 = vpack.c.b16 %v2517, %v2516
      %v2546 = vpack.c.b16 %v2519, %v2518
      %v2547 = vpack.c.b16 %v2521, %v2520
      %v2548 = vpack.c.b16 %v2523, %v2522
      %v2549 = vpack.c.b16 %v2525, %v2524
      %v2550 = vpack.c.b16 %v2527, %v2526
      %v2551 = vpack.c.b16 %v2529, %v2528
      %v2552 = vpack.c.b16 %v2531, %v2530
      %v2553 = vpack.c.b16 %v2533, %v2532
      %v2554 = vpack.c.b16 %v2535, %v2534
      %v2555 = vpack.c.b16 %v2537, %v2536
      %v2556 = vpack.c.b16 %v2539, %v2538
      %v2557 = vpack.c.b16 %v2541, %v2540
      %2574 = vmatprep.subr.bf16.mxu0 0
      %2575 = vmatpush1.bf16.msra.mxu0 %v2542
      %2576 = vmatprep.subr.bf16.mxu0 0
      %2577 = vmatpush1.bf16.msra.mxu0 %v2543
      %2578 = vmatprep.subr.bf16.mxu0 0
      %2579 = vmatpush1.bf16.msra.mxu0 %v2544
      %2580 = vmatprep.subr.bf16.mxu0 0
      %2581 = vmatpush1.bf16.msra.mxu0 %v2545
      %2582 = vmatprep.subr.bf16.mxu0 0
      %2583 = vmatpush1.bf16.msra.mxu0 %v2546
      %2584 = vmatprep.subr.bf16.mxu0 0
      %2585 = vmatpush1.bf16.msra.mxu0 %v2547
      %2586 = vmatprep.subr.bf16.mxu0 0
      %2587 = vmatpush1.bf16.msra.mxu0 %v2548
      %2588 = vmatprep.subr.bf16.mxu0 0
      %2589 = vmatpush1.bf16.msra.mxu0 %v2549
      %2590 = vmatprep.subr.bf16.mxu0 0
      %2591 = vmatpush1.bf16.msra.mxu0 %v2550
      %2592 = vmatprep.subr.bf16.mxu0 0
      %2593 = vmatpush1.bf16.msra.mxu0 %v2551
      %2594 = vmatprep.subr.bf16.mxu0 0
      %2595 = vmatpush1.bf16.msra.mxu0 %v2552
      %2596 = vmatprep.subr.bf16.mxu0 0
      %2597 = vmatpush1.bf16.msra.mxu0 %v2553
      %2598 = vmatprep.subr.bf16.mxu0 0
      %2599 = vmatpush1.bf16.msra.mxu0 %v2554
      %2600 = vmatprep.subr.bf16.mxu0 0
      %2601 = vmatpush1.bf16.msra.mxu0 %v2555
      %2602 = vmatprep.subr.bf16.mxu0 0
      %2603 = vmatpush1.bf16.msra.mxu0 %v2556
      %2604 = vmatprep.subr.bf16.mxu0 0
      %2605 = vmatpush1.bf16.msra.mxu0 %v2557
      %2606 = vmatprep.mubr.bf16.mxu0 %v1249
      %2607 = vmatmul.mubr.bf16.gmra.mrb[0].mxu0 %v1248
      %v2608 = vpop.f32.mrb[0].mxu0
      %v2609 = vadd.f32 0.0, %v2608
      %v2610 = vpop.f32.mrb[0].mxu0
      %v2611 = vpop.f32.mrb[0].mxu0
      %v2612 = vpop.f32.mrb[0].mxu0
      %2613 = vdwg.mxu0
      %s2614 = scalar_lea.vmem %s3, 80
      %v2615 = vld [vmem:[%s2614] sm:$0xf]
      %v2616 = vld [vmem:[%s2614 + $0x4] sm:$0xf]
      %v2617 = vld [vmem:[%s2614 + $0x8] sm:$0xf]
      %v2618 = vld [vmem:[%s2614 + $0xc] sm:$0xf]
      %v2619 = vpack.c.bf16 %v2609, %v2609
      %v2624 = vunpack.c.l.b16 %v2615
      %v2625 = vunpack.c.l.b16 %v2616
      %v2626 = vunpack.c.l.b16 %v2617
      %v2627 = vunpack.c.l.b16 %v2618
      %v2628 = vpack.c.b16 %v2625, %v2624
      %v2629 = vpack.c.b16 %v2627, %v2626
      %v2631 = vsel %vm1576, %v2628, 0
      %v2634 = vsel %vm1576, %v2629, 0
      %v2637 = vsel %vm1583, %v2619, 0
      %2639 = vmatprep.subr.bf16.mxu0 0
      %2640 = vmatpush1.bf16.msra.mxu0 %v2637
      %2641 = vmatprep.subr.bf16.mxu0 0
      %2642 = vmatpush1.bf16.msra.mxu0 0
      %2643 = vmatprep.subr.bf16.mxu0 0
      %2644 = vmatpush1.bf16.msra.mxu0 0
      %2645 = vmatprep.subr.bf16.mxu0 0
      %2646 = vmatpush1.bf16.msra.mxu0 0
      %2647 = vmatprep.subr.bf16.mxu0 0
      %2648 = vmatpush1.bf16.msra.mxu0 0
      %2649 = vmatprep.subr.bf16.mxu0 0
      %2650 = vmatpush1.bf16.msra.mxu0 0
      %2651 = vmatprep.subr.bf16.mxu0 0
      %2652 = vmatpush1.bf16.msra.mxu0 0
      %2653 = vmatprep.subr.bf16.mxu0 0
      %2654 = vmatpush1.bf16.msra.mxu0 0
      %2655 = vmatprep.subr.bf16.mxu0 0
      %2656 = vmatpush1.bf16.msra.mxu0 0
      %2657 = vmatprep.subr.bf16.mxu0 0
      %2658 = vmatpush1.bf16.msra.mxu0 0
      %2659 = vmatprep.subr.bf16.mxu0 0
      %2660 = vmatpush1.bf16.msra.mxu0 0
      %2661 = vmatprep.subr.bf16.mxu0 0
      %2662 = vmatpush1.bf16.msra.mxu0 0
      %2663 = vmatprep.subr.bf16.mxu0 0
      %2664 = vmatpush1.bf16.msra.mxu0 0
      %2665 = vmatprep.subr.bf16.mxu0 0
      %2666 = vmatpush1.bf16.msra.mxu0 0
      %2667 = vmatprep.subr.bf16.mxu0 0
      %2668 = vmatpush1.bf16.msra.mxu0 0
      %2669 = vmatprep.subr.bf16.mxu0 0
      %2670 = vmatpush1.bf16.msra.mxu0 0
      %2671 = vmatprep.mubr.bf16.mxu0 0
      %2672 = vmatmul.mubr.bf16.gmra.mrb[0].mxu0 %v2631
      %v2673 = vpop.f32.mrb[0].mxu0
      %v2674 = vadd.f32 0.0, %v2673
      %v2675 = vpop.f32.mrb[0].mxu0
      %v2676 = vpop.f32.mrb[0].mxu0
      %v2677 = vadd.f32 0.0, %v2676
      %v2678 = vpop.f32.mrb[0].mxu0
      %2679 = vmatprep.mubr.bf16.mxu0 0
      %2680 = vmatmul.mubr.bf16.gmra.mrb[0].mxu0 %v2634
      %v2681 = vpop.f32.mrb[0].mxu0
      %v2682 = vadd.f32 0.0, %v2681
      %v2683 = vpop.f32.mrb[0].mxu0
      %v2684 = vpop.f32.mrb[0].mxu0
      %v2685 = vadd.f32 0.0, %v2684
      %v2686 = vpop.f32.mrb[0].mxu0
      %2687 = vdwg.mxu0
      %v2688 = vadd.f32 %v2441, %v2674
      %v2689 = vadd.f32 %v2442, %v2677
      %v2690 = vadd.f32 %v2443, %v2682
      %v2691 = vadd.f32 %v2444, %v2685
      %s2692 = scalar_lea.vmem %s5, 768
      %v2693 = vld [vmem:[%s2692] sm:$0xf]
      %v2694 = vld [vmem:[%s2692 + $0x4] sm:$0xf]
      %v2695 = vld [vmem:[%s2692 + $0x8] sm:$0xf]
      %v2696 = vld [vmem:[%s2692 + $0xc] sm:$0xf]
      %v2697 = vld [vmem:[%s2692 + $0x10] sm:$0xf]
      %v2698 = vld [vmem:[%s2692 + $0x14] sm:$0xf]
      %v2699 = vld [vmem:[%s2692 + $0x18] sm:$0xf]
      %v2700 = vld [vmem:[%s2692 + $0x1c] sm:$0xf]
      %v2701 = vld [vmem:[%s2692 + $0x20] sm:$0xf]
      %v2702 = vld [vmem:[%s2692 + $0x24] sm:$0xf]
      %v2703 = vld [vmem:[%s2692 + $0x28] sm:$0xf]
      %v2704 = vld [vmem:[%s2692 + $0x2c] sm:$0xf]
      %v2705 = vld [vmem:[%s2692 + $0x30] sm:$0xf]
      %v2706 = vld [vmem:[%s2692 + $0x34] sm:$0xf]
      %v2707 = vld [vmem:[%s2692 + $0x38] sm:$0xf]
      %v2708 = vld [vmem:[%s2692 + $0x3c] sm:$0xf]
      %v2709 = vld [vmem:[%s2692 + $0x40] sm:$0xf]
      %v2710 = vld [vmem:[%s2692 + $0x44] sm:$0xf]
      %v2711 = vld [vmem:[%s2692 + $0x48] sm:$0xf]
      %v2712 = vld [vmem:[%s2692 + $0x4c] sm:$0xf]
      %v2713 = vld [vmem:[%s2692 + $0x50] sm:$0xf]
      %v2714 = vld [vmem:[%s2692 + $0x54] sm:$0xf]
      %v2715 = vld [vmem:[%s2692 + $0x58] sm:$0xf]
      %v2716 = vld [vmem:[%s2692 + $0x5c] sm:$0xf]
      %v2717 = vld [vmem:[%s2692 + $0x60] sm:$0xf]
      %v2718 = vld [vmem:[%s2692 + $0x64] sm:$0xf]
      %v2719 = vld [vmem:[%s2692 + $0x68] sm:$0xf]
      %v2720 = vld [vmem:[%s2692 + $0x6c] sm:$0xf]
      %v2721 = vld [vmem:[%s2692 + $0x70] sm:$0xf]
      %v2722 = vld [vmem:[%s2692 + $0x74] sm:$0xf]
      %v2723 = vld [vmem:[%s2692 + $0x78] sm:$0xf]
      %v2724 = vld [vmem:[%s2692 + $0x7c] sm:$0xf]
      %v2757 = vunpack.c.l.b16 %v2693
      %v2758 = vunpack.c.l.b16 %v2694
      %v2759 = vunpack.c.l.b16 %v2695
      %v2760 = vunpack.c.l.b16 %v2696
      %v2761 = vunpack.c.l.b16 %v2697
      %v2762 = vunpack.c.l.b16 %v2698
      %v2763 = vunpack.c.l.b16 %v2699
      %v2764 = vunpack.c.l.b16 %v2700
      %v2765 = vunpack.c.l.b16 %v2701
      %v2766 = vunpack.c.l.b16 %v2702
      %v2767 = vunpack.c.l.b16 %v2703
      %v2768 = vunpack.c.l.b16 %v2704
      %v2769 = vunpack.c.l.b16 %v2705
      %v2770 = vunpack.c.l.b16 %v2706
      %v2771 = vunpack.c.l.b16 %v2707
      %v2772 = vunpack.c.l.b16 %v2708
      %v2773 = vunpack.c.l.b16 %v2709
      %v2774 = vunpack.c.l.b16 %v2710
      %v2775 = vunpack.c.l.b16 %v2711
      %v2776 = vunpack.c.l.b16 %v2712
      %v2777 = vunpack.c.l.b16 %v2713
      %v2778 = vunpack.c.l.b16 %v2714
      %v2779 = vunpack.c.l.b16 %v2715
      %v2780 = vunpack.c.l.b16 %v2716
      %v2781 = vunpack.c.l.b16 %v2717
      %v2782 = vunpack.c.l.b16 %v2718
      %v2783 = vunpack.c.l.b16 %v2719
      %v2784 = vunpack.c.l.b16 %v2720
      %v2785 = vunpack.c.l.b16 %v2721
      %v2786 = vunpack.c.l.b16 %v2722
      %v2787 = vunpack.c.l.b16 %v2723
      %v2788 = vunpack.c.l.b16 %v2724
      %v2789 = vpack.c.b16 %v2758, %v2757
      %v2790 = vpack.c.b16 %v2760, %v2759
      %v2791 = vpack.c.b16 %v2762, %v2761
      %v2792 = vpack.c.b16 %v2764, %v2763
      %v2793 = vpack.c.b16 %v2766, %v2765
      %v2794 = vpack.c.b16 %v2768, %v2767
      %v2795 = vpack.c.b16 %v2770, %v2769
      %v2796 = vpack.c.b16 %v2772, %v2771
      %v2797 = vpack.c.b16 %v2774, %v2773
      %v2798 = vpack.c.b16 %v2776, %v2775
      %v2799 = vpack.c.b16 %v2778, %v2777
      %v2800 = vpack.c.b16 %v2780, %v2779
      %v2801 = vpack.c.b16 %v2782, %v2781
      %v2802 = vpack.c.b16 %v2784, %v2783
      %v2803 = vpack.c.b16 %v2786, %v2785
      %v2804 = vpack.c.b16 %v2788, %v2787
      %2821 = vmatprep.subr.bf16.mxu0 0
      %2822 = vmatpush1.bf16.msra.mxu0 %v2789
      %2823 = vmatprep.subr.bf16.mxu0 0
      %2824 = vmatpush1.bf16.msra.mxu0 %v2790
      %2825 = vmatprep.subr.bf16.mxu0 0
      %2826 = vmatpush1.bf16.msra.mxu0 %v2791
      %2827 = vmatprep.subr.bf16.mxu0 0
      %2828 = vmatpush1.bf16.msra.mxu0 %v2792
      %2829 = vmatprep.subr.bf16.mxu0 0
      %2830 = vmatpush1.bf16.msra.mxu0 %v2793
      %2831 = vmatprep.subr.bf16.mxu0 0
      %2832 = vmatpush1.bf16.msra.mxu0 %v2794
      %2833 = vmatprep.subr.bf16.mxu0 0
      %2834 = vmatpush1.bf16.msra.mxu0 %v2795
      %2835 = vmatprep.subr.bf16.mxu0 0
      %2836 = vmatpush1.bf16.msra.mxu0 %v2796
      %2837 = vmatprep.subr.bf16.mxu0 0
      %2838 = vmatpush1.bf16.msra.mxu0 %v2797
      %2839 = vmatprep.subr.bf16.mxu0 0
      %2840 = vmatpush1.bf16.msra.mxu0 %v2798
      %2841 = vmatprep.subr.bf16.mxu0 0
      %2842 = vmatpush1.bf16.msra.mxu0 %v2799
      %2843 = vmatprep.subr.bf16.mxu0 0
      %2844 = vmatpush1.bf16.msra.mxu0 %v2800
      %2845 = vmatprep.subr.bf16.mxu0 0
      %2846 = vmatpush1.bf16.msra.mxu0 %v2801
      %2847 = vmatprep.subr.bf16.mxu0 0
      %2848 = vmatpush1.bf16.msra.mxu0 %v2802
      %2849 = vmatprep.subr.bf16.mxu0 0
      %2850 = vmatpush1.bf16.msra.mxu0 %v2803
      %2851 = vmatprep.subr.bf16.mxu0 0
      %2852 = vmatpush1.bf16.msra.mxu0 %v2804
      %2853 = vmatprep.mubr.bf16.mxu0 %v1249
      %2854 = vmatmul.mubr.bf16.gmra.mrb[0].mxu0 %v1248
      %v2855 = vpop.f32.mrb[0].mxu0
      %v2856 = vadd.f32 0.0, %v2855
      %v2857 = vpop.f32.mrb[0].mxu0
      %v2858 = vpop.f32.mrb[0].mxu0
      %v2859 = vpop.f32.mrb[0].mxu0
      %2860 = vdwg.mxu0
      %s2861 = scalar_lea.vmem %s3, 96
      %v2862 = vld [vmem:[%s2861] sm:$0xf]
      %v2863 = vld [vmem:[%s2861 + $0x4] sm:$0xf]
      %v2864 = vld [vmem:[%s2861 + $0x8] sm:$0xf]
      %v2865 = vld [vmem:[%s2861 + $0xc] sm:$0xf]
      %v2866 = vpack.c.bf16 %v2856, %v2856
      %v2871 = vunpack.c.l.b16 %v2862
      %v2872 = vunpack.c.l.b16 %v2863
      %v2873 = vunpack.c.l.b16 %v2864
      %v2874 = vunpack.c.l.b16 %v2865
      %v2875 = vpack.c.b16 %v2872, %v2871
      %v2876 = vpack.c.b16 %v2874, %v2873
      %v2878 = vsel %vm1576, %v2875, 0
      %v2881 = vsel %vm1576, %v2876, 0
      %v2884 = vsel %vm1583, %v2866, 0
      %2886 = vmatprep.subr.bf16.mxu0 0
      %2887 = vmatpush1.bf16.msra.mxu0 %v2884
      %2888 = vmatprep.subr.bf16.mxu0 0
      %2889 = vmatpush1.bf16.msra.mxu0 0
      %2890 = vmatprep.subr.bf16.mxu0 0
      %2891 = vmatpush1.bf16.msra.mxu0 0
      %2892 = vmatprep.subr.bf16.mxu0 0
      %2893 = vmatpush1.bf16.msra.mxu0 0
      %2894 = vmatprep.subr.bf16.mxu0 0
      %2895 = vmatpush1.bf16.msra.mxu0 0
      %2896 = vmatprep.subr.bf16.mxu0 0
      %2897 = vmatpush1.bf16.msra.mxu0 0
      %2898 = vmatprep.subr.bf16.mxu0 0
      %2899 = vmatpush1.bf16.msra.mxu0 0
      %2900 = vmatprep.subr.bf16.mxu0 0
      %2901 = vmatpush1.bf16.msra.mxu0 0
      %2902 = vmatprep.subr.bf16.mxu0 0
      %2903 = vmatpush1.bf16.msra.mxu0 0
      %2904 = vmatprep.subr.bf16.mxu0 0
      %2905 = vmatpush1.bf16.msra.mxu0 0
      %2906 = vmatprep.subr.bf16.mxu0 0
      %2907 = vmatpush1.bf16.msra.mxu0 0
      %2908 = vmatprep.subr.bf16.mxu0 0
      %2909 = vmatpush1.bf16.msra.mxu0 0
      %2910 = vmatprep.subr.bf16.mxu0 0
      %2911 = vmatpush1.bf16.msra.mxu0 0
      %2912 = vmatprep.subr.bf16.mxu0 0
      %2913 = vmatpush1.bf16.msra.mxu0 0
      %2914 = vmatprep.subr.bf16.mxu0 0
      %2915 = vmatpush1.bf16.msra.mxu0 0
      %2916 = vmatprep.subr.bf16.mxu0 0
      %2917 = vmatpush1.bf16.msra.mxu0 0
      %2918 = vmatprep.mubr.bf16.mxu0 0
      %2919 = vmatmul.mubr.bf16.gmra.mrb[0].mxu0 %v2878
      %v2920 = vpop.f32.mrb[0].mxu0
      %v2921 = vadd.f32 0.0, %v2920
      %v2922 = vpop.f32.mrb[0].mxu0
      %v2923 = vpop.f32.mrb[0].mxu0
      %v2924 = vadd.f32 0.0, %v2923
      %v2925 = vpop.f32.mrb[0].mxu0
      %2926 = vmatprep.mubr.bf16.mxu0 0
      %2927 = vmatmul.mubr.bf16.gmra.mrb[0].mxu0 %v2881
      %v2928 = vpop.f32.mrb[0].mxu0
      %v2929 = vadd.f32 0.0, %v2928
      %v2930 = vpop.f32.mrb[0].mxu0
      %v2931 = vpop.f32.mrb[0].mxu0
      %v2932 = vadd.f32 0.0, %v2931
      %v2933 = vpop.f32.mrb[0].mxu0
      %2934 = vdwg.mxu0
      %v2935 = vadd.f32 %v2688, %v2921
      %v2936 = vadd.f32 %v2689, %v2924
      %v2937 = vadd.f32 %v2690, %v2929
      %v2938 = vadd.f32 %v2691, %v2932
      %s2939 = scalar_lea.vmem %s5, 896
      %v2940 = vld [vmem:[%s2939] sm:$0xf]
      %v2941 = vld [vmem:[%s2939 + $0x4] sm:$0xf]
      %v2942 = vld [vmem:[%s2939 + $0x8] sm:$0xf]
      %v2943 = vld [vmem:[%s2939 + $0xc] sm:$0xf]
      %v2944 = vld [vmem:[%s2939 + $0x10] sm:$0xf]
      %v2945 = vld [vmem:[%s2939 + $0x14] sm:$0xf]
      %v2946 = vld [vmem:[%s2939 + $0x18] sm:$0xf]
      %v2947 = vld [vmem:[%s2939 + $0x1c] sm:$0xf]
      %v2948 = vld [vmem:[%s2939 + $0x20] sm:$0xf]
      %v2949 = vld [vmem:[%s2939 + $0x24] sm:$0xf]
      %v2950 = vld [vmem:[%s2939 + $0x28] sm:$0xf]
      %v2951 = vld [vmem:[%s2939 + $0x2c] sm:$0xf]
      %v2952 = vld [vmem:[%s2939 + $0x30] sm:$0xf]
      %v2953 = vld [vmem:[%s2939 + $0x34] sm:$0xf]
      %v2954 = vld [vmem:[%s2939 + $0x38] sm:$0xf]
      %v2955 = vld [vmem:[%s2939 + $0x3c] sm:$0xf]
      %v2956 = vld [vmem:[%s2939 + $0x40] sm:$0xf]
      %v2957 = vld [vmem:[%s2939 + $0x44] sm:$0xf]
      %v2958 = vld [vmem:[%s2939 + $0x48] sm:$0xf]
      %v2959 = vld [vmem:[%s2939 + $0x4c] sm:$0xf]
      %v2960 = vld [vmem:[%s2939 + $0x50] sm:$0xf]
      %v2961 = vld [vmem:[%s2939 + $0x54] sm:$0xf]
      %v2962 = vld [vmem:[%s2939 + $0x58] sm:$0xf]
      %v2963 = vld [vmem:[%s2939 + $0x5c] sm:$0xf]
      %v2964 = vld [vmem:[%s2939 + $0x60] sm:$0xf]
      %v2965 = vld [vmem:[%s2939 + $0x64] sm:$0xf]
      %v2966 = vld [vmem:[%s2939 + $0x68] sm:$0xf]
      %v2967 = vld [vmem:[%s2939 + $0x6c] sm:$0xf]
      %v2968 = vld [vmem:[%s2939 + $0x70] sm:$0xf]
      %v2969 = vld [vmem:[%s2939 + $0x74] sm:$0xf]
      %v2970 = vld [vmem:[%s2939 + $0x78] sm:$0xf]
      %v2971 = vld [vmem:[%s2939 + $0x7c] sm:$0xf]
      %v3004 = vunpack.c.l.b16 %v2940
      %v3005 = vunpack.c.l.b16 %v2941
      %v3006 = vunpack.c.l.b16 %v2942
      %v3007 = vunpack.c.l.b16 %v2943
      %v3008 = vunpack.c.l.b16 %v2944
      %v3009 = vunpack.c.l.b16 %v2945
      %v3010 = vunpack.c.l.b16 %v2946
      %v3011 = vunpack.c.l.b16 %v2947
      %v3012 = vunpack.c.l.b16 %v2948
      %v3013 = vunpack.c.l.b16 %v2949
      %v3014 = vunpack.c.l.b16 %v2950
      %v3015 = vunpack.c.l.b16 %v2951
      %v3016 = vunpack.c.l.b16 %v2952
      %v3017 = vunpack.c.l.b16 %v2953
      %v3018 = vunpack.c.l.b16 %v2954
      %v3019 = vunpack.c.l.b16 %v2955
      %v3020 = vunpack.c.l.b16 %v2956
      %v3021 = vunpack.c.l.b16 %v2957
      %v3022 = vunpack.c.l.b16 %v2958
      %v3023 = vunpack.c.l.b16 %v2959
      %v3024 = vunpack.c.l.b16 %v2960
      %v3025 = vunpack.c.l.b16 %v2961
      %v3026 = vunpack.c.l.b16 %v2962
      %v3027 = vunpack.c.l.b16 %v2963
      %v3028 = vunpack.c.l.b16 %v2964
      %v3029 = vunpack.c.l.b16 %v2965
      %v3030 = vunpack.c.l.b16 %v2966
      %v3031 = vunpack.c.l.b16 %v2967
      %v3032 = vunpack.c.l.b16 %v2968
      %v3033 = vunpack.c.l.b16 %v2969
      %v3034 = vunpack.c.l.b16 %v2970
      %v3035 = vunpack.c.l.b16 %v2971
      %v3036 = vpack.c.b16 %v3005, %v3004
      %v3037 = vpack.c.b16 %v3007, %v3006
      %v3038 = vpack.c.b16 %v3009, %v3008
      %v3039 = vpack.c.b16 %v3011, %v3010
      %v3040 = vpack.c.b16 %v3013, %v3012
      %v3041 = vpack.c.b16 %v3015, %v3014
      %v3042 = vpack.c.b16 %v3017, %v3016
      %v3043 = vpack.c.b16 %v3019, %v3018
      %v3044 = vpack.c.b16 %v3021, %v3020
      %v3045 = vpack.c.b16 %v3023, %v3022
      %v3046 = vpack.c.b16 %v3025, %v3024
      %v3047 = vpack.c.b16 %v3027, %v3026
      %v3048 = vpack.c.b16 %v3029, %v3028
      %v3049 = vpack.c.b16 %v3031, %v3030
      %v3050 = vpack.c.b16 %v3033, %v3032
      %v3051 = vpack.c.b16 %v3035, %v3034
      %3068 = vmatprep.subr.bf16.mxu0 0
      %3069 = vmatpush1.bf16.msra.mxu0 %v3036
      %3070 = vmatprep.subr.bf16.mxu0 0
      %3071 = vmatpush1.bf16.msra.mxu0 %v3037
      %3072 = vmatprep.subr.bf16.mxu0 0
      %3073 = vmatpush1.bf16.msra.mxu0 %v3038
      %3074 = vmatprep.subr.bf16.mxu0 0
      %3075 = vmatpush1.bf16.msra.mxu0 %v3039
      %3076 = vmatprep.subr.bf16.mxu0 0
      %3077 = vmatpush1.bf16.msra.mxu0 %v3040
      %3078 = vmatprep.subr.bf16.mxu0 0
      %3079 = vmatpush1.bf16.msra.mxu0 %v3041
      %3080 = vmatprep.subr.bf16.mxu0 0
      %3081 = vmatpush1.bf16.msra.mxu0 %v3042
      %3082 = vmatprep.subr.bf16.mxu0 0
      %3083 = vmatpush1.bf16.msra.mxu0 %v3043
      %3084 = vmatprep.subr.bf16.mxu0 0
      %3085 = vmatpush1.bf16.msra.mxu0 %v3044
      %3086 = vmatprep.subr.bf16.mxu0 0
      %3087 = vmatpush1.bf16.msra.mxu0 %v3045
      %3088 = vmatprep.subr.bf16.mxu0 0
      %3089 = vmatpush1.bf16.msra.mxu0 %v3046
      %3090 = vmatprep.subr.bf16.mxu0 0
      %3091 = vmatpush1.bf16.msra.mxu0 %v3047
      %3092 = vmatprep.subr.bf16.mxu0 0
      %3093 = vmatpush1.bf16.msra.mxu0 %v3048
      %3094 = vmatprep.subr.bf16.mxu0 0
      %3095 = vmatpush1.bf16.msra.mxu0 %v3049
      %3096 = vmatprep.subr.bf16.mxu0 0
      %3097 = vmatpush1.bf16.msra.mxu0 %v3050
      %3098 = vmatprep.subr.bf16.mxu0 0
      %3099 = vmatpush1.bf16.msra.mxu0 %v3051
      %3100 = vmatprep.mubr.bf16.mxu0 %v1249
      %3101 = vmatmul.mubr.bf16.gmra.mrb[0].mxu0 %v1248
      %v3102 = vpop.f32.mrb[0].mxu0
      %v3103 = vadd.f32 0.0, %v3102
      %v3104 = vpop.f32.mrb[0].mxu0
      %v3105 = vpop.f32.mrb[0].mxu0
      %v3106 = vpop.f32.mrb[0].mxu0
      %3107 = vdwg.mxu0
      %s3108 = scalar_lea.vmem %s3, 112
      %v3109 = vld [vmem:[%s3108] sm:$0xf]
      %v3110 = vld [vmem:[%s3108 + $0x4] sm:$0xf]
      %v3111 = vld [vmem:[%s3108 + $0x8] sm:$0xf]
      %v3112 = vld [vmem:[%s3108 + $0xc] sm:$0xf]
      %v3113 = vpack.c.bf16 %v3103, %v3103
      %v3118 = vunpack.c.l.b16 %v3109
      %v3119 = vunpack.c.l.b16 %v3110
      %v3120 = vunpack.c.l.b16 %v3111
      %v3121 = vunpack.c.l.b16 %v3112
      %v3122 = vpack.c.b16 %v3119, %v3118
      %v3123 = vpack.c.b16 %v3121, %v3120
      %v3125 = vsel %vm1576, %v3122, 0
      %v3128 = vsel %vm1576, %v3123, 0
      %v3131 = vsel %vm1583, %v3113, 0
      %3133 = vmatprep.subr.bf16.mxu0 0
      %3134 = vmatpush1.bf16.msra.mxu0 %v3131
      %3135 = vmatprep.subr.bf16.mxu0 0
      %3136 = vmatpush1.bf16.msra.mxu0 0
      %3137 = vmatprep.subr.bf16.mxu0 0
      %3138 = vmatpush1.bf16.msra.mxu0 0
      %3139 = vmatprep.subr.bf16.mxu0 0
      %3140 = vmatpush1.bf16.msra.mxu0 0
      %3141 = vmatprep.subr.bf16.mxu0 0
      %3142 = vmatpush1.bf16.msra.mxu0 0
      %3143 = vmatprep.subr.bf16.mxu0 0
      %3144 = vmatpush1.bf16.msra.mxu0 0
      %3145 = vmatprep.subr.bf16.mxu0 0
      %3146 = vmatpush1.bf16.msra.mxu0 0
      %3147 = vmatprep.subr.bf16.mxu0 0
      %3148 = vmatpush1.bf16.msra.mxu0 0
      %3149 = vmatprep.subr.bf16.mxu0 0
      %3150 = vmatpush1.bf16.msra.mxu0 0
      %3151 = vmatprep.subr.bf16.mxu0 0
      %3152 = vmatpush1.bf16.msra.mxu0 0
      %3153 = vmatprep.subr.bf16.mxu0 0
      %3154 = vmatpush1.bf16.msra.mxu0 0
      %3155 = vmatprep.subr.bf16.mxu0 0
      %3156 = vmatpush1.bf16.msra.mxu0 0
      %3157 = vmatprep.subr.bf16.mxu0 0
      %3158 = vmatpush1.bf16.msra.mxu0 0
      %3159 = vmatprep.subr.bf16.mxu0 0
      %3160 = vmatpush1.bf16.msra.mxu0 0
      %3161 = vmatprep.subr.bf16.mxu0 0
      %3162 = vmatpush1.bf16.msra.mxu0 0
      %3163 = vmatprep.subr.bf16.mxu0 0
      %3164 = vmatpush1.bf16.msra.mxu0 0
      %3165 = vmatprep.mubr.bf16.mxu0 0
      %3166 = vmatmul.mubr.bf16.gmra.mrb[0].mxu0 %v3125
      %v3167 = vpop.f32.mrb[0].mxu0
      %v3168 = vadd.f32 0.0, %v3167
      %v3169 = vpop.f32.mrb[0].mxu0
      %v3170 = vpop.f32.mrb[0].mxu0
      %v3171 = vadd.f32 0.0, %v3170
      %v3172 = vpop.f32.mrb[0].mxu0
      %3173 = vmatprep.mubr.bf16.mxu0 0
      %3174 = vmatmul.mubr.bf16.gmra.mrb[0].mxu0 %v3128
      %v3175 = vpop.f32.mrb[0].mxu0
      %v3176 = vadd.f32 0.0, %v3175
      %v3177 = vpop.f32.mrb[0].mxu0
      %v3178 = vpop.f32.mrb[0].mxu0
      %v3179 = vadd.f32 0.0, %v3178
      %v3180 = vpop.f32.mrb[0].mxu0
      %3181 = vdwg.mxu0
      %v3182 = vadd.f32 %v2935, %v3168
      %v3183 = vadd.f32 %v2936, %v3171
      %v3184 = vadd.f32 %v2937, %v3176
      %v3185 = vadd.f32 %v2938, %v3179
      %s3186 = scalar_lea.vmem %s5, 1024
      %v3187 = vld [vmem:[%s3186] sm:$0xf]
      %v3188 = vld [vmem:[%s3186 + $0x4] sm:$0xf]
      %v3189 = vld [vmem:[%s3186 + $0x8] sm:$0xf]
      %v3190 = vld [vmem:[%s3186 + $0xc] sm:$0xf]
      %v3191 = vld [vmem:[%s3186 + $0x10] sm:$0xf]
      %v3192 = vld [vmem:[%s3186 + $0x14] sm:$0xf]
      %v3193 = vld [vmem:[%s3186 + $0x18] sm:$0xf]
      %v3194 = vld [vmem:[%s3186 + $0x1c] sm:$0xf]
      %v3195 = vld [vmem:[%s3186 + $0x20] sm:$0xf]
      %v3196 = vld [vmem:[%s3186 + $0x24] sm:$0xf]
      %v3197 = vld [vmem:[%s3186 + $0x28] sm:$0xf]
      %v3198 = vld [vmem:[%s3186 + $0x2c] sm:$0xf]
      %v3199 = vld [vmem:[%s3186 + $0x30] sm:$0xf]
      %v3200 = vld [vmem:[%s3186 + $0x34] sm:$0xf]
      %v3201 = vld [vmem:[%s3186 + $0x38] sm:$0xf]
      %v3202 = vld [vmem:[%s3186 + $0x3c] sm:$0xf]
      %v3203 = vld [vmem:[%s3186 + $0x40] sm:$0xf]
      %v3204 = vld [vmem:[%s3186 + $0x44] sm:$0xf]
      %v3205 = vld [vmem:[%s3186 + $0x48] sm:$0xf]
      %v3206 = vld [vmem:[%s3186 + $0x4c] sm:$0xf]
      %v3207 = vld [vmem:[%s3186 + $0x50] sm:$0xf]
      %v3208 = vld [vmem:[%s3186 + $0x54] sm:$0xf]
      %v3209 = vld [vmem:[%s3186 + $0x58] sm:$0xf]
      %v3210 = vld [vmem:[%s3186 + $0x5c] sm:$0xf]
      %v3211 = vld [vmem:[%s3186 + $0x60] sm:$0xf]
      %v3212 = vld [vmem:[%s3186 + $0x64] sm:$0xf]
      %v3213 = vld [vmem:[%s3186 + $0x68] sm:$0xf]
      %v3214 = vld [vmem:[%s3186 + $0x6c] sm:$0xf]
      %v3215 = vld [vmem:[%s3186 + $0x70] sm:$0xf]
      %v3216 = vld [vmem:[%s3186 + $0x74] sm:$0xf]
      %v3217 = vld [vmem:[%s3186 + $0x78] sm:$0xf]
      %v3218 = vld [vmem:[%s3186 + $0x7c] sm:$0xf]
      %v3251 = vunpack.c.l.b16 %v3187
      %v3252 = vunpack.c.l.b16 %v3188
      %v3253 = vunpack.c.l.b16 %v3189
      %v3254 = vunpack.c.l.b16 %v3190
      %v3255 = vunpack.c.l.b16 %v3191
      %v3256 = vunpack.c.l.b16 %v3192
      %v3257 = vunpack.c.l.b16 %v3193
      %v3258 = vunpack.c.l.b16 %v3194
      %v3259 = vunpack.c.l.b16 %v3195
      %v3260 = vunpack.c.l.b16 %v3196
      %v3261 = vunpack.c.l.b16 %v3197
      %v3262 = vunpack.c.l.b16 %v3198
      %v3263 = vunpack.c.l.b16 %v3199
      %v3264 = vunpack.c.l.b16 %v3200
      %v3265 = vunpack.c.l.b16 %v3201
      %v3266 = vunpack.c.l.b16 %v3202
      %v3267 = vunpack.c.l.b16 %v3203
      %v3268 = vunpack.c.l.b16 %v3204
      %v3269 = vunpack.c.l.b16 %v3205
      %v3270 = vunpack.c.l.b16 %v3206
      %v3271 = vunpack.c.l.b16 %v3207
      %v3272 = vunpack.c.l.b16 %v3208
      %v3273 = vunpack.c.l.b16 %v3209
      %v3274 = vunpack.c.l.b16 %v3210
      %v3275 = vunpack.c.l.b16 %v3211
      %v3276 = vunpack.c.l.b16 %v3212
      %v3277 = vunpack.c.l.b16 %v3213
      %v3278 = vunpack.c.l.b16 %v3214
      %v3279 = vunpack.c.l.b16 %v3215
      %v3280 = vunpack.c.l.b16 %v3216
      %v3281 = vunpack.c.l.b16 %v3217
      %v3282 = vunpack.c.l.b16 %v3218
      %v3283 = vpack.c.b16 %v3252, %v3251
      %v3284 = vpack.c.b16 %v3254, %v3253
      %v3285 = vpack.c.b16 %v3256, %v3255
      %v3286 = vpack.c.b16 %v3258, %v3257
      %v3287 = vpack.c.b16 %v3260, %v3259
      %v3288 = vpack.c.b16 %v3262, %v3261
      %v3289 = vpack.c.b16 %v3264, %v3263
      %v3290 = vpack.c.b16 %v3266, %v3265
      %v3291 = vpack.c.b16 %v3268, %v3267
      %v3292 = vpack.c.b16 %v3270, %v3269
      %v3293 = vpack.c.b16 %v3272, %v3271
      %v3294 = vpack.c.b16 %v3274, %v3273
      %v3295 = vpack.c.b16 %v3276, %v3275
      %v3296 = vpack.c.b16 %v3278, %v3277
      %v3297 = vpack.c.b16 %v3280, %v3279
      %v3298 = vpack.c.b16 %v3282, %v3281
      %3315 = vmatprep.subr.bf16.mxu0 0
      %3316 = vmatpush1.bf16.msra.mxu0 %v3283
      %3317 = vmatprep.subr.bf16.mxu0 0
      %3318 = vmatpush1.bf16.msra.mxu0 %v3284
      %3319 = vmatprep.subr.bf16.mxu0 0
      %3320 = vmatpush1.bf16.msra.mxu0 %v3285
      %3321 = vmatprep.subr.bf16.mxu0 0
      %3322 = vmatpush1.bf16.msra.mxu0 %v3286
      %3323 = vmatprep.subr.bf16.mxu0 0
      %3324 = vmatpush1.bf16.msra.mxu0 %v3287
      %3325 = vmatprep.subr.bf16.mxu0 0
      %3326 = vmatpush1.bf16.msra.mxu0 %v3288
      %3327 = vmatprep.subr.bf16.mxu0 0
      %3328 = vmatpush1.bf16.msra.mxu0 %v3289
      %3329 = vmatprep.subr.bf16.mxu0 0
      %3330 = vmatpush1.bf16.msra.mxu0 %v3290
      %3331 = vmatprep.subr.bf16.mxu0 0
      %3332 = vmatpush1.bf16.msra.mxu0 %v3291
      %3333 = vmatprep.subr.bf16.mxu0 0
      %3334 = vmatpush1.bf16.msra.mxu0 %v3292
      %3335 = vmatprep.subr.bf16.mxu0 0
      %3336 = vmatpush1.bf16.msra.mxu0 %v3293
      %3337 = vmatprep.subr.bf16.mxu0 0
      %3338 = vmatpush1.bf16.msra.mxu0 %v3294
      %3339 = vmatprep.subr.bf16.mxu0 0
      %3340 = vmatpush1.bf16.msra.mxu0 %v3295
      %3341 = vmatprep.subr.bf16.mxu0 0
      %3342 = vmatpush1.bf16.msra.mxu0 %v3296
      %3343 = vmatprep.subr.bf16.mxu0 0
      %3344 = vmatpush1.bf16.msra.mxu0 %v3297
      %3345 = vmatprep.subr.bf16.mxu0 0
      %3346 = vmatpush1.bf16.msra.mxu0 %v3298
      %3347 = vmatprep.mubr.bf16.mxu0 %v1249
      %3348 = vmatmul.mubr.bf16.gmra.mrb[0].mxu0 %v1248
      %v3349 = vpop.f32.mrb[0].mxu0
      %v3350 = vadd.f32 0.0, %v3349
      %v3351 = vpop.f32.mrb[0].mxu0
      %v3352 = vpop.f32.mrb[0].mxu0
      %v3353 = vpop.f32.mrb[0].mxu0
      %3354 = vdwg.mxu0
      %s3355 = scalar_lea.vmem %s3, 128
      %v3356 = vld [vmem:[%s3355] sm:$0xf]
      %v3357 = vld [vmem:[%s3355 + $0x4] sm:$0xf]
      %v3358 = vld [vmem:[%s3355 + $0x8] sm:$0xf]
      %v3359 = vld [vmem:[%s3355 + $0xc] sm:$0xf]
      %v3360 = vpack.c.bf16 %v3350, %v3350
      %v3365 = vunpack.c.l.b16 %v3356
      %v3366 = vunpack.c.l.b16 %v3357
      %v3367 = vunpack.c.l.b16 %v3358
      %v3368 = vunpack.c.l.b16 %v3359
      %v3369 = vpack.c.b16 %v3366, %v3365
      %v3370 = vpack.c.b16 %v3368, %v3367
      %v3372 = vsel %vm1576, %v3369, 0
      %v3375 = vsel %vm1576, %v3370, 0
      %v3378 = vsel %vm1583, %v3360, 0
      %3380 = vmatprep.subr.bf16.mxu0 0
      %3381 = vmatpush1.bf16.msra.mxu0 %v3378
      %3382 = vmatprep.subr.bf16.mxu0 0
      %3383 = vmatpush1.bf16.msra.mxu0 0
      %3384 = vmatprep.subr.bf16.mxu0 0
      %3385 = vmatpush1.bf16.msra.mxu0 0
      %3386 = vmatprep.subr.bf16.mxu0 0
      %3387 = vmatpush1.bf16.msra.mxu0 0
      %3388 = vmatprep.subr.bf16.mxu0 0
      %3389 = vmatpush1.bf16.msra.mxu0 0
      %3390 = vmatprep.subr.bf16.mxu0 0
      %3391 = vmatpush1.bf16.msra.mxu0 0
      %3392 = vmatprep.subr.bf16.mxu0 0
      %3393 = vmatpush1.bf16.msra.mxu0 0
      %3394 = vmatprep.subr.bf16.mxu0 0
      %3395 = vmatpush1.bf16.msra.mxu0 0
      %3396 = vmatprep.subr.bf16.mxu0 0
      %3397 = vmatpush1.bf16.msra.mxu0 0
      %3398 = vmatprep.subr.bf16.mxu0 0
      %3399 = vmatpush1.bf16.msra.mxu0 0
      %3400 = vmatprep.subr.bf16.mxu0 0
      %3401 = vmatpush1.bf16.msra.mxu0 0
      %3402 = vmatprep.subr.bf16.mxu0 0
      %3403 = vmatpush1.bf16.msra.mxu0 0
      %3404 = vmatprep.subr.bf16.mxu0 0
      %3405 = vmatpush1.bf16.msra.mxu0 0
      %3406 = vmatprep.subr.bf16.mxu0 0
      %3407 = vmatpush1.bf16.msra.mxu0 0
      %3408 = vmatprep.subr.bf16.mxu0 0
      %3409 = vmatpush1.bf16.msra.mxu0 0
      %3410 = vmatprep.subr.bf16.mxu0 0
      %3411 = vmatpush1.bf16.msra.mxu0 0
      %3412 = vmatprep.mubr.bf16.mxu0 0
      %3413 = vmatmul.mubr.bf16.gmra.mrb[0].mxu0 %v3372
      %v3414 = vpop.f32.mrb[0].mxu0
      %v3415 = vadd.f32 0.0, %v3414
      %v3416 = vpop.f32.mrb[0].mxu0
      %v3417 = vpop.f32.mrb[0].mxu0
      %v3418 = vadd.f32 0.0, %v3417
      %v3419 = vpop.f32.mrb[0].mxu0
      %3420 = vmatprep.mubr.bf16.mxu0 0
      %3421 = vmatmul.mubr.bf16.gmra.mrb[0].mxu0 %v3375
      %v3422 = vpop.f32.mrb[0].mxu0
      %v3423 = vadd.f32 0.0, %v3422
      %v3424 = vpop.f32.mrb[0].mxu0
      %v3425 = vpop.f32.mrb[0].mxu0
      %v3426 = vadd.f32 0.0, %v3425
      %v3427 = vpop.f32.mrb[0].mxu0
      %3428 = vdwg.mxu0
      %v3429 = vadd.f32 %v3182, %v3415
      %v3430 = vadd.f32 %v3183, %v3418
      %v3431 = vadd.f32 %v3184, %v3423
      %v3432 = vadd.f32 %v3185, %v3426
      %v3433 = vld [vmem:[%s7] sm:$0x3]
      %v3434 = vpack.c.bf16 %v3430, %v3429
      %v3435 = vpack.c.bf16 %v3432, %v3431
      %v3436 = vld [vmem:[%s9] sm:$0xf]
      %3438 = vset.pattern.permute.xlu0 0
      %3439 = vperm.xlu0 %3438, %v3436
      %v3440 = vpop.permute.xlu0 %3439
      %vm3442 = vcmask 261120
      %v3444 = vsel %vm3442, %v3433, 0
      %3446 = vmatprep.subr.bf16.mxu0 0
      %3447 = vmatpush1.bf16.msra.mxu0 %v3434
      %3448 = vmatprep.subr.bf16.mxu0 0
      %3449 = vmatpush1.bf16.msra.mxu0 %v3435
      %3450 = vmatprep.subr.bf16.mxu0 0
      %3451 = vmatpush1.bf16.msra.mxu0 0
      %3452 = vmatprep.subr.bf16.mxu0 0
      %3453 = vmatpush1.bf16.msra.mxu0 0
      %3454 = vmatprep.subr.bf16.mxu0 0
      %3455 = vmatpush1.bf16.msra.mxu0 0
      %3456 = vmatprep.subr.bf16.mxu0 0
      %3457 = vmatpush1.bf16.msra.mxu0 0
      %3458 = vmatprep.subr.bf16.mxu0 0
      %3459 = vmatpush1.bf16.msra.mxu0 0
      %3460 = vmatprep.subr.bf16.mxu0 0
      %3461 = vmatpush1.bf16.msra.mxu0 0
      %3462 = vmatprep.subr.bf16.mxu0 0
      %3463 = vmatpush1.bf16.msra.mxu0 0
      %3464 = vmatprep.subr.bf16.mxu0 0
      %3465 = vmatpush1.bf16.msra.mxu0 0
      %3466 = vmatprep.subr.bf16.mxu0 0
      %3467 = vmatpush1.bf16.msra.mxu0 0
      %3468 = vmatprep.subr.bf16.mxu0 0
      %3469 = vmatpush1.bf16.msra.mxu0 0
      %3470 = vmatprep.subr.bf16.mxu0 0
      %3471 = vmatpush1.bf16.msra.mxu0 0
      %3472 = vmatprep.subr.bf16.mxu0 0
      %3473 = vmatpush1.bf16.msra.mxu0 0
      %3474 = vmatprep.subr.bf16.mxu0 0
      %3475 = vmatpush1.bf16.msra.mxu0 0
      %3476 = vmatprep.subr.bf16.mxu0 0
      %3477 = vmatpush1.bf16.msra.mxu0 0
      %3478 = vmatprep.mubr.bf16.mxu0 0
      %3479 = vmatmul.mubr.bf16.gmra.mrb[0].mxu0 %v3444
      %v3480 = vpop.f32.mrb[0].mxu0
      %v3481 = vadd.f32 %v3440, %v3480
      %v3482 = vpop.f32.mrb[0].mxu0
      %v3483 = vpop.f32.mrb[0].mxu0
      %v3484 = vpop.f32.mrb[0].mxu0
      %3485 = vdwg.mxu0
      %v3486 = vmax.f32 %v3481, 0.0
      %v3487 = vld [vmem:[%s13] sm:$0xf]
      %v3488 = vld [vmem:[%s13 + $0x4] sm:$0xf]
      %v3489 = vld [vmem:[%s13 + $0x8] sm:$0xf]
      %v3490 = vld [vmem:[%s13 + $0xc] sm:$0xf]
      %v3491 = vld [vmem:[%s13 + $0x10] sm:$0xf]
      %v3492 = vld [vmem:[%s13 + $0x14] sm:$0xf]
      %v3493 = vld [vmem:[%s13 + $0x18] sm:$0xf]
      %v3494 = vld [vmem:[%s13 + $0x1c] sm:$0xf]
      %v3495 = vpack.c.bf16 %v3486, %v3486
      %v3504 = vunpack.c.l.b16 %v3487
      %v3505 = vunpack.c.l.b16 %v3488
      %v3506 = vunpack.c.l.b16 %v3489
      %v3507 = vunpack.c.l.b16 %v3490
      %v3508 = vunpack.c.l.b16 %v3491
      %v3509 = vunpack.c.l.b16 %v3492
      %v3510 = vunpack.c.l.b16 %v3493
      %v3511 = vunpack.c.l.b16 %v3494
      %v3512 = vpack.c.b16 %v3505, %v3504
      %v3513 = vpack.c.b16 %v3507, %v3506
      %v3514 = vpack.c.b16 %v3509, %v3508
      %v3515 = vpack.c.b16 %v3511, %v3510
      %vm3520 = vcmask 523264
      %v3522 = vsel %vm3520, %v3495, 0
      %3524 = vmatprep.subr.bf16.mxu0 0
      %3525 = vmatpush1.bf16.msra.mxu0 %v3512
      %3526 = vmatprep.subr.bf16.mxu0 0
      %3527 = vmatpush1.bf16.msra.mxu0 %v3513
      %3528 = vmatprep.subr.bf16.mxu0 0
      %3529 = vmatpush1.bf16.msra.mxu0 %v3514
      %3530 = vmatprep.subr.bf16.mxu0 0
      %3531 = vmatpush1.bf16.msra.mxu0 %v3515
      %3532 = vmatprep.subr.bf16.mxu0 0
      %3533 = vmatpush1.bf16.msra.mxu0 0
      %3534 = vmatprep.subr.bf16.mxu0 0
      %3535 = vmatpush1.bf16.msra.mxu0 0
      %3536 = vmatprep.subr.bf16.mxu0 0
      %3537 = vmatpush1.bf16.msra.mxu0 0
      %3538 = vmatprep.subr.bf16.mxu0 0
      %3539 = vmatpush1.bf16.msra.mxu0 0
      %3540 = vmatprep.subr.bf16.mxu0 0
      %3541 = vmatpush1.bf16.msra.mxu0 0
      %3542 = vmatprep.subr.bf16.mxu0 0
      %3543 = vmatpush1.bf16.msra.mxu0 0
      %3544 = vmatprep.subr.bf16.mxu0 0
      %3545 = vmatpush1.bf16.msra.mxu0 0
      %3546 = vmatprep.subr.bf16.mxu0 0
      %3547 = vmatpush1.bf16.msra.mxu0 0
      %3548 = vmatprep.subr.bf16.mxu0 0
      %3549 = vmatpush1.bf16.msra.mxu0 0
      %3550 = vmatprep.subr.bf16.mxu0 0
      %3551 = vmatpush1.bf16.msra.mxu0 0
      %3552 = vmatprep.subr.bf16.mxu0 0
      %3553 = vmatpush1.bf16.msra.mxu0 0
      %3554 = vmatprep.subr.bf16.mxu0 0
      %3555 = vmatpush1.bf16.msra.mxu0 0
      %3556 = vmatprep.mubr.bf16.mxu0 0
      %3557 = vmatmul.mubr.bf16.gmra.mrb[0].mxu0 %v3522
      %v3558 = vpop.f32.mrb[0].mxu0
      %v3559 = vadd.f32 0.0, %v3558
      %v3560 = vpop.f32.mrb[0].mxu0
      %v3561 = vpop.f32.mrb[0].mxu0
      %v3562 = vpop.f32.mrb[0].mxu0
      %3563 = vdwg.mxu0
      %v3564 = vld [vmem:[%s11] sm:$0x3]
      %v3565 = vpack.c.bf16 %v3559, %v3559
      %s3566 = scalar_lea.vmem %s13, 32
      %v3567 = vld [vmem:[%s3566] sm:$0xf]
      %v3568 = vld [vmem:[%s3566 + $0x4] sm:$0xf]
      %v3569 = vld [vmem:[%s3566 + $0x8] sm:$0xf]
      %v3570 = vld [vmem:[%s3566 + $0xc] sm:$0xf]
      %v3571 = vld [vmem:[%s3566 + $0x10] sm:$0xf]
      %v3572 = vld [vmem:[%s3566 + $0x14] sm:$0xf]
      %v3573 = vld [vmem:[%s3566 + $0x18] sm:$0xf]
      %v3574 = vld [vmem:[%s3566 + $0x1c] sm:$0xf]
      %v3583 = vunpack.c.l.b16 %v3567
      %v3584 = vunpack.c.l.b16 %v3568
      %v3585 = vunpack.c.l.b16 %v3569
      %v3586 = vunpack.c.l.b16 %v3570
      %v3587 = vunpack.c.l.b16 %v3571
      %v3588 = vunpack.c.l.b16 %v3572
      %v3589 = vunpack.c.l.b16 %v3573
      %v3590 = vunpack.c.l.b16 %v3574
      %v3591 = vpack.c.b16 %v3584, %v3583
      %v3592 = vpack.c.b16 %v3586, %v3585
      %v3593 = vpack.c.b16 %v3588, %v3587
      %v3594 = vpack.c.b16 %v3590, %v3589
      %3599 = vmatprep.subr.bf16.mxu0 0
      %3600 = vmatpush1.bf16.msra.mxu0 %v3591
      %3601 = vmatprep.subr.bf16.mxu0 0
      %3602 = vmatpush1.bf16.msra.mxu0 %v3592
      %3603 = vmatprep.subr.bf16.mxu0 0
      %3604 = vmatpush1.bf16.msra.mxu0 %v3593
      %3605 = vmatprep.subr.bf16.mxu0 0
      %3606 = vmatpush1.bf16.msra.mxu0 %v3594
      %3607 = vmatprep.subr.bf16.mxu0 0
      %3608 = vmatpush1.bf16.msra.mxu0 0
      %3609 = vmatprep.subr.bf16.mxu0 0
      %3610 = vmatpush1.bf16.msra.mxu0 0
      %3611 = vmatprep.subr.bf16.mxu0 0
      %3612 = vmatpush1.bf16.msra.mxu0 0
      %3613 = vmatprep.subr.bf16.mxu0 0
      %3614 = vmatpush1.bf16.msra.mxu0 0
      %3615 = vmatprep.subr.bf16.mxu0 0
      %3616 = vmatpush1.bf16.msra.mxu0 0
      %3617 = vmatprep.subr.bf16.mxu0 0
      %3618 = vmatpush1.bf16.msra.mxu0 0
      %3619 = vmatprep.subr.bf16.mxu0 0
      %3620 = vmatpush1.bf16.msra.mxu0 0
      %3621 = vmatprep.subr.bf16.mxu0 0
      %3622 = vmatpush1.bf16.msra.mxu0 0
      %3623 = vmatprep.subr.bf16.mxu0 0
      %3624 = vmatpush1.bf16.msra.mxu0 0
      %3625 = vmatprep.subr.bf16.mxu0 0
      %3626 = vmatpush1.bf16.msra.mxu0 0
      %3627 = vmatprep.subr.bf16.mxu0 0
      %3628 = vmatpush1.bf16.msra.mxu0 0
      %3629 = vmatprep.subr.bf16.mxu0 0
      %3630 = vmatpush1.bf16.msra.mxu0 0
      %3631 = vmatprep.mubr.bf16.mxu0 0
      %3632 = vmatmul.mubr.bf16.gmra.mrb[0].mxu0 %v3522
      %v3633 = vpop.f32.mrb[0].mxu0
      %v3634 = vadd.f32 0.0, %v3633
      %v3635 = vpop.f32.mrb[0].mxu0
      %v3636 = vpop.f32.mrb[0].mxu0
      %v3637 = vpop.f32.mrb[0].mxu0
      %3638 = vdwg.mxu0
      %s3639 = scalar_lea.vmem %s11, 2
      %v3640 = vld [vmem:[%s3639] sm:$0x3]
      %v3641 = vpack.c.bf16 %v3634, %v3634
      %v3643 = vsel %vm1576, %v3640, 0
      %v3646 = vsel %vm1583, %v3641, 0
      %3648 = vmatprep.subr.bf16.mxu0 0
      %3649 = vmatpush1.bf16.msra.mxu0 %v3646
      %3650 = vmatprep.subr.bf16.mxu0 0
      %3651 = vmatpush1.bf16.msra.mxu0 0
      %3652 = vmatprep.subr.bf16.mxu0 0
      %3653 = vmatpush1.bf16.msra.mxu0 0
      %3654 = vmatprep.subr.bf16.mxu0 0
      %3655 = vmatpush1.bf16.msra.mxu0 0
      %3656 = vmatprep.subr.bf16.mxu0 0
      %3657 = vmatpush1.bf16.msra.mxu0 0
      %3658 = vmatprep.subr.bf16.mxu0 0
      %3659 = vmatpush1.bf16.msra.mxu0 0
      %3660 = vmatprep.subr.bf16.mxu0 0
      %3661 = vmatpush1.bf16.msra.mxu0 0
      %3662 = vmatprep.subr.bf16.mxu0 0
      %3663 = vmatpush1.bf16.msra.mxu0 0
      %3664 = vmatprep.subr.bf16.mxu0 0
      %3665 = vmatpush1.bf16.msra.mxu0 0
      %3666 = vmatprep.subr.bf16.mxu0 0
      %3667 = vmatpush1.bf16.msra.mxu0 0
      %3668 = vmatprep.subr.bf16.mxu0 0
      %3669 = vmatpush1.bf16.msra.mxu0 0
      %3670 = vmatprep.subr.bf16.mxu0 0
      %3671 = vmatpush1.bf16.msra.mxu0 0
      %3672 = vmatprep.subr.bf16.mxu0 0
      %3673 = vmatpush1.bf16.msra.mxu0 0
      %3674 = vmatprep.subr.bf16.mxu0 0
      %3675 = vmatpush1.bf16.msra.mxu0 0
      %3676 = vmatprep.subr.bf16.mxu0 0
      %3677 = vmatpush1.bf16.msra.mxu0 0
      %3678 = vmatprep.subr.bf16.mxu0 0
      %3679 = vmatpush1.bf16.msra.mxu0 0
      %3680 = vmatprep.mubr.bf16.mxu0 0
      %3681 = vmatmul.mubr.bf16.gmra.mrb[0].mxu0 %v3643
      %v3682 = vpop.f32.mrb[0].mxu0
      %v3683 = vadd.f32 0.0, %v3682
      %v3684 = vpop.f32.mrb[0].mxu0
      %v3685 = vpop.f32.mrb[0].mxu0
      %v3686 = vpop.f32.mrb[0].mxu0
      %3687 = vdwg.mxu0
      %v3689 = vsel %vm1576, %v3564, 0
      %v3692 = vsel %vm1583, %v3565, 0
      %3694 = vmatprep.subr.bf16.mxu0 0
      %3695 = vmatpush1.bf16.msra.mxu0 %v3692
      %3696 = vmatprep.subr.bf16.mxu0 0
      %3697 = vmatpush1.bf16.msra.mxu0 0
      %3698 = vmatprep.subr.bf16.mxu0 0
      %3699 = vmatpush1.bf16.msra.mxu0 0
      %3700 = vmatprep.subr.bf16.mxu0 0
      %3701 = vmatpush1.bf16.msra.mxu0 0
      %3702 = vmatprep.subr.bf16.mxu0 0
      %3703 = vmatpush1.bf16.msra.mxu0 0
      %3704 = vmatprep.subr.bf16.mxu0 0
      %3705 = vmatpush1.bf16.msra.mxu0 0
      %3706 = vmatprep.subr.bf16.mxu0 0
      %3707 = vmatpush1.bf16.msra.mxu0 0
      %3708 = vmatprep.subr.bf16.mxu0 0
      %3709 = vmatpush1.bf16.msra.mxu0 0
      %3710 = vmatprep.subr.bf16.mxu0 0
      %3711 = vmatpush1.bf16.msra.mxu0 0
      %3712 = vmatprep.subr.bf16.mxu0 0
      %3713 = vmatpush1.bf16.msra.mxu0 0
      %3714 = vmatprep.subr.bf16.mxu0 0
      %3715 = vmatpush1.bf16.msra.mxu0 0
      %3716 = vmatprep.subr.bf16.mxu0 0
      %3717 = vmatpush1.bf16.msra.mxu0 0
      %3718 = vmatprep.subr.bf16.mxu0 0
      %3719 = vmatpush1.bf16.msra.mxu0 0
      %3720 = vmatprep.subr.bf16.mxu0 0
      %3721 = vmatpush1.bf16.msra.mxu0 0
      %3722 = vmatprep.subr.bf16.mxu0 0
      %3723 = vmatpush1.bf16.msra.mxu0 0
      %3724 = vmatprep.subr.bf16.mxu0 0
      %3725 = vmatpush1.bf16.msra.mxu0 0
      %3726 = vmatprep.mubr.bf16.mxu0 0
      %3727 = vmatmul.mubr.bf16.gmra.mrb[0].mxu0 %v3689
      %v3728 = vpop.f32.mrb[0].mxu0
      %v3729 = vadd.f32 %v3683, %v3728
      %v3730 = vpop.f32.mrb[0].mxu0
      %v3731 = vpop.f32.mrb[0].mxu0
      %v3732 = vpop.f32.mrb[0].mxu0
      %3733 = vdwg.mxu0
      %s3734 = scalar_lea.vmem %s13, 64
      %v3735 = vld [vmem:[%s3734] sm:$0xf]
      %v3736 = vld [vmem:[%s3734 + $0x4] sm:$0xf]
      %v3737 = vld [vmem:[%s3734 + $0x8] sm:$0xf]
      %v3738 = vld [vmem:[%s3734 + $0xc] sm:$0xf]
      %v3739 = vld [vmem:[%s3734 + $0x10] sm:$0xf]
      %v3740 = vld [vmem:[%s3734 + $0x14] sm:$0xf]
      %v3741 = vld [vmem:[%s3734 + $0x18] sm:$0xf]
      %v3742 = vld [vmem:[%s3734 + $0x1c] sm:$0xf]
      %v3751 = vunpack.c.l.b16 %v3735
      %v3752 = vunpack.c.l.b16 %v3736
      %v3753 = vunpack.c.l.b16 %v3737
      %v3754 = vunpack.c.l.b16 %v3738
      %v3755 = vunpack.c.l.b16 %v3739
      %v3756 = vunpack.c.l.b16 %v3740
      %v3757 = vunpack.c.l.b16 %v3741
      %v3758 = vunpack.c.l.b16 %v3742
      %v3759 = vpack.c.b16 %v3752, %v3751
      %v3760 = vpack.c.b16 %v3754, %v3753
      %v3761 = vpack.c.b16 %v3756, %v3755
      %v3762 = vpack.c.b16 %v3758, %v3757
      %3767 = vmatprep.subr.bf16.mxu0 0
      %3768 = vmatpush1.bf16.msra.mxu0 %v3759
      %3769 = vmatprep.subr.bf16.mxu0 0
      %3770 = vmatpush1.bf16.msra.mxu0 %v3760
      %3771 = vmatprep.subr.bf16.mxu0 0
      %3772 = vmatpush1.bf16.msra.mxu0 %v3761
      %3773 = vmatprep.subr.bf16.mxu0 0
      %3774 = vmatpush1.bf16.msra.mxu0 %v3762
      %3775 = vmatprep.subr.bf16.mxu0 0
      %3776 = vmatpush1.bf16.msra.mxu0 0
      %3777 = vmatprep.subr.bf16.mxu0 0
      %3778 = vmatpush1.bf16.msra.mxu0 0
      %3779 = vmatprep.subr.bf16.mxu0 0
      %3780 = vmatpush1.bf16.msra.mxu0 0
      %3781 = vmatprep.subr.bf16.mxu0 0
      %3782 = vmatpush1.bf16.msra.mxu0 0
      %3783 = vmatprep.subr.bf16.mxu0 0
      %3784 = vmatpush1.bf16.msra.mxu0 0
      %3785 = vmatprep.subr.bf16.mxu0 0
      %3786 = vmatpush1.bf16.msra.mxu0 0
      %3787 = vmatprep.subr.bf16.mxu0 0
      %3788 = vmatpush1.bf16.msra.mxu0 0
      %3789 = vmatprep.subr.bf16.mxu0 0
      %3790 = vmatpush1.bf16.msra.mxu0 0
      %3791 = vmatprep.subr.bf16.mxu0 0
      %3792 = vmatpush1.bf16.msra.mxu0 0
      %3793 = vmatprep.subr.bf16.mxu0 0
      %3794 = vmatpush1.bf16.msra.mxu0 0
      %3795 = vmatprep.subr.bf16.mxu0 0
      %3796 = vmatpush1.bf16.msra.mxu0 0
      %3797 = vmatprep.subr.bf16.mxu0 0
      %3798 = vmatpush1.bf16.msra.mxu0 0
      %3799 = vmatprep.mubr.bf16.mxu0 0
      %3800 = vmatmul.mubr.bf16.gmra.mrb[0].mxu0 %v3522
      %v3801 = vpop.f32.mrb[0].mxu0
      %v3802 = vadd.f32 0.0, %v3801
      %v3803 = vpop.f32.mrb[0].mxu0
      %v3804 = vpop.f32.mrb[0].mxu0
      %v3805 = vpop.f32.mrb[0].mxu0
      %3806 = vdwg.mxu0
      %s3807 = scalar_lea.vmem %s11, 4
      %v3808 = vld [vmem:[%s3807] sm:$0x3]
      %v3809 = vpack.c.bf16 %v3802, %v3802
      %v3811 = vsel %vm1576, %v3808, 0
      %v3814 = vsel %vm1583, %v3809, 0
      %3816 = vmatprep.subr.bf16.mxu0 0
      %3817 = vmatpush1.bf16.msra.mxu0 %v3814
      %3818 = vmatprep.subr.bf16.mxu0 0
      %3819 = vmatpush1.bf16.msra.mxu0 0
      %3820 = vmatprep.subr.bf16.mxu0 0
      %3821 = vmatpush1.bf16.msra.mxu0 0
      %3822 = vmatprep.subr.bf16.mxu0 0
      %3823 = vmatpush1.bf16.msra.mxu0 0
      %3824 = vmatprep.subr.bf16.mxu0 0
      %3825 = vmatpush1.bf16.msra.mxu0 0
      %3826 = vmatprep.subr.bf16.mxu0 0
      %3827 = vmatpush1.bf16.msra.mxu0 0
      %3828 = vmatprep.subr.bf16.mxu0 0
      %3829 = vmatpush1.bf16.msra.mxu0 0
      %3830 = vmatprep.subr.bf16.mxu0 0
      %3831 = vmatpush1.bf16.msra.mxu0 0
      %3832 = vmatprep.subr.bf16.mxu0 0
      %3833 = vmatpush1.bf16.msra.mxu0 0
      %3834 = vmatprep.subr.bf16.mxu0 0
      %3835 = vmatpush1.bf16.msra.mxu0 0
      %3836 = vmatprep.subr.bf16.mxu0 0
      %3837 = vmatpush1.bf16.msra.mxu0 0
      %3838 = vmatprep.subr.bf16.mxu0 0
      %3839 = vmatpush1.bf16.msra.mxu0 0
      %3840 = vmatprep.subr.bf16.mxu0 0
      %3841 = vmatpush1.bf16.msra.mxu0 0
      %3842 = vmatprep.subr.bf16.mxu0 0
      %3843 = vmatpush1.bf16.msra.mxu0 0
      %3844 = vmatprep.subr.bf16.mxu0 0
      %3845 = vmatpush1.bf16.msra.mxu0 0
      %3846 = vmatprep.subr.bf16.mxu0 0
      %3847 = vmatpush1.bf16.msra.mxu0 0
      %3848 = vmatprep.mubr.bf16.mxu0 0
      %3849 = vmatmul.mubr.bf16.gmra.mrb[0].mxu0 %v3811
      %v3850 = vpop.f32.mrb[0].mxu0
      %v3851 = vadd.f32 0.0, %v3850
      %v3852 = vpop.f32.mrb[0].mxu0
      %v3853 = vpop.f32.mrb[0].mxu0
      %v3854 = vpop.f32.mrb[0].mxu0
      %3855 = vdwg.mxu0
      %v3856 = vadd.f32 %v3729, %v3851
      %s3857 = scalar_lea.vmem %s13, 96
      %v3858 = vld [vmem:[%s3857] sm:$0xf]
      %v3859 = vld [vmem:[%s3857 + $0x4] sm:$0xf]
      %v3860 = vld [vmem:[%s3857 + $0x8] sm:$0xf]
      %v3861 = vld [vmem:[%s3857 + $0xc] sm:$0xf]
      %v3862 = vld [vmem:[%s3857 + $0x10] sm:$0xf]
      %v3863 = vld [vmem:[%s3857 + $0x14] sm:$0xf]
      %v3864 = vld [vmem:[%s3857 + $0x18] sm:$0xf]
      %v3865 = vld [vmem:[%s3857 + $0x1c] sm:$0xf]
      %v3874 = vunpack.c.l.b16 %v3858
      %v3875 = vunpack.c.l.b16 %v3859
      %v3876 = vunpack.c.l.b16 %v3860
      %v3877 = vunpack.c.l.b16 %v3861
      %v3878 = vunpack.c.l.b16 %v3862
      %v3879 = vunpack.c.l.b16 %v3863
      %v3880 = vunpack.c.l.b16 %v3864
      %v3881 = vunpack.c.l.b16 %v3865
      %v3882 = vpack.c.b16 %v3875, %v3874
      %v3883 = vpack.c.b16 %v3877, %v3876
      %v3884 = vpack.c.b16 %v3879, %v3878
      %v3885 = vpack.c.b16 %v3881, %v3880
      %3890 = vmatprep.subr.bf16.mxu0 0
      %3891 = vmatpush1.bf16.msra.mxu0 %v3882
      %3892 = vmatprep.subr.bf16.mxu0 0
      %3893 = vmatpush1.bf16.msra.mxu0 %v3883
      %3894 = vmatprep.subr.bf16.mxu0 0
      %3895 = vmatpush1.bf16.msra.mxu0 %v3884
      %3896 = vmatprep.subr.bf16.mxu0 0
      %3897 = vmatpush1.bf16.msra.mxu0 %v3885
      %3898 = vmatprep.subr.bf16.mxu0 0
      %3899 = vmatpush1.bf16.msra.mxu0 0
      %3900 = vmatprep.subr.bf16.mxu0 0
      %3901 = vmatpush1.bf16.msra.mxu0 0
      %3902 = vmatprep.subr.bf16.mxu0 0
      %3903 = vmatpush1.bf16.msra.mxu0 0
      %3904 = vmatprep.subr.bf16.mxu0 0
      %3905 = vmatpush1.bf16.msra.mxu0 0
      %3906 = vmatprep.subr.bf16.mxu0 0
      %3907 = vmatpush1.bf16.msra.mxu0 0
      %3908 = vmatprep.subr.bf16.mxu0 0
      %3909 = vmatpush1.bf16.msra.mxu0 0
      %3910 = vmatprep.subr.bf16.mxu0 0
      %3911 = vmatpush1.bf16.msra.mxu0 0
      %3912 = vmatprep.subr.bf16.mxu0 0
      %3913 = vmatpush1.bf16.msra.mxu0 0
      %3914 = vmatprep.subr.bf16.mxu0 0
      %3915 = vmatpush1.bf16.msra.mxu0 0
      %3916 = vmatprep.subr.bf16.mxu0 0
      %3917 = vmatpush1.bf16.msra.mxu0 0
      %3918 = vmatprep.subr.bf16.mxu0 0
      %3919 = vmatpush1.bf16.msra.mxu0 0
      %3920 = vmatprep.subr.bf16.mxu0 0
      %3921 = vmatpush1.bf16.msra.mxu0 0
      %3922 = vmatprep.mubr.bf16.mxu0 0
      %3923 = vmatmul.mubr.bf16.gmra.mrb[0].mxu0 %v3522
      %v3924 = vpop.f32.mrb[0].mxu0
      %v3925 = vadd.f32 0.0, %v3924
      %v3926 = vpop.f32.mrb[0].mxu0
      %v3927 = vpop.f32.mrb[0].mxu0
      %v3928 = vpop.f32.mrb[0].mxu0
      %3929 = vdwg.mxu0
      %s3930 = scalar_lea.vmem %s11, 6
      %v3931 = vld [vmem:[%s3930] sm:$0x3]
      %v3932 = vpack.c.bf16 %v3925, %v3925
      %v3934 = vsel %vm1576, %v3931, 0
      %v3937 = vsel %vm1583, %v3932, 0
      %3939 = vmatprep.subr.bf16.mxu0 0
      %3940 = vmatpush1.bf16.msra.mxu0 %v3937
      %3941 = vmatprep.subr.bf16.mxu0 0
      %3942 = vmatpush1.bf16.msra.mxu0 0
      %3943 = vmatprep.subr.bf16.mxu0 0
      %3944 = vmatpush1.bf16.msra.mxu0 0
      %3945 = vmatprep.subr.bf16.mxu0 0
      %3946 = vmatpush1.bf16.msra.mxu0 0
      %3947 = vmatprep.subr.bf16.mxu0 0
      %3948 = vmatpush1.bf16.msra.mxu0 0
      %3949 = vmatprep.subr.bf16.mxu0 0
      %3950 = vmatpush1.bf16.msra.mxu0 0
      %3951 = vmatprep.subr.bf16.mxu0 0
      %3952 = vmatpush1.bf16.msra.mxu0 0
      %3953 = vmatprep.subr.bf16.mxu0 0
      %3954 = vmatpush1.bf16.msra.mxu0 0
      %3955 = vmatprep.subr.bf16.mxu0 0
      %3956 = vmatpush1.bf16.msra.mxu0 0
      %3957 = vmatprep.subr.bf16.mxu0 0
      %3958 = vmatpush1.bf16.msra.mxu0 0
      %3959 = vmatprep.subr.bf16.mxu0 0
      %3960 = vmatpush1.bf16.msra.mxu0 0
      %3961 = vmatprep.subr.bf16.mxu0 0
      %3962 = vmatpush1.bf16.msra.mxu0 0
      %3963 = vmatprep.subr.bf16.mxu0 0
      %3964 = vmatpush1.bf16.msra.mxu0 0
      %3965 = vmatprep.subr.bf16.mxu0 0
      %3966 = vmatpush1.bf16.msra.mxu0 0
      %3967 = vmatprep.subr.bf16.mxu0 0
      %3968 = vmatpush1.bf16.msra.mxu0 0
      %3969 = vmatprep.subr.bf16.mxu0 0
      %3970 = vmatpush1.bf16.msra.mxu0 0
      %3971 = vmatprep.mubr.bf16.mxu0 0
      %3972 = vmatmul.mubr.bf16.gmra.mrb[0].mxu0 %v3934
      %v3973 = vpop.f32.mrb[0].mxu0
      %v3974 = vadd.f32 0.0, %v3973
      %v3975 = vpop.f32.mrb[0].mxu0
      %v3976 = vpop.f32.mrb[0].mxu0
      %v3977 = vpop.f32.mrb[0].mxu0
      %3978 = vdwg.mxu0
      %v3979 = vadd.f32 %v3856, %v3974
      %s3980 = scalar_lea.vmem %s13, 128
      %v3981 = vld [vmem:[%s3980] sm:$0xf]
      %v3982 = vld [vmem:[%s3980 + $0x4] sm:$0xf]
      %v3983 = vld [vmem:[%s3980 + $0x8] sm:$0xf]
      %v3984 = vld [vmem:[%s3980 + $0xc] sm:$0xf]
      %v3985 = vld [vmem:[%s3980 + $0x10] sm:$0xf]
      %v3986 = vld [vmem:[%s3980 + $0x14] sm:$0xf]
      %v3987 = vld [vmem:[%s3980 + $0x18] sm:$0xf]
      %v3988 = vld [vmem:[%s3980 + $0x1c] sm:$0xf]
      %v3997 = vunpack.c.l.b16 %v3981
      %v3998 = vunpack.c.l.b16 %v3982
      %v3999 = vunpack.c.l.b16 %v3983
      %v4000 = vunpack.c.l.b16 %v3984
      %v4001 = vunpack.c.l.b16 %v3985
      %v4002 = vunpack.c.l.b16 %v3986
      %v4003 = vunpack.c.l.b16 %v3987
      %v4004 = vunpack.c.l.b16 %v3988
      %v4005 = vpack.c.b16 %v3998, %v3997
      %v4006 = vpack.c.b16 %v4000, %v3999
      %v4007 = vpack.c.b16 %v4002, %v4001
      %v4008 = vpack.c.b16 %v4004, %v4003
      %4013 = vmatprep.subr.bf16.mxu0 0
      %4014 = vmatpush1.bf16.msra.mxu0 %v4005
      %4015 = vmatprep.subr.bf16.mxu0 0
      %4016 = vmatpush1.bf16.msra.mxu0 %v4006
      %4017 = vmatprep.subr.bf16.mxu0 0
      %4018 = vmatpush1.bf16.msra.mxu0 %v4007
      %4019 = vmatprep.subr.bf16.mxu0 0
      %4020 = vmatpush1.bf16.msra.mxu0 %v4008
      %4021 = vmatprep.subr.bf16.mxu0 0
      %4022 = vmatpush1.bf16.msra.mxu0 0
      %4023 = vmatprep.subr.bf16.mxu0 0
      %4024 = vmatpush1.bf16.msra.mxu0 0
      %4025 = vmatprep.subr.bf16.mxu0 0
      %4026 = vmatpush1.bf16.msra.mxu0 0
      %4027 = vmatprep.subr.bf16.mxu0 0
      %4028 = vmatpush1.bf16.msra.mxu0 0
      %4029 = vmatprep.subr.bf16.mxu0 0
      %4030 = vmatpush1.bf16.msra.mxu0 0
      %4031 = vmatprep.subr.bf16.mxu0 0
      %4032 = vmatpush1.bf16.msra.mxu0 0
      %4033 = vmatprep.subr.bf16.mxu0 0
      %4034 = vmatpush1.bf16.msra.mxu0 0
      %4035 = vmatprep.subr.bf16.mxu0 0
      %4036 = vmatpush1.bf16.msra.mxu0 0
      %4037 = vmatprep.subr.bf16.mxu0 0
      %4038 = vmatpush1.bf16.msra.mxu0 0
      %4039 = vmatprep.subr.bf16.mxu0 0
      %4040 = vmatpush1.bf16.msra.mxu0 0
      %4041 = vmatprep.subr.bf16.mxu0 0
      %4042 = vmatpush1.bf16.msra.mxu0 0
      %4043 = vmatprep.subr.bf16.mxu0 0
      %4044 = vmatpush1.bf16.msra.mxu0 0
      %4045 = vmatprep.mubr.bf16.mxu0 0
      %4046 = vmatmul.mubr.bf16.gmra.mrb[0].mxu0 %v3522
      %v4047 = vpop.f32.mrb[0].mxu0
      %v4048 = vadd.f32 0.0, %v4047
      %v4049 = vpop.f32.mrb[0].mxu0
      %v4050 = vpop.f32.mrb[0].mxu0
      %v4051 = vpop.f32.mrb[0].mxu0
      %4052 = vdwg.mxu0
      %s4053 = scalar_lea.vmem %s11, 8
      %v4054 = vld [vmem:[%s4053] sm:$0x3]
      %v4055 = vpack.c.bf16 %v4048, %v4048
      %v4057 = vsel %vm1576, %v4054, 0
      %v4060 = vsel %vm1583, %v4055, 0
      %4062 = vmatprep.subr.bf16.mxu0 0
      %4063 = vmatpush1.bf16.msra.mxu0 %v4060
      %4064 = vmatprep.subr.bf16.mxu0 0
      %4065 = vmatpush1.bf16.msra.mxu0 0
      %4066 = vmatprep.subr.bf16.mxu0 0
      %4067 = vmatpush1.bf16.msra.mxu0 0
      %4068 = vmatprep.subr.bf16.mxu0 0
      %4069 = vmatpush1.bf16.msra.mxu0 0
      %4070 = vmatprep.subr.bf16.mxu0 0
      %4071 = vmatpush1.bf16.msra.mxu0 0
      %4072 = vmatprep.subr.bf16.mxu0 0
      %4073 = vmatpush1.bf16.msra.mxu0 0
      %4074 = vmatprep.subr.bf16.mxu0 0
      %4075 = vmatpush1.bf16.msra.mxu0 0
      %4076 = vmatprep.subr.bf16.mxu0 0
      %4077 = vmatpush1.bf16.msra.mxu0 0
      %4078 = vmatprep.subr.bf16.mxu0 0
      %4079 = vmatpush1.bf16.msra.mxu0 0
      %4080 = vmatprep.subr.bf16.mxu0 0
      %4081 = vmatpush1.bf16.msra.mxu0 0
      %4082 = vmatprep.subr.bf16.mxu0 0
      %4083 = vmatpush1.bf16.msra.mxu0 0
      %4084 = vmatprep.subr.bf16.mxu0 0
      %4085 = vmatpush1.bf16.msra.mxu0 0
      %4086 = vmatprep.subr.bf16.mxu0 0
      %4087 = vmatpush1.bf16.msra.mxu0 0
      %4088 = vmatprep.subr.bf16.mxu0 0
      %4089 = vmatpush1.bf16.msra.mxu0 0
      %4090 = vmatprep.subr.bf16.mxu0 0
      %4091 = vmatpush1.bf16.msra.mxu0 0
      %4092 = vmatprep.subr.bf16.mxu0 0
      %4093 = vmatpush1.bf16.msra.mxu0 0
      %4094 = vmatprep.mubr.bf16.mxu0 0
      %4095 = vmatmul.mubr.bf16.gmra.mrb[0].mxu0 %v4057
      %v4096 = vpop.f32.mrb[0].mxu0
      %v4097 = vadd.f32 0.0, %v4096
      %v4098 = vpop.f32.mrb[0].mxu0
      %v4099 = vpop.f32.mrb[0].mxu0
      %v4100 = vpop.f32.mrb[0].mxu0
      %4101 = vdwg.mxu0
      %v4102 = vadd.f32 %v3979, %v4097
      %s4103 = scalar_lea.vmem %s13, 160
      %v4104 = vld [vmem:[%s4103] sm:$0xf]
      %v4105 = vld [vmem:[%s4103 + $0x4] sm:$0xf]
      %v4106 = vld [vmem:[%s4103 + $0x8] sm:$0xf]
      %v4107 = vld [vmem:[%s4103 + $0xc] sm:$0xf]
      %v4108 = vld [vmem:[%s4103 + $0x10] sm:$0xf]
      %v4109 = vld [vmem:[%s4103 + $0x14] sm:$0xf]
      %v4110 = vld [vmem:[%s4103 + $0x18] sm:$0xf]
      %v4111 = vld [vmem:[%s4103 + $0x1c] sm:$0xf]
      %v4120 = vunpack.c.l.b16 %v4104
      %v4121 = vunpack.c.l.b16 %v4105
      %v4122 = vunpack.c.l.b16 %v4106
      %v4123 = vunpack.c.l.b16 %v4107
      %v4124 = vunpack.c.l.b16 %v4108
      %v4125 = vunpack.c.l.b16 %v4109
      %v4126 = vunpack.c.l.b16 %v4110
      %v4127 = vunpack.c.l.b16 %v4111
      %v4128 = vpack.c.b16 %v4121, %v4120
      %v4129 = vpack.c.b16 %v4123, %v4122
      %v4130 = vpack.c.b16 %v4125, %v4124
      %v4131 = vpack.c.b16 %v4127, %v4126
      %4136 = vmatprep.subr.bf16.mxu0 0
      %4137 = vmatpush1.bf16.msra.mxu0 %v4128
      %4138 = vmatprep.subr.bf16.mxu0 0
      %4139 = vmatpush1.bf16.msra.mxu0 %v4129
      %4140 = vmatprep.subr.bf16.mxu0 0
      %4141 = vmatpush1.bf16.msra.mxu0 %v4130
      %4142 = vmatprep.subr.bf16.mxu0 0
      %4143 = vmatpush1.bf16.msra.mxu0 %v4131
      %4144 = vmatprep.subr.bf16.mxu0 0
      %4145 = vmatpush1.bf16.msra.mxu0 0
      %4146 = vmatprep.subr.bf16.mxu0 0
      %4147 = vmatpush1.bf16.msra.mxu0 0
      %4148 = vmatprep.subr.bf16.mxu0 0
      %4149 = vmatpush1.bf16.msra.mxu0 0
      %4150 = vmatprep.subr.bf16.mxu0 0
      %4151 = vmatpush1.bf16.msra.mxu0 0
      %4152 = vmatprep.subr.bf16.mxu0 0
      %4153 = vmatpush1.bf16.msra.mxu0 0
      %4154 = vmatprep.subr.bf16.mxu0 0
      %4155 = vmatpush1.bf16.msra.mxu0 0
      %4156 = vmatprep.subr.bf16.mxu0 0
      %4157 = vmatpush1.bf16.msra.mxu0 0
      %4158 = vmatprep.subr.bf16.mxu0 0
      %4159 = vmatpush1.bf16.msra.mxu0 0
      %4160 = vmatprep.subr.bf16.mxu0 0
      %4161 = vmatpush1.bf16.msra.mxu0 0
      %4162 = vmatprep.subr.bf16.mxu0 0
      %4163 = vmatpush1.bf16.msra.mxu0 0
      %4164 = vmatprep.subr.bf16.mxu0 0
      %4165 = vmatpush1.bf16.msra.mxu0 0
      %4166 = vmatprep.subr.bf16.mxu0 0
      %4167 = vmatpush1.bf16.msra.mxu0 0
      %4168 = vmatprep.mubr.bf16.mxu0 0
      %4169 = vmatmul.mubr.bf16.gmra.mrb[0].mxu0 %v3522
      %v4170 = vpop.f32.mrb[0].mxu0
      %v4171 = vadd.f32 0.0, %v4170
      %v4172 = vpop.f32.mrb[0].mxu0
      %v4173 = vpop.f32.mrb[0].mxu0
      %v4174 = vpop.f32.mrb[0].mxu0
      %4175 = vdwg.mxu0
      %s4176 = scalar_lea.vmem %s11, 10
      %v4177 = vld [vmem:[%s4176] sm:$0x3]
      %v4178 = vpack.c.bf16 %v4171, %v4171
      %v4180 = vsel %vm1576, %v4177, 0
      %v4183 = vsel %vm1583, %v4178, 0
      %4185 = vmatprep.subr.bf16.mxu0 0
      %4186 = vmatpush1.bf16.msra.mxu0 %v4183
      %4187 = vmatprep.subr.bf16.mxu0 0
      %4188 = vmatpush1.bf16.msra.mxu0 0
      %4189 = vmatprep.subr.bf16.mxu0 0
      %4190 = vmatpush1.bf16.msra.mxu0 0
      %4191 = vmatprep.subr.bf16.mxu0 0
      %4192 = vmatpush1.bf16.msra.mxu0 0
      %4193 = vmatprep.subr.bf16.mxu0 0
      %4194 = vmatpush1.bf16.msra.mxu0 0
      %4195 = vmatprep.subr.bf16.mxu0 0
      %4196 = vmatpush1.bf16.msra.mxu0 0
      %4197 = vmatprep.subr.bf16.mxu0 0
      %4198 = vmatpush1.bf16.msra.mxu0 0
      %4199 = vmatprep.subr.bf16.mxu0 0
      %4200 = vmatpush1.bf16.msra.mxu0 0
      %4201 = vmatprep.subr.bf16.mxu0 0
      %4202 = vmatpush1.bf16.msra.mxu0 0
      %4203 = vmatprep.subr.bf16.mxu0 0
      %4204 = vmatpush1.bf16.msra.mxu0 0
      %4205 = vmatprep.subr.bf16.mxu0 0
      %4206 = vmatpush1.bf16.msra.mxu0 0
      %4207 = vmatprep.subr.bf16.mxu0 0
      %4208 = vmatpush1.bf16.msra.mxu0 0
      %4209 = vmatprep.subr.bf16.mxu0 0
      %4210 = vmatpush1.bf16.msra.mxu0 0
      %4211 = vmatprep.subr.bf16.mxu0 0
      %4212 = vmatpush1.bf16.msra.mxu0 0
      %4213 = vmatprep.subr.bf16.mxu0 0
      %4214 = vmatpush1.bf16.msra.mxu0 0
      %4215 = vmatprep.subr.bf16.mxu0 0
      %4216 = vmatpush1.bf16.msra.mxu0 0
      %4217 = vmatprep.mubr.bf16.mxu0 0
      %4218 = vmatmul.mubr.bf16.gmra.mrb[0].mxu0 %v4180
      %v4219 = vpop.f32.mrb[0].mxu0
      %v4220 = vadd.f32 0.0, %v4219
      %v4221 = vpop.f32.mrb[0].mxu0
      %v4222 = vpop.f32.mrb[0].mxu0
      %v4223 = vpop.f32.mrb[0].mxu0
      %4224 = vdwg.mxu0
      %v4225 = vadd.f32 %v4102, %v4220
      %s4226 = scalar_lea.vmem %s13, 192
      %v4227 = vld [vmem:[%s4226] sm:$0xf]
      %v4228 = vld [vmem:[%s4226 + $0x4] sm:$0xf]
      %v4229 = vld [vmem:[%s4226 + $0x8] sm:$0xf]
      %v4230 = vld [vmem:[%s4226 + $0xc] sm:$0xf]
      %v4231 = vld [vmem:[%s4226 + $0x10] sm:$0xf]
      %v4232 = vld [vmem:[%s4226 + $0x14] sm:$0xf]
      %v4233 = vld [vmem:[%s4226 + $0x18] sm:$0xf]
      %v4234 = vld [vmem:[%s4226 + $0x1c] sm:$0xf]
      %v4243 = vunpack.c.l.b16 %v4227
      %v4244 = vunpack.c.l.b16 %v4228
      %v4245 = vunpack.c.l.b16 %v4229
      %v4246 = vunpack.c.l.b16 %v4230
      %v4247 = vunpack.c.l.b16 %v4231
      %v4248 = vunpack.c.l.b16 %v4232
      %v4249 = vunpack.c.l.b16 %v4233
      %v4250 = vunpack.c.l.b16 %v4234
      %v4251 = vpack.c.b16 %v4244, %v4243
      %v4252 = vpack.c.b16 %v4246, %v4245
      %v4253 = vpack.c.b16 %v4248, %v4247
      %v4254 = vpack.c.b16 %v4250, %v4249
      %4259 = vmatprep.subr.bf16.mxu0 0
      %4260 = vmatpush1.bf16.msra.mxu0 %v4251
      %4261 = vmatprep.subr.bf16.mxu0 0
      %4262 = vmatpush1.bf16.msra.mxu0 %v4252
      %4263 = vmatprep.subr.bf16.mxu0 0
      %4264 = vmatpush1.bf16.msra.mxu0 %v4253
      %4265 = vmatprep.subr.bf16.mxu0 0
      %4266 = vmatpush1.bf16.msra.mxu0 %v4254
      %4267 = vmatprep.subr.bf16.mxu0 0
      %4268 = vmatpush1.bf16.msra.mxu0 0
      %4269 = vmatprep.subr.bf16.mxu0 0
      %4270 = vmatpush1.bf16.msra.mxu0 0
      %4271 = vmatprep.subr.bf16.mxu0 0
      %4272 = vmatpush1.bf16.msra.mxu0 0
      %4273 = vmatprep.subr.bf16.mxu0 0
      %4274 = vmatpush1.bf16.msra.mxu0 0
      %4275 = vmatprep.subr.bf16.mxu0 0
      %4276 = vmatpush1.bf16.msra.mxu0 0
      %4277 = vmatprep.subr.bf16.mxu0 0
      %4278 = vmatpush1.bf16.msra.mxu0 0
      %4279 = vmatprep.subr.bf16.mxu0 0
      %4280 = vmatpush1.bf16.msra.mxu0 0
      %4281 = vmatprep.subr.bf16.mxu0 0
      %4282 = vmatpush1.bf16.msra.mxu0 0
      %4283 = vmatprep.subr.bf16.mxu0 0
      %4284 = vmatpush1.bf16.msra.mxu0 0
      %4285 = vmatprep.subr.bf16.mxu0 0
      %4286 = vmatpush1.bf16.msra.mxu0 0
      %4287 = vmatprep.subr.bf16.mxu0 0
      %4288 = vmatpush1.bf16.msra.mxu0 0
      %4289 = vmatprep.subr.bf16.mxu0 0
      %4290 = vmatpush1.bf16.msra.mxu0 0
      %4291 = vmatprep.mubr.bf16.mxu0 0
      %4292 = vmatmul.mubr.bf16.gmra.mrb[0].mxu0 %v3522
      %v4293 = vpop.f32.mrb[0].mxu0
      %v4294 = vadd.f32 0.0, %v4293
      %v4295 = vpop.f32.mrb[0].mxu0
      %v4296 = vpop.f32.mrb[0].mxu0
      %v4297 = vpop.f32.mrb[0].mxu0
      %4298 = vdwg.mxu0
      %s4299 = scalar_lea.vmem %s11, 12
      %v4300 = vld [vmem:[%s4299] sm:$0x3]
      %v4301 = vpack.c.bf16 %v4294, %v4294
      %v4303 = vsel %vm1576, %v4300, 0
      %v4306 = vsel %vm1583, %v4301, 0
      %4308 = vmatprep.subr.bf16.mxu0 0
      %4309 = vmatpush1.bf16.msra.mxu0 %v4306
      %4310 = vmatprep.subr.bf16.mxu0 0
      %4311 = vmatpush1.bf16.msra.mxu0 0
      %4312 = vmatprep.subr.bf16.mxu0 0
      %4313 = vmatpush1.bf16.msra.mxu0 0
      %4314 = vmatprep.subr.bf16.mxu0 0
      %4315 = vmatpush1.bf16.msra.mxu0 0
      %4316 = vmatprep.subr.bf16.mxu0 0
      %4317 = vmatpush1.bf16.msra.mxu0 0
      %4318 = vmatprep.subr.bf16.mxu0 0
      %4319 = vmatpush1.bf16.msra.mxu0 0
      %4320 = vmatprep.subr.bf16.mxu0 0
      %4321 = vmatpush1.bf16.msra.mxu0 0
      %4322 = vmatprep.subr.bf16.mxu0 0
      %4323 = vmatpush1.bf16.msra.mxu0 0
      %4324 = vmatprep.subr.bf16.mxu0 0
      %4325 = vmatpush1.bf16.msra.mxu0 0
      %4326 = vmatprep.subr.bf16.mxu0 0
      %4327 = vmatpush1.bf16.msra.mxu0 0
      %4328 = vmatprep.subr.bf16.mxu0 0
      %4329 = vmatpush1.bf16.msra.mxu0 0
      %4330 = vmatprep.subr.bf16.mxu0 0
      %4331 = vmatpush1.bf16.msra.mxu0 0
      %4332 = vmatprep.subr.bf16.mxu0 0
      %4333 = vmatpush1.bf16.msra.mxu0 0
      %4334 = vmatprep.subr.bf16.mxu0 0
      %4335 = vmatpush1.bf16.msra.mxu0 0
      %4336 = vmatprep.subr.bf16.mxu0 0
      %4337 = vmatpush1.bf16.msra.mxu0 0
      %4338 = vmatprep.subr.bf16.mxu0 0
      %4339 = vmatpush1.bf16.msra.mxu0 0
      %4340 = vmatprep.mubr.bf16.mxu0 0
      %4341 = vmatmul.mubr.bf16.gmra.mrb[0].mxu0 %v4303
      %v4342 = vpop.f32.mrb[0].mxu0
      %v4343 = vadd.f32 0.0, %v4342
      %v4344 = vpop.f32.mrb[0].mxu0
      %v4345 = vpop.f32.mrb[0].mxu0
      %v4346 = vpop.f32.mrb[0].mxu0
      %4347 = vdwg.mxu0
      %v4348 = vadd.f32 %v4225, %v4343
      %s4349 = scalar_lea.vmem %s13, 224
      %v4350 = vld [vmem:[%s4349] sm:$0xf]
      %v4351 = vld [vmem:[%s4349 + $0x4] sm:$0xf]
      %v4352 = vld [vmem:[%s4349 + $0x8] sm:$0xf]
      %v4353 = vld [vmem:[%s4349 + $0xc] sm:$0xf]
      %v4354 = vld [vmem:[%s4349 + $0x10] sm:$0xf]
      %v4355 = vld [vmem:[%s4349 + $0x14] sm:$0xf]
      %v4356 = vld [vmem:[%s4349 + $0x18] sm:$0xf]
      %v4357 = vld [vmem:[%s4349 + $0x1c] sm:$0xf]
      %v4366 = vunpack.c.l.b16 %v4350
      %v4367 = vunpack.c.l.b16 %v4351
      %v4368 = vunpack.c.l.b16 %v4352
      %v4369 = vunpack.c.l.b16 %v4353
      %v4370 = vunpack.c.l.b16 %v4354
      %v4371 = vunpack.c.l.b16 %v4355
      %v4372 = vunpack.c.l.b16 %v4356
      %v4373 = vunpack.c.l.b16 %v4357
      %v4374 = vpack.c.b16 %v4367, %v4366
      %v4375 = vpack.c.b16 %v4369, %v4368
      %v4376 = vpack.c.b16 %v4371, %v4370
      %v4377 = vpack.c.b16 %v4373, %v4372
      %4382 = vmatprep.subr.bf16.mxu0 0
      %4383 = vmatpush1.bf16.msra.mxu0 %v4374
      %4384 = vmatprep.subr.bf16.mxu0 0
      %4385 = vmatpush1.bf16.msra.mxu0 %v4375
      %4386 = vmatprep.subr.bf16.mxu0 0
      %4387 = vmatpush1.bf16.msra.mxu0 %v4376
      %4388 = vmatprep.subr.bf16.mxu0 0
      %4389 = vmatpush1.bf16.msra.mxu0 %v4377
      %4390 = vmatprep.subr.bf16.mxu0 0
      %4391 = vmatpush1.bf16.msra.mxu0 0
      %4392 = vmatprep.subr.bf16.mxu0 0
      %4393 = vmatpush1.bf16.msra.mxu0 0
      %4394 = vmatprep.subr.bf16.mxu0 0
      %4395 = vmatpush1.bf16.msra.mxu0 0
      %4396 = vmatprep.subr.bf16.mxu0 0
      %4397 = vmatpush1.bf16.msra.mxu0 0
      %4398 = vmatprep.subr.bf16.mxu0 0
      %4399 = vmatpush1.bf16.msra.mxu0 0
      %4400 = vmatprep.subr.bf16.mxu0 0
      %4401 = vmatpush1.bf16.msra.mxu0 0
      %4402 = vmatprep.subr.bf16.mxu0 0
      %4403 = vmatpush1.bf16.msra.mxu0 0
      %4404 = vmatprep.subr.bf16.mxu0 0
      %4405 = vmatpush1.bf16.msra.mxu0 0
      %4406 = vmatprep.subr.bf16.mxu0 0
      %4407 = vmatpush1.bf16.msra.mxu0 0
      %4408 = vmatprep.subr.bf16.mxu0 0
      %4409 = vmatpush1.bf16.msra.mxu0 0
      %4410 = vmatprep.subr.bf16.mxu0 0
      %4411 = vmatpush1.bf16.msra.mxu0 0
      %4412 = vmatprep.subr.bf16.mxu0 0
      %4413 = vmatpush1.bf16.msra.mxu0 0
      %4414 = vmatprep.mubr.bf16.mxu0 0
      %4415 = vmatmul.mubr.bf16.gmra.mrb[0].mxu0 %v3522
      %v4416 = vpop.f32.mrb[0].mxu0
      %v4417 = vadd.f32 0.0, %v4416
      %v4418 = vpop.f32.mrb[0].mxu0
      %v4419 = vpop.f32.mrb[0].mxu0
      %v4420 = vpop.f32.mrb[0].mxu0
      %4421 = vdwg.mxu0
      %s4422 = scalar_lea.vmem %s11, 14
      %v4423 = vld [vmem:[%s4422] sm:$0x3]
      %v4424 = vpack.c.bf16 %v4417, %v4417
      %v4426 = vsel %vm1576, %v4423, 0
      %v4429 = vsel %vm1583, %v4424, 0
      %4431 = vmatprep.subr.bf16.mxu0 0
      %4432 = vmatpush1.bf16.msra.mxu0 %v4429
      %4433 = vmatprep.subr.bf16.mxu0 0
      %4434 = vmatpush1.bf16.msra.mxu0 0
      %4435 = vmatprep.subr.bf16.mxu0 0
      %4436 = vmatpush1.bf16.msra.mxu0 0
      %4437 = vmatprep.subr.bf16.mxu0 0
      %4438 = vmatpush1.bf16.msra.mxu0 0
      %4439 = vmatprep.subr.bf16.mxu0 0
      %4440 = vmatpush1.bf16.msra.mxu0 0
      %4441 = vmatprep.subr.bf16.mxu0 0
      %4442 = vmatpush1.bf16.msra.mxu0 0
      %4443 = vmatprep.subr.bf16.mxu0 0
      %4444 = vmatpush1.bf16.msra.mxu0 0
      %4445 = vmatprep.subr.bf16.mxu0 0
      %4446 = vmatpush1.bf16.msra.mxu0 0
      %4447 = vmatprep.subr.bf16.mxu0 0
      %4448 = vmatpush1.bf16.msra.mxu0 0
      %4449 = vmatprep.subr.bf16.mxu0 0
      %4450 = vmatpush1.bf16.msra.mxu0 0
      %4451 = vmatprep.subr.bf16.mxu0 0
      %4452 = vmatpush1.bf16.msra.mxu0 0
      %4453 = vmatprep.subr.bf16.mxu0 0
      %4454 = vmatpush1.bf16.msra.mxu0 0
      %4455 = vmatprep.subr.bf16.mxu0 0
      %4456 = vmatpush1.bf16.msra.mxu0 0
      %4457 = vmatprep.subr.bf16.mxu0 0
      %4458 = vmatpush1.bf16.msra.mxu0 0
      %4459 = vmatprep.subr.bf16.mxu0 0
      %4460 = vmatpush1.bf16.msra.mxu0 0
      %4461 = vmatprep.subr.bf16.mxu0 0
      %4462 = vmatpush1.bf16.msra.mxu0 0
      %4463 = vmatprep.mubr.bf16.mxu0 0
      %4464 = vmatmul.mubr.bf16.gmra.mrb[0].mxu0 %v4426
      %v4465 = vpop.f32.mrb[0].mxu0
      %v4466 = vadd.f32 0.0, %v4465
      %v4467 = vpop.f32.mrb[0].mxu0
      %v4468 = vpop.f32.mrb[0].mxu0
      %v4469 = vpop.f32.mrb[0].mxu0
      %4470 = vdwg.mxu0
      %v4471 = vadd.f32 %v4348, %v4466
      %s4472 = scalar_lea.vmem %s13, 256
      %v4473 = vld [vmem:[%s4472] sm:$0xf]
      %v4474 = vld [vmem:[%s4472 + $0x4] sm:$0xf]
      %v4475 = vld [vmem:[%s4472 + $0x8] sm:$0xf]
      %v4476 = vld [vmem:[%s4472 + $0xc] sm:$0xf]
      %v4477 = vld [vmem:[%s4472 + $0x10] sm:$0xf]
      %v4478 = vld [vmem:[%s4472 + $0x14] sm:$0xf]
      %v4479 = vld [vmem:[%s4472 + $0x18] sm:$0xf]
      %v4480 = vld [vmem:[%s4472 + $0x1c] sm:$0xf]
      %v4489 = vunpack.c.l.b16 %v4473
      %v4490 = vunpack.c.l.b16 %v4474
      %v4491 = vunpack.c.l.b16 %v4475
      %v4492 = vunpack.c.l.b16 %v4476
      %v4493 = vunpack.c.l.b16 %v4477
      %v4494 = vunpack.c.l.b16 %v4478
      %v4495 = vunpack.c.l.b16 %v4479
      %v4496 = vunpack.c.l.b16 %v4480
      %v4497 = vpack.c.b16 %v4490, %v4489
      %v4498 = vpack.c.b16 %v4492, %v4491
      %v4499 = vpack.c.b16 %v4494, %v4493
      %v4500 = vpack.c.b16 %v4496, %v4495
      %4505 = vmatprep.subr.bf16.mxu0 0
      %4506 = vmatpush1.bf16.msra.mxu0 %v4497
      %4507 = vmatprep.subr.bf16.mxu0 0
      %4508 = vmatpush1.bf16.msra.mxu0 %v4498
      %4509 = vmatprep.subr.bf16.mxu0 0
      %4510 = vmatpush1.bf16.msra.mxu0 %v4499
      %4511 = vmatprep.subr.bf16.mxu0 0
      %4512 = vmatpush1.bf16.msra.mxu0 %v4500
      %4513 = vmatprep.subr.bf16.mxu0 0
      %4514 = vmatpush1.bf16.msra.mxu0 0
      %4515 = vmatprep.subr.bf16.mxu0 0
      %4516 = vmatpush1.bf16.msra.mxu0 0
      %4517 = vmatprep.subr.bf16.mxu0 0
      %4518 = vmatpush1.bf16.msra.mxu0 0
      %4519 = vmatprep.subr.bf16.mxu0 0
      %4520 = vmatpush1.bf16.msra.mxu0 0
      %4521 = vmatprep.subr.bf16.mxu0 0
      %4522 = vmatpush1.bf16.msra.mxu0 0
      %4523 = vmatprep.subr.bf16.mxu0 0
      %4524 = vmatpush1.bf16.msra.mxu0 0
      %4525 = vmatprep.subr.bf16.mxu0 0
      %4526 = vmatpush1.bf16.msra.mxu0 0
      %4527 = vmatprep.subr.bf16.mxu0 0
      %4528 = vmatpush1.bf16.msra.mxu0 0
      %4529 = vmatprep.subr.bf16.mxu0 0
      %4530 = vmatpush1.bf16.msra.mxu0 0
      %4531 = vmatprep.subr.bf16.mxu0 0
      %4532 = vmatpush1.bf16.msra.mxu0 0
      %4533 = vmatprep.subr.bf16.mxu0 0
      %4534 = vmatpush1.bf16.msra.mxu0 0
      %4535 = vmatprep.subr.bf16.mxu0 0
      %4536 = vmatpush1.bf16.msra.mxu0 0
      %4537 = vmatprep.mubr.bf16.mxu0 0
      %4538 = vmatmul.mubr.bf16.gmra.mrb[0].mxu0 %v3522
      %v4539 = vpop.f32.mrb[0].mxu0
      %v4540 = vadd.f32 0.0, %v4539
      %v4541 = vpop.f32.mrb[0].mxu0
      %v4542 = vpop.f32.mrb[0].mxu0
      %v4543 = vpop.f32.mrb[0].mxu0
      %4544 = vdwg.mxu0
      %s4545 = scalar_lea.vmem %s11, 16
      %v4546 = vld [vmem:[%s4545] sm:$0x3]
      %v4547 = vpack.c.bf16 %v4540, %v4540
      %v4549 = vsel %vm1576, %v4546, 0
      %v4552 = vsel %vm1583, %v4547, 0
      %4554 = vmatprep.subr.bf16.mxu0 0
      %4555 = vmatpush1.bf16.msra.mxu0 %v4552
      %4556 = vmatprep.subr.bf16.mxu0 0
      %4557 = vmatpush1.bf16.msra.mxu0 0
      %4558 = vmatprep.subr.bf16.mxu0 0
      %4559 = vmatpush1.bf16.msra.mxu0 0
      %4560 = vmatprep.subr.bf16.mxu0 0
      %4561 = vmatpush1.bf16.msra.mxu0 0
      %4562 = vmatprep.subr.bf16.mxu0 0
      %4563 = vmatpush1.bf16.msra.mxu0 0
      %4564 = vmatprep.subr.bf16.mxu0 0
      %4565 = vmatpush1.bf16.msra.mxu0 0
      %4566 = vmatprep.subr.bf16.mxu0 0
      %4567 = vmatpush1.bf16.msra.mxu0 0
      %4568 = vmatprep.subr.bf16.mxu0 0
      %4569 = vmatpush1.bf16.msra.mxu0 0
      %4570 = vmatprep.subr.bf16.mxu0 0
      %4571 = vmatpush1.bf16.msra.mxu0 0
      %4572 = vmatprep.subr.bf16.mxu0 0
      %4573 = vmatpush1.bf16.msra.mxu0 0
      %4574 = vmatprep.subr.bf16.mxu0 0
      %4575 = vmatpush1.bf16.msra.mxu0 0
      %4576 = vmatprep.subr.bf16.mxu0 0
      %4577 = vmatpush1.bf16.msra.mxu0 0
      %4578 = vmatprep.subr.bf16.mxu0 0
      %4579 = vmatpush1.bf16.msra.mxu0 0
      %4580 = vmatprep.subr.bf16.mxu0 0
      %4581 = vmatpush1.bf16.msra.mxu0 0
      %4582 = vmatprep.subr.bf16.mxu0 0
      %4583 = vmatpush1.bf16.msra.mxu0 0
      %4584 = vmatprep.subr.bf16.mxu0 0
      %4585 = vmatpush1.bf16.msra.mxu0 0
      %4586 = vmatprep.mubr.bf16.mxu0 0
      %4587 = vmatmul.mubr.bf16.gmra.mrb[0].mxu0 %v4549
      %v4588 = vpop.f32.mrb[0].mxu0
      %v4589 = vadd.f32 0.0, %v4588
      %v4590 = vpop.f32.mrb[0].mxu0
      %v4591 = vpop.f32.mrb[0].mxu0
      %v4592 = vpop.f32.mrb[0].mxu0
      %4593 = vdwg.mxu0
      %v4594 = vadd.f32 %v4471, %v4589
      %v4595 = vld [vmem:[%s15] sm:$0xf]
      %4597 = vset.pattern.permute.xlu0 0
      %4598 = vperm.xlu0 %4597, %v4595
      %v4599 = vpop.permute.xlu0 %4598
      %v4601 = vadd.f32 %v4594, %v4599
      %v4602 = vmax.f32 %v4601, 0.0
      %v4603 = vld [vmem:[%s17] sm:$0xf]
      %v4604 = vld [vmem:[%s17 + $0x4] sm:$0xf]
      %v4605 = vld [vmem:[%s17 + $0x8] sm:$0xf]
      %v4606 = vld [vmem:[%s17 + $0xc] sm:$0xf]
      %v4607 = vpack.c.bf16 %v4602, %v4602
      %v4608 = vld [vmem:[%s19] sm:$0xff]
      %v4609 = vld [vmem:[%s19 + $0x8] sm:$0xff]
      %v4610 = vld [vmem:[%s19 + $0x10] sm:$0xff]
      %v4611 = vld [vmem:[%s19 + $0x18] sm:$0xff]
      %4613 = vset.pattern.permute.xlu0 0
      %4614 = vperm.xlu0 %4613, %v4608
      %v4615 = vpop.permute.xlu0 %4614
      %4618 = vset.pattern.permute.xlu0 0
      %4619 = vperm.xlu0 %4618, %v4609
      %v4620 = vpop.permute.xlu0 %4619
      %4623 = vset.pattern.permute.xlu0 0
      %4624 = vperm.xlu0 %4623, %v4610
      %v4625 = vpop.permute.xlu0 %4624
      %4628 = vset.pattern.permute.xlu0 0
      %4629 = vperm.xlu0 %4628, %v4611
      %v4630 = vpop.permute.xlu0 %4629
      %v4636 = vunpack.c.l.b16 %v4603
      %v4637 = vunpack.c.l.b16 %v4604
      %v4638 = vunpack.c.l.b16 %v4605
      %v4639 = vunpack.c.l.b16 %v4606
      %v4640 = vpack.c.b16 %v4637, %v4636
      %v4641 = vpack.c.b16 %v4639, %v4638
      %v4643 = vsel %vm1576, %v4640, 0
      %v4646 = vsel %vm1576, %v4641, 0
      %v4649 = vsel %vm1583, %v4607, 0
      %4651 = vmatprep.subr.bf16.mxu0 0
      %4652 = vmatpush1.bf16.msra.mxu0 %v4649
      %4653 = vmatprep.subr.bf16.mxu0 0
      %4654 = vmatpush1.bf16.msra.mxu0 0
      %4655 = vmatprep.subr.bf16.mxu0 0
      %4656 = vmatpush1.bf16.msra.mxu0 0
      %4657 = vmatprep.subr.bf16.mxu0 0
      %4658 = vmatpush1.bf16.msra.mxu0 0
      %4659 = vmatprep.subr.bf16.mxu0 0
      %4660 = vmatpush1.bf16.msra.mxu0 0
      %4661 = vmatprep.subr.bf16.mxu0 0
      %4662 = vmatpush1.bf16.msra.mxu0 0
      %4663 = vmatprep.subr.bf16.mxu0 0
      %4664 = vmatpush1.bf16.msra.mxu0 0
      %4665 = vmatprep.subr.bf16.mxu0 0
      %4666 = vmatpush1.bf16.msra.mxu0 0
      %4667 = vmatprep.subr.bf16.mxu0 0
      %4668 = vmatpush1.bf16.msra.mxu0 0
      %4669 = vmatprep.subr.bf16.mxu0 0
      %4670 = vmatpush1.bf16.msra.mxu0 0
      %4671 = vmatprep.subr.bf16.mxu0 0
      %4672 = vmatpush1.bf16.msra.mxu0 0
      %4673 = vmatprep.subr.bf16.mxu0 0
      %4674 = vmatpush1.bf16.msra.mxu0 0
      %4675 = vmatprep.subr.bf16.mxu0 0
      %4676 = vmatpush1.bf16.msra.mxu0 0
      %4677 = vmatprep.subr.bf16.mxu0 0
      %4678 = vmatpush1.bf16.msra.mxu0 0
      %4679 = vmatprep.subr.bf16.mxu0 0
      %4680 = vmatpush1.bf16.msra.mxu0 0
      %4681 = vmatprep.subr.bf16.mxu0 0
      %4682 = vmatpush1.bf16.msra.mxu0 0
      %4683 = vmatprep.mubr.bf16.mxu0 0
      %4684 = vmatmul.mubr.bf16.gmra.mrb[0].mxu0 %v4643
      %v4685 = vpop.f32.mrb[0].mxu0
      %v4686 = vadd.f32 %v4615, %v4685
      %v4687 = vpop.f32.mrb[0].mxu0
      %v4688 = vpop.f32.mrb[0].mxu0
      %v4689 = vadd.f32 %v4620, %v4688
      %v4690 = vpop.f32.mrb[0].mxu0
      %4691 = vmatprep.mubr.bf16.mxu0 0
      %4692 = vmatmul.mubr.bf16.gmra.mrb[0].mxu0 %v4646
      %v4693 = vpop.f32.mrb[0].mxu0
      %v4694 = vadd.f32 %v4625, %v4693
      %v4695 = vpop.f32.mrb[0].mxu0
      %v4696 = vpop.f32.mrb[0].mxu0
      %v4697 = vadd.f32 %v4630, %v4696
      %v4698 = vpop.f32.mrb[0].mxu0
      %4699 = vdwg.mxu0
      %v4700 = vmax.f32 %v4686, 0.0
      %v4701 = vmax.f32 %v4689, 0.0
      %v4702 = vmax.f32 %v4694, 0.0
      %v4703 = vmax.f32 %v4697, 0.0
      %v4704 = vld [vmem:[%s21] sm:$0x3]
      %v4705 = vpack.c.bf16 %v4701, %v4700
      %v4706 = vpack.c.bf16 %v4703, %v4702
      %v4707 = vld [vmem:[%s23] sm:$0xf]
      %4709 = vset.pattern.permute.xlu0 0
      %4710 = vperm.xlu0 %4709, %v4707
      %v4711 = vpop.permute.xlu0 %4710
      %v4714 = vsel %vm3442, %v4704, 0
      %4716 = vmatprep.subr.bf16.mxu0 0
      %4717 = vmatpush1.bf16.msra.mxu0 %v4705
      %4718 = vmatprep.subr.bf16.mxu0 0
      %4719 = vmatpush1.bf16.msra.mxu0 %v4706
      %4720 = vmatprep.subr.bf16.mxu0 0
      %4721 = vmatpush1.bf16.msra.mxu0 0
      %4722 = vmatprep.subr.bf16.mxu0 0
      %4723 = vmatpush1.bf16.msra.mxu0 0
      %4724 = vmatprep.subr.bf16.mxu0 0
      %4725 = vmatpush1.bf16.msra.mxu0 0
      %4726 = vmatprep.subr.bf16.mxu0 0
      %4727 = vmatpush1.bf16.msra.mxu0 0
      %4728 = vmatprep.subr.bf16.mxu0 0
      %4729 = vmatpush1.bf16.msra.mxu0 0
      %4730 = vmatprep.subr.bf16.mxu0 0
      %4731 = vmatpush1.bf16.msra.mxu0 0
      %4732 = vmatprep.subr.bf16.mxu0 0
      %4733 = vmatpush1.bf16.msra.mxu0 0
      %4734 = vmatprep.subr.bf16.mxu0 0
      %4735 = vmatpush1.bf16.msra.mxu0 0
      %4736 = vmatprep.subr.bf16.mxu0 0
      %4737 = vmatpush1.bf16.msra.mxu0 0
      %4738 = vmatprep.subr.bf16.mxu0 0
      %4739 = vmatpush1.bf16.msra.mxu0 0
      %4740 = vmatprep.subr.bf16.mxu0 0
      %4741 = vmatpush1.bf16.msra.mxu0 0
      %4742 = vmatprep.subr.bf16.mxu0 0
      %4743 = vmatpush1.bf16.msra.mxu0 0
      %4744 = vmatprep.subr.bf16.mxu0 0
      %4745 = vmatpush1.bf16.msra.mxu0 0
      %4746 = vmatprep.subr.bf16.mxu0 0
      %4747 = vmatpush1.bf16.msra.mxu0 0
      %4748 = vmatprep.mubr.bf16.mxu0 0
      %4749 = vmatmul.mubr.bf16.gmra.mrb[0].mxu0 %v4714
      %v4750 = vpop.f32.mrb[0].mxu0
      %v4751 = vadd.f32 %v4711, %v4750
      %v4752 = vpop.f32.mrb[0].mxu0
      %v4753 = vpop.f32.mrb[0].mxu0
      %v4754 = vpop.f32.mrb[0].mxu0
      %4755 = vdwg.mxu0
      %v4756 = vmax.f32 %v4751, 0.0
      %v4757 = vld [vmem:[%s27] sm:$0xf]
      %v4758 = vld [vmem:[%s27 + $0x4] sm:$0xf]
      %v4759 = vld [vmem:[%s27 + $0x8] sm:$0xf]
      %v4760 = vld [vmem:[%s27 + $0xc] sm:$0xf]
      %v4761 = vld [vmem:[%s27 + $0x10] sm:$0xf]
      %v4762 = vld [vmem:[%s27 + $0x14] sm:$0xf]
      %v4763 = vld [vmem:[%s27 + $0x18] sm:$0xf]
      %v4764 = vld [vmem:[%s27 + $0x1c] sm:$0xf]
      %v4765 = vpack.c.bf16 %v4756, %v4756
      %v4774 = vunpack.c.l.b16 %v4757
      %v4775 = vunpack.c.l.b16 %v4758
      %v4776 = vunpack.c.l.b16 %v4759
      %v4777 = vunpack.c.l.b16 %v4760
      %v4778 = vunpack.c.l.b16 %v4761
      %v4779 = vunpack.c.l.b16 %v4762
      %v4780 = vunpack.c.l.b16 %v4763
      %v4781 = vunpack.c.l.b16 %v4764
      %v4782 = vpack.c.b16 %v4775, %v4774
      %v4783 = vpack.c.b16 %v4777, %v4776
      %v4784 = vpack.c.b16 %v4779, %v4778
      %v4785 = vpack.c.b16 %v4781, %v4780
      %v4791 = vsel %vm3520, %v4765, 0
      %4793 = vmatprep.subr.bf16.mxu0 0
      %4794 = vmatpush1.bf16.msra.mxu0 %v4782
      %4795 = vmatprep.subr.bf16.mxu0 0
      %4796 = vmatpush1.bf16.msra.mxu0 %v4783
      %4797 = vmatprep.subr.bf16.mxu0 0
      %4798 = vmatpush1.bf16.msra.mxu0 %v4784
      %4799 = vmatprep.subr.bf16.mxu0 0
      %4800 = vmatpush1.bf16.msra.mxu0 %v4785
      %4801 = vmatprep.subr.bf16.mxu0 0
      %4802 = vmatpush1.bf16.msra.mxu0 0
      %4803 = vmatprep.subr.bf16.mxu0 0
      %4804 = vmatpush1.bf16.msra.mxu0 0
      %4805 = vmatprep.subr.bf16.mxu0 0
      %4806 = vmatpush1.bf16.msra.mxu0 0
      %4807 = vmatprep.subr.bf16.mxu0 0
      %4808 = vmatpush1.bf16.msra.mxu0 0
      %4809 = vmatprep.subr.bf16.mxu0 0
      %4810 = vmatpush1.bf16.msra.mxu0 0
      %4811 = vmatprep.subr.bf16.mxu0 0
      %4812 = vmatpush1.bf16.msra.mxu0 0
      %4813 = vmatprep.subr.bf16.mxu0 0
      %4814 = vmatpush1.bf16.msra.mxu0 0
      %4815 = vmatprep.subr.bf16.mxu0 0
      %4816 = vmatpush1.bf16.msra.mxu0 0
      %4817 = vmatprep.subr.bf16.mxu0 0
      %4818 = vmatpush1.bf16.msra.mxu0 0
      %4819 = vmatprep.subr.bf16.mxu0 0
      %4820 = vmatpush1.bf16.msra.mxu0 0
      %4821 = vmatprep.subr.bf16.mxu0 0
      %4822 = vmatpush1.bf16.msra.mxu0 0
      %4823 = vmatprep.subr.bf16.mxu0 0
      %4824 = vmatpush1.bf16.msra.mxu0 0
      %4825 = vmatprep.mubr.bf16.mxu0 0
      %4826 = vmatmul.mubr.bf16.gmra.mrb[0].mxu0 %v4791
      %v4827 = vpop.f32.mrb[0].mxu0
      %v4828 = vadd.f32 0.0, %v4827
      %v4829 = vpop.f32.mrb[0].mxu0
      %v4830 = vpop.f32.mrb[0].mxu0
      %v4831 = vpop.f32.mrb[0].mxu0
      %4832 = vdwg.mxu0
      %v4833 = vld [vmem:[%s25] sm:$0x3]
      %v4834 = vpack.c.bf16 %v4828, %v4828
      %s4835 = scalar_lea.vmem %s27, 32
      %v4836 = vld [vmem:[%s4835] sm:$0xf]
      %v4837 = vld [vmem:[%s4835 + $0x4] sm:$0xf]
      %v4838 = vld [vmem:[%s4835 + $0x8] sm:$0xf]
      %v4839 = vld [vmem:[%s4835 + $0xc] sm:$0xf]
      %v4840 = vld [vmem:[%s4835 + $0x10] sm:$0xf]
      %v4841 = vld [vmem:[%s4835 + $0x14] sm:$0xf]
      %v4842 = vld [vmem:[%s4835 + $0x18] sm:$0xf]
      %v4843 = vld [vmem:[%s4835 + $0x1c] sm:$0xf]
      %v4852 = vunpack.c.l.b16 %v4836
      %v4853 = vunpack.c.l.b16 %v4837
      %v4854 = vunpack.c.l.b16 %v4838
      %v4855 = vunpack.c.l.b16 %v4839
      %v4856 = vunpack.c.l.b16 %v4840
      %v4857 = vunpack.c.l.b16 %v4841
      %v4858 = vunpack.c.l.b16 %v4842
      %v4859 = vunpack.c.l.b16 %v4843
      %v4860 = vpack.c.b16 %v4853, %v4852
      %v4861 = vpack.c.b16 %v4855, %v4854
      %v4862 = vpack.c.b16 %v4857, %v4856
      %v4863 = vpack.c.b16 %v4859, %v4858
      %4868 = vmatprep.subr.bf16.mxu0 0
      %4869 = vmatpush1.bf16.msra.mxu0 %v4860
      %4870 = vmatprep.subr.bf16.mxu0 0
      %4871 = vmatpush1.bf16.msra.mxu0 %v4861
      %4872 = vmatprep.subr.bf16.mxu0 0
      %4873 = vmatpush1.bf16.msra.mxu0 %v4862
      %4874 = vmatprep.subr.bf16.mxu0 0
      %4875 = vmatpush1.bf16.msra.mxu0 %v4863
      %4876 = vmatprep.subr.bf16.mxu0 0
      %4877 = vmatpush1.bf16.msra.mxu0 0
      %4878 = vmatprep.subr.bf16.mxu0 0
      %4879 = vmatpush1.bf16.msra.mxu0 0
      %4880 = vmatprep.subr.bf16.mxu0 0
      %4881 = vmatpush1.bf16.msra.mxu0 0
      %4882 = vmatprep.subr.bf16.mxu0 0
      %4883 = vmatpush1.bf16.msra.mxu0 0
      %4884 = vmatprep.subr.bf16.mxu0 0
      %4885 = vmatpush1.bf16.msra.mxu0 0
      %4886 = vmatprep.subr.bf16.mxu0 0
      %4887 = vmatpush1.bf16.msra.mxu0 0
      %4888 = vmatprep.subr.bf16.mxu0 0
      %4889 = vmatpush1.bf16.msra.mxu0 0
      %4890 = vmatprep.subr.bf16.mxu0 0
      %4891 = vmatpush1.bf16.msra.mxu0 0
      %4892 = vmatprep.subr.bf16.mxu0 0
      %4893 = vmatpush1.bf16.msra.mxu0 0
      %4894 = vmatprep.subr.bf16.mxu0 0
      %4895 = vmatpush1.bf16.msra.mxu0 0
      %4896 = vmatprep.subr.bf16.mxu0 0
      %4897 = vmatpush1.bf16.msra.mxu0 0
      %4898 = vmatprep.subr.bf16.mxu0 0
      %4899 = vmatpush1.bf16.msra.mxu0 0
      %4900 = vmatprep.mubr.bf16.mxu0 0
      %4901 = vmatmul.mubr.bf16.gmra.mrb[0].mxu0 %v4791
      %v4902 = vpop.f32.mrb[0].mxu0
      %v4903 = vadd.f32 0.0, %v4902
      %v4904 = vpop.f32.mrb[0].mxu0
      %v4905 = vpop.f32.mrb[0].mxu0
      %v4906 = vpop.f32.mrb[0].mxu0
      %4907 = vdwg.mxu0
      %s4908 = scalar_lea.vmem %s25, 2
      %v4909 = vld [vmem:[%s4908] sm:$0x3]
      %v4910 = vpack.c.bf16 %v4903, %v4903
      %v4912 = vsel %vm1576, %v4909, 0
      %v4915 = vsel %vm1583, %v4910, 0
      %4917 = vmatprep.subr.bf16.mxu0 0
      %4918 = vmatpush1.bf16.msra.mxu0 %v4915
      %4919 = vmatprep.subr.bf16.mxu0 0
      %4920 = vmatpush1.bf16.msra.mxu0 0
      %4921 = vmatprep.subr.bf16.mxu0 0
      %4922 = vmatpush1.bf16.msra.mxu0 0
      %4923 = vmatprep.subr.bf16.mxu0 0
      %4924 = vmatpush1.bf16.msra.mxu0 0
      %4925 = vmatprep.subr.bf16.mxu0 0
      %4926 = vmatpush1.bf16.msra.mxu0 0
      %4927 = vmatprep.subr.bf16.mxu0 0
      %4928 = vmatpush1.bf16.msra.mxu0 0
      %4929 = vmatprep.subr.bf16.mxu0 0
      %4930 = vmatpush1.bf16.msra.mxu0 0
      %4931 = vmatprep.subr.bf16.mxu0 0
      %4932 = vmatpush1.bf16.msra.mxu0 0
      %4933 = vmatprep.subr.bf16.mxu0 0
      %4934 = vmatpush1.bf16.msra.mxu0 0
      %4935 = vmatprep.subr.bf16.mxu0 0
      %4936 = vmatpush1.bf16.msra.mxu0 0
      %4937 = vmatprep.subr.bf16.mxu0 0
      %4938 = vmatpush1.bf16.msra.mxu0 0
      %4939 = vmatprep.subr.bf16.mxu0 0
      %4940 = vmatpush1.bf16.msra.mxu0 0
      %4941 = vmatprep.subr.bf16.mxu0 0
      %4942 = vmatpush1.bf16.msra.mxu0 0
      %4943 = vmatprep.subr.bf16.mxu0 0
      %4944 = vmatpush1.bf16.msra.mxu0 0
      %4945 = vmatprep.subr.bf16.mxu0 0
      %4946 = vmatpush1.bf16.msra.mxu0 0
      %4947 = vmatprep.subr.bf16.mxu0 0
      %4948 = vmatpush1.bf16.msra.mxu0 0
      %4949 = vmatprep.mubr.bf16.mxu0 0
      %4950 = vmatmul.mubr.bf16.gmra.mrb[0].mxu0 %v4912
      %v4951 = vpop.f32.mrb[0].mxu0
      %v4952 = vadd.f32 0.0, %v4951
      %v4953 = vpop.f32.mrb[0].mxu0
      %v4954 = vpop.f32.mrb[0].mxu0
      %v4955 = vpop.f32.mrb[0].mxu0
      %4956 = vdwg.mxu0
      %v4958 = vsel %vm1576, %v4833, 0
      %v4961 = vsel %vm1583, %v4834, 0
      %4963 = vmatprep.subr.bf16.mxu0 0
      %4964 = vmatpush1.bf16.msra.mxu0 %v4961
      %4965 = vmatprep.subr.bf16.mxu0 0
      %4966 = vmatpush1.bf16.msra.mxu0 0
      %4967 = vmatprep.subr.bf16.mxu0 0
      %4968 = vmatpush1.bf16.msra.mxu0 0
      %4969 = vmatprep.subr.bf16.mxu0 0
      %4970 = vmatpush1.bf16.msra.mxu0 0
      %4971 = vmatprep.subr.bf16.mxu0 0
      %4972 = vmatpush1.bf16.msra.mxu0 0
      %4973 = vmatprep.subr.bf16.mxu0 0
      %4974 = vmatpush1.bf16.msra.mxu0 0
      %4975 = vmatprep.subr.bf16.mxu0 0
      %4976 = vmatpush1.bf16.msra.mxu0 0
      %4977 = vmatprep.subr.bf16.mxu0 0
      %4978 = vmatpush1.bf16.msra.mxu0 0
      %4979 = vmatprep.subr.bf16.mxu0 0
      %4980 = vmatpush1.bf16.msra.mxu0 0
      %4981 = vmatprep.subr.bf16.mxu0 0
      %4982 = vmatpush1.bf16.msra.mxu0 0
      %4983 = vmatprep.subr.bf16.mxu0 0
      %4984 = vmatpush1.bf16.msra.mxu0 0
      %4985 = vmatprep.subr.bf16.mxu0 0
      %4986 = vmatpush1.bf16.msra.mxu0 0
      %4987 = vmatprep.subr.bf16.mxu0 0
      %4988 = vmatpush1.bf16.msra.mxu0 0
      %4989 = vmatprep.subr.bf16.mxu0 0
      %4990 = vmatpush1.bf16.msra.mxu0 0
      %4991 = vmatprep.subr.bf16.mxu0 0
      %4992 = vmatpush1.bf16.msra.mxu0 0
      %4993 = vmatprep.subr.bf16.mxu0 0
      %4994 = vmatpush1.bf16.msra.mxu0 0
      %4995 = vmatprep.mubr.bf16.mxu0 0
      %4996 = vmatmul.mubr.bf16.gmra.mrb[0].mxu0 %v4958
      %v4997 = vpop.f32.mrb[0].mxu0
      %v4998 = vadd.f32 %v4952, %v4997
      %v4999 = vpop.f32.mrb[0].mxu0
      %v5000 = vpop.f32.mrb[0].mxu0
      %v5001 = vpop.f32.mrb[0].mxu0
      %5002 = vdwg.mxu0
      %s5003 = scalar_lea.vmem %s27, 64
      %v5004 = vld [vmem:[%s5003] sm:$0xf]
      %v5005 = vld [vmem:[%s5003 + $0x4] sm:$0xf]
      %v5006 = vld [vmem:[%s5003 + $0x8] sm:$0xf]
      %v5007 = vld [vmem:[%s5003 + $0xc] sm:$0xf]
      %v5008 = vld [vmem:[%s5003 + $0x10] sm:$0xf]
      %v5009 = vld [vmem:[%s5003 + $0x14] sm:$0xf]
      %v5010 = vld [vmem:[%s5003 + $0x18] sm:$0xf]
      %v5011 = vld [vmem:[%s5003 + $0x1c] sm:$0xf]
      %v5020 = vunpack.c.l.b16 %v5004
      %v5021 = vunpack.c.l.b16 %v5005
      %v5022 = vunpack.c.l.b16 %v5006
      %v5023 = vunpack.c.l.b16 %v5007
      %v5024 = vunpack.c.l.b16 %v5008
      %v5025 = vunpack.c.l.b16 %v5009
      %v5026 = vunpack.c.l.b16 %v5010
      %v5027 = vunpack.c.l.b16 %v5011
      %v5028 = vpack.c.b16 %v5021, %v5020
      %v5029 = vpack.c.b16 %v5023, %v5022
      %v5030 = vpack.c.b16 %v5025, %v5024
      %v5031 = vpack.c.b16 %v5027, %v5026
      %5036 = vmatprep.subr.bf16.mxu0 0
      %5037 = vmatpush1.bf16.msra.mxu0 %v5028
      %5038 = vmatprep.subr.bf16.mxu0 0
      %5039 = vmatpush1.bf16.msra.mxu0 %v5029
      %5040 = vmatprep.subr.bf16.mxu0 0
      %5041 = vmatpush1.bf16.msra.mxu0 %v5030
      %5042 = vmatprep.subr.bf16.mxu0 0
      %5043 = vmatpush1.bf16.msra.mxu0 %v5031
      %5044 = vmatprep.subr.bf16.mxu0 0
      %5045 = vmatpush1.bf16.msra.mxu0 0
      %5046 = vmatprep.subr.bf16.mxu0 0
      %5047 = vmatpush1.bf16.msra.mxu0 0
      %5048 = vmatprep.subr.bf16.mxu0 0
      %5049 = vmatpush1.bf16.msra.mxu0 0
      %5050 = vmatprep.subr.bf16.mxu0 0
      %5051 = vmatpush1.bf16.msra.mxu0 0
      %5052 = vmatprep.subr.bf16.mxu0 0
      %5053 = vmatpush1.bf16.msra.mxu0 0
      %5054 = vmatprep.subr.bf16.mxu0 0
      %5055 = vmatpush1.bf16.msra.mxu0 0
      %5056 = vmatprep.subr.bf16.mxu0 0
      %5057 = vmatpush1.bf16.msra.mxu0 0
      %5058 = vmatprep.subr.bf16.mxu0 0
      %5059 = vmatpush1.bf16.msra.mxu0 0
      %5060 = vmatprep.subr.bf16.mxu0 0
      %5061 = vmatpush1.bf16.msra.mxu0 0
      %5062 = vmatprep.subr.bf16.mxu0 0
      %5063 = vmatpush1.bf16.msra.mxu0 0
      %5064 = vmatprep.subr.bf16.mxu0 0
      %5065 = vmatpush1.bf16.msra.mxu0 0
      %5066 = vmatprep.subr.bf16.mxu0 0
      %5067 = vmatpush1.bf16.msra.mxu0 0
      %5068 = vmatprep.mubr.bf16.mxu0 0
      %5069 = vmatmul.mubr.bf16.gmra.mrb[0].mxu0 %v4791
      %v5070 = vpop.f32.mrb[0].mxu0
      %v5071 = vadd.f32 0.0, %v5070
      %v5072 = vpop.f32.mrb[0].mxu0
      %v5073 = vpop.f32.mrb[0].mxu0
      %v5074 = vpop.f32.mrb[0].mxu0
      %5075 = vdwg.mxu0
      %s5076 = scalar_lea.vmem %s25, 4
      %v5077 = vld [vmem:[%s5076] sm:$0x3]
      %v5078 = vpack.c.bf16 %v5071, %v5071
      %v5080 = vsel %vm1576, %v5077, 0
      %v5083 = vsel %vm1583, %v5078, 0
      %5085 = vmatprep.subr.bf16.mxu0 0
      %5086 = vmatpush1.bf16.msra.mxu0 %v5083
      %5087 = vmatprep.subr.bf16.mxu0 0
      %5088 = vmatpush1.bf16.msra.mxu0 0
      %5089 = vmatprep.subr.bf16.mxu0 0
      %5090 = vmatpush1.bf16.msra.mxu0 0
      %5091 = vmatprep.subr.bf16.mxu0 0
      %5092 = vmatpush1.bf16.msra.mxu0 0
      %5093 = vmatprep.subr.bf16.mxu0 0
      %5094 = vmatpush1.bf16.msra.mxu0 0
      %5095 = vmatprep.subr.bf16.mxu0 0
      %5096 = vmatpush1.bf16.msra.mxu0 0
      %5097 = vmatprep.subr.bf16.mxu0 0
      %5098 = vmatpush1.bf16.msra.mxu0 0
      %5099 = vmatprep.subr.bf16.mxu0 0
      %5100 = vmatpush1.bf16.msra.mxu0 0
      %5101 = vmatprep.subr.bf16.mxu0 0
      %5102 = vmatpush1.bf16.msra.mxu0 0
      %5103 = vmatprep.subr.bf16.mxu0 0
      %5104 = vmatpush1.bf16.msra.mxu0 0
      %5105 = vmatprep.subr.bf16.mxu0 0
      %5106 = vmatpush1.bf16.msra.mxu0 0
      %5107 = vmatprep.subr.bf16.mxu0 0
      %5108 = vmatpush1.bf16.msra.mxu0 0
      %5109 = vmatprep.subr.bf16.mxu0 0
      %5110 = vmatpush1.bf16.msra.mxu0 0
      %5111 = vmatprep.subr.bf16.mxu0 0
      %5112 = vmatpush1.bf16.msra.mxu0 0
      %5113 = vmatprep.subr.bf16.mxu0 0
      %5114 = vmatpush1.bf16.msra.mxu0 0
      %5115 = vmatprep.subr.bf16.mxu0 0
      %5116 = vmatpush1.bf16.msra.mxu0 0
      %5117 = vmatprep.mubr.bf16.mxu0 0
      %5118 = vmatmul.mubr.bf16.gmra.mrb[0].mxu0 %v5080
      %v5119 = vpop.f32.mrb[0].mxu0
      %v5120 = vadd.f32 0.0, %v5119
      %v5121 = vpop.f32.mrb[0].mxu0
      %v5122 = vpop.f32.mrb[0].mxu0
      %v5123 = vpop.f32.mrb[0].mxu0
      %5124 = vdwg.mxu0
      %v5125 = vadd.f32 %v4998, %v5120
      %s5126 = scalar_lea.vmem %s27, 96
      %v5127 = vld [vmem:[%s5126] sm:$0xf]
      %v5128 = vld [vmem:[%s5126 + $0x4] sm:$0xf]
      %v5129 = vld [vmem:[%s5126 + $0x8] sm:$0xf]
      %v5130 = vld [vmem:[%s5126 + $0xc] sm:$0xf]
      %v5131 = vld [vmem:[%s5126 + $0x10] sm:$0xf]
      %v5132 = vld [vmem:[%s5126 + $0x14] sm:$0xf]
      %v5133 = vld [vmem:[%s5126 + $0x18] sm:$0xf]
      %v5134 = vld [vmem:[%s5126 + $0x1c] sm:$0xf]
      %v5143 = vunpack.c.l.b16 %v5127
      %v5144 = vunpack.c.l.b16 %v5128
      %v5145 = vunpack.c.l.b16 %v5129
      %v5146 = vunpack.c.l.b16 %v5130
      %v5147 = vunpack.c.l.b16 %v5131
      %v5148 = vunpack.c.l.b16 %v5132
      %v5149 = vunpack.c.l.b16 %v5133
      %v5150 = vunpack.c.l.b16 %v5134
      %v5151 = vpack.c.b16 %v5144, %v5143
      %v5152 = vpack.c.b16 %v5146, %v5145
      %v5153 = vpack.c.b16 %v5148, %v5147
      %v5154 = vpack.c.b16 %v5150, %v5149
      %5159 = vmatprep.subr.bf16.mxu0 0
      %5160 = vmatpush1.bf16.msra.mxu0 %v5151
      %5161 = vmatprep.subr.bf16.mxu0 0
      %5162 = vmatpush1.bf16.msra.mxu0 %v5152
      %5163 = vmatprep.subr.bf16.mxu0 0
      %5164 = vmatpush1.bf16.msra.mxu0 %v5153
      %5165 = vmatprep.subr.bf16.mxu0 0
      %5166 = vmatpush1.bf16.msra.mxu0 %v5154
      %5167 = vmatprep.subr.bf16.mxu0 0
      %5168 = vmatpush1.bf16.msra.mxu0 0
      %5169 = vmatprep.subr.bf16.mxu0 0
      %5170 = vmatpush1.bf16.msra.mxu0 0
      %5171 = vmatprep.subr.bf16.mxu0 0
      %5172 = vmatpush1.bf16.msra.mxu0 0
      %5173 = vmatprep.subr.bf16.mxu0 0
      %5174 = vmatpush1.bf16.msra.mxu0 0
      %5175 = vmatprep.subr.bf16.mxu0 0
      %5176 = vmatpush1.bf16.msra.mxu0 0
      %5177 = vmatprep.subr.bf16.mxu0 0
      %5178 = vmatpush1.bf16.msra.mxu0 0
      %5179 = vmatprep.subr.bf16.mxu0 0
      %5180 = vmatpush1.bf16.msra.mxu0 0
      %5181 = vmatprep.subr.bf16.mxu0 0
      %5182 = vmatpush1.bf16.msra.mxu0 0
      %5183 = vmatprep.subr.bf16.mxu0 0
      %5184 = vmatpush1.bf16.msra.mxu0 0
      %5185 = vmatprep.subr.bf16.mxu0 0
      %5186 = vmatpush1.bf16.msra.mxu0 0
      %5187 = vmatprep.subr.bf16.mxu0 0
      %5188 = vmatpush1.bf16.msra.mxu0 0
      %5189 = vmatprep.subr.bf16.mxu0 0
      %5190 = vmatpush1.bf16.msra.mxu0 0
      %5191 = vmatprep.mubr.bf16.mxu0 0
      %5192 = vmatmul.mubr.bf16.gmra.mrb[0].mxu0 %v4791
      %v5193 = vpop.f32.mrb[0].mxu0
      %v5194 = vadd.f32 0.0, %v5193
      %v5195 = vpop.f32.mrb[0].mxu0
      %v5196 = vpop.f32.mrb[0].mxu0
      %v5197 = vpop.f32.mrb[0].mxu0
      %5198 = vdwg.mxu0
      %s5199 = scalar_lea.vmem %s25, 6
      %v5200 = vld [vmem:[%s5199] sm:$0x3]
      %v5201 = vpack.c.bf16 %v5194, %v5194
      %v5203 = vsel %vm1576, %v5200, 0
      %v5206 = vsel %vm1583, %v5201, 0
      %5208 = vmatprep.subr.bf16.mxu0 0
      %5209 = vmatpush1.bf16.msra.mxu0 %v5206
      %5210 = vmatprep.subr.bf16.mxu0 0
      %5211 = vmatpush1.bf16.msra.mxu0 0
      %5212 = vmatprep.subr.bf16.mxu0 0
      %5213 = vmatpush1.bf16.msra.mxu0 0
      %5214 = vmatprep.subr.bf16.mxu0 0
      %5215 = vmatpush1.bf16.msra.mxu0 0
      %5216 = vmatprep.subr.bf16.mxu0 0
      %5217 = vmatpush1.bf16.msra.mxu0 0
      %5218 = vmatprep.subr.bf16.mxu0 0
      %5219 = vmatpush1.bf16.msra.mxu0 0
      %5220 = vmatprep.subr.bf16.mxu0 0
      %5221 = vmatpush1.bf16.msra.mxu0 0
      %5222 = vmatprep.subr.bf16.mxu0 0
      %5223 = vmatpush1.bf16.msra.mxu0 0
      %5224 = vmatprep.subr.bf16.mxu0 0
      %5225 = vmatpush1.bf16.msra.mxu0 0
      %5226 = vmatprep.subr.bf16.mxu0 0
      %5227 = vmatpush1.bf16.msra.mxu0 0
      %5228 = vmatprep.subr.bf16.mxu0 0
      %5229 = vmatpush1.bf16.msra.mxu0 0
      %5230 = vmatprep.subr.bf16.mxu0 0
      %5231 = vmatpush1.bf16.msra.mxu0 0
      %5232 = vmatprep.subr.bf16.mxu0 0
      %5233 = vmatpush1.bf16.msra.mxu0 0
      %5234 = vmatprep.subr.bf16.mxu0 0
      %5235 = vmatpush1.bf16.msra.mxu0 0
      %5236 = vmatprep.subr.bf16.mxu0 0
      %5237 = vmatpush1.bf16.msra.mxu0 0
      %5238 = vmatprep.subr.bf16.mxu0 0
      %5239 = vmatpush1.bf16.msra.mxu0 0
      %5240 = vmatprep.mubr.bf16.mxu0 0
      %5241 = vmatmul.mubr.bf16.gmra.mrb[0].mxu0 %v5203
      %v5242 = vpop.f32.mrb[0].mxu0
      %v5243 = vadd.f32 0.0, %v5242
      %v5244 = vpop.f32.mrb[0].mxu0
      %v5245 = vpop.f32.mrb[0].mxu0
      %v5246 = vpop.f32.mrb[0].mxu0
      %5247 = vdwg.mxu0
      %v5248 = vadd.f32 %v5125, %v5243
      %s5249 = scalar_lea.vmem %s27, 128
      %v5250 = vld [vmem:[%s5249] sm:$0xf]
      %v5251 = vld [vmem:[%s5249 + $0x4] sm:$0xf]
      %v5252 = vld [vmem:[%s5249 + $0x8] sm:$0xf]
      %v5253 = vld [vmem:[%s5249 + $0xc] sm:$0xf]
      %v5254 = vld [vmem:[%s5249 + $0x10] sm:$0xf]
      %v5255 = vld [vmem:[%s5249 + $0x14] sm:$0xf]
      %v5256 = vld [vmem:[%s5249 + $0x18] sm:$0xf]
      %v5257 = vld [vmem:[%s5249 + $0x1c] sm:$0xf]
      %v5266 = vunpack.c.l.b16 %v5250
      %v5267 = vunpack.c.l.b16 %v5251
      %v5268 = vunpack.c.l.b16 %v5252
      %v5269 = vunpack.c.l.b16 %v5253
      %v5270 = vunpack.c.l.b16 %v5254
      %v5271 = vunpack.c.l.b16 %v5255
      %v5272 = vunpack.c.l.b16 %v5256
      %v5273 = vunpack.c.l.b16 %v5257
      %v5274 = vpack.c.b16 %v5267, %v5266
      %v5275 = vpack.c.b16 %v5269, %v5268
      %v5276 = vpack.c.b16 %v5271, %v5270
      %v5277 = vpack.c.b16 %v5273, %v5272
      %5282 = vmatprep.subr.bf16.mxu0 0
      %5283 = vmatpush1.bf16.msra.mxu0 %v5274
      %5284 = vmatprep.subr.bf16.mxu0 0
      %5285 = vmatpush1.bf16.msra.mxu0 %v5275
      %5286 = vmatprep.subr.bf16.mxu0 0
      %5287 = vmatpush1.bf16.msra.mxu0 %v5276
      %5288 = vmatprep.subr.bf16.mxu0 0
      %5289 = vmatpush1.bf16.msra.mxu0 %v5277
      %5290 = vmatprep.subr.bf16.mxu0 0
      %5291 = vmatpush1.bf16.msra.mxu0 0
      %5292 = vmatprep.subr.bf16.mxu0 0
      %5293 = vmatpush1.bf16.msra.mxu0 0
      %5294 = vmatprep.subr.bf16.mxu0 0
      %5295 = vmatpush1.bf16.msra.mxu0 0
      %5296 = vmatprep.subr.bf16.mxu0 0
      %5297 = vmatpush1.bf16.msra.mxu0 0
      %5298 = vmatprep.subr.bf16.mxu0 0
      %5299 = vmatpush1.bf16.msra.mxu0 0
      %5300 = vmatprep.subr.bf16.mxu0 0
      %5301 = vmatpush1.bf16.msra.mxu0 0
      %5302 = vmatprep.subr.bf16.mxu0 0
      %5303 = vmatpush1.bf16.msra.mxu0 0
      %5304 = vmatprep.subr.bf16.mxu0 0
      %5305 = vmatpush1.bf16.msra.mxu0 0
      %5306 = vmatprep.subr.bf16.mxu0 0
      %5307 = vmatpush1.bf16.msra.mxu0 0
      %5308 = vmatprep.subr.bf16.mxu0 0
      %5309 = vmatpush1.bf16.msra.mxu0 0
      %5310 = vmatprep.subr.bf16.mxu0 0
      %5311 = vmatpush1.bf16.msra.mxu0 0
      %5312 = vmatprep.subr.bf16.mxu0 0
      %5313 = vmatpush1.bf16.msra.mxu0 0
      %5314 = vmatprep.mubr.bf16.mxu0 0
      %5315 = vmatmul.mubr.bf16.gmra.mrb[0].mxu0 %v4791
      %v5316 = vpop.f32.mrb[0].mxu0
      %v5317 = vadd.f32 0.0, %v5316
      %v5318 = vpop.f32.mrb[0].mxu0
      %v5319 = vpop.f32.mrb[0].mxu0
      %v5320 = vpop.f32.mrb[0].mxu0
      %5321 = vdwg.mxu0
      %s5322 = scalar_lea.vmem %s25, 8
      %v5323 = vld [vmem:[%s5322] sm:$0x3]
      %v5324 = vpack.c.bf16 %v5317, %v5317
      %v5326 = vsel %vm1576, %v5323, 0
      %v5329 = vsel %vm1583, %v5324, 0
      %5331 = vmatprep.subr.bf16.mxu0 0
      %5332 = vmatpush1.bf16.msra.mxu0 %v5329
      %5333 = vmatprep.subr.bf16.mxu0 0
      %5334 = vmatpush1.bf16.msra.mxu0 0
      %5335 = vmatprep.subr.bf16.mxu0 0
      %5336 = vmatpush1.bf16.msra.mxu0 0
      %5337 = vmatprep.subr.bf16.mxu0 0
      %5338 = vmatpush1.bf16.msra.mxu0 0
      %5339 = vmatprep.subr.bf16.mxu0 0
      %5340 = vmatpush1.bf16.msra.mxu0 0
      %5341 = vmatprep.subr.bf16.mxu0 0
      %5342 = vmatpush1.bf16.msra.mxu0 0
      %5343 = vmatprep.subr.bf16.mxu0 0
      %5344 = vmatpush1.bf16.msra.mxu0 0
      %5345 = vmatprep.subr.bf16.mxu0 0
      %5346 = vmatpush1.bf16.msra.mxu0 0
      %5347 = vmatprep.subr.bf16.mxu0 0
      %5348 = vmatpush1.bf16.msra.mxu0 0
      %5349 = vmatprep.subr.bf16.mxu0 0
      %5350 = vmatpush1.bf16.msra.mxu0 0
      %5351 = vmatprep.subr.bf16.mxu0 0
      %5352 = vmatpush1.bf16.msra.mxu0 0
      %5353 = vmatprep.subr.bf16.mxu0 0
      %5354 = vmatpush1.bf16.msra.mxu0 0
      %5355 = vmatprep.subr.bf16.mxu0 0
      %5356 = vmatpush1.bf16.msra.mxu0 0
      %5357 = vmatprep.subr.bf16.mxu0 0
      %5358 = vmatpush1.bf16.msra.mxu0 0
      %5359 = vmatprep.subr.bf16.mxu0 0
      %5360 = vmatpush1.bf16.msra.mxu0 0
      %5361 = vmatprep.subr.bf16.mxu0 0
      %5362 = vmatpush1.bf16.msra.mxu0 0
      %5363 = vmatprep.mubr.bf16.mxu0 0
      %5364 = vmatmul.mubr.bf16.gmra.mrb[0].mxu0 %v5326
      %v5365 = vpop.f32.mrb[0].mxu0
      %v5366 = vadd.f32 0.0, %v5365
      %v5367 = vpop.f32.mrb[0].mxu0
      %v5368 = vpop.f32.mrb[0].mxu0
      %v5369 = vpop.f32.mrb[0].mxu0
      %5370 = vdwg.mxu0
      %v5371 = vadd.f32 %v5248, %v5366
      %s5372 = scalar_lea.vmem %s27, 160
      %v5373 = vld [vmem:[%s5372] sm:$0xf]
      %v5374 = vld [vmem:[%s5372 + $0x4] sm:$0xf]
      %v5375 = vld [vmem:[%s5372 + $0x8] sm:$0xf]
      %v5376 = vld [vmem:[%s5372 + $0xc] sm:$0xf]
      %v5377 = vld [vmem:[%s5372 + $0x10] sm:$0xf]
      %v5378 = vld [vmem:[%s5372 + $0x14] sm:$0xf]
      %v5379 = vld [vmem:[%s5372 + $0x18] sm:$0xf]
      %v5380 = vld [vmem:[%s5372 + $0x1c] sm:$0xf]
      %v5389 = vunpack.c.l.b16 %v5373
      %v5390 = vunpack.c.l.b16 %v5374
      %v5391 = vunpack.c.l.b16 %v5375
      %v5392 = vunpack.c.l.b16 %v5376
      %v5393 = vunpack.c.l.b16 %v5377
      %v5394 = vunpack.c.l.b16 %v5378
      %v5395 = vunpack.c.l.b16 %v5379
      %v5396 = vunpack.c.l.b16 %v5380
      %v5397 = vpack.c.b16 %v5390, %v5389
      %v5398 = vpack.c.b16 %v5392, %v5391
      %v5399 = vpack.c.b16 %v5394, %v5393
      %v5400 = vpack.c.b16 %v5396, %v5395
      %5405 = vmatprep.subr.bf16.mxu0 0
      %5406 = vmatpush1.bf16.msra.mxu0 %v5397
      %5407 = vmatprep.subr.bf16.mxu0 0
      %5408 = vmatpush1.bf16.msra.mxu0 %v5398
      %5409 = vmatprep.subr.bf16.mxu0 0
      %5410 = vmatpush1.bf16.msra.mxu0 %v5399
      %5411 = vmatprep.subr.bf16.mxu0 0
      %5412 = vmatpush1.bf16.msra.mxu0 %v5400
      %5413 = vmatprep.subr.bf16.mxu0 0
      %5414 = vmatpush1.bf16.msra.mxu0 0
      %5415 = vmatprep.subr.bf16.mxu0 0
      %5416 = vmatpush1.bf16.msra.mxu0 0
      %5417 = vmatprep.subr.bf16.mxu0 0
      %5418 = vmatpush1.bf16.msra.mxu0 0
      %5419 = vmatprep.subr.bf16.mxu0 0
      %5420 = vmatpush1.bf16.msra.mxu0 0
      %5421 = vmatprep.subr.bf16.mxu0 0
      %5422 = vmatpush1.bf16.msra.mxu0 0
      %5423 = vmatprep.subr.bf16.mxu0 0
      %5424 = vmatpush1.bf16.msra.mxu0 0
      %5425 = vmatprep.subr.bf16.mxu0 0
      %5426 = vmatpush1.bf16.msra.mxu0 0
      %5427 = vmatprep.subr.bf16.mxu0 0
      %5428 = vmatpush1.bf16.msra.mxu0 0
      %5429 = vmatprep.subr.bf16.mxu0 0
      %5430 = vmatpush1.bf16.msra.mxu0 0
      %5431 = vmatprep.subr.bf16.mxu0 0
      %5432 = vmatpush1.bf16.msra.mxu0 0
      %5433 = vmatprep.subr.bf16.mxu0 0
      %5434 = vmatpush1.bf16.msra.mxu0 0
      %5435 = vmatprep.subr.bf16.mxu0 0
      %5436 = vmatpush1.bf16.msra.mxu0 0
      %5437 = vmatprep.mubr.bf16.mxu0 0
      %5438 = vmatmul.mubr.bf16.gmra.mrb[0].mxu0 %v4791
      %v5439 = vpop.f32.mrb[0].mxu0
      %v5440 = vadd.f32 0.0, %v5439
      %v5441 = vpop.f32.mrb[0].mxu0
      %v5442 = vpop.f32.mrb[0].mxu0
      %v5443 = vpop.f32.mrb[0].mxu0
      %5444 = vdwg.mxu0
      %s5445 = scalar_lea.vmem %s25, 10
      %v5446 = vld [vmem:[%s5445] sm:$0x3]
      %v5447 = vpack.c.bf16 %v5440, %v5440
      %v5449 = vsel %vm1576, %v5446, 0
      %v5452 = vsel %vm1583, %v5447, 0
      %5454 = vmatprep.subr.bf16.mxu0 0
      %5455 = vmatpush1.bf16.msra.mxu0 %v5452
      %5456 = vmatprep.subr.bf16.mxu0 0
      %5457 = vmatpush1.bf16.msra.mxu0 0
      %5458 = vmatprep.subr.bf16.mxu0 0
      %5459 = vmatpush1.bf16.msra.mxu0 0
      %5460 = vmatprep.subr.bf16.mxu0 0
      %5461 = vmatpush1.bf16.msra.mxu0 0
      %5462 = vmatprep.subr.bf16.mxu0 0
      %5463 = vmatpush1.bf16.msra.mxu0 0
      %5464 = vmatprep.subr.bf16.mxu0 0
      %5465 = vmatpush1.bf16.msra.mxu0 0
      %5466 = vmatprep.subr.bf16.mxu0 0
      %5467 = vmatpush1.bf16.msra.mxu0 0
      %5468 = vmatprep.subr.bf16.mxu0 0
      %5469 = vmatpush1.bf16.msra.mxu0 0
      %5470 = vmatprep.subr.bf16.mxu0 0
      %5471 = vmatpush1.bf16.msra.mxu0 0
      %5472 = vmatprep.subr.bf16.mxu0 0
      %5473 = vmatpush1.bf16.msra.mxu0 0
      %5474 = vmatprep.subr.bf16.mxu0 0
      %5475 = vmatpush1.bf16.msra.mxu0 0
      %5476 = vmatprep.subr.bf16.mxu0 0
      %5477 = vmatpush1.bf16.msra.mxu0 0
      %5478 = vmatprep.subr.bf16.mxu0 0
      %5479 = vmatpush1.bf16.msra.mxu0 0
      %5480 = vmatprep.subr.bf16.mxu0 0
      %5481 = vmatpush1.bf16.msra.mxu0 0
      %5482 = vmatprep.subr.bf16.mxu0 0
      %5483 = vmatpush1.bf16.msra.mxu0 0
      %5484 = vmatprep.subr.bf16.mxu0 0
      %5485 = vmatpush1.bf16.msra.mxu0 0
      %5486 = vmatprep.mubr.bf16.mxu0 0
      %5487 = vmatmul.mubr.bf16.gmra.mrb[0].mxu0 %v5449
      %v5488 = vpop.f32.mrb[0].mxu0
      %v5489 = vadd.f32 0.0, %v5488
      %v5490 = vpop.f32.mrb[0].mxu0
      %v5491 = vpop.f32.mrb[0].mxu0
      %v5492 = vpop.f32.mrb[0].mxu0
      %5493 = vdwg.mxu0
      %v5494 = vadd.f32 %v5371, %v5489
      %s5495 = scalar_lea.vmem %s27, 192
      %v5496 = vld [vmem:[%s5495] sm:$0xf]
      %v5497 = vld [vmem:[%s5495 + $0x4] sm:$0xf]
      %v5498 = vld [vmem:[%s5495 + $0x8] sm:$0xf]
      %v5499 = vld [vmem:[%s5495 + $0xc] sm:$0xf]
      %v5500 = vld [vmem:[%s5495 + $0x10] sm:$0xf]
      %v5501 = vld [vmem:[%s5495 + $0x14] sm:$0xf]
      %v5502 = vld [vmem:[%s5495 + $0x18] sm:$0xf]
      %v5503 = vld [vmem:[%s5495 + $0x1c] sm:$0xf]
      %v5512 = vunpack.c.l.b16 %v5496
      %v5513 = vunpack.c.l.b16 %v5497
      %v5514 = vunpack.c.l.b16 %v5498
      %v5515 = vunpack.c.l.b16 %v5499
      %v5516 = vunpack.c.l.b16 %v5500
      %v5517 = vunpack.c.l.b16 %v5501
      %v5518 = vunpack.c.l.b16 %v5502
      %v5519 = vunpack.c.l.b16 %v5503
      %v5520 = vpack.c.b16 %v5513, %v5512
      %v5521 = vpack.c.b16 %v5515, %v5514
      %v5522 = vpack.c.b16 %v5517, %v5516
      %v5523 = vpack.c.b16 %v5519, %v5518
      %5528 = vmatprep.subr.bf16.mxu0 0
      %5529 = vmatpush1.bf16.msra.mxu0 %v5520
      %5530 = vmatprep.subr.bf16.mxu0 0
      %5531 = vmatpush1.bf16.msra.mxu0 %v5521
      %5532 = vmatprep.subr.bf16.mxu0 0
      %5533 = vmatpush1.bf16.msra.mxu0 %v5522
      %5534 = vmatprep.subr.bf16.mxu0 0
      %5535 = vmatpush1.bf16.msra.mxu0 %v5523
      %5536 = vmatprep.subr.bf16.mxu0 0
      %5537 = vmatpush1.bf16.msra.mxu0 0
      %5538 = vmatprep.subr.bf16.mxu0 0
      %5539 = vmatpush1.bf16.msra.mxu0 0
      %5540 = vmatprep.subr.bf16.mxu0 0
      %5541 = vmatpush1.bf16.msra.mxu0 0
      %5542 = vmatprep.subr.bf16.mxu0 0
      %5543 = vmatpush1.bf16.msra.mxu0 0
      %5544 = vmatprep.subr.bf16.mxu0 0
      %5545 = vmatpush1.bf16.msra.mxu0 0
      %5546 = vmatprep.subr.bf16.mxu0 0
      %5547 = vmatpush1.bf16.msra.mxu0 0
      %5548 = vmatprep.subr.bf16.mxu0 0
      %5549 = vmatpush1.bf16.msra.mxu0 0
      %5550 = vmatprep.subr.bf16.mxu0 0
      %5551 = vmatpush1.bf16.msra.mxu0 0
      %5552 = vmatprep.subr.bf16.mxu0 0
      %5553 = vmatpush1.bf16.msra.mxu0 0
      %5554 = vmatprep.subr.bf16.mxu0 0
      %5555 = vmatpush1.bf16.msra.mxu0 0
      %5556 = vmatprep.subr.bf16.mxu0 0
      %5557 = vmatpush1.bf16.msra.mxu0 0
      %5558 = vmatprep.subr.bf16.mxu0 0
      %5559 = vmatpush1.bf16.msra.mxu0 0
      %5560 = vmatprep.mubr.bf16.mxu0 0
      %5561 = vmatmul.mubr.bf16.gmra.mrb[0].mxu0 %v4791
      %v5562 = vpop.f32.mrb[0].mxu0
      %v5563 = vadd.f32 0.0, %v5562
      %v5564 = vpop.f32.mrb[0].mxu0
      %v5565 = vpop.f32.mrb[0].mxu0
      %v5566 = vpop.f32.mrb[0].mxu0
      %5567 = vdwg.mxu0
      %s5568 = scalar_lea.vmem %s25, 12
      %v5569 = vld [vmem:[%s5568] sm:$0x3]
      %v5570 = vpack.c.bf16 %v5563, %v5563
      %v5572 = vsel %vm1576, %v5569, 0
      %v5575 = vsel %vm1583, %v5570, 0
      %5577 = vmatprep.subr.bf16.mxu0 0
      %5578 = vmatpush1.bf16.msra.mxu0 %v5575
      %5579 = vmatprep.subr.bf16.mxu0 0
      %5580 = vmatpush1.bf16.msra.mxu0 0
      %5581 = vmatprep.subr.bf16.mxu0 0
      %5582 = vmatpush1.bf16.msra.mxu0 0
      %5583 = vmatprep.subr.bf16.mxu0 0
      %5584 = vmatpush1.bf16.msra.mxu0 0
      %5585 = vmatprep.subr.bf16.mxu0 0
      %5586 = vmatpush1.bf16.msra.mxu0 0
      %5587 = vmatprep.subr.bf16.mxu0 0
      %5588 = vmatpush1.bf16.msra.mxu0 0
      %5589 = vmatprep.subr.bf16.mxu0 0
      %5590 = vmatpush1.bf16.msra.mxu0 0
      %5591 = vmatprep.subr.bf16.mxu0 0
      %5592 = vmatpush1.bf16.msra.mxu0 0
      %5593 = vmatprep.subr.bf16.mxu0 0
      %5594 = vmatpush1.bf16.msra.mxu0 0
      %5595 = vmatprep.subr.bf16.mxu0 0
      %5596 = vmatpush1.bf16.msra.mxu0 0
      %5597 = vmatprep.subr.bf16.mxu0 0
      %5598 = vmatpush1.bf16.msra.mxu0 0
      %5599 = vmatprep.subr.bf16.mxu0 0
      %5600 = vmatpush1.bf16.msra.mxu0 0
      %5601 = vmatprep.subr.bf16.mxu0 0
      %5602 = vmatpush1.bf16.msra.mxu0 0
      %5603 = vmatprep.subr.bf16.mxu0 0
      %5604 = vmatpush1.bf16.msra.mxu0 0
      %5605 = vmatprep.subr.bf16.mxu0 0
      %5606 = vmatpush1.bf16.msra.mxu0 0
      %5607 = vmatprep.subr.bf16.mxu0 0
      %5608 = vmatpush1.bf16.msra.mxu0 0
      %5609 = vmatprep.mubr.bf16.mxu0 0
      %5610 = vmatmul.mubr.bf16.gmra.mrb[0].mxu0 %v5572
      %v5611 = vpop.f32.mrb[0].mxu0
      %v5612 = vadd.f32 0.0, %v5611
      %v5613 = vpop.f32.mrb[0].mxu0
      %v5614 = vpop.f32.mrb[0].mxu0
      %v5615 = vpop.f32.mrb[0].mxu0
      %5616 = vdwg.mxu0
      %v5617 = vadd.f32 %v5494, %v5612
      %s5618 = scalar_lea.vmem %s27, 224
      %v5619 = vld [vmem:[%s5618] sm:$0xf]
      %v5620 = vld [vmem:[%s5618 + $0x4] sm:$0xf]
      %v5621 = vld [vmem:[%s5618 + $0x8] sm:$0xf]
      %v5622 = vld [vmem:[%s5618 + $0xc] sm:$0xf]
      %v5623 = vld [vmem:[%s5618 + $0x10] sm:$0xf]
      %v5624 = vld [vmem:[%s5618 + $0x14] sm:$0xf]
      %v5625 = vld [vmem:[%s5618 + $0x18] sm:$0xf]
      %v5626 = vld [vmem:[%s5618 + $0x1c] sm:$0xf]
      %v5635 = vunpack.c.l.b16 %v5619
      %v5636 = vunpack.c.l.b16 %v5620
      %v5637 = vunpack.c.l.b16 %v5621
      %v5638 = vunpack.c.l.b16 %v5622
      %v5639 = vunpack.c.l.b16 %v5623
      %v5640 = vunpack.c.l.b16 %v5624
      %v5641 = vunpack.c.l.b16 %v5625
      %v5642 = vunpack.c.l.b16 %v5626
      %v5643 = vpack.c.b16 %v5636, %v5635
      %v5644 = vpack.c.b16 %v5638, %v5637
      %v5645 = vpack.c.b16 %v5640, %v5639
      %v5646 = vpack.c.b16 %v5642, %v5641
      %5651 = vmatprep.subr.bf16.mxu0 0
      %5652 = vmatpush1.bf16.msra.mxu0 %v5643
      %5653 = vmatprep.subr.bf16.mxu0 0
      %5654 = vmatpush1.bf16.msra.mxu0 %v5644
      %5655 = vmatprep.subr.bf16.mxu0 0
      %5656 = vmatpush1.bf16.msra.mxu0 %v5645
      %5657 = vmatprep.subr.bf16.mxu0 0
      %5658 = vmatpush1.bf16.msra.mxu0 %v5646
      %5659 = vmatprep.subr.bf16.mxu0 0
      %5660 = vmatpush1.bf16.msra.mxu0 0
      %5661 = vmatprep.subr.bf16.mxu0 0
      %5662 = vmatpush1.bf16.msra.mxu0 0
      %5663 = vmatprep.subr.bf16.mxu0 0
      %5664 = vmatpush1.bf16.msra.mxu0 0
      %5665 = vmatprep.subr.bf16.mxu0 0
      %5666 = vmatpush1.bf16.msra.mxu0 0
      %5667 = vmatprep.subr.bf16.mxu0 0
      %5668 = vmatpush1.bf16.msra.mxu0 0
      %5669 = vmatprep.subr.bf16.mxu0 0
      %5670 = vmatpush1.bf16.msra.mxu0 0
      %5671 = vmatprep.subr.bf16.mxu0 0
      %5672 = vmatpush1.bf16.msra.mxu0 0
      %5673 = vmatprep.subr.bf16.mxu0 0
      %5674 = vmatpush1.bf16.msra.mxu0 0
      %5675 = vmatprep.subr.bf16.mxu0 0
      %5676 = vmatpush1.bf16.msra.mxu0 0
      %5677 = vmatprep.subr.bf16.mxu0 0
      %5678 = vmatpush1.bf16.msra.mxu0 0
      %5679 = vmatprep.subr.bf16.mxu0 0
      %5680 = vmatpush1.bf16.msra.mxu0 0
      %5681 = vmatprep.subr.bf16.mxu0 0
      %5682 = vmatpush1.bf16.msra.mxu0 0
      %5683 = vmatprep.mubr.bf16.mxu0 0
      %5684 = vmatmul.mubr.bf16.gmra.mrb[0].mxu0 %v4791
      %v5685 = vpop.f32.mrb[0].mxu0
      %v5686 = vadd.f32 0.0, %v5685
      %v5687 = vpop.f32.mrb[0].mxu0
      %v5688 = vpop.f32.mrb[0].mxu0
      %v5689 = vpop.f32.mrb[0].mxu0
      %5690 = vdwg.mxu0
      %s5691 = scalar_lea.vmem %s25, 14
      %v5692 = vld [vmem:[%s5691] sm:$0x3]
      %v5693 = vpack.c.bf16 %v5686, %v5686
      %v5695 = vsel %vm1576, %v5692, 0
      %v5698 = vsel %vm1583, %v5693, 0
      %5700 = vmatprep.subr.bf16.mxu0 0
      %5701 = vmatpush1.bf16.msra.mxu0 %v5698
      %5702 = vmatprep.subr.bf16.mxu0 0
      %5703 = vmatpush1.bf16.msra.mxu0 0
      %5704 = vmatprep.subr.bf16.mxu0 0
      %5705 = vmatpush1.bf16.msra.mxu0 0
      %5706 = vmatprep.subr.bf16.mxu0 0
      %5707 = vmatpush1.bf16.msra.mxu0 0
      %5708 = vmatprep.subr.bf16.mxu0 0
      %5709 = vmatpush1.bf16.msra.mxu0 0
      %5710 = vmatprep.subr.bf16.mxu0 0
      %5711 = vmatpush1.bf16.msra.mxu0 0
      %5712 = vmatprep.subr.bf16.mxu0 0
      %5713 = vmatpush1.bf16.msra.mxu0 0
      %5714 = vmatprep.subr.bf16.mxu0 0
      %5715 = vmatpush1.bf16.msra.mxu0 0
      %5716 = vmatprep.subr.bf16.mxu0 0
      %5717 = vmatpush1.bf16.msra.mxu0 0
      %5718 = vmatprep.subr.bf16.mxu0 0
      %5719 = vmatpush1.bf16.msra.mxu0 0
      %5720 = vmatprep.subr.bf16.mxu0 0
      %5721 = vmatpush1.bf16.msra.mxu0 0
      %5722 = vmatprep.subr.bf16.mxu0 0
      %5723 = vmatpush1.bf16.msra.mxu0 0
      %5724 = vmatprep.subr.bf16.mxu0 0
      %5725 = vmatpush1.bf16.msra.mxu0 0
      %5726 = vmatprep.subr.bf16.mxu0 0
      %5727 = vmatpush1.bf16.msra.mxu0 0
      %5728 = vmatprep.subr.bf16.mxu0 0
      %5729 = vmatpush1.bf16.msra.mxu0 0
      %5730 = vmatprep.subr.bf16.mxu0 0
      %5731 = vmatpush1.bf16.msra.mxu0 0
      %5732 = vmatprep.mubr.bf16.mxu0 0
      %5733 = vmatmul.mubr.bf16.gmra.mrb[0].mxu0 %v5695
      %v5734 = vpop.f32.mrb[0].mxu0
      %v5735 = vadd.f32 0.0, %v5734
      %v5736 = vpop.f32.mrb[0].mxu0
      %v5737 = vpop.f32.mrb[0].mxu0
      %v5738 = vpop.f32.mrb[0].mxu0
      %5739 = vdwg.mxu0
      %v5740 = vadd.f32 %v5617, %v5735
      %s5741 = scalar_lea.vmem %s27, 256
      %v5742 = vld [vmem:[%s5741] sm:$0xf]
      %v5743 = vld [vmem:[%s5741 + $0x4] sm:$0xf]
      %v5744 = vld [vmem:[%s5741 + $0x8] sm:$0xf]
      %v5745 = vld [vmem:[%s5741 + $0xc] sm:$0xf]
      %v5746 = vld [vmem:[%s5741 + $0x10] sm:$0xf]
      %v5747 = vld [vmem:[%s5741 + $0x14] sm:$0xf]
      %v5748 = vld [vmem:[%s5741 + $0x18] sm:$0xf]
      %v5749 = vld [vmem:[%s5741 + $0x1c] sm:$0xf]
      %v5758 = vunpack.c.l.b16 %v5742
      %v5759 = vunpack.c.l.b16 %v5743
      %v5760 = vunpack.c.l.b16 %v5744
      %v5761 = vunpack.c.l.b16 %v5745
      %v5762 = vunpack.c.l.b16 %v5746
      %v5763 = vunpack.c.l.b16 %v5747
      %v5764 = vunpack.c.l.b16 %v5748
      %v5765 = vunpack.c.l.b16 %v5749
      %v5766 = vpack.c.b16 %v5759, %v5758
      %v5767 = vpack.c.b16 %v5761, %v5760
      %v5768 = vpack.c.b16 %v5763, %v5762
      %v5769 = vpack.c.b16 %v5765, %v5764
      %5774 = vmatprep.subr.bf16.mxu0 0
      %5775 = vmatpush1.bf16.msra.mxu0 %v5766
      %5776 = vmatprep.subr.bf16.mxu0 0
      %5777 = vmatpush1.bf16.msra.mxu0 %v5767
      %5778 = vmatprep.subr.bf16.mxu0 0
      %5779 = vmatpush1.bf16.msra.mxu0 %v5768
      %5780 = vmatprep.subr.bf16.mxu0 0
      %5781 = vmatpush1.bf16.msra.mxu0 %v5769
      %5782 = vmatprep.subr.bf16.mxu0 0
      %5783 = vmatpush1.bf16.msra.mxu0 0
      %5784 = vmatprep.subr.bf16.mxu0 0
      %5785 = vmatpush1.bf16.msra.mxu0 0
      %5786 = vmatprep.subr.bf16.mxu0 0
      %5787 = vmatpush1.bf16.msra.mxu0 0
      %5788 = vmatprep.subr.bf16.mxu0 0
      %5789 = vmatpush1.bf16.msra.mxu0 0
      %5790 = vmatprep.subr.bf16.mxu0 0
      %5791 = vmatpush1.bf16.msra.mxu0 0
      %5792 = vmatprep.subr.bf16.mxu0 0
      %5793 = vmatpush1.bf16.msra.mxu0 0
      %5794 = vmatprep.subr.bf16.mxu0 0
      %5795 = vmatpush1.bf16.msra.mxu0 0
      %5796 = vmatprep.subr.bf16.mxu0 0
      %5797 = vmatpush1.bf16.msra.mxu0 0
      %5798 = vmatprep.subr.bf16.mxu0 0
      %5799 = vmatpush1.bf16.msra.mxu0 0
      %5800 = vmatprep.subr.bf16.mxu0 0
      %5801 = vmatpush1.bf16.msra.mxu0 0
      %5802 = vmatprep.subr.bf16.mxu0 0
      %5803 = vmatpush1.bf16.msra.mxu0 0
      %5804 = vmatprep.subr.bf16.mxu0 0
      %5805 = vmatpush1.bf16.msra.mxu0 0
      %5806 = vmatprep.mubr.bf16.mxu0 0
      %5807 = vmatmul.mubr.bf16.gmra.mrb[0].mxu0 %v4791
      %v5808 = vpop.f32.mrb[0].mxu0
      %v5809 = vadd.f32 0.0, %v5808
      %v5810 = vpop.f32.mrb[0].mxu0
      %v5811 = vpop.f32.mrb[0].mxu0
      %v5812 = vpop.f32.mrb[0].mxu0
      %5813 = vdwg.mxu0
      %s5814 = scalar_lea.vmem %s25, 16
      %v5815 = vld [vmem:[%s5814] sm:$0x3]
      %v5816 = vpack.c.bf16 %v5809, %v5809
      %v5818 = vsel %vm1576, %v5815, 0
      %v5821 = vsel %vm1583, %v5816, 0
      %5823 = vmatprep.subr.bf16.mxu0 0
      %5824 = vmatpush1.bf16.msra.mxu0 %v5821
      %5825 = vmatprep.subr.bf16.mxu0 0
      %5826 = vmatpush1.bf16.msra.mxu0 0
      %5827 = vmatprep.subr.bf16.mxu0 0
      %5828 = vmatpush1.bf16.msra.mxu0 0
      %5829 = vmatprep.subr.bf16.mxu0 0
      %5830 = vmatpush1.bf16.msra.mxu0 0
      %5831 = vmatprep.subr.bf16.mxu0 0
      %5832 = vmatpush1.bf16.msra.mxu0 0
      %5833 = vmatprep.subr.bf16.mxu0 0
      %5834 = vmatpush1.bf16.msra.mxu0 0
      %5835 = vmatprep.subr.bf16.mxu0 0
      %5836 = vmatpush1.bf16.msra.mxu0 0
      %5837 = vmatprep.subr.bf16.mxu0 0
      %5838 = vmatpush1.bf16.msra.mxu0 0
      %5839 = vmatprep.subr.bf16.mxu0 0
      %5840 = vmatpush1.bf16.msra.mxu0 0
      %5841 = vmatprep.subr.bf16.mxu0 0
      %5842 = vmatpush1.bf16.msra.mxu0 0
      %5843 = vmatprep.subr.bf16.mxu0 0
      %5844 = vmatpush1.bf16.msra.mxu0 0
      %5845 = vmatprep.subr.bf16.mxu0 0
      %5846 = vmatpush1.bf16.msra.mxu0 0
      %5847 = vmatprep.subr.bf16.mxu0 0
      %5848 = vmatpush1.bf16.msra.mxu0 0
      %5849 = vmatprep.subr.bf16.mxu0 0
      %5850 = vmatpush1.bf16.msra.mxu0 0
      %5851 = vmatprep.subr.bf16.mxu0 0
      %5852 = vmatpush1.bf16.msra.mxu0 0
      %5853 = vmatprep.subr.bf16.mxu0 0
      %5854 = vmatpush1.bf16.msra.mxu0 0
      %5855 = vmatprep.mubr.bf16.mxu0 0
      %5856 = vmatmul.mubr.bf16.gmra.mrb[0].mxu0 %v5818
      %v5857 = vpop.f32.mrb[0].mxu0
      %v5858 = vadd.f32 0.0, %v5857
      %v5859 = vpop.f32.mrb[0].mxu0
      %v5860 = vpop.f32.mrb[0].mxu0
      %v5861 = vpop.f32.mrb[0].mxu0
      %5862 = vdwg.mxu0
      %v5863 = vadd.f32 %v5740, %v5858
      %v5864 = vld [vmem:[%s29] sm:$0xf]
      %5866 = vset.pattern.permute.xlu0 0
      %5867 = vperm.xlu0 %5866, %v5864
      %v5868 = vpop.permute.xlu0 %5867
      %v5870 = vadd.f32 %v5863, %v5868
      %v5871 = vmax.f32 %v5870, 0.0
      %v5872 = vld [vmem:[%s31] sm:$0xf]
      %v5873 = vld [vmem:[%s31 + $0x4] sm:$0xf]
      %v5874 = vld [vmem:[%s31 + $0x8] sm:$0xf]
      %v5875 = vld [vmem:[%s31 + $0xc] sm:$0xf]
      %v5876 = vpack.c.bf16 %v5871, %v5871
      %v5877 = vld [vmem:[%s33] sm:$0xff]
      %v5878 = vld [vmem:[%s33 + $0x8] sm:$0xff]
      %v5879 = vld [vmem:[%s33 + $0x10] sm:$0xff]
      %v5880 = vld [vmem:[%s33 + $0x18] sm:$0xff]
      %5882 = vset.pattern.permute.xlu0 0
      %5883 = vperm.xlu0 %5882, %v5877
      %v5884 = vpop.permute.xlu0 %5883
      %5887 = vset.pattern.permute.xlu0 0
      %5888 = vperm.xlu0 %5887, %v5878
      %v5889 = vpop.permute.xlu0 %5888
      %5892 = vset.pattern.permute.xlu0 0
      %5893 = vperm.xlu0 %5892, %v5879
      %v5894 = vpop.permute.xlu0 %5893
      %5897 = vset.pattern.permute.xlu0 0
      %5898 = vperm.xlu0 %5897, %v5880
      %v5899 = vpop.permute.xlu0 %5898
      %v5905 = vunpack.c.l.b16 %v5872
      %v5906 = vunpack.c.l.b16 %v5873
      %v5907 = vunpack.c.l.b16 %v5874
      %v5908 = vunpack.c.l.b16 %v5875
      %v5909 = vpack.c.b16 %v5906, %v5905
      %v5910 = vpack.c.b16 %v5908, %v5907
      %v5912 = vsel %vm1576, %v5909, 0
      %v5915 = vsel %vm1576, %v5910, 0
      %v5918 = vsel %vm1583, %v5876, 0
      %5920 = vmatprep.subr.bf16.mxu0 0
      %5921 = vmatpush1.bf16.msra.mxu0 %v5918
      %5922 = vmatprep.subr.bf16.mxu0 0
      %5923 = vmatpush1.bf16.msra.mxu0 0
      %5924 = vmatprep.subr.bf16.mxu0 0
      %5925 = vmatpush1.bf16.msra.mxu0 0
      %5926 = vmatprep.subr.bf16.mxu0 0
      %5927 = vmatpush1.bf16.msra.mxu0 0
      %5928 = vmatprep.subr.bf16.mxu0 0
      %5929 = vmatpush1.bf16.msra.mxu0 0
      %5930 = vmatprep.subr.bf16.mxu0 0
      %5931 = vmatpush1.bf16.msra.mxu0 0
      %5932 = vmatprep.subr.bf16.mxu0 0
      %5933 = vmatpush1.bf16.msra.mxu0 0
      %5934 = vmatprep.subr.bf16.mxu0 0
      %5935 = vmatpush1.bf16.msra.mxu0 0
      %5936 = vmatprep.subr.bf16.mxu0 0
      %5937 = vmatpush1.bf16.msra.mxu0 0
      %5938 = vmatprep.subr.bf16.mxu0 0
      %5939 = vmatpush1.bf16.msra.mxu0 0
      %5940 = vmatprep.subr.bf16.mxu0 0
      %5941 = vmatpush1.bf16.msra.mxu0 0
      %5942 = vmatprep.subr.bf16.mxu0 0
      %5943 = vmatpush1.bf16.msra.mxu0 0
      %5944 = vmatprep.subr.bf16.mxu0 0
      %5945 = vmatpush1.bf16.msra.mxu0 0
      %5946 = vmatprep.subr.bf16.mxu0 0
      %5947 = vmatpush1.bf16.msra.mxu0 0
      %5948 = vmatprep.subr.bf16.mxu0 0
      %5949 = vmatpush1.bf16.msra.mxu0 0
      %5950 = vmatprep.subr.bf16.mxu0 0
      %5951 = vmatpush1.bf16.msra.mxu0 0
      %5952 = vmatprep.mubr.bf16.mxu0 0
      %5953 = vmatmul.mubr.bf16.gmra.mrb[0].mxu0 %v5912
      %v5954 = vpop.f32.mrb[0].mxu0
      %v5955 = vadd.f32 %v5884, %v5954
      %v5956 = vpop.f32.mrb[0].mxu0
      %v5957 = vpop.f32.mrb[0].mxu0
      %v5958 = vadd.f32 %v5889, %v5957
      %v5959 = vpop.f32.mrb[0].mxu0
      %5960 = vmatprep.mubr.bf16.mxu0 0
      %5961 = vmatmul.mubr.bf16.gmra.mrb[0].mxu0 %v5915
      %v5962 = vpop.f32.mrb[0].mxu0
      %v5963 = vadd.f32 %v5894, %v5962
      %v5964 = vpop.f32.mrb[0].mxu0
      %v5965 = vpop.f32.mrb[0].mxu0
      %v5966 = vadd.f32 %v5899, %v5965
      %v5967 = vpop.f32.mrb[0].mxu0
      %5968 = vdwg.mxu0
      %v5969 = vmax.f32 %v5955, 0.0
      %v5970 = vmax.f32 %v5958, 0.0
      %v5971 = vmax.f32 %v5963, 0.0
      %v5972 = vmax.f32 %v5966, 0.0
      %v5973 = vld [vmem:[%s35] sm:$0x3]
      %v5974 = vpack.c.bf16 %v5970, %v5969
      %v5975 = vpack.c.bf16 %v5972, %v5971
      %v5976 = vld [vmem:[%s37] sm:$0xf]
      %5978 = vset.pattern.permute.xlu0 0
      %5979 = vperm.xlu0 %5978, %v5976
      %v5980 = vpop.permute.xlu0 %5979
      %v5983 = vsel %vm3442, %v5973, 0
      %5985 = vmatprep.subr.bf16.mxu0 0
      %5986 = vmatpush1.bf16.msra.mxu0 %v5974
      %5987 = vmatprep.subr.bf16.mxu0 0
      %5988 = vmatpush1.bf16.msra.mxu0 %v5975
      %5989 = vmatprep.subr.bf16.mxu0 0
      %5990 = vmatpush1.bf16.msra.mxu0 0
      %5991 = vmatprep.subr.bf16.mxu0 0
      %5992 = vmatpush1.bf16.msra.mxu0 0
      %5993 = vmatprep.subr.bf16.mxu0 0
      %5994 = vmatpush1.bf16.msra.mxu0 0
      %5995 = vmatprep.subr.bf16.mxu0 0
      %5996 = vmatpush1.bf16.msra.mxu0 0
      %5997 = vmatprep.subr.bf16.mxu0 0
      %5998 = vmatpush1.bf16.msra.mxu0 0
      %5999 = vmatprep.subr.bf16.mxu0 0
      %6000 = vmatpush1.bf16.msra.mxu0 0
      %6001 = vmatprep.subr.bf16.mxu0 0
      %6002 = vmatpush1.bf16.msra.mxu0 0
      %6003 = vmatprep.subr.bf16.mxu0 0
      %6004 = vmatpush1.bf16.msra.mxu0 0
      %6005 = vmatprep.subr.bf16.mxu0 0
      %6006 = vmatpush1.bf16.msra.mxu0 0
      %6007 = vmatprep.subr.bf16.mxu0 0
      %6008 = vmatpush1.bf16.msra.mxu0 0
      %6009 = vmatprep.subr.bf16.mxu0 0
      %6010 = vmatpush1.bf16.msra.mxu0 0
      %6011 = vmatprep.subr.bf16.mxu0 0
      %6012 = vmatpush1.bf16.msra.mxu0 0
      %6013 = vmatprep.subr.bf16.mxu0 0
      %6014 = vmatpush1.bf16.msra.mxu0 0
      %6015 = vmatprep.subr.bf16.mxu0 0
      %6016 = vmatpush1.bf16.msra.mxu0 0
      %6017 = vmatprep.mubr.bf16.mxu0 0
      %6018 = vmatmul.mubr.bf16.gmra.mrb[0].mxu0 %v5983
      %v6019 = vpop.f32.mrb[0].mxu0
      %v6020 = vadd.f32 %v5980, %v6019
      %v6021 = vpop.f32.mrb[0].mxu0
      %v6022 = vpop.f32.mrb[0].mxu0
      %v6023 = vpop.f32.mrb[0].mxu0
      %6024 = vdwg.mxu0
      %v6025 = vmax.f32 %v6020, 0.0
      %v6026 = vld [vmem:[%s41] sm:$0xf]
      %v6027 = vld [vmem:[%s41 + $0x4] sm:$0xf]
      %v6028 = vpack.c.bf16 %v6025, %v6025
      %v6031 = vunpack.c.l.b16 %v6026
      %v6032 = vunpack.c.l.b16 %v6027
      %v6033 = vpack.c.b16 %v6032, %v6031
      %vm6035 = vcmask 130048
      %v6037 = vsel %vm6035, %v6028, 0
      %6039 = vmatprep.subr.bf16.mxu0 0
      %6040 = vmatpush1.bf16.msra.mxu0 %v6033
      %6041 = vmatprep.subr.bf16.mxu0 0
      %6042 = vmatpush1.bf16.msra.mxu0 0
      %6043 = vmatprep.subr.bf16.mxu0 0
      %6044 = vmatpush1.bf16.msra.mxu0 0
      %6045 = vmatprep.subr.bf16.mxu0 0
      %6046 = vmatpush1.bf16.msra.mxu0 0
      %6047 = vmatprep.subr.bf16.mxu0 0
      %6048 = vmatpush1.bf16.msra.mxu0 0
      %6049 = vmatprep.subr.bf16.mxu0 0
      %6050 = vmatpush1.bf16.msra.mxu0 0
      %6051 = vmatprep.subr.bf16.mxu0 0
      %6052 = vmatpush1.bf16.msra.mxu0 0
      %6053 = vmatprep.subr.bf16.mxu0 0
      %6054 = vmatpush1.bf16.msra.mxu0 0
      %6055 = vmatprep.subr.bf16.mxu0 0
      %6056 = vmatpush1.bf16.msra.mxu0 0
      %6057 = vmatprep.subr.bf16.mxu0 0
      %6058 = vmatpush1.bf16.msra.mxu0 0
      %6059 = vmatprep.subr.bf16.mxu0 0
      %6060 = vmatpush1.bf16.msra.mxu0 0
      %6061 = vmatprep.subr.bf16.mxu0 0
      %6062 = vmatpush1.bf16.msra.mxu0 0
      %6063 = vmatprep.subr.bf16.mxu0 0
      %6064 = vmatpush1.bf16.msra.mxu0 0
      %6065 = vmatprep.subr.bf16.mxu0 0
      %6066 = vmatpush1.bf16.msra.mxu0 0
      %6067 = vmatprep.subr.bf16.mxu0 0
      %6068 = vmatpush1.bf16.msra.mxu0 0
      %6069 = vmatprep.subr.bf16.mxu0 0
      %6070 = vmatpush1.bf16.msra.mxu0 0
      %6071 = vmatprep.mubr.bf16.mxu0 0
      %6072 = vmatmul.mubr.bf16.gmra.mrb[0].mxu0 %v6037
      %v6073 = vpop.f32.mrb[0].mxu0
      %v6074 = vadd.f32 0.0, %v6073
      %v6075 = vpop.f32.mrb[0].mxu0
      %v6076 = vpop.f32.mrb[0].mxu0
      %v6077 = vpop.f32.mrb[0].mxu0
      %6078 = vdwg.mxu0
      %v6079 = vld [vmem:[%s39] sm:$0x3]
      %v6080 = vpack.c.bf16 %v6074, %v6074
      %s6081 = scalar_lea.vmem %s41, 8
      %v6082 = vld [vmem:[%s6081] sm:$0xf]
      %v6083 = vld [vmem:[%s6081 + $0x4] sm:$0xf]
      %v6086 = vunpack.c.l.b16 %v6082
      %v6087 = vunpack.c.l.b16 %v6083
      %v6088 = vpack.c.b16 %v6087, %v6086
      %6090 = vmatprep.subr.bf16.mxu0 0
      %6091 = vmatpush1.bf16.msra.mxu0 %v6088
      %6092 = vmatprep.subr.bf16.mxu0 0
      %6093 = vmatpush1.bf16.msra.mxu0 0
      %6094 = vmatprep.subr.bf16.mxu0 0
      %6095 = vmatpush1.bf16.msra.mxu0 0
      %6096 = vmatprep.subr.bf16.mxu0 0
      %6097 = vmatpush1.bf16.msra.mxu0 0
      %6098 = vmatprep.subr.bf16.mxu0 0
      %6099 = vmatpush1.bf16.msra.mxu0 0
      %6100 = vmatprep.subr.bf16.mxu0 0
      %6101 = vmatpush1.bf16.msra.mxu0 0
      %6102 = vmatprep.subr.bf16.mxu0 0
      %6103 = vmatpush1.bf16.msra.mxu0 0
      %6104 = vmatprep.subr.bf16.mxu0 0
      %6105 = vmatpush1.bf16.msra.mxu0 0
      %6106 = vmatprep.subr.bf16.mxu0 0
      %6107 = vmatpush1.bf16.msra.mxu0 0
      %6108 = vmatprep.subr.bf16.mxu0 0
      %6109 = vmatpush1.bf16.msra.mxu0 0
      %6110 = vmatprep.subr.bf16.mxu0 0
      %6111 = vmatpush1.bf16.msra.mxu0 0
      %6112 = vmatprep.subr.bf16.mxu0 0
      %6113 = vmatpush1.bf16.msra.mxu0 0
      %6114 = vmatprep.subr.bf16.mxu0 0
      %6115 = vmatpush1.bf16.msra.mxu0 0
      %6116 = vmatprep.subr.bf16.mxu0 0
      %6117 = vmatpush1.bf16.msra.mxu0 0
      %6118 = vmatprep.subr.bf16.mxu0 0
      %6119 = vmatpush1.bf16.msra.mxu0 0
      %6120 = vmatprep.subr.bf16.mxu0 0
      %6121 = vmatpush1.bf16.msra.mxu0 0
      %6122 = vmatprep.mubr.bf16.mxu0 0
      %6123 = vmatmul.mubr.bf16.gmra.mrb[0].mxu0 %v6037
      %v6124 = vpop.f32.mrb[0].mxu0
      %v6125 = vadd.f32 0.0, %v6124
      %v6126 = vpop.f32.mrb[0].mxu0
      %v6127 = vpop.f32.mrb[0].mxu0
      %v6128 = vpop.f32.mrb[0].mxu0
      %6129 = vdwg.mxu0
      %s6130 = scalar_lea.vmem %s39, 2
      %v6131 = vld [vmem:[%s6130] sm:$0x3]
      %v6132 = vpack.c.bf16 %v6125, %v6125
      %v6134 = vsel %vm1576, %v6131, 0
      %v6137 = vsel %vm1583, %v6132, 0
      %6139 = vmatprep.subr.bf16.mxu0 0
      %6140 = vmatpush1.bf16.msra.mxu0 %v6137
      %6141 = vmatprep.subr.bf16.mxu0 0
      %6142 = vmatpush1.bf16.msra.mxu0 0
      %6143 = vmatprep.subr.bf16.mxu0 0
      %6144 = vmatpush1.bf16.msra.mxu0 0
      %6145 = vmatprep.subr.bf16.mxu0 0
      %6146 = vmatpush1.bf16.msra.mxu0 0
      %6147 = vmatprep.subr.bf16.mxu0 0
      %6148 = vmatpush1.bf16.msra.mxu0 0
      %6149 = vmatprep.subr.bf16.mxu0 0
      %6150 = vmatpush1.bf16.msra.mxu0 0
      %6151 = vmatprep.subr.bf16.mxu0 0
      %6152 = vmatpush1.bf16.msra.mxu0 0
      %6153 = vmatprep.subr.bf16.mxu0 0
      %6154 = vmatpush1.bf16.msra.mxu0 0
      %6155 = vmatprep.subr.bf16.mxu0 0
      %6156 = vmatpush1.bf16.msra.mxu0 0
      %6157 = vmatprep.subr.bf16.mxu0 0
      %6158 = vmatpush1.bf16.msra.mxu0 0
      %6159 = vmatprep.subr.bf16.mxu0 0
      %6160 = vmatpush1.bf16.msra.mxu0 0
      %6161 = vmatprep.subr.bf16.mxu0 0
      %6162 = vmatpush1.bf16.msra.mxu0 0
      %6163 = vmatprep.subr.bf16.mxu0 0
      %6164 = vmatpush1.bf16.msra.mxu0 0
      %6165 = vmatprep.subr.bf16.mxu0 0
      %6166 = vmatpush1.bf16.msra.mxu0 0
      %6167 = vmatprep.subr.bf16.mxu0 0
      %6168 = vmatpush1.bf16.msra.mxu0 0
      %6169 = vmatprep.subr.bf16.mxu0 0
      %6170 = vmatpush1.bf16.msra.mxu0 0
      %6171 = vmatprep.mubr.bf16.mxu0 0
      %6172 = vmatmul.mubr.bf16.gmra.mrb[0].mxu0 %v6134
      %v6173 = vpop.f32.mrb[0].mxu0
      %v6174 = vadd.f32 0.0, %v6173
      %v6175 = vpop.f32.mrb[0].mxu0
      %v6176 = vpop.f32.mrb[0].mxu0
      %v6177 = vpop.f32.mrb[0].mxu0
      %6178 = vdwg.mxu0
      %v6180 = vsel %vm1576, %v6079, 0
      %v6183 = vsel %vm1583, %v6080, 0
      %6185 = vmatprep.subr.bf16.mxu0 0
      %6186 = vmatpush1.bf16.msra.mxu0 %v6183
      %6187 = vmatprep.subr.bf16.mxu0 0
      %6188 = vmatpush1.bf16.msra.mxu0 0
      %6189 = vmatprep.subr.bf16.mxu0 0
      %6190 = vmatpush1.bf16.msra.mxu0 0
      %6191 = vmatprep.subr.bf16.mxu0 0
      %6192 = vmatpush1.bf16.msra.mxu0 0
      %6193 = vmatprep.subr.bf16.mxu0 0
      %6194 = vmatpush1.bf16.msra.mxu0 0
      %6195 = vmatprep.subr.bf16.mxu0 0
      %6196 = vmatpush1.bf16.msra.mxu0 0
      %6197 = vmatprep.subr.bf16.mxu0 0
      %6198 = vmatpush1.bf16.msra.mxu0 0
      %6199 = vmatprep.subr.bf16.mxu0 0
      %6200 = vmatpush1.bf16.msra.mxu0 0
      %6201 = vmatprep.subr.bf16.mxu0 0
      %6202 = vmatpush1.bf16.msra.mxu0 0
      %6203 = vmatprep.subr.bf16.mxu0 0
      %6204 = vmatpush1.bf16.msra.mxu0 0
      %6205 = vmatprep.subr.bf16.mxu0 0
      %6206 = vmatpush1.bf16.msra.mxu0 0
      %6207 = vmatprep.subr.bf16.mxu0 0
      %6208 = vmatpush1.bf16.msra.mxu0 0
      %6209 = vmatprep.subr.bf16.mxu0 0
      %6210 = vmatpush1.bf16.msra.mxu0 0
      %6211 = vmatprep.subr.bf16.mxu0 0
      %6212 = vmatpush1.bf16.msra.mxu0 0
      %6213 = vmatprep.subr.bf16.mxu0 0
      %6214 = vmatpush1.bf16.msra.mxu0 0
      %6215 = vmatprep.subr.bf16.mxu0 0
      %6216 = vmatpush1.bf16.msra.mxu0 0
      %6217 = vmatprep.mubr.bf16.mxu0 0
      %6218 = vmatmul.mubr.bf16.gmra.mrb[0].mxu0 %v6180
      %v6219 = vpop.f32.mrb[0].mxu0
      %v6220 = vadd.f32 %v6174, %v6219
      %v6221 = vpop.f32.mrb[0].mxu0
      %v6222 = vpop.f32.mrb[0].mxu0
      %v6223 = vpop.f32.mrb[0].mxu0
      %6224 = vdwg.mxu0
      %s6225 = scalar_lea.vmem %s41, 16
      %v6226 = vld [vmem:[%s6225] sm:$0xf]
      %v6227 = vld [vmem:[%s6225 + $0x4] sm:$0xf]
      %v6230 = vunpack.c.l.b16 %v6226
      %v6231 = vunpack.c.l.b16 %v6227
      %v6232 = vpack.c.b16 %v6231, %v6230
      %6234 = vmatprep.subr.bf16.mxu0 0
      %6235 = vmatpush1.bf16.msra.mxu0 %v6232
      %6236 = vmatprep.subr.bf16.mxu0 0
      %6237 = vmatpush1.bf16.msra.mxu0 0
      %6238 = vmatprep.subr.bf16.mxu0 0
      %6239 = vmatpush1.bf16.msra.mxu0 0
      %6240 = vmatprep.subr.bf16.mxu0 0
      %6241 = vmatpush1.bf16.msra.mxu0 0
      %6242 = vmatprep.subr.bf16.mxu0 0
      %6243 = vmatpush1.bf16.msra.mxu0 0
      %6244 = vmatprep.subr.bf16.mxu0 0
      %6245 = vmatpush1.bf16.msra.mxu0 0
      %6246 = vmatprep.subr.bf16.mxu0 0
      %6247 = vmatpush1.bf16.msra.mxu0 0
      %6248 = vmatprep.subr.bf16.mxu0 0
      %6249 = vmatpush1.bf16.msra.mxu0 0
      %6250 = vmatprep.subr.bf16.mxu0 0
      %6251 = vmatpush1.bf16.msra.mxu0 0
      %6252 = vmatprep.subr.bf16.mxu0 0
      %6253 = vmatpush1.bf16.msra.mxu0 0
      %6254 = vmatprep.subr.bf16.mxu0 0
      %6255 = vmatpush1.bf16.msra.mxu0 0
      %6256 = vmatprep.subr.bf16.mxu0 0
      %6257 = vmatpush1.bf16.msra.mxu0 0
      %6258 = vmatprep.subr.bf16.mxu0 0
      %6259 = vmatpush1.bf16.msra.mxu0 0
      %6260 = vmatprep.subr.bf16.mxu0 0
      %6261 = vmatpush1.bf16.msra.mxu0 0
      %6262 = vmatprep.subr.bf16.mxu0 0
      %6263 = vmatpush1.bf16.msra.mxu0 0
      %6264 = vmatprep.subr.bf16.mxu0 0
      %6265 = vmatpush1.bf16.msra.mxu0 0
      %6266 = vmatprep.mubr.bf16.mxu0 0
      %6267 = vmatmul.mubr.bf16.gmra.mrb[0].mxu0 %v6037
      %v6268 = vpop.f32.mrb[0].mxu0
      %v6269 = vadd.f32 0.0, %v6268
      %v6270 = vpop.f32.mrb[0].mxu0
      %v6271 = vpop.f32.mrb[0].mxu0
      %v6272 = vpop.f32.mrb[0].mxu0
      %6273 = vdwg.mxu0
      %s6274 = scalar_lea.vmem %s39, 4
      %v6275 = vld [vmem:[%s6274] sm:$0x3]
      %v6276 = vpack.c.bf16 %v6269, %v6269
      %v6278 = vsel %vm1576, %v6275, 0
      %v6281 = vsel %vm1583, %v6276, 0
      %6283 = vmatprep.subr.bf16.mxu0 0
      %6284 = vmatpush1.bf16.msra.mxu0 %v6281
      %6285 = vmatprep.subr.bf16.mxu0 0
      %6286 = vmatpush1.bf16.msra.mxu0 0
      %6287 = vmatprep.subr.bf16.mxu0 0
      %6288 = vmatpush1.bf16.msra.mxu0 0
      %6289 = vmatprep.subr.bf16.mxu0 0
      %6290 = vmatpush1.bf16.msra.mxu0 0
      %6291 = vmatprep.subr.bf16.mxu0 0
      %6292 = vmatpush1.bf16.msra.mxu0 0
      %6293 = vmatprep.subr.bf16.mxu0 0
      %6294 = vmatpush1.bf16.msra.mxu0 0
      %6295 = vmatprep.subr.bf16.mxu0 0
      %6296 = vmatpush1.bf16.msra.mxu0 0
      %6297 = vmatprep.subr.bf16.mxu0 0
      %6298 = vmatpush1.bf16.msra.mxu0 0
      %6299 = vmatprep.subr.bf16.mxu0 0
      %6300 = vmatpush1.bf16.msra.mxu0 0
      %6301 = vmatprep.subr.bf16.mxu0 0
      %6302 = vmatpush1.bf16.msra.mxu0 0
      %6303 = vmatprep.subr.bf16.mxu0 0
      %6304 = vmatpush1.bf16.msra.mxu0 0
      %6305 = vmatprep.subr.bf16.mxu0 0
      %6306 = vmatpush1.bf16.msra.mxu0 0
      %6307 = vmatprep.subr.bf16.mxu0 0
      %6308 = vmatpush1.bf16.msra.mxu0 0
      %6309 = vmatprep.subr.bf16.mxu0 0
      %6310 = vmatpush1.bf16.msra.mxu0 0
      %6311 = vmatprep.subr.bf16.mxu0 0
      %6312 = vmatpush1.bf16.msra.mxu0 0
      %6313 = vmatprep.subr.bf16.mxu0 0
      %6314 = vmatpush1.bf16.msra.mxu0 0
      %6315 = vmatprep.mubr.bf16.mxu0 0
      %6316 = vmatmul.mubr.bf16.gmra.mrb[0].mxu0 %v6278
      %v6317 = vpop.f32.mrb[0].mxu0
      %v6318 = vadd.f32 0.0, %v6317
      %v6319 = vpop.f32.mrb[0].mxu0
      %v6320 = vpop.f32.mrb[0].mxu0
      %v6321 = vpop.f32.mrb[0].mxu0
      %6322 = vdwg.mxu0
      %v6323 = vadd.f32 %v6220, %v6318
      %s6324 = scalar_lea.vmem %s41, 24
      %v6325 = vld [vmem:[%s6324] sm:$0xf]
      %v6326 = vld [vmem:[%s6324 + $0x4] sm:$0xf]
      %v6329 = vunpack.c.l.b16 %v6325
      %v6330 = vunpack.c.l.b16 %v6326
      %v6331 = vpack.c.b16 %v6330, %v6329
      %6333 = vmatprep.subr.bf16.mxu0 0
      %6334 = vmatpush1.bf16.msra.mxu0 %v6331
      %6335 = vmatprep.subr.bf16.mxu0 0
      %6336 = vmatpush1.bf16.msra.mxu0 0
      %6337 = vmatprep.subr.bf16.mxu0 0
      %6338 = vmatpush1.bf16.msra.mxu0 0
      %6339 = vmatprep.subr.bf16.mxu0 0
      %6340 = vmatpush1.bf16.msra.mxu0 0
      %6341 = vmatprep.subr.bf16.mxu0 0
      %6342 = vmatpush1.bf16.msra.mxu0 0
      %6343 = vmatprep.subr.bf16.mxu0 0
      %6344 = vmatpush1.bf16.msra.mxu0 0
      %6345 = vmatprep.subr.bf16.mxu0 0
      %6346 = vmatpush1.bf16.msra.mxu0 0
      %6347 = vmatprep.subr.bf16.mxu0 0
      %6348 = vmatpush1.bf16.msra.mxu0 0
      %6349 = vmatprep.subr.bf16.mxu0 0
      %6350 = vmatpush1.bf16.msra.mxu0 0
      %6351 = vmatprep.subr.bf16.mxu0 0
      %6352 = vmatpush1.bf16.msra.mxu0 0
      %6353 = vmatprep.subr.bf16.mxu0 0
      %6354 = vmatpush1.bf16.msra.mxu0 0
      %6355 = vmatprep.subr.bf16.mxu0 0
      %6356 = vmatpush1.bf16.msra.mxu0 0
      %6357 = vmatprep.subr.bf16.mxu0 0
      %6358 = vmatpush1.bf16.msra.mxu0 0
      %6359 = vmatprep.subr.bf16.mxu0 0
      %6360 = vmatpush1.bf16.msra.mxu0 0
      %6361 = vmatprep.subr.bf16.mxu0 0
      %6362 = vmatpush1.bf16.msra.mxu0 0
      %6363 = vmatprep.subr.bf16.mxu0 0
      %6364 = vmatpush1.bf16.msra.mxu0 0
      %6365 = vmatprep.mubr.bf16.mxu0 0
      %6366 = vmatmul.mubr.bf16.gmra.mrb[0].mxu0 %v6037
      %v6367 = vpop.f32.mrb[0].mxu0
      %v6368 = vadd.f32 0.0, %v6367
      %v6369 = vpop.f32.mrb[0].mxu0
      %v6370 = vpop.f32.mrb[0].mxu0
      %v6371 = vpop.f32.mrb[0].mxu0
      %6372 = vdwg.mxu0
      %s6373 = scalar_lea.vmem %s39, 6
      %v6374 = vld [vmem:[%s6373] sm:$0x3]
      %v6375 = vpack.c.bf16 %v6368, %v6368
      %v6377 = vsel %vm1576, %v6374, 0
      %v6380 = vsel %vm1583, %v6375, 0
      %6382 = vmatprep.subr.bf16.mxu0 0
      %6383 = vmatpush1.bf16.msra.mxu0 %v6380
      %6384 = vmatprep.subr.bf16.mxu0 0
      %6385 = vmatpush1.bf16.msra.mxu0 0
      %6386 = vmatprep.subr.bf16.mxu0 0
      %6387 = vmatpush1.bf16.msra.mxu0 0
      %6388 = vmatprep.subr.bf16.mxu0 0
      %6389 = vmatpush1.bf16.msra.mxu0 0
      %6390 = vmatprep.subr.bf16.mxu0 0
      %6391 = vmatpush1.bf16.msra.mxu0 0
      %6392 = vmatprep.subr.bf16.mxu0 0
      %6393 = vmatpush1.bf16.msra.mxu0 0
      %6394 = vmatprep.subr.bf16.mxu0 0
      %6395 = vmatpush1.bf16.msra.mxu0 0
      %6396 = vmatprep.subr.bf16.mxu0 0
      %6397 = vmatpush1.bf16.msra.mxu0 0
      %6398 = vmatprep.subr.bf16.mxu0 0
      %6399 = vmatpush1.bf16.msra.mxu0 0
      %6400 = vmatprep.subr.bf16.mxu0 0
      %6401 = vmatpush1.bf16.msra.mxu0 0
      %6402 = vmatprep.subr.bf16.mxu0 0
      %6403 = vmatpush1.bf16.msra.mxu0 0
      %6404 = vmatprep.subr.bf16.mxu0 0
      %6405 = vmatpush1.bf16.msra.mxu0 0
      %6406 = vmatprep.subr.bf16.mxu0 0
      %6407 = vmatpush1.bf16.msra.mxu0 0
      %6408 = vmatprep.subr.bf16.mxu0 0
      %6409 = vmatpush1.bf16.msra.mxu0 0
      %6410 = vmatprep.subr.bf16.mxu0 0
      %6411 = vmatpush1.bf16.msra.mxu0 0
      %6412 = vmatprep.subr.bf16.mxu0 0
      %6413 = vmatpush1.bf16.msra.mxu0 0
      %6414 = vmatprep.mubr.bf16.mxu0 0
      %6415 = vmatmul.mubr.bf16.gmra.mrb[0].mxu0 %v6377
      %v6416 = vpop.f32.mrb[0].mxu0
      %v6417 = vadd.f32 0.0, %v6416
      %v6418 = vpop.f32.mrb[0].mxu0
      %v6419 = vpop.f32.mrb[0].mxu0
      %v6420 = vpop.f32.mrb[0].mxu0
      %6421 = vdwg.mxu0
      %v6422 = vadd.f32 %v6323, %v6417
      %s6423 = scalar_lea.vmem %s41, 32
      %v6424 = vld [vmem:[%s6423] sm:$0xf]
      %v6425 = vld [vmem:[%s6423 + $0x4] sm:$0xf]
      %v6428 = vunpack.c.l.b16 %v6424
      %v6429 = vunpack.c.l.b16 %v6425
      %v6430 = vpack.c.b16 %v6429, %v6428
      %6432 = vmatprep.subr.bf16.mxu0 0
      %6433 = vmatpush1.bf16.msra.mxu0 %v6430
      %6434 = vmatprep.subr.bf16.mxu0 0
      %6435 = vmatpush1.bf16.msra.mxu0 0
      %6436 = vmatprep.subr.bf16.mxu0 0
      %6437 = vmatpush1.bf16.msra.mxu0 0
      %6438 = vmatprep.subr.bf16.mxu0 0
      %6439 = vmatpush1.bf16.msra.mxu0 0
      %6440 = vmatprep.subr.bf16.mxu0 0
      %6441 = vmatpush1.bf16.msra.mxu0 0
      %6442 = vmatprep.subr.bf16.mxu0 0
      %6443 = vmatpush1.bf16.msra.mxu0 0
      %6444 = vmatprep.subr.bf16.mxu0 0
      %6445 = vmatpush1.bf16.msra.mxu0 0
      %6446 = vmatprep.subr.bf16.mxu0 0
      %6447 = vmatpush1.bf16.msra.mxu0 0
      %6448 = vmatprep.subr.bf16.mxu0 0
      %6449 = vmatpush1.bf16.msra.mxu0 0
      %6450 = vmatprep.subr.bf16.mxu0 0
      %6451 = vmatpush1.bf16.msra.mxu0 0
      %6452 = vmatprep.subr.bf16.mxu0 0
      %6453 = vmatpush1.bf16.msra.mxu0 0
      %6454 = vmatprep.subr.bf16.mxu0 0
      %6455 = vmatpush1.bf16.msra.mxu0 0
      %6456 = vmatprep.subr.bf16.mxu0 0
      %6457 = vmatpush1.bf16.msra.mxu0 0
      %6458 = vmatprep.subr.bf16.mxu0 0
      %6459 = vmatpush1.bf16.msra.mxu0 0
      %6460 = vmatprep.subr.bf16.mxu0 0
      %6461 = vmatpush1.bf16.msra.mxu0 0
      %6462 = vmatprep.subr.bf16.mxu0 0
      %6463 = vmatpush1.bf16.msra.mxu0 0
      %6464 = vmatprep.mubr.bf16.mxu0 0
      %6465 = vmatmul.mubr.bf16.gmra.mrb[0].mxu0 %v6037
      %v6466 = vpop.f32.mrb[0].mxu0
      %v6467 = vadd.f32 0.0, %v6466
      %v6468 = vpop.f32.mrb[0].mxu0
      %v6469 = vpop.f32.mrb[0].mxu0
      %v6470 = vpop.f32.mrb[0].mxu0
      %6471 = vdwg.mxu0
      %s6472 = scalar_lea.vmem %s39, 8
      %v6473 = vld [vmem:[%s6472] sm:$0x3]
      %v6474 = vpack.c.bf16 %v6467, %v6467
      %v6476 = vsel %vm1576, %v6473, 0
      %v6479 = vsel %vm1583, %v6474, 0
      %6481 = vmatprep.subr.bf16.mxu0 0
      %6482 = vmatpush1.bf16.msra.mxu0 %v6479
      %6483 = vmatprep.subr.bf16.mxu0 0
      %6484 = vmatpush1.bf16.msra.mxu0 0
      %6485 = vmatprep.subr.bf16.mxu0 0
      %6486 = vmatpush1.bf16.msra.mxu0 0
      %6487 = vmatprep.subr.bf16.mxu0 0
      %6488 = vmatpush1.bf16.msra.mxu0 0
      %6489 = vmatprep.subr.bf16.mxu0 0
      %6490 = vmatpush1.bf16.msra.mxu0 0
      %6491 = vmatprep.subr.bf16.mxu0 0
      %6492 = vmatpush1.bf16.msra.mxu0 0
      %6493 = vmatprep.subr.bf16.mxu0 0
      %6494 = vmatpush1.bf16.msra.mxu0 0
      %6495 = vmatprep.subr.bf16.mxu0 0
      %6496 = vmatpush1.bf16.msra.mxu0 0
      %6497 = vmatprep.subr.bf16.mxu0 0
      %6498 = vmatpush1.bf16.msra.mxu0 0
      %6499 = vmatprep.subr.bf16.mxu0 0
      %6500 = vmatpush1.bf16.msra.mxu0 0
      %6501 = vmatprep.subr.bf16.mxu0 0
      %6502 = vmatpush1.bf16.msra.mxu0 0
      %6503 = vmatprep.subr.bf16.mxu0 0
      %6504 = vmatpush1.bf16.msra.mxu0 0
      %6505 = vmatprep.subr.bf16.mxu0 0
      %6506 = vmatpush1.bf16.msra.mxu0 0
      %6507 = vmatprep.subr.bf16.mxu0 0
      %6508 = vmatpush1.bf16.msra.mxu0 0
      %6509 = vmatprep.subr.bf16.mxu0 0
      %6510 = vmatpush1.bf16.msra.mxu0 0
      %6511 = vmatprep.subr.bf16.mxu0 0
      %6512 = vmatpush1.bf16.msra.mxu0 0
      %6513 = vmatprep.mubr.bf16.mxu0 0
      %6514 = vmatmul.mubr.bf16.gmra.mrb[0].mxu0 %v6476
      %v6515 = vpop.f32.mrb[0].mxu0
      %v6516 = vadd.f32 0.0, %v6515
      %v6517 = vpop.f32.mrb[0].mxu0
      %v6518 = vpop.f32.mrb[0].mxu0
      %v6519 = vpop.f32.mrb[0].mxu0
      %6520 = vdwg.mxu0
      %v6521 = vadd.f32 %v6422, %v6516
      %s6522 = scalar_lea.vmem %s41, 40
      %v6523 = vld [vmem:[%s6522] sm:$0xf]
      %v6524 = vld [vmem:[%s6522 + $0x4] sm:$0xf]
      %v6527 = vunpack.c.l.b16 %v6523
      %v6528 = vunpack.c.l.b16 %v6524
      %v6529 = vpack.c.b16 %v6528, %v6527
      %6531 = vmatprep.subr.bf16.mxu0 0
      %6532 = vmatpush1.bf16.msra.mxu0 %v6529
      %6533 = vmatprep.subr.bf16.mxu0 0
      %6534 = vmatpush1.bf16.msra.mxu0 0
      %6535 = vmatprep.subr.bf16.mxu0 0
      %6536 = vmatpush1.bf16.msra.mxu0 0
      %6537 = vmatprep.subr.bf16.mxu0 0
      %6538 = vmatpush1.bf16.msra.mxu0 0
      %6539 = vmatprep.subr.bf16.mxu0 0
      %6540 = vmatpush1.bf16.msra.mxu0 0
      %6541 = vmatprep.subr.bf16.mxu0 0
      %6542 = vmatpush1.bf16.msra.mxu0 0
      %6543 = vmatprep.subr.bf16.mxu0 0
      %6544 = vmatpush1.bf16.msra.mxu0 0
      %6545 = vmatprep.subr.bf16.mxu0 0
      %6546 = vmatpush1.bf16.msra.mxu0 0
      %6547 = vmatprep.subr.bf16.mxu0 0
      %6548 = vmatpush1.bf16.msra.mxu0 0
      %6549 = vmatprep.subr.bf16.mxu0 0
      %6550 = vmatpush1.bf16.msra.mxu0 0
      %6551 = vmatprep.subr.bf16.mxu0 0
      %6552 = vmatpush1.bf16.msra.mxu0 0
      %6553 = vmatprep.subr.bf16.mxu0 0
      %6554 = vmatpush1.bf16.msra.mxu0 0
      %6555 = vmatprep.subr.bf16.mxu0 0
      %6556 = vmatpush1.bf16.msra.mxu0 0
      %6557 = vmatprep.subr.bf16.mxu0 0
      %6558 = vmatpush1.bf16.msra.mxu0 0
      %6559 = vmatprep.subr.bf16.mxu0 0
      %6560 = vmatpush1.bf16.msra.mxu0 0
      %6561 = vmatprep.subr.bf16.mxu0 0
      %6562 = vmatpush1.bf16.msra.mxu0 0
      %6563 = vmatprep.mubr.bf16.mxu0 0
      %6564 = vmatmul.mubr.bf16.gmra.mrb[0].mxu0 %v6037
      %v6565 = vpop.f32.mrb[0].mxu0
      %v6566 = vadd.f32 0.0, %v6565
      %v6567 = vpop.f32.mrb[0].mxu0
      %v6568 = vpop.f32.mrb[0].mxu0
      %v6569 = vpop.f32.mrb[0].mxu0
      %6570 = vdwg.mxu0
      %s6571 = scalar_lea.vmem %s39, 10
      %v6572 = vld [vmem:[%s6571] sm:$0x3]
      %v6573 = vpack.c.bf16 %v6566, %v6566
      %v6575 = vsel %vm1576, %v6572, 0
      %v6578 = vsel %vm1583, %v6573, 0
      %6580 = vmatprep.subr.bf16.mxu0 0
      %6581 = vmatpush1.bf16.msra.mxu0 %v6578
      %6582 = vmatprep.subr.bf16.mxu0 0
      %6583 = vmatpush1.bf16.msra.mxu0 0
      %6584 = vmatprep.subr.bf16.mxu0 0
      %6585 = vmatpush1.bf16.msra.mxu0 0
      %6586 = vmatprep.subr.bf16.mxu0 0
      %6587 = vmatpush1.bf16.msra.mxu0 0
      %6588 = vmatprep.subr.bf16.mxu0 0
      %6589 = vmatpush1.bf16.msra.mxu0 0
      %6590 = vmatprep.subr.bf16.mxu0 0
      %6591 = vmatpush1.bf16.msra.mxu0 0
      %6592 = vmatprep.subr.bf16.mxu0 0
      %6593 = vmatpush1.bf16.msra.mxu0 0
      %6594 = vmatprep.subr.bf16.mxu0 0
      %6595 = vmatpush1.bf16.msra.mxu0 0
      %6596 = vmatprep.subr.bf16.mxu0 0
      %6597 = vmatpush1.bf16.msra.mxu0 0
      %6598 = vmatprep.subr.bf16.mxu0 0
      %6599 = vmatpush1.bf16.msra.mxu0 0
      %6600 = vmatprep.subr.bf16.mxu0 0
      %6601 = vmatpush1.bf16.msra.mxu0 0
      %6602 = vmatprep.subr.bf16.mxu0 0
      %6603 = vmatpush1.bf16.msra.mxu0 0
      %6604 = vmatprep.subr.bf16.mxu0 0
      %6605 = vmatpush1.bf16.msra.mxu0 0
      %6606 = vmatprep.subr.bf16.mxu0 0
      %6607 = vmatpush1.bf16.msra.mxu0 0
      %6608 = vmatprep.subr.bf16.mxu0 0
      %6609 = vmatpush1.bf16.msra.mxu0 0
      %6610 = vmatprep.subr.bf16.mxu0 0
      %6611 = vmatpush1.bf16.msra.mxu0 0
      %6612 = vmatprep.mubr.bf16.mxu0 0
      %6613 = vmatmul.mubr.bf16.gmra.mrb[0].mxu0 %v6575
      %v6614 = vpop.f32.mrb[0].mxu0
      %v6615 = vadd.f32 0.0, %v6614
      %v6616 = vpop.f32.mrb[0].mxu0
      %v6617 = vpop.f32.mrb[0].mxu0
      %v6618 = vpop.f32.mrb[0].mxu0
      %6619 = vdwg.mxu0
      %v6620 = vadd.f32 %v6521, %v6615
      %s6621 = scalar_lea.vmem %s41, 48
      %v6622 = vld [vmem:[%s6621] sm:$0xf]
      %v6623 = vld [vmem:[%s6621 + $0x4] sm:$0xf]
      %v6626 = vunpack.c.l.b16 %v6622
      %v6627 = vunpack.c.l.b16 %v6623
      %v6628 = vpack.c.b16 %v6627, %v6626
      %6630 = vmatprep.subr.bf16.mxu0 0
      %6631 = vmatpush1.bf16.msra.mxu0 %v6628
      %6632 = vmatprep.subr.bf16.mxu0 0
      %6633 = vmatpush1.bf16.msra.mxu0 0
      %6634 = vmatprep.subr.bf16.mxu0 0
      %6635 = vmatpush1.bf16.msra.mxu0 0
      %6636 = vmatprep.subr.bf16.mxu0 0
      %6637 = vmatpush1.bf16.msra.mxu0 0
      %6638 = vmatprep.subr.bf16.mxu0 0
      %6639 = vmatpush1.bf16.msra.mxu0 0
      %6640 = vmatprep.subr.bf16.mxu0 0
      %6641 = vmatpush1.bf16.msra.mxu0 0
      %6642 = vmatprep.subr.bf16.mxu0 0
      %6643 = vmatpush1.bf16.msra.mxu0 0
      %6644 = vmatprep.subr.bf16.mxu0 0
      %6645 = vmatpush1.bf16.msra.mxu0 0
      %6646 = vmatprep.subr.bf16.mxu0 0
      %6647 = vmatpush1.bf16.msra.mxu0 0
      %6648 = vmatprep.subr.bf16.mxu0 0
      %6649 = vmatpush1.bf16.msra.mxu0 0
      %6650 = vmatprep.subr.bf16.mxu0 0
      %6651 = vmatpush1.bf16.msra.mxu0 0
      %6652 = vmatprep.subr.bf16.mxu0 0
      %6653 = vmatpush1.bf16.msra.mxu0 0
      %6654 = vmatprep.subr.bf16.mxu0 0
      %6655 = vmatpush1.bf16.msra.mxu0 0
      %6656 = vmatprep.subr.bf16.mxu0 0
      %6657 = vmatpush1.bf16.msra.mxu0 0
      %6658 = vmatprep.subr.bf16.mxu0 0
      %6659 = vmatpush1.bf16.msra.mxu0 0
      %6660 = vmatprep.subr.bf16.mxu0 0
      %6661 = vmatpush1.bf16.msra.mxu0 0
      %6662 = vmatprep.mubr.bf16.mxu0 0
      %6663 = vmatmul.mubr.bf16.gmra.mrb[0].mxu0 %v6037
      %v6664 = vpop.f32.mrb[0].mxu0
      %v6665 = vadd.f32 0.0, %v6664
      %v6666 = vpop.f32.mrb[0].mxu0
      %v6667 = vpop.f32.mrb[0].mxu0
      %v6668 = vpop.f32.mrb[0].mxu0
      %6669 = vdwg.mxu0
      %s6670 = scalar_lea.vmem %s39, 12
      %v6671 = vld [vmem:[%s6670] sm:$0x3]
      %v6672 = vpack.c.bf16 %v6665, %v6665
      %v6674 = vsel %vm1576, %v6671, 0
      %v6677 = vsel %vm1583, %v6672, 0
      %6679 = vmatprep.subr.bf16.mxu0 0
      %6680 = vmatpush1.bf16.msra.mxu0 %v6677
      %6681 = vmatprep.subr.bf16.mxu0 0
      %6682 = vmatpush1.bf16.msra.mxu0 0
      %6683 = vmatprep.subr.bf16.mxu0 0
      %6684 = vmatpush1.bf16.msra.mxu0 0
      %6685 = vmatprep.subr.bf16.mxu0 0
      %6686 = vmatpush1.bf16.msra.mxu0 0
      %6687 = vmatprep.subr.bf16.mxu0 0
      %6688 = vmatpush1.bf16.msra.mxu0 0
      %6689 = vmatprep.subr.bf16.mxu0 0
      %6690 = vmatpush1.bf16.msra.mxu0 0
      %6691 = vmatprep.subr.bf16.mxu0 0
      %6692 = vmatpush1.bf16.msra.mxu0 0
      %6693 = vmatprep.subr.bf16.mxu0 0
      %6694 = vmatpush1.bf16.msra.mxu0 0
      %6695 = vmatprep.subr.bf16.mxu0 0
      %6696 = vmatpush1.bf16.msra.mxu0 0
      %6697 = vmatprep.subr.bf16.mxu0 0
      %6698 = vmatpush1.bf16.msra.mxu0 0
      %6699 = vmatprep.subr.bf16.mxu0 0
      %6700 = vmatpush1.bf16.msra.mxu0 0
      %6701 = vmatprep.subr.bf16.mxu0 0
      %6702 = vmatpush1.bf16.msra.mxu0 0
      %6703 = vmatprep.subr.bf16.mxu0 0
      %6704 = vmatpush1.bf16.msra.mxu0 0
      %6705 = vmatprep.subr.bf16.mxu0 0
      %6706 = vmatpush1.bf16.msra.mxu0 0
      %6707 = vmatprep.subr.bf16.mxu0 0
      %6708 = vmatpush1.bf16.msra.mxu0 0
      %6709 = vmatprep.subr.bf16.mxu0 0
      %6710 = vmatpush1.bf16.msra.mxu0 0
      %6711 = vmatprep.mubr.bf16.mxu0 0
      %6712 = vmatmul.mubr.bf16.gmra.mrb[0].mxu0 %v6674
      %v6713 = vpop.f32.mrb[0].mxu0
      %v6714 = vadd.f32 0.0, %v6713
      %v6715 = vpop.f32.mrb[0].mxu0
      %v6716 = vpop.f32.mrb[0].mxu0
      %v6717 = vpop.f32.mrb[0].mxu0
      %6718 = vdwg.mxu0
      %v6719 = vadd.f32 %v6620, %v6714
      %s6720 = scalar_lea.vmem %s41, 56
      %v6721 = vld [vmem:[%s6720] sm:$0xf]
      %v6722 = vld [vmem:[%s6720 + $0x4] sm:$0xf]
      %v6725 = vunpack.c.l.b16 %v6721
      %v6726 = vunpack.c.l.b16 %v6722
      %v6727 = vpack.c.b16 %v6726, %v6725
      %6729 = vmatprep.subr.bf16.mxu0 0
      %6730 = vmatpush1.bf16.msra.mxu0 %v6727
      %6731 = vmatprep.subr.bf16.mxu0 0
      %6732 = vmatpush1.bf16.msra.mxu0 0
      %6733 = vmatprep.subr.bf16.mxu0 0
      %6734 = vmatpush1.bf16.msra.mxu0 0
      %6735 = vmatprep.subr.bf16.mxu0 0
      %6736 = vmatpush1.bf16.msra.mxu0 0
      %6737 = vmatprep.subr.bf16.mxu0 0
      %6738 = vmatpush1.bf16.msra.mxu0 0
      %6739 = vmatprep.subr.bf16.mxu0 0
      %6740 = vmatpush1.bf16.msra.mxu0 0
      %6741 = vmatprep.subr.bf16.mxu0 0
      %6742 = vmatpush1.bf16.msra.mxu0 0
      %6743 = vmatprep.subr.bf16.mxu0 0
      %6744 = vmatpush1.bf16.msra.mxu0 0
      %6745 = vmatprep.subr.bf16.mxu0 0
      %6746 = vmatpush1.bf16.msra.mxu0 0
      %6747 = vmatprep.subr.bf16.mxu0 0
      %6748 = vmatpush1.bf16.msra.mxu0 0
      %6749 = vmatprep.subr.bf16.mxu0 0
      %6750 = vmatpush1.bf16.msra.mxu0 0
      %6751 = vmatprep.subr.bf16.mxu0 0
      %6752 = vmatpush1.bf16.msra.mxu0 0
      %6753 = vmatprep.subr.bf16.mxu0 0
      %6754 = vmatpush1.bf16.msra.mxu0 0
      %6755 = vmatprep.subr.bf16.mxu0 0
      %6756 = vmatpush1.bf16.msra.mxu0 0
      %6757 = vmatprep.subr.bf16.mxu0 0
      %6758 = vmatpush1.bf16.msra.mxu0 0
      %6759 = vmatprep.subr.bf16.mxu0 0
      %6760 = vmatpush1.bf16.msra.mxu0 0
      %6761 = vmatprep.mubr.bf16.mxu0 0
      %6762 = vmatmul.mubr.bf16.gmra.mrb[0].mxu0 %v6037
      %v6763 = vpop.f32.mrb[0].mxu0
      %v6764 = vadd.f32 0.0, %v6763
      %v6765 = vpop.f32.mrb[0].mxu0
      %v6766 = vpop.f32.mrb[0].mxu0
      %v6767 = vpop.f32.mrb[0].mxu0
      %6768 = vdwg.mxu0
      %s6769 = scalar_lea.vmem %s39, 14
      %v6770 = vld [vmem:[%s6769] sm:$0x3]
      %v6771 = vpack.c.bf16 %v6764, %v6764
      %v6773 = vsel %vm1576, %v6770, 0
      %v6776 = vsel %vm1583, %v6771, 0
      %6778 = vmatprep.subr.bf16.mxu0 0
      %6779 = vmatpush1.bf16.msra.mxu0 %v6776
      %6780 = vmatprep.subr.bf16.mxu0 0
      %6781 = vmatpush1.bf16.msra.mxu0 0
      %6782 = vmatprep.subr.bf16.mxu0 0
      %6783 = vmatpush1.bf16.msra.mxu0 0
      %6784 = vmatprep.subr.bf16.mxu0 0
      %6785 = vmatpush1.bf16.msra.mxu0 0
      %6786 = vmatprep.subr.bf16.mxu0 0
      %6787 = vmatpush1.bf16.msra.mxu0 0
      %6788 = vmatprep.subr.bf16.mxu0 0
      %6789 = vmatpush1.bf16.msra.mxu0 0
      %6790 = vmatprep.subr.bf16.mxu0 0
      %6791 = vmatpush1.bf16.msra.mxu0 0
      %6792 = vmatprep.subr.bf16.mxu0 0
      %6793 = vmatpush1.bf16.msra.mxu0 0
      %6794 = vmatprep.subr.bf16.mxu0 0
      %6795 = vmatpush1.bf16.msra.mxu0 0
      %6796 = vmatprep.subr.bf16.mxu0 0
      %6797 = vmatpush1.bf16.msra.mxu0 0
      %6798 = vmatprep.subr.bf16.mxu0 0
      %6799 = vmatpush1.bf16.msra.mxu0 0
      %6800 = vmatprep.subr.bf16.mxu0 0
      %6801 = vmatpush1.bf16.msra.mxu0 0
      %6802 = vmatprep.subr.bf16.mxu0 0
      %6803 = vmatpush1.bf16.msra.mxu0 0
      %6804 = vmatprep.subr.bf16.mxu0 0
      %6805 = vmatpush1.bf16.msra.mxu0 0
      %6806 = vmatprep.subr.bf16.mxu0 0
      %6807 = vmatpush1.bf16.msra.mxu0 0
      %6808 = vmatprep.subr.bf16.mxu0 0
      %6809 = vmatpush1.bf16.msra.mxu0 0
      %6810 = vmatprep.mubr.bf16.mxu0 0
      %6811 = vmatmul.mubr.bf16.gmra.mrb[0].mxu0 %v6773
      %v6812 = vpop.f32.mrb[0].mxu0
      %v6813 = vadd.f32 0.0, %v6812
      %v6814 = vpop.f32.mrb[0].mxu0
      %v6815 = vpop.f32.mrb[0].mxu0
      %v6816 = vpop.f32.mrb[0].mxu0
      %6817 = vdwg.mxu0
      %v6818 = vadd.f32 %v6719, %v6813
      %s6819 = scalar_lea.vmem %s41, 64
      %v6820 = vld [vmem:[%s6819] sm:$0xf]
      %v6821 = vld [vmem:[%s6819 + $0x4] sm:$0xf]
      %v6824 = vunpack.c.l.b16 %v6820
      %v6825 = vunpack.c.l.b16 %v6821
      %v6826 = vpack.c.b16 %v6825, %v6824
      %6828 = vmatprep.subr.bf16.mxu0 0
      %6829 = vmatpush1.bf16.msra.mxu0 %v6826
      %6830 = vmatprep.subr.bf16.mxu0 0
      %6831 = vmatpush1.bf16.msra.mxu0 0
      %6832 = vmatprep.subr.bf16.mxu0 0
      %6833 = vmatpush1.bf16.msra.mxu0 0
      %6834 = vmatprep.subr.bf16.mxu0 0
      %6835 = vmatpush1.bf16.msra.mxu0 0
      %6836 = vmatprep.subr.bf16.mxu0 0
      %6837 = vmatpush1.bf16.msra.mxu0 0
      %6838 = vmatprep.subr.bf16.mxu0 0
      %6839 = vmatpush1.bf16.msra.mxu0 0
      %6840 = vmatprep.subr.bf16.mxu0 0
      %6841 = vmatpush1.bf16.msra.mxu0 0
      %6842 = vmatprep.subr.bf16.mxu0 0
      %6843 = vmatpush1.bf16.msra.mxu0 0
      %6844 = vmatprep.subr.bf16.mxu0 0
      %6845 = vmatpush1.bf16.msra.mxu0 0
      %6846 = vmatprep.subr.bf16.mxu0 0
      %6847 = vmatpush1.bf16.msra.mxu0 0
      %6848 = vmatprep.subr.bf16.mxu0 0
      %6849 = vmatpush1.bf16.msra.mxu0 0
      %6850 = vmatprep.subr.bf16.mxu0 0
      %6851 = vmatpush1.bf16.msra.mxu0 0
      %6852 = vmatprep.subr.bf16.mxu0 0
      %6853 = vmatpush1.bf16.msra.mxu0 0
      %6854 = vmatprep.subr.bf16.mxu0 0
      %6855 = vmatpush1.bf16.msra.mxu0 0
      %6856 = vmatprep.subr.bf16.mxu0 0
      %6857 = vmatpush1.bf16.msra.mxu0 0
      %6858 = vmatprep.subr.bf16.mxu0 0
      %6859 = vmatpush1.bf16.msra.mxu0 0
      %6860 = vmatprep.mubr.bf16.mxu0 0
      %6861 = vmatmul.mubr.bf16.gmra.mrb[0].mxu0 %v6037
      %v6862 = vpop.f32.mrb[0].mxu0
      %v6863 = vadd.f32 0.0, %v6862
      %v6864 = vpop.f32.mrb[0].mxu0
      %v6865 = vpop.f32.mrb[0].mxu0
      %v6866 = vpop.f32.mrb[0].mxu0
      %6867 = vdwg.mxu0
      %s6868 = scalar_lea.vmem %s39, 16
      %v6869 = vld [vmem:[%s6868] sm:$0x3]
      %v6870 = vpack.c.bf16 %v6863, %v6863
      %v6872 = vsel %vm1576, %v6869, 0
      %v6875 = vsel %vm1583, %v6870, 0
      %6877 = vmatprep.subr.bf16.mxu0 0
      %6878 = vmatpush1.bf16.msra.mxu0 %v6875
      %6879 = vmatprep.subr.bf16.mxu0 0
      %6880 = vmatpush1.bf16.msra.mxu0 0
      %6881 = vmatprep.subr.bf16.mxu0 0
      %6882 = vmatpush1.bf16.msra.mxu0 0
      %6883 = vmatprep.subr.bf16.mxu0 0
      %6884 = vmatpush1.bf16.msra.mxu0 0
      %6885 = vmatprep.subr.bf16.mxu0 0
      %6886 = vmatpush1.bf16.msra.mxu0 0
      %6887 = vmatprep.subr.bf16.mxu0 0
      %6888 = vmatpush1.bf16.msra.mxu0 0
      %6889 = vmatprep.subr.bf16.mxu0 0
      %6890 = vmatpush1.bf16.msra.mxu0 0
      %6891 = vmatprep.subr.bf16.mxu0 0
      %6892 = vmatpush1.bf16.msra.mxu0 0
      %6893 = vmatprep.subr.bf16.mxu0 0
      %6894 = vmatpush1.bf16.msra.mxu0 0
      %6895 = vmatprep.subr.bf16.mxu0 0
      %6896 = vmatpush1.bf16.msra.mxu0 0
      %6897 = vmatprep.subr.bf16.mxu0 0
      %6898 = vmatpush1.bf16.msra.mxu0 0
      %6899 = vmatprep.subr.bf16.mxu0 0
      %6900 = vmatpush1.bf16.msra.mxu0 0
      %6901 = vmatprep.subr.bf16.mxu0 0
      %6902 = vmatpush1.bf16.msra.mxu0 0
      %6903 = vmatprep.subr.bf16.mxu0 0
      %6904 = vmatpush1.bf16.msra.mxu0 0
      %6905 = vmatprep.subr.bf16.mxu0 0
      %6906 = vmatpush1.bf16.msra.mxu0 0
      %6907 = vmatprep.subr.bf16.mxu0 0
      %6908 = vmatpush1.bf16.msra.mxu0 0
      %6909 = vmatprep.mubr.bf16.mxu0 0
      %6910 = vmatmul.mubr.bf16.gmra.mrb[0].mxu0 %v6872
      %v6911 = vpop.f32.mrb[0].mxu0
      %v6912 = vadd.f32 0.0, %v6911
      %v6913 = vpop.f32.mrb[0].mxu0
      %v6914 = vpop.f32.mrb[0].mxu0
      %v6915 = vpop.f32.mrb[0].mxu0
      %6916 = vdwg.mxu0
      %v6917 = vadd.f32 %v6818, %v6912
      %v6918 = vld [vmem:[%s43] sm:$0xf]
      %6920 = vset.pattern.permute.xlu0 0
      %6921 = vperm.xlu0 %6920, %v6918
      %v6922 = vpop.permute.xlu0 %6921
      %v6924 = vadd.f32 %v6917, %v6922
      %v6925 = vmax.f32 %v6924, 0.0
      %v6926 = vld [vmem:[%s45] sm:$0xf]
      %v6927 = vld [vmem:[%s45 + $0x4] sm:$0xf]
      %v6928 = vld [vmem:[%s45 + $0x8] sm:$0xf]
      %v6929 = vld [vmem:[%s45 + $0xc] sm:$0xf]
      %v6930 = vpack.c.bf16 %v6925, %v6925
      %v6931 = vld [vmem:[%s47] sm:$0xff]
      %v6932 = vld [vmem:[%s47 + $0x8] sm:$0xff]
      %v6933 = vld [vmem:[%s47 + $0x10] sm:$0xff]
      %v6934 = vld [vmem:[%s47 + $0x18] sm:$0xff]
      %6936 = vset.pattern.permute.xlu0 0
      %6937 = vperm.xlu0 %6936, %v6931
      %v6938 = vpop.permute.xlu0 %6937
      %6941 = vset.pattern.permute.xlu0 0
      %6942 = vperm.xlu0 %6941, %v6932
      %v6943 = vpop.permute.xlu0 %6942
      %6946 = vset.pattern.permute.xlu0 0
      %6947 = vperm.xlu0 %6946, %v6933
      %v6948 = vpop.permute.xlu0 %6947
      %6951 = vset.pattern.permute.xlu0 0
      %6952 = vperm.xlu0 %6951, %v6934
      %v6953 = vpop.permute.xlu0 %6952
      %v6959 = vunpack.c.l.b16 %v6926
      %v6960 = vunpack.c.l.b16 %v6927
      %v6961 = vunpack.c.l.b16 %v6928
      %v6962 = vunpack.c.l.b16 %v6929
      %v6963 = vpack.c.b16 %v6960, %v6959
      %v6964 = vpack.c.b16 %v6962, %v6961
      %v6966 = vsel %vm1576, %v6963, 0
      %v6969 = vsel %vm1576, %v6964, 0
      %v6972 = vsel %vm1583, %v6930, 0
      %6974 = vmatprep.subr.bf16.mxu0 0
      %6975 = vmatpush1.bf16.msra.mxu0 %v6972
      %6976 = vmatprep.subr.bf16.mxu0 0
      %6977 = vmatpush1.bf16.msra.mxu0 0
      %6978 = vmatprep.subr.bf16.mxu0 0
      %6979 = vmatpush1.bf16.msra.mxu0 0
      %6980 = vmatprep.subr.bf16.mxu0 0
      %6981 = vmatpush1.bf16.msra.mxu0 0
      %6982 = vmatprep.subr.bf16.mxu0 0
      %6983 = vmatpush1.bf16.msra.mxu0 0
      %6984 = vmatprep.subr.bf16.mxu0 0
      %6985 = vmatpush1.bf16.msra.mxu0 0
      %6986 = vmatprep.subr.bf16.mxu0 0
      %6987 = vmatpush1.bf16.msra.mxu0 0
      %6988 = vmatprep.subr.bf16.mxu0 0
      %6989 = vmatpush1.bf16.msra.mxu0 0
      %6990 = vmatprep.subr.bf16.mxu0 0
      %6991 = vmatpush1.bf16.msra.mxu0 0
      %6992 = vmatprep.subr.bf16.mxu0 0
      %6993 = vmatpush1.bf16.msra.mxu0 0
      %6994 = vmatprep.subr.bf16.mxu0 0
      %6995 = vmatpush1.bf16.msra.mxu0 0
      %6996 = vmatprep.subr.bf16.mxu0 0
      %6997 = vmatpush1.bf16.msra.mxu0 0
      %6998 = vmatprep.subr.bf16.mxu0 0
      %6999 = vmatpush1.bf16.msra.mxu0 0
      %7000 = vmatprep.subr.bf16.mxu0 0
      %7001 = vmatpush1.bf16.msra.mxu0 0
      %7002 = vmatprep.subr.bf16.mxu0 0
      %7003 = vmatpush1.bf16.msra.mxu0 0
      %7004 = vmatprep.subr.bf16.mxu0 0
      %7005 = vmatpush1.bf16.msra.mxu0 0
      %7006 = vmatprep.mubr.bf16.mxu0 0
      %7007 = vmatmul.mubr.bf16.gmra.mrb[0].mxu0 %v6966
      %v7008 = vpop.f32.mrb[0].mxu0
      %v7009 = vadd.f32 %v6938, %v7008
      %v7010 = vpop.f32.mrb[0].mxu0
      %v7011 = vpop.f32.mrb[0].mxu0
      %v7012 = vadd.f32 %v6943, %v7011
      %v7013 = vpop.f32.mrb[0].mxu0
      %7014 = vmatprep.mubr.bf16.mxu0 0
      %7015 = vmatmul.mubr.bf16.gmra.mrb[0].mxu0 %v6969
      %v7016 = vpop.f32.mrb[0].mxu0
      %v7017 = vadd.f32 %v6948, %v7016
      %v7018 = vpop.f32.mrb[0].mxu0
      %v7019 = vpop.f32.mrb[0].mxu0
      %v7020 = vadd.f32 %v6953, %v7019
      %v7021 = vpop.f32.mrb[0].mxu0
      %7022 = vdwg.mxu0
      %v7023 = vmax.f32 %v7009, 0.0
      %v7024 = vmax.f32 %v7012, 0.0
      %v7025 = vmax.f32 %v7017, 0.0
      %v7026 = vmax.f32 %v7020, 0.0
      %v7027 = vld [vmem:[%s49] sm:$0x3]
      %v7028 = vpack.c.bf16 %v7024, %v7023
      %v7029 = vpack.c.bf16 %v7026, %v7025
      %v7030 = vld [vmem:[%s51] sm:$0xf]
      %7032 = vset.pattern.permute.xlu0 0
      %7033 = vperm.xlu0 %7032, %v7030
      %v7034 = vpop.permute.xlu0 %7033
      %v7037 = vsel %vm3442, %v7027, 0
      %7039 = vmatprep.subr.bf16.mxu0 0
      %7040 = vmatpush1.bf16.msra.mxu0 %v7028
      %7041 = vmatprep.subr.bf16.mxu0 0
      %7042 = vmatpush1.bf16.msra.mxu0 %v7029
      %7043 = vmatprep.subr.bf16.mxu0 0
      %7044 = vmatpush1.bf16.msra.mxu0 0
      %7045 = vmatprep.subr.bf16.mxu0 0
      %7046 = vmatpush1.bf16.msra.mxu0 0
      %7047 = vmatprep.subr.bf16.mxu0 0
      %7048 = vmatpush1.bf16.msra.mxu0 0
      %7049 = vmatprep.subr.bf16.mxu0 0
      %7050 = vmatpush1.bf16.msra.mxu0 0
      %7051 = vmatprep.subr.bf16.mxu0 0
      %7052 = vmatpush1.bf16.msra.mxu0 0
      %7053 = vmatprep.subr.bf16.mxu0 0
      %7054 = vmatpush1.bf16.msra.mxu0 0
      %7055 = vmatprep.subr.bf16.mxu0 0
      %7056 = vmatpush1.bf16.msra.mxu0 0
      %7057 = vmatprep.subr.bf16.mxu0 0
      %7058 = vmatpush1.bf16.msra.mxu0 0
      %7059 = vmatprep.subr.bf16.mxu0 0
      %7060 = vmatpush1.bf16.msra.mxu0 0
      %7061 = vmatprep.subr.bf16.mxu0 0
      %7062 = vmatpush1.bf16.msra.mxu0 0
      %7063 = vmatprep.subr.bf16.mxu0 0
      %7064 = vmatpush1.bf16.msra.mxu0 0
      %7065 = vmatprep.subr.bf16.mxu0 0
      %7066 = vmatpush1.bf16.msra.mxu0 0
      %7067 = vmatprep.subr.bf16.mxu0 0
      %7068 = vmatpush1.bf16.msra.mxu0 0
      %7069 = vmatprep.subr.bf16.mxu0 0
      %7070 = vmatpush1.bf16.msra.mxu0 0
      %7071 = vmatprep.mubr.bf16.mxu0 0
      %7072 = vmatmul.mubr.bf16.gmra.mrb[0].mxu0 %v7037
      %v7073 = vpop.f32.mrb[0].mxu0
      %v7074 = vadd.f32 %v7034, %v7073
      %v7075 = vpop.f32.mrb[0].mxu0
      %v7076 = vpop.f32.mrb[0].mxu0
      %v7077 = vpop.f32.mrb[0].mxu0
      %7078 = vdwg.mxu0
      %v7079 = vmax.f32 %v7074, 0.0
      %v7080 = vld [vmem:[%s55] sm:$0xf]
      %v7081 = vld [vmem:[%s55 + $0x4] sm:$0xf]
      %v7082 = vpack.c.bf16 %v7079, %v7079
      %v7085 = vunpack.c.l.b16 %v7080
      %v7086 = vunpack.c.l.b16 %v7081
      %v7087 = vpack.c.b16 %v7086, %v7085
      %v7090 = vsel %vm6035, %v7082, 0
      %7092 = vmatprep.subr.bf16.mxu0 0
      %7093 = vmatpush1.bf16.msra.mxu0 %v7087
      %7094 = vmatprep.subr.bf16.mxu0 0
      %7095 = vmatpush1.bf16.msra.mxu0 0
      %7096 = vmatprep.subr.bf16.mxu0 0
      %7097 = vmatpush1.bf16.msra.mxu0 0
      %7098 = vmatprep.subr.bf16.mxu0 0
      %7099 = vmatpush1.bf16.msra.mxu0 0
      %7100 = vmatprep.subr.bf16.mxu0 0
      %7101 = vmatpush1.bf16.msra.mxu0 0
      %7102 = vmatprep.subr.bf16.mxu0 0
      %7103 = vmatpush1.bf16.msra.mxu0 0
      %7104 = vmatprep.subr.bf16.mxu0 0
      %7105 = vmatpush1.bf16.msra.mxu0 0
      %7106 = vmatprep.subr.bf16.mxu0 0
      %7107 = vmatpush1.bf16.msra.mxu0 0
      %7108 = vmatprep.subr.bf16.mxu0 0
      %7109 = vmatpush1.bf16.msra.mxu0 0
      %7110 = vmatprep.subr.bf16.mxu0 0
      %7111 = vmatpush1.bf16.msra.mxu0 0
      %7112 = vmatprep.subr.bf16.mxu0 0
      %7113 = vmatpush1.bf16.msra.mxu0 0
      %7114 = vmatprep.subr.bf16.mxu0 0
      %7115 = vmatpush1.bf16.msra.mxu0 0
      %7116 = vmatprep.subr.bf16.mxu0 0
      %7117 = vmatpush1.bf16.msra.mxu0 0
      %7118 = vmatprep.subr.bf16.mxu0 0
      %7119 = vmatpush1.bf16.msra.mxu0 0
      %7120 = vmatprep.subr.bf16.mxu0 0
      %7121 = vmatpush1.bf16.msra.mxu0 0
      %7122 = vmatprep.subr.bf16.mxu0 0
      %7123 = vmatpush1.bf16.msra.mxu0 0
      %7124 = vmatprep.mubr.bf16.mxu0 0
      %7125 = vmatmul.mubr.bf16.gmra.mrb[0].mxu0 %v7090
      %v7126 = vpop.f32.mrb[0].mxu0
      %v7127 = vadd.f32 0.0, %v7126
      %v7128 = vpop.f32.mrb[0].mxu0
      %v7129 = vpop.f32.mrb[0].mxu0
      %v7130 = vpop.f32.mrb[0].mxu0
      %7131 = vdwg.mxu0
      %v7132 = vld [vmem:[%s53] sm:$0x3]
      %v7133 = vpack.c.bf16 %v7127, %v7127
      %s7134 = scalar_lea.vmem %s55, 8
      %v7135 = vld [vmem:[%s7134] sm:$0xf]
      %v7136 = vld [vmem:[%s7134 + $0x4] sm:$0xf]
      %v7139 = vunpack.c.l.b16 %v7135
      %v7140 = vunpack.c.l.b16 %v7136
      %v7141 = vpack.c.b16 %v7140, %v7139
      %7143 = vmatprep.subr.bf16.mxu0 0
      %7144 = vmatpush1.bf16.msra.mxu0 %v7141
      %7145 = vmatprep.subr.bf16.mxu0 0
      %7146 = vmatpush1.bf16.msra.mxu0 0
      %7147 = vmatprep.subr.bf16.mxu0 0
      %7148 = vmatpush1.bf16.msra.mxu0 0
      %7149 = vmatprep.subr.bf16.mxu0 0
      %7150 = vmatpush1.bf16.msra.mxu0 0
      %7151 = vmatprep.subr.bf16.mxu0 0
      %7152 = vmatpush1.bf16.msra.mxu0 0
      %7153 = vmatprep.subr.bf16.mxu0 0
      %7154 = vmatpush1.bf16.msra.mxu0 0
      %7155 = vmatprep.subr.bf16.mxu0 0
      %7156 = vmatpush1.bf16.msra.mxu0 0
      %7157 = vmatprep.subr.bf16.mxu0 0
      %7158 = vmatpush1.bf16.msra.mxu0 0
      %7159 = vmatprep.subr.bf16.mxu0 0
      %7160 = vmatpush1.bf16.msra.mxu0 0
      %7161 = vmatprep.subr.bf16.mxu0 0
      %7162 = vmatpush1.bf16.msra.mxu0 0
      %7163 = vmatprep.subr.bf16.mxu0 0
      %7164 = vmatpush1.bf16.msra.mxu0 0
      %7165 = vmatprep.subr.bf16.mxu0 0
      %7166 = vmatpush1.bf16.msra.mxu0 0
      %7167 = vmatprep.subr.bf16.mxu0 0
      %7168 = vmatpush1.bf16.msra.mxu0 0
      %7169 = vmatprep.subr.bf16.mxu0 0
      %7170 = vmatpush1.bf16.msra.mxu0 0
      %7171 = vmatprep.subr.bf16.mxu0 0
      %7172 = vmatpush1.bf16.msra.mxu0 0
      %7173 = vmatprep.subr.bf16.mxu0 0
      %7174 = vmatpush1.bf16.msra.mxu0 0
      %7175 = vmatprep.mubr.bf16.mxu0 0
      %7176 = vmatmul.mubr.bf16.gmra.mrb[0].mxu0 %v7090
      %v7177 = vpop.f32.mrb[0].mxu0
      %v7178 = vadd.f32 0.0, %v7177
      %v7179 = vpop.f32.mrb[0].mxu0
      %v7180 = vpop.f32.mrb[0].mxu0
      %v7181 = vpop.f32.mrb[0].mxu0
      %7182 = vdwg.mxu0
      %s7183 = scalar_lea.vmem %s53, 2
      %v7184 = vld [vmem:[%s7183] sm:$0x3]
      %v7185 = vpack.c.bf16 %v7178, %v7178
      %v7187 = vsel %vm1576, %v7184, 0
      %v7190 = vsel %vm1583, %v7185, 0
      %7192 = vmatprep.subr.bf16.mxu0 0
      %7193 = vmatpush1.bf16.msra.mxu0 %v7190
      %7194 = vmatprep.subr.bf16.mxu0 0
      %7195 = vmatpush1.bf16.msra.mxu0 0
      %7196 = vmatprep.subr.bf16.mxu0 0
      %7197 = vmatpush1.bf16.msra.mxu0 0
      %7198 = vmatprep.subr.bf16.mxu0 0
      %7199 = vmatpush1.bf16.msra.mxu0 0
      %7200 = vmatprep.subr.bf16.mxu0 0
      %7201 = vmatpush1.bf16.msra.mxu0 0
      %7202 = vmatprep.subr.bf16.mxu0 0
      %7203 = vmatpush1.bf16.msra.mxu0 0
      %7204 = vmatprep.subr.bf16.mxu0 0
      %7205 = vmatpush1.bf16.msra.mxu0 0
      %7206 = vmatprep.subr.bf16.mxu0 0
      %7207 = vmatpush1.bf16.msra.mxu0 0
      %7208 = vmatprep.subr.bf16.mxu0 0
      %7209 = vmatpush1.bf16.msra.mxu0 0
      %7210 = vmatprep.subr.bf16.mxu0 0
      %7211 = vmatpush1.bf16.msra.mxu0 0
      %7212 = vmatprep.subr.bf16.mxu0 0
      %7213 = vmatpush1.bf16.msra.mxu0 0
      %7214 = vmatprep.subr.bf16.mxu0 0
      %7215 = vmatpush1.bf16.msra.mxu0 0
      %7216 = vmatprep.subr.bf16.mxu0 0
      %7217 = vmatpush1.bf16.msra.mxu0 0
      %7218 = vmatprep.subr.bf16.mxu0 0
      %7219 = vmatpush1.bf16.msra.mxu0 0
      %7220 = vmatprep.subr.bf16.mxu0 0
      %7221 = vmatpush1.bf16.msra.mxu0 0
      %7222 = vmatprep.subr.bf16.mxu0 0
      %7223 = vmatpush1.bf16.msra.mxu0 0
      %7224 = vmatprep.mubr.bf16.mxu0 0
      %7225 = vmatmul.mubr.bf16.gmra.mrb[0].mxu0 %v7187
      %v7226 = vpop.f32.mrb[0].mxu0
      %v7227 = vadd.f32 0.0, %v7226
      %v7228 = vpop.f32.mrb[0].mxu0
      %v7229 = vpop.f32.mrb[0].mxu0
      %v7230 = vpop.f32.mrb[0].mxu0
      %7231 = vdwg.mxu0
      %v7233 = vsel %vm1576, %v7132, 0
      %v7236 = vsel %vm1583, %v7133, 0
      %7238 = vmatprep.subr.bf16.mxu0 0
      %7239 = vmatpush1.bf16.msra.mxu0 %v7236
      %7240 = vmatprep.subr.bf16.mxu0 0
      %7241 = vmatpush1.bf16.msra.mxu0 0
      %7242 = vmatprep.subr.bf16.mxu0 0
      %7243 = vmatpush1.bf16.msra.mxu0 0
      %7244 = vmatprep.subr.bf16.mxu0 0
      %7245 = vmatpush1.bf16.msra.mxu0 0
      %7246 = vmatprep.subr.bf16.mxu0 0
      %7247 = vmatpush1.bf16.msra.mxu0 0
      %7248 = vmatprep.subr.bf16.mxu0 0
      %7249 = vmatpush1.bf16.msra.mxu0 0
      %7250 = vmatprep.subr.bf16.mxu0 0
      %7251 = vmatpush1.bf16.msra.mxu0 0
      %7252 = vmatprep.subr.bf16.mxu0 0
      %7253 = vmatpush1.bf16.msra.mxu0 0
      %7254 = vmatprep.subr.bf16.mxu0 0
      %7255 = vmatpush1.bf16.msra.mxu0 0
      %7256 = vmatprep.subr.bf16.mxu0 0
      %7257 = vmatpush1.bf16.msra.mxu0 0
      %7258 = vmatprep.subr.bf16.mxu0 0
      %7259 = vmatpush1.bf16.msra.mxu0 0
      %7260 = vmatprep.subr.bf16.mxu0 0
      %7261 = vmatpush1.bf16.msra.mxu0 0
      %7262 = vmatprep.subr.bf16.mxu0 0
      %7263 = vmatpush1.bf16.msra.mxu0 0
      %7264 = vmatprep.subr.bf16.mxu0 0
      %7265 = vmatpush1.bf16.msra.mxu0 0
      %7266 = vmatprep.subr.bf16.mxu0 0
      %7267 = vmatpush1.bf16.msra.mxu0 0
      %7268 = vmatprep.subr.bf16.mxu0 0
      %7269 = vmatpush1.bf16.msra.mxu0 0
      %7270 = vmatprep.mubr.bf16.mxu0 0
      %7271 = vmatmul.mubr.bf16.gmra.mrb[0].mxu0 %v7233
      %v7272 = vpop.f32.mrb[0].mxu0
      %v7273 = vadd.f32 %v7227, %v7272
      %v7274 = vpop.f32.mrb[0].mxu0
      %v7275 = vpop.f32.mrb[0].mxu0
      %v7276 = vpop.f32.mrb[0].mxu0
      %7277 = vdwg.mxu0
      %s7278 = scalar_lea.vmem %s55, 16
      %v7279 = vld [vmem:[%s7278] sm:$0xf]
      %v7280 = vld [vmem:[%s7278 + $0x4] sm:$0xf]
      %v7283 = vunpack.c.l.b16 %v7279
      %v7284 = vunpack.c.l.b16 %v7280
      %v7285 = vpack.c.b16 %v7284, %v7283
      %7287 = vmatprep.subr.bf16.mxu0 0
      %7288 = vmatpush1.bf16.msra.mxu0 %v7285
      %7289 = vmatprep.subr.bf16.mxu0 0
      %7290 = vmatpush1.bf16.msra.mxu0 0
      %7291 = vmatprep.subr.bf16.mxu0 0
      %7292 = vmatpush1.bf16.msra.mxu0 0
      %7293 = vmatprep.subr.bf16.mxu0 0
      %7294 = vmatpush1.bf16.msra.mxu0 0
      %7295 = vmatprep.subr.bf16.mxu0 0
      %7296 = vmatpush1.bf16.msra.mxu0 0
      %7297 = vmatprep.subr.bf16.mxu0 0
      %7298 = vmatpush1.bf16.msra.mxu0 0
      %7299 = vmatprep.subr.bf16.mxu0 0
      %7300 = vmatpush1.bf16.msra.mxu0 0
      %7301 = vmatprep.subr.bf16.mxu0 0
      %7302 = vmatpush1.bf16.msra.mxu0 0
      %7303 = vmatprep.subr.bf16.mxu0 0
      %7304 = vmatpush1.bf16.msra.mxu0 0
      %7305 = vmatprep.subr.bf16.mxu0 0
      %7306 = vmatpush1.bf16.msra.mxu0 0
      %7307 = vmatprep.subr.bf16.mxu0 0
      %7308 = vmatpush1.bf16.msra.mxu0 0
      %7309 = vmatprep.subr.bf16.mxu0 0
      %7310 = vmatpush1.bf16.msra.mxu0 0
      %7311 = vmatprep.subr.bf16.mxu0 0
      %7312 = vmatpush1.bf16.msra.mxu0 0
      %7313 = vmatprep.subr.bf16.mxu0 0
      %7314 = vmatpush1.bf16.msra.mxu0 0
      %7315 = vmatprep.subr.bf16.mxu0 0
      %7316 = vmatpush1.bf16.msra.mxu0 0
      %7317 = vmatprep.subr.bf16.mxu0 0
      %7318 = vmatpush1.bf16.msra.mxu0 0
      %7319 = vmatprep.mubr.bf16.mxu0 0
      %7320 = vmatmul.mubr.bf16.gmra.mrb[0].mxu0 %v7090
      %v7321 = vpop.f32.mrb[0].mxu0
      %v7322 = vadd.f32 0.0, %v7321
      %v7323 = vpop.f32.mrb[0].mxu0
      %v7324 = vpop.f32.mrb[0].mxu0
      %v7325 = vpop.f32.mrb[0].mxu0
      %7326 = vdwg.mxu0
      %s7327 = scalar_lea.vmem %s53, 4
      %v7328 = vld [vmem:[%s7327] sm:$0x3]
      %v7329 = vpack.c.bf16 %v7322, %v7322
      %v7331 = vsel %vm1576, %v7328, 0
      %v7334 = vsel %vm1583, %v7329, 0
      %7336 = vmatprep.subr.bf16.mxu0 0
      %7337 = vmatpush1.bf16.msra.mxu0 %v7334
      %7338 = vmatprep.subr.bf16.mxu0 0
      %7339 = vmatpush1.bf16.msra.mxu0 0
      %7340 = vmatprep.subr.bf16.mxu0 0
      %7341 = vmatpush1.bf16.msra.mxu0 0
      %7342 = vmatprep.subr.bf16.mxu0 0
      %7343 = vmatpush1.bf16.msra.mxu0 0
      %7344 = vmatprep.subr.bf16.mxu0 0
      %7345 = vmatpush1.bf16.msra.mxu0 0
      %7346 = vmatprep.subr.bf16.mxu0 0
      %7347 = vmatpush1.bf16.msra.mxu0 0
      %7348 = vmatprep.subr.bf16.mxu0 0
      %7349 = vmatpush1.bf16.msra.mxu0 0
      %7350 = vmatprep.subr.bf16.mxu0 0
      %7351 = vmatpush1.bf16.msra.mxu0 0
      %7352 = vmatprep.subr.bf16.mxu0 0
      %7353 = vmatpush1.bf16.msra.mxu0 0
      %7354 = vmatprep.subr.bf16.mxu0 0
      %7355 = vmatpush1.bf16.msra.mxu0 0
      %7356 = vmatprep.subr.bf16.mxu0 0
      %7357 = vmatpush1.bf16.msra.mxu0 0
      %7358 = vmatprep.subr.bf16.mxu0 0
      %7359 = vmatpush1.bf16.msra.mxu0 0
      %7360 = vmatprep.subr.bf16.mxu0 0
      %7361 = vmatpush1.bf16.msra.mxu0 0
      %7362 = vmatprep.subr.bf16.mxu0 0
      %7363 = vmatpush1.bf16.msra.mxu0 0
      %7364 = vmatprep.subr.bf16.mxu0 0
      %7365 = vmatpush1.bf16.msra.mxu0 0
      %7366 = vmatprep.subr.bf16.mxu0 0
      %7367 = vmatpush1.bf16.msra.mxu0 0
      %7368 = vmatprep.mubr.bf16.mxu0 0
      %7369 = vmatmul.mubr.bf16.gmra.mrb[0].mxu0 %v7331
      %v7370 = vpop.f32.mrb[0].mxu0
      %v7371 = vadd.f32 0.0, %v7370
      %v7372 = vpop.f32.mrb[0].mxu0
      %v7373 = vpop.f32.mrb[0].mxu0
      %v7374 = vpop.f32.mrb[0].mxu0
      %7375 = vdwg.mxu0
      %v7376 = vadd.f32 %v7273, %v7371
      %s7377 = scalar_lea.vmem %s55, 24
      %v7378 = vld [vmem:[%s7377] sm:$0xf]
      %v7379 = vld [vmem:[%s7377 + $0x4] sm:$0xf]
      %v7382 = vunpack.c.l.b16 %v7378
      %v7383 = vunpack.c.l.b16 %v7379
      %v7384 = vpack.c.b16 %v7383, %v7382
      %7386 = vmatprep.subr.bf16.mxu0 0
      %7387 = vmatpush1.bf16.msra.mxu0 %v7384
      %7388 = vmatprep.subr.bf16.mxu0 0
      %7389 = vmatpush1.bf16.msra.mxu0 0
      %7390 = vmatprep.subr.bf16.mxu0 0
      %7391 = vmatpush1.bf16.msra.mxu0 0
      %7392 = vmatprep.subr.bf16.mxu0 0
      %7393 = vmatpush1.bf16.msra.mxu0 0
      %7394 = vmatprep.subr.bf16.mxu0 0
      %7395 = vmatpush1.bf16.msra.mxu0 0
      %7396 = vmatprep.subr.bf16.mxu0 0
      %7397 = vmatpush1.bf16.msra.mxu0 0
      %7398 = vmatprep.subr.bf16.mxu0 0
      %7399 = vmatpush1.bf16.msra.mxu0 0
      %7400 = vmatprep.subr.bf16.mxu0 0
      %7401 = vmatpush1.bf16.msra.mxu0 0
      %7402 = vmatprep.subr.bf16.mxu0 0
      %7403 = vmatpush1.bf16.msra.mxu0 0
      %7404 = vmatprep.subr.bf16.mxu0 0
      %7405 = vmatpush1.bf16.msra.mxu0 0
      %7406 = vmatprep.subr.bf16.mxu0 0
      %7407 = vmatpush1.bf16.msra.mxu0 0
      %7408 = vmatprep.subr.bf16.mxu0 0
      %7409 = vmatpush1.bf16.msra.mxu0 0
      %7410 = vmatprep.subr.bf16.mxu0 0
      %7411 = vmatpush1.bf16.msra.mxu0 0
      %7412 = vmatprep.subr.bf16.mxu0 0
      %7413 = vmatpush1.bf16.msra.mxu0 0
      %7414 = vmatprep.subr.bf16.mxu0 0
      %7415 = vmatpush1.bf16.msra.mxu0 0
      %7416 = vmatprep.subr.bf16.mxu0 0
      %7417 = vmatpush1.bf16.msra.mxu0 0
      %7418 = vmatprep.mubr.bf16.mxu0 0
      %7419 = vmatmul.mubr.bf16.gmra.mrb[0].mxu0 %v7090
      %v7420 = vpop.f32.mrb[0].mxu0
      %v7421 = vadd.f32 0.0, %v7420
      %v7422 = vpop.f32.mrb[0].mxu0
      %v7423 = vpop.f32.mrb[0].mxu0
      %v7424 = vpop.f32.mrb[0].mxu0
      %7425 = vdwg.mxu0
      %s7426 = scalar_lea.vmem %s53, 6
      %v7427 = vld [vmem:[%s7426] sm:$0x3]
      %v7428 = vpack.c.bf16 %v7421, %v7421
      %v7430 = vsel %vm1576, %v7427, 0
      %v7433 = vsel %vm1583, %v7428, 0
      %7435 = vmatprep.subr.bf16.mxu0 0
      %7436 = vmatpush1.bf16.msra.mxu0 %v7433
      %7437 = vmatprep.subr.bf16.mxu0 0
      %7438 = vmatpush1.bf16.msra.mxu0 0
      %7439 = vmatprep.subr.bf16.mxu0 0
      %7440 = vmatpush1.bf16.msra.mxu0 0
      %7441 = vmatprep.subr.bf16.mxu0 0
      %7442 = vmatpush1.bf16.msra.mxu0 0
      %7443 = vmatprep.subr.bf16.mxu0 0
      %7444 = vmatpush1.bf16.msra.mxu0 0
      %7445 = vmatprep.subr.bf16.mxu0 0
      %7446 = vmatpush1.bf16.msra.mxu0 0
      %7447 = vmatprep.subr.bf16.mxu0 0
      %7448 = vmatpush1.bf16.msra.mxu0 0
      %7449 = vmatprep.subr.bf16.mxu0 0
      %7450 = vmatpush1.bf16.msra.mxu0 0
      %7451 = vmatprep.subr.bf16.mxu0 0
      %7452 = vmatpush1.bf16.msra.mxu0 0
      %7453 = vmatprep.subr.bf16.mxu0 0
      %7454 = vmatpush1.bf16.msra.mxu0 0
      %7455 = vmatprep.subr.bf16.mxu0 0
      %7456 = vmatpush1.bf16.msra.mxu0 0
      %7457 = vmatprep.subr.bf16.mxu0 0
      %7458 = vmatpush1.bf16.msra.mxu0 0
      %7459 = vmatprep.subr.bf16.mxu0 0
      %7460 = vmatpush1.bf16.msra.mxu0 0
      %7461 = vmatprep.subr.bf16.mxu0 0
      %7462 = vmatpush1.bf16.msra.mxu0 0
      %7463 = vmatprep.subr.bf16.mxu0 0
      %7464 = vmatpush1.bf16.msra.mxu0 0
      %7465 = vmatprep.subr.bf16.mxu0 0
      %7466 = vmatpush1.bf16.msra.mxu0 0
      %7467 = vmatprep.mubr.bf16.mxu0 0
      %7468 = vmatmul.mubr.bf16.gmra.mrb[0].mxu0 %v7430
      %v7469 = vpop.f32.mrb[0].mxu0
      %v7470 = vadd.f32 0.0, %v7469
      %v7471 = vpop.f32.mrb[0].mxu0
      %v7472 = vpop.f32.mrb[0].mxu0
      %v7473 = vpop.f32.mrb[0].mxu0
      %7474 = vdwg.mxu0
      %v7475 = vadd.f32 %v7376, %v7470
      %s7476 = scalar_lea.vmem %s55, 32
      %v7477 = vld [vmem:[%s7476] sm:$0xf]
      %v7478 = vld [vmem:[%s7476 + $0x4] sm:$0xf]
      %v7481 = vunpack.c.l.b16 %v7477
      %v7482 = vunpack.c.l.b16 %v7478
      %v7483 = vpack.c.b16 %v7482, %v7481
      %7485 = vmatprep.subr.bf16.mxu0 0
      %7486 = vmatpush1.bf16.msra.mxu0 %v7483
      %7487 = vmatprep.subr.bf16.mxu0 0
      %7488 = vmatpush1.bf16.msra.mxu0 0
      %7489 = vmatprep.subr.bf16.mxu0 0
      %7490 = vmatpush1.bf16.msra.mxu0 0
      %7491 = vmatprep.subr.bf16.mxu0 0
      %7492 = vmatpush1.bf16.msra.mxu0 0
      %7493 = vmatprep.subr.bf16.mxu0 0
      %7494 = vmatpush1.bf16.msra.mxu0 0
      %7495 = vmatprep.subr.bf16.mxu0 0
      %7496 = vmatpush1.bf16.msra.mxu0 0
      %7497 = vmatprep.subr.bf16.mxu0 0
      %7498 = vmatpush1.bf16.msra.mxu0 0
      %7499 = vmatprep.subr.bf16.mxu0 0
      %7500 = vmatpush1.bf16.msra.mxu0 0
      %7501 = vmatprep.subr.bf16.mxu0 0
      %7502 = vmatpush1.bf16.msra.mxu0 0
      %7503 = vmatprep.subr.bf16.mxu0 0
      %7504 = vmatpush1.bf16.msra.mxu0 0
      %7505 = vmatprep.subr.bf16.mxu0 0
      %7506 = vmatpush1.bf16.msra.mxu0 0
      %7507 = vmatprep.subr.bf16.mxu0 0
      %7508 = vmatpush1.bf16.msra.mxu0 0
      %7509 = vmatprep.subr.bf16.mxu0 0
      %7510 = vmatpush1.bf16.msra.mxu0 0
      %7511 = vmatprep.subr.bf16.mxu0 0
      %7512 = vmatpush1.bf16.msra.mxu0 0
      %7513 = vmatprep.subr.bf16.mxu0 0
      %7514 = vmatpush1.bf16.msra.mxu0 0
      %7515 = vmatprep.subr.bf16.mxu0 0
      %7516 = vmatpush1.bf16.msra.mxu0 0
      %7517 = vmatprep.mubr.bf16.mxu0 0
      %7518 = vmatmul.mubr.bf16.gmra.mrb[0].mxu0 %v7090
      %v7519 = vpop.f32.mrb[0].mxu0
      %v7520 = vadd.f32 0.0, %v7519
      %v7521 = vpop.f32.mrb[0].mxu0
      %v7522 = vpop.f32.mrb[0].mxu0
      %v7523 = vpop.f32.mrb[0].mxu0
      %7524 = vdwg.mxu0
      %s7525 = scalar_lea.vmem %s53, 8
      %v7526 = vld [vmem:[%s7525] sm:$0x3]
      %v7527 = vpack.c.bf16 %v7520, %v7520
      %v7529 = vsel %vm1576, %v7526, 0
      %v7532 = vsel %vm1583, %v7527, 0
      %7534 = vmatprep.subr.bf16.mxu0 0
      %7535 = vmatpush1.bf16.msra.mxu0 %v7532
      %7536 = vmatprep.subr.bf16.mxu0 0
      %7537 = vmatpush1.bf16.msra.mxu0 0
      %7538 = vmatprep.subr.bf16.mxu0 0
      %7539 = vmatpush1.bf16.msra.mxu0 0
      %7540 = vmatprep.subr.bf16.mxu0 0
      %7541 = vmatpush1.bf16.msra.mxu0 0
      %7542 = vmatprep.subr.bf16.mxu0 0
      %7543 = vmatpush1.bf16.msra.mxu0 0
      %7544 = vmatprep.subr.bf16.mxu0 0
      %7545 = vmatpush1.bf16.msra.mxu0 0
      %7546 = vmatprep.subr.bf16.mxu0 0
      %7547 = vmatpush1.bf16.msra.mxu0 0
      %7548 = vmatprep.subr.bf16.mxu0 0
      %7549 = vmatpush1.bf16.msra.mxu0 0
      %7550 = vmatprep.subr.bf16.mxu0 0
      %7551 = vmatpush1.bf16.msra.mxu0 0
      %7552 = vmatprep.subr.bf16.mxu0 0
      %7553 = vmatpush1.bf16.msra.mxu0 0
      %7554 = vmatprep.subr.bf16.mxu0 0
      %7555 = vmatpush1.bf16.msra.mxu0 0
      %7556 = vmatprep.subr.bf16.mxu0 0
      %7557 = vmatpush1.bf16.msra.mxu0 0
      %7558 = vmatprep.subr.bf16.mxu0 0
      %7559 = vmatpush1.bf16.msra.mxu0 0
      %7560 = vmatprep.subr.bf16.mxu0 0
      %7561 = vmatpush1.bf16.msra.mxu0 0
      %7562 = vmatprep.subr.bf16.mxu0 0
      %7563 = vmatpush1.bf16.msra.mxu0 0
      %7564 = vmatprep.subr.bf16.mxu0 0
      %7565 = vmatpush1.bf16.msra.mxu0 0
      %7566 = vmatprep.mubr.bf16.mxu0 0
      %7567 = vmatmul.mubr.bf16.gmra.mrb[0].mxu0 %v7529
      %v7568 = vpop.f32.mrb[0].mxu0
      %v7569 = vadd.f32 0.0, %v7568
      %v7570 = vpop.f32.mrb[0].mxu0
      %v7571 = vpop.f32.mrb[0].mxu0
      %v7572 = vpop.f32.mrb[0].mxu0
      %7573 = vdwg.mxu0
      %v7574 = vadd.f32 %v7475, %v7569
      %s7575 = scalar_lea.vmem %s55, 40
      %v7576 = vld [vmem:[%s7575] sm:$0xf]
      %v7577 = vld [vmem:[%s7575 + $0x4] sm:$0xf]
      %v7580 = vunpack.c.l.b16 %v7576
      %v7581 = vunpack.c.l.b16 %v7577
      %v7582 = vpack.c.b16 %v7581, %v7580
      %7584 = vmatprep.subr.bf16.mxu0 0
      %7585 = vmatpush1.bf16.msra.mxu0 %v7582
      %7586 = vmatprep.subr.bf16.mxu0 0
      %7587 = vmatpush1.bf16.msra.mxu0 0
      %7588 = vmatprep.subr.bf16.mxu0 0
      %7589 = vmatpush1.bf16.msra.mxu0 0
      %7590 = vmatprep.subr.bf16.mxu0 0
      %7591 = vmatpush1.bf16.msra.mxu0 0
      %7592 = vmatprep.subr.bf16.mxu0 0
      %7593 = vmatpush1.bf16.msra.mxu0 0
      %7594 = vmatprep.subr.bf16.mxu0 0
      %7595 = vmatpush1.bf16.msra.mxu0 0
      %7596 = vmatprep.subr.bf16.mxu0 0
      %7597 = vmatpush1.bf16.msra.mxu0 0
      %7598 = vmatprep.subr.bf16.mxu0 0
      %7599 = vmatpush1.bf16.msra.mxu0 0
      %7600 = vmatprep.subr.bf16.mxu0 0
      %7601 = vmatpush1.bf16.msra.mxu0 0
      %7602 = vmatprep.subr.bf16.mxu0 0
      %7603 = vmatpush1.bf16.msra.mxu0 0
      %7604 = vmatprep.subr.bf16.mxu0 0
      %7605 = vmatpush1.bf16.msra.mxu0 0
      %7606 = vmatprep.subr.bf16.mxu0 0
      %7607 = vmatpush1.bf16.msra.mxu0 0
      %7608 = vmatprep.subr.bf16.mxu0 0
      %7609 = vmatpush1.bf16.msra.mxu0 0
      %7610 = vmatprep.subr.bf16.mxu0 0
      %7611 = vmatpush1.bf16.msra.mxu0 0
      %7612 = vmatprep.subr.bf16.mxu0 0
      %7613 = vmatpush1.bf16.msra.mxu0 0
      %7614 = vmatprep.subr.bf16.mxu0 0
      %7615 = vmatpush1.bf16.msra.mxu0 0
      %7616 = vmatprep.mubr.bf16.mxu0 0
      %7617 = vmatmul.mubr.bf16.gmra.mrb[0].mxu0 %v7090
      %v7618 = vpop.f32.mrb[0].mxu0
      %v7619 = vadd.f32 0.0, %v7618
      %v7620 = vpop.f32.mrb[0].mxu0
      %v7621 = vpop.f32.mrb[0].mxu0
      %v7622 = vpop.f32.mrb[0].mxu0
      %7623 = vdwg.mxu0
      %s7624 = scalar_lea.vmem %s53, 10
      %v7625 = vld [vmem:[%s7624] sm:$0x3]
      %v7626 = vpack.c.bf16 %v7619, %v7619
      %v7628 = vsel %vm1576, %v7625, 0
      %v7631 = vsel %vm1583, %v7626, 0
      %7633 = vmatprep.subr.bf16.mxu0 0
      %7634 = vmatpush1.bf16.msra.mxu0 %v7631
      %7635 = vmatprep.subr.bf16.mxu0 0
      %7636 = vmatpush1.bf16.msra.mxu0 0
      %7637 = vmatprep.subr.bf16.mxu0 0
      %7638 = vmatpush1.bf16.msra.mxu0 0
      %7639 = vmatprep.subr.bf16.mxu0 0
      %7640 = vmatpush1.bf16.msra.mxu0 0
      %7641 = vmatprep.subr.bf16.mxu0 0
      %7642 = vmatpush1.bf16.msra.mxu0 0
      %7643 = vmatprep.subr.bf16.mxu0 0
      %7644 = vmatpush1.bf16.msra.mxu0 0
      %7645 = vmatprep.subr.bf16.mxu0 0
      %7646 = vmatpush1.bf16.msra.mxu0 0
      %7647 = vmatprep.subr.bf16.mxu0 0
      %7648 = vmatpush1.bf16.msra.mxu0 0
      %7649 = vmatprep.subr.bf16.mxu0 0
      %7650 = vmatpush1.bf16.msra.mxu0 0
      %7651 = vmatprep.subr.bf16.mxu0 0
      %7652 = vmatpush1.bf16.msra.mxu0 0
      %7653 = vmatprep.subr.bf16.mxu0 0
      %7654 = vmatpush1.bf16.msra.mxu0 0
      %7655 = vmatprep.subr.bf16.mxu0 0
      %7656 = vmatpush1.bf16.msra.mxu0 0
      %7657 = vmatprep.subr.bf16.mxu0 0
      %7658 = vmatpush1.bf16.msra.mxu0 0
      %7659 = vmatprep.subr.bf16.mxu0 0
      %7660 = vmatpush1.bf16.msra.mxu0 0
      %7661 = vmatprep.subr.bf16.mxu0 0
      %7662 = vmatpush1.bf16.msra.mxu0 0
      %7663 = vmatprep.subr.bf16.mxu0 0
      %7664 = vmatpush1.bf16.msra.mxu0 0
      %7665 = vmatprep.mubr.bf16.mxu0 0
      %7666 = vmatmul.mubr.bf16.gmra.mrb[0].mxu0 %v7628
      %v7667 = vpop.f32.mrb[0].mxu0
      %v7668 = vadd.f32 0.0, %v7667
      %v7669 = vpop.f32.mrb[0].mxu0
      %v7670 = vpop.f32.mrb[0].mxu0
      %v7671 = vpop.f32.mrb[0].mxu0
      %7672 = vdwg.mxu0
      %v7673 = vadd.f32 %v7574, %v7668
      %s7674 = scalar_lea.vmem %s55, 48
      %v7675 = vld [vmem:[%s7674] sm:$0xf]
      %v7676 = vld [vmem:[%s7674 + $0x4] sm:$0xf]
      %v7679 = vunpack.c.l.b16 %v7675
      %v7680 = vunpack.c.l.b16 %v7676
      %v7681 = vpack.c.b16 %v7680, %v7679
      %7683 = vmatprep.subr.bf16.mxu0 0
      %7684 = vmatpush1.bf16.msra.mxu0 %v7681
      %7685 = vmatprep.subr.bf16.mxu0 0
      %7686 = vmatpush1.bf16.msra.mxu0 0
      %7687 = vmatprep.subr.bf16.mxu0 0
      %7688 = vmatpush1.bf16.msra.mxu0 0
      %7689 = vmatprep.subr.bf16.mxu0 0
      %7690 = vmatpush1.bf16.msra.mxu0 0
      %7691 = vmatprep.subr.bf16.mxu0 0
      %7692 = vmatpush1.bf16.msra.mxu0 0
      %7693 = vmatprep.subr.bf16.mxu0 0
      %7694 = vmatpush1.bf16.msra.mxu0 0
      %7695 = vmatprep.subr.bf16.mxu0 0
      %7696 = vmatpush1.bf16.msra.mxu0 0
      %7697 = vmatprep.subr.bf16.mxu0 0
      %7698 = vmatpush1.bf16.msra.mxu0 0
      %7699 = vmatprep.subr.bf16.mxu0 0
      %7700 = vmatpush1.bf16.msra.mxu0 0
      %7701 = vmatprep.subr.bf16.mxu0 0
      %7702 = vmatpush1.bf16.msra.mxu0 0
      %7703 = vmatprep.subr.bf16.mxu0 0
      %7704 = vmatpush1.bf16.msra.mxu0 0
      %7705 = vmatprep.subr.bf16.mxu0 0
      %7706 = vmatpush1.bf16.msra.mxu0 0
      %7707 = vmatprep.subr.bf16.mxu0 0
      %7708 = vmatpush1.bf16.msra.mxu0 0
      %7709 = vmatprep.subr.bf16.mxu0 0
      %7710 = vmatpush1.bf16.msra.mxu0 0
      %7711 = vmatprep.subr.bf16.mxu0 0
      %7712 = vmatpush1.bf16.msra.mxu0 0
      %7713 = vmatprep.subr.bf16.mxu0 0
      %7714 = vmatpush1.bf16.msra.mxu0 0
      %7715 = vmatprep.mubr.bf16.mxu0 0
      %7716 = vmatmul.mubr.bf16.gmra.mrb[0].mxu0 %v7090
      %v7717 = vpop.f32.mrb[0].mxu0
      %v7718 = vadd.f32 0.0, %v7717
      %v7719 = vpop.f32.mrb[0].mxu0
      %v7720 = vpop.f32.mrb[0].mxu0
      %v7721 = vpop.f32.mrb[0].mxu0
      %7722 = vdwg.mxu0
      %s7723 = scalar_lea.vmem %s53, 12
      %v7724 = vld [vmem:[%s7723] sm:$0x3]
      %v7725 = vpack.c.bf16 %v7718, %v7718
      %v7727 = vsel %vm1576, %v7724, 0
      %v7730 = vsel %vm1583, %v7725, 0
      %7732 = vmatprep.subr.bf16.mxu0 0
      %7733 = vmatpush1.bf16.msra.mxu0 %v7730
      %7734 = vmatprep.subr.bf16.mxu0 0
      %7735 = vmatpush1.bf16.msra.mxu0 0
      %7736 = vmatprep.subr.bf16.mxu0 0
      %7737 = vmatpush1.bf16.msra.mxu0 0
      %7738 = vmatprep.subr.bf16.mxu0 0
      %7739 = vmatpush1.bf16.msra.mxu0 0
      %7740 = vmatprep.subr.bf16.mxu0 0
      %7741 = vmatpush1.bf16.msra.mxu0 0
      %7742 = vmatprep.subr.bf16.mxu0 0
      %7743 = vmatpush1.bf16.msra.mxu0 0
      %7744 = vmatprep.subr.bf16.mxu0 0
      %7745 = vmatpush1.bf16.msra.mxu0 0
      %7746 = vmatprep.subr.bf16.mxu0 0
      %7747 = vmatpush1.bf16.msra.mxu0 0
      %7748 = vmatprep.subr.bf16.mxu0 0
      %7749 = vmatpush1.bf16.msra.mxu0 0
      %7750 = vmatprep.subr.bf16.mxu0 0
      %7751 = vmatpush1.bf16.msra.mxu0 0
      %7752 = vmatprep.subr.bf16.mxu0 0
      %7753 = vmatpush1.bf16.msra.mxu0 0
      %7754 = vmatprep.subr.bf16.mxu0 0
      %7755 = vmatpush1.bf16.msra.mxu0 0
      %7756 = vmatprep.subr.bf16.mxu0 0
      %7757 = vmatpush1.bf16.msra.mxu0 0
      %7758 = vmatprep.subr.bf16.mxu0 0
      %7759 = vmatpush1.bf16.msra.mxu0 0
      %7760 = vmatprep.subr.bf16.mxu0 0
      %7761 = vmatpush1.bf16.msra.mxu0 0
      %7762 = vmatprep.subr.bf16.mxu0 0
      %7763 = vmatpush1.bf16.msra.mxu0 0
      %7764 = vmatprep.mubr.bf16.mxu0 0
      %7765 = vmatmul.mubr.bf16.gmra.mrb[0].mxu0 %v7727
      %v7766 = vpop.f32.mrb[0].mxu0
      %v7767 = vadd.f32 0.0, %v7766
      %v7768 = vpop.f32.mrb[0].mxu0
      %v7769 = vpop.f32.mrb[0].mxu0
      %v7770 = vpop.f32.mrb[0].mxu0
      %7771 = vdwg.mxu0
      %v7772 = vadd.f32 %v7673, %v7767
      %s7773 = scalar_lea.vmem %s55, 56
      %v7774 = vld [vmem:[%s7773] sm:$0xf]
      %v7775 = vld [vmem:[%s7773 + $0x4] sm:$0xf]
      %v7778 = vunpack.c.l.b16 %v7774
      %v7779 = vunpack.c.l.b16 %v7775
      %v7780 = vpack.c.b16 %v7779, %v7778
      %7782 = vmatprep.subr.bf16.mxu0 0
      %7783 = vmatpush1.bf16.msra.mxu0 %v7780
      %7784 = vmatprep.subr.bf16.mxu0 0
      %7785 = vmatpush1.bf16.msra.mxu0 0
      %7786 = vmatprep.subr.bf16.mxu0 0
      %7787 = vmatpush1.bf16.msra.mxu0 0
      %7788 = vmatprep.subr.bf16.mxu0 0
      %7789 = vmatpush1.bf16.msra.mxu0 0
      %7790 = vmatprep.subr.bf16.mxu0 0
      %7791 = vmatpush1.bf16.msra.mxu0 0
      %7792 = vmatprep.subr.bf16.mxu0 0
      %7793 = vmatpush1.bf16.msra.mxu0 0
      %7794 = vmatprep.subr.bf16.mxu0 0
      %7795 = vmatpush1.bf16.msra.mxu0 0
      %7796 = vmatprep.subr.bf16.mxu0 0
      %7797 = vmatpush1.bf16.msra.mxu0 0
      %7798 = vmatprep.subr.bf16.mxu0 0
      %7799 = vmatpush1.bf16.msra.mxu0 0
      %7800 = vmatprep.subr.bf16.mxu0 0
      %7801 = vmatpush1.bf16.msra.mxu0 0
      %7802 = vmatprep.subr.bf16.mxu0 0
      %7803 = vmatpush1.bf16.msra.mxu0 0
      %7804 = vmatprep.subr.bf16.mxu0 0
      %7805 = vmatpush1.bf16.msra.mxu0 0
      %7806 = vmatprep.subr.bf16.mxu0 0
      %7807 = vmatpush1.bf16.msra.mxu0 0
      %7808 = vmatprep.subr.bf16.mxu0 0
      %7809 = vmatpush1.bf16.msra.mxu0 0
      %7810 = vmatprep.subr.bf16.mxu0 0
      %7811 = vmatpush1.bf16.msra.mxu0 0
      %7812 = vmatprep.subr.bf16.mxu0 0
      %7813 = vmatpush1.bf16.msra.mxu0 0
      %7814 = vmatprep.mubr.bf16.mxu0 0
      %7815 = vmatmul.mubr.bf16.gmra.mrb[0].mxu0 %v7090
      %v7816 = vpop.f32.mrb[0].mxu0
      %v7817 = vadd.f32 0.0, %v7816
      %v7818 = vpop.f32.mrb[0].mxu0
      %v7819 = vpop.f32.mrb[0].mxu0
      %v7820 = vpop.f32.mrb[0].mxu0
      %7821 = vdwg.mxu0
      %s7822 = scalar_lea.vmem %s53, 14
      %v7823 = vld [vmem:[%s7822] sm:$0x3]
      %v7824 = vpack.c.bf16 %v7817, %v7817
      %v7826 = vsel %vm1576, %v7823, 0
      %v7829 = vsel %vm1583, %v7824, 0
      %7831 = vmatprep.subr.bf16.mxu0 0
      %7832 = vmatpush1.bf16.msra.mxu0 %v7829
      %7833 = vmatprep.subr.bf16.mxu0 0
      %7834 = vmatpush1.bf16.msra.mxu0 0
      %7835 = vmatprep.subr.bf16.mxu0 0
      %7836 = vmatpush1.bf16.msra.mxu0 0
      %7837 = vmatprep.subr.bf16.mxu0 0
      %7838 = vmatpush1.bf16.msra.mxu0 0
      %7839 = vmatprep.subr.bf16.mxu0 0
      %7840 = vmatpush1.bf16.msra.mxu0 0
      %7841 = vmatprep.subr.bf16.mxu0 0
      %7842 = vmatpush1.bf16.msra.mxu0 0
      %7843 = vmatprep.subr.bf16.mxu0 0
      %7844 = vmatpush1.bf16.msra.mxu0 0
      %7845 = vmatprep.subr.bf16.mxu0 0
      %7846 = vmatpush1.bf16.msra.mxu0 0
      %7847 = vmatprep.subr.bf16.mxu0 0
      %7848 = vmatpush1.bf16.msra.mxu0 0
      %7849 = vmatprep.subr.bf16.mxu0 0
      %7850 = vmatpush1.bf16.msra.mxu0 0
      %7851 = vmatprep.subr.bf16.mxu0 0
      %7852 = vmatpush1.bf16.msra.mxu0 0
      %7853 = vmatprep.subr.bf16.mxu0 0
      %7854 = vmatpush1.bf16.msra.mxu0 0
      %7855 = vmatprep.subr.bf16.mxu0 0
      %7856 = vmatpush1.bf16.msra.mxu0 0
      %7857 = vmatprep.subr.bf16.mxu0 0
      %7858 = vmatpush1.bf16.msra.mxu0 0
      %7859 = vmatprep.subr.bf16.mxu0 0
      %7860 = vmatpush1.bf16.msra.mxu0 0
      %7861 = vmatprep.subr.bf16.mxu0 0
      %7862 = vmatpush1.bf16.msra.mxu0 0
      %7863 = vmatprep.mubr.bf16.mxu0 0
      %7864 = vmatmul.mubr.bf16.gmra.mrb[0].mxu0 %v7826
      %v7865 = vpop.f32.mrb[0].mxu0
      %v7866 = vadd.f32 0.0, %v7865
      %v7867 = vpop.f32.mrb[0].mxu0
      %v7868 = vpop.f32.mrb[0].mxu0
      %v7869 = vpop.f32.mrb[0].mxu0
      %7870 = vdwg.mxu0
      %v7871 = vadd.f32 %v7772, %v7866
      %s7872 = scalar_lea.vmem %s55, 64
      %v7873 = vld [vmem:[%s7872] sm:$0xf]
      %v7874 = vld [vmem:[%s7872 + $0x4] sm:$0xf]
      %v7877 = vunpack.c.l.b16 %v7873
      %v7878 = vunpack.c.l.b16 %v7874
      %v7879 = vpack.c.b16 %v7878, %v7877
      %7881 = vmatprep.subr.bf16.mxu0 0
      %7882 = vmatpush1.bf16.msra.mxu0 %v7879
      %7883 = vmatprep.subr.bf16.mxu0 0
      %7884 = vmatpush1.bf16.msra.mxu0 0
      %7885 = vmatprep.subr.bf16.mxu0 0
      %7886 = vmatpush1.bf16.msra.mxu0 0
      %7887 = vmatprep.subr.bf16.mxu0 0
      %7888 = vmatpush1.bf16.msra.mxu0 0
      %7889 = vmatprep.subr.bf16.mxu0 0
      %7890 = vmatpush1.bf16.msra.mxu0 0
      %7891 = vmatprep.subr.bf16.mxu0 0
      %7892 = vmatpush1.bf16.msra.mxu0 0
      %7893 = vmatprep.subr.bf16.mxu0 0
      %7894 = vmatpush1.bf16.msra.mxu0 0
      %7895 = vmatprep.subr.bf16.mxu0 0
      %7896 = vmatpush1.bf16.msra.mxu0 0
      %7897 = vmatprep.subr.bf16.mxu0 0
      %7898 = vmatpush1.bf16.msra.mxu0 0
      %7899 = vmatprep.subr.bf16.mxu0 0
      %7900 = vmatpush1.bf16.msra.mxu0 0
      %7901 = vmatprep.subr.bf16.mxu0 0
      %7902 = vmatpush1.bf16.msra.mxu0 0
      %7903 = vmatprep.subr.bf16.mxu0 0
      %7904 = vmatpush1.bf16.msra.mxu0 0
      %7905 = vmatprep.subr.bf16.mxu0 0
      %7906 = vmatpush1.bf16.msra.mxu0 0
      %7907 = vmatprep.subr.bf16.mxu0 0
      %7908 = vmatpush1.bf16.msra.mxu0 0
      %7909 = vmatprep.subr.bf16.mxu0 0
      %7910 = vmatpush1.bf16.msra.mxu0 0
      %7911 = vmatprep.subr.bf16.mxu0 0
      %7912 = vmatpush1.bf16.msra.mxu0 0
      %7913 = vmatprep.mubr.bf16.mxu0 0
      %7914 = vmatmul.mubr.bf16.gmra.mrb[0].mxu0 %v7090
      %v7915 = vpop.f32.mrb[0].mxu0
      %v7916 = vadd.f32 0.0, %v7915
      %v7917 = vpop.f32.mrb[0].mxu0
      %v7918 = vpop.f32.mrb[0].mxu0
      %v7919 = vpop.f32.mrb[0].mxu0
      %7920 = vdwg.mxu0
      %s7921 = scalar_lea.vmem %s53, 16
      %v7922 = vld [vmem:[%s7921] sm:$0x3]
      %v7923 = vpack.c.bf16 %v7916, %v7916
      %v7925 = vsel %vm1576, %v7922, 0
      %v7928 = vsel %vm1583, %v7923, 0
      %7930 = vmatprep.subr.bf16.mxu0 0
      %7931 = vmatpush1.bf16.msra.mxu0 %v7928
      %7932 = vmatprep.subr.bf16.mxu0 0
      %7933 = vmatpush1.bf16.msra.mxu0 0
      %7934 = vmatprep.subr.bf16.mxu0 0
      %7935 = vmatpush1.bf16.msra.mxu0 0
      %7936 = vmatprep.subr.bf16.mxu0 0
      %7937 = vmatpush1.bf16.msra.mxu0 0
      %7938 = vmatprep.subr.bf16.mxu0 0
      %7939 = vmatpush1.bf16.msra.mxu0 0
      %7940 = vmatprep.subr.bf16.mxu0 0
      %7941 = vmatpush1.bf16.msra.mxu0 0
      %7942 = vmatprep.subr.bf16.mxu0 0
      %7943 = vmatpush1.bf16.msra.mxu0 0
      %7944 = vmatprep.subr.bf16.mxu0 0
      %7945 = vmatpush1.bf16.msra.mxu0 0
      %7946 = vmatprep.subr.bf16.mxu0 0
      %7947 = vmatpush1.bf16.msra.mxu0 0
      %7948 = vmatprep.subr.bf16.mxu0 0
      %7949 = vmatpush1.bf16.msra.mxu0 0
      %7950 = vmatprep.subr.bf16.mxu0 0
      %7951 = vmatpush1.bf16.msra.mxu0 0
      %7952 = vmatprep.subr.bf16.mxu0 0
      %7953 = vmatpush1.bf16.msra.mxu0 0
      %7954 = vmatprep.subr.bf16.mxu0 0
      %7955 = vmatpush1.bf16.msra.mxu0 0
      %7956 = vmatprep.subr.bf16.mxu0 0
      %7957 = vmatpush1.bf16.msra.mxu0 0
      %7958 = vmatprep.subr.bf16.mxu0 0
      %7959 = vmatpush1.bf16.msra.mxu0 0
      %7960 = vmatprep.subr.bf16.mxu0 0
      %7961 = vmatpush1.bf16.msra.mxu0 0
      %7962 = vmatprep.mubr.bf16.mxu0 0
      %7963 = vmatmul.mubr.bf16.gmra.mrb[0].mxu0 %v7925
      %v7964 = vpop.f32.mrb[0].mxu0
      %v7965 = vadd.f32 0.0, %v7964
      %v7966 = vpop.f32.mrb[0].mxu0
      %v7967 = vpop.f32.mrb[0].mxu0
      %v7968 = vpop.f32.mrb[0].mxu0
      %7969 = vdwg.mxu0
      %v7970 = vadd.f32 %v7871, %v7965
      %v7971 = vld [vmem:[%s57] sm:$0xf]
      %7973 = vset.pattern.permute.xlu0 0
      %7974 = vperm.xlu0 %7973, %v7971
      %v7975 = vpop.permute.xlu0 %7974
      %v7977 = vadd.f32 %v7970, %v7975
      %v7978 = vmax.f32 %v7977, 0.0
      %v7979 = vld [vmem:[%s59] sm:$0xf]
      %v7980 = vld [vmem:[%s59 + $0x4] sm:$0xf]
      %v7981 = vld [vmem:[%s59 + $0x8] sm:$0xf]
      %v7982 = vld [vmem:[%s59 + $0xc] sm:$0xf]
      %v7983 = vpack.c.bf16 %v7978, %v7978
      %v7984 = vld [vmem:[%s61] sm:$0xff]
      %v7985 = vld [vmem:[%s61 + $0x8] sm:$0xff]
      %v7986 = vld [vmem:[%s61 + $0x10] sm:$0xff]
      %v7987 = vld [vmem:[%s61 + $0x18] sm:$0xff]
      %7989 = vset.pattern.permute.xlu0 0
      %7990 = vperm.xlu0 %7989, %v7984
      %v7991 = vpop.permute.xlu0 %7990
      %7994 = vset.pattern.permute.xlu0 0
      %7995 = vperm.xlu0 %7994, %v7985
      %v7996 = vpop.permute.xlu0 %7995
      %7999 = vset.pattern.permute.xlu0 0
      %8000 = vperm.xlu0 %7999, %v7986
      %v8001 = vpop.permute.xlu0 %8000
      %8004 = vset.pattern.permute.xlu0 0
      %8005 = vperm.xlu0 %8004, %v7987
      %v8006 = vpop.permute.xlu0 %8005
      %v8012 = vunpack.c.l.b16 %v7979
      %v8013 = vunpack.c.l.b16 %v7980
      %v8014 = vunpack.c.l.b16 %v7981
      %v8015 = vunpack.c.l.b16 %v7982
      %v8016 = vpack.c.b16 %v8013, %v8012
      %v8017 = vpack.c.b16 %v8015, %v8014
      %v8019 = vsel %vm1576, %v8016, 0
      %v8022 = vsel %vm1576, %v8017, 0
      %v8025 = vsel %vm1583, %v7983, 0
      %8027 = vmatprep.subr.bf16.mxu0 0
      %8028 = vmatpush1.bf16.msra.mxu0 %v8025
      %8029 = vmatprep.subr.bf16.mxu0 0
      %8030 = vmatpush1.bf16.msra.mxu0 0
      %8031 = vmatprep.subr.bf16.mxu0 0
      %8032 = vmatpush1.bf16.msra.mxu0 0
      %8033 = vmatprep.subr.bf16.mxu0 0
      %8034 = vmatpush1.bf16.msra.mxu0 0
      %8035 = vmatprep.subr.bf16.mxu0 0
      %8036 = vmatpush1.bf16.msra.mxu0 0
      %8037 = vmatprep.subr.bf16.mxu0 0
      %8038 = vmatpush1.bf16.msra.mxu0 0
      %8039 = vmatprep.subr.bf16.mxu0 0
      %8040 = vmatpush1.bf16.msra.mxu0 0
      %8041 = vmatprep.subr.bf16.mxu0 0
      %8042 = vmatpush1.bf16.msra.mxu0 0
      %8043 = vmatprep.subr.bf16.mxu0 0
      %8044 = vmatpush1.bf16.msra.mxu0 0
      %8045 = vmatprep.subr.bf16.mxu0 0
      %8046 = vmatpush1.bf16.msra.mxu0 0
      %8047 = vmatprep.subr.bf16.mxu0 0
      %8048 = vmatpush1.bf16.msra.mxu0 0
      %8049 = vmatprep.subr.bf16.mxu0 0
      %8050 = vmatpush1.bf16.msra.mxu0 0
      %8051 = vmatprep.subr.bf16.mxu0 0
      %8052 = vmatpush1.bf16.msra.mxu0 0
      %8053 = vmatprep.subr.bf16.mxu0 0
      %8054 = vmatpush1.bf16.msra.mxu0 0
      %8055 = vmatprep.subr.bf16.mxu0 0
      %8056 = vmatpush1.bf16.msra.mxu0 0
      %8057 = vmatprep.subr.bf16.mxu0 0
      %8058 = vmatpush1.bf16.msra.mxu0 0
      %8059 = vmatprep.mubr.bf16.mxu0 0
      %8060 = vmatmul.mubr.bf16.gmra.mrb[0].mxu0 %v8019
      %v8061 = vpop.f32.mrb[0].mxu0
      %v8062 = vadd.f32 %v7991, %v8061
      %v8063 = vpop.f32.mrb[0].mxu0
      %v8064 = vpop.f32.mrb[0].mxu0
      %v8065 = vadd.f32 %v7996, %v8064
      %v8066 = vpop.f32.mrb[0].mxu0
      %8067 = vmatprep.mubr.bf16.mxu0 0
      %8068 = vmatmul.mubr.bf16.gmra.mrb[0].mxu0 %v8022
      %v8069 = vpop.f32.mrb[0].mxu0
      %v8070 = vadd.f32 %v8001, %v8069
      %v8071 = vpop.f32.mrb[0].mxu0
      %v8072 = vpop.f32.mrb[0].mxu0
      %v8073 = vadd.f32 %v8006, %v8072
      %v8074 = vpop.f32.mrb[0].mxu0
      %8075 = vdwg.mxu0
      %v8076 = vmax.f32 %v8062, 0.0
      %v8077 = vmax.f32 %v8065, 0.0
      %v8078 = vmax.f32 %v8070, 0.0
      %v8079 = vmax.f32 %v8073, 0.0
      %v8080 = vld [vmem:[%s63] sm:$0x3]
      %v8081 = vpack.c.bf16 %v8077, %v8076
      %v8082 = vpack.c.bf16 %v8079, %v8078
      %v8083 = vld [vmem:[%s65] sm:$0xf]
      %8085 = vset.pattern.permute.xlu0 0
      %8086 = vperm.xlu0 %8085, %v8083
      %v8087 = vpop.permute.xlu0 %8086
      %v8090 = vsel %vm3442, %v8080, 0
      %8092 = vmatprep.subr.bf16.mxu0 0
      %8093 = vmatpush1.bf16.msra.mxu0 %v8081
      %8094 = vmatprep.subr.bf16.mxu0 0
      %8095 = vmatpush1.bf16.msra.mxu0 %v8082
      %8096 = vmatprep.subr.bf16.mxu0 0
      %8097 = vmatpush1.bf16.msra.mxu0 0
      %8098 = vmatprep.subr.bf16.mxu0 0
      %8099 = vmatpush1.bf16.msra.mxu0 0
      %8100 = vmatprep.subr.bf16.mxu0 0
      %8101 = vmatpush1.bf16.msra.mxu0 0
      %8102 = vmatprep.subr.bf16.mxu0 0
      %8103 = vmatpush1.bf16.msra.mxu0 0
      %8104 = vmatprep.subr.bf16.mxu0 0
      %8105 = vmatpush1.bf16.msra.mxu0 0
      %8106 = vmatprep.subr.bf16.mxu0 0
      %8107 = vmatpush1.bf16.msra.mxu0 0
      %8108 = vmatprep.subr.bf16.mxu0 0
      %8109 = vmatpush1.bf16.msra.mxu0 0
      %8110 = vmatprep.subr.bf16.mxu0 0
      %8111 = vmatpush1.bf16.msra.mxu0 0
      %8112 = vmatprep.subr.bf16.mxu0 0
      %8113 = vmatpush1.bf16.msra.mxu0 0
      %8114 = vmatprep.subr.bf16.mxu0 0
      %8115 = vmatpush1.bf16.msra.mxu0 0
      %8116 = vmatprep.subr.bf16.mxu0 0
      %8117 = vmatpush1.bf16.msra.mxu0 0
      %8118 = vmatprep.subr.bf16.mxu0 0
      %8119 = vmatpush1.bf16.msra.mxu0 0
      %8120 = vmatprep.subr.bf16.mxu0 0
      %8121 = vmatpush1.bf16.msra.mxu0 0
      %8122 = vmatprep.subr.bf16.mxu0 0
      %8123 = vmatpush1.bf16.msra.mxu0 0
      %8124 = vmatprep.mubr.bf16.mxu0 0
      %8125 = vmatmul.mubr.bf16.gmra.mrb[0].mxu0 %v8090
      %v8126 = vpop.f32.mrb[0].mxu0
      %v8127 = vadd.f32 %v8087, %v8126
      %v8128 = vpop.f32.mrb[0].mxu0
      %v8129 = vpop.f32.mrb[0].mxu0
      %v8130 = vpop.f32.mrb[0].mxu0
      %8131 = vdwg.mxu0
      %v8132 = vmax.f32 %v8127, 0.0
      %v8133 = vld [vmem:[%s69] sm:$0xf]
      %v8134 = vld [vmem:[%s69 + $0x4] sm:$0xf]
      %v8135 = vpack.c.bf16 %v8132, %v8132
      %v8138 = vunpack.c.l.b16 %v8133
      %v8139 = vunpack.c.l.b16 %v8134
      %v8140 = vpack.c.b16 %v8139, %v8138
      %v8143 = vsel %vm6035, %v8135, 0
      %8145 = vmatprep.subr.bf16.mxu0 0
      %8146 = vmatpush1.bf16.msra.mxu0 %v8140
      %8147 = vmatprep.subr.bf16.mxu0 0
      %8148 = vmatpush1.bf16.msra.mxu0 0
      %8149 = vmatprep.subr.bf16.mxu0 0
      %8150 = vmatpush1.bf16.msra.mxu0 0
      %8151 = vmatprep.subr.bf16.mxu0 0
      %8152 = vmatpush1.bf16.msra.mxu0 0
      %8153 = vmatprep.subr.bf16.mxu0 0
      %8154 = vmatpush1.bf16.msra.mxu0 0
      %8155 = vmatprep.subr.bf16.mxu0 0
      %8156 = vmatpush1.bf16.msra.mxu0 0
      %8157 = vmatprep.subr.bf16.mxu0 0
      %8158 = vmatpush1.bf16.msra.mxu0 0
      %8159 = vmatprep.subr.bf16.mxu0 0
      %8160 = vmatpush1.bf16.msra.mxu0 0
      %8161 = vmatprep.subr.bf16.mxu0 0
      %8162 = vmatpush1.bf16.msra.mxu0 0
      %8163 = vmatprep.subr.bf16.mxu0 0
      %8164 = vmatpush1.bf16.msra.mxu0 0
      %8165 = vmatprep.subr.bf16.mxu0 0
      %8166 = vmatpush1.bf16.msra.mxu0 0
      %8167 = vmatprep.subr.bf16.mxu0 0
      %8168 = vmatpush1.bf16.msra.mxu0 0
      %8169 = vmatprep.subr.bf16.mxu0 0
      %8170 = vmatpush1.bf16.msra.mxu0 0
      %8171 = vmatprep.subr.bf16.mxu0 0
      %8172 = vmatpush1.bf16.msra.mxu0 0
      %8173 = vmatprep.subr.bf16.mxu0 0
      %8174 = vmatpush1.bf16.msra.mxu0 0
      %8175 = vmatprep.subr.bf16.mxu0 0
      %8176 = vmatpush1.bf16.msra.mxu0 0
      %8177 = vmatprep.mubr.bf16.mxu0 0
      %8178 = vmatmul.mubr.bf16.gmra.mrb[0].mxu0 %v8143
      %v8179 = vpop.f32.mrb[0].mxu0
      %v8180 = vadd.f32 0.0, %v8179
      %v8181 = vpop.f32.mrb[0].mxu0
      %v8182 = vpop.f32.mrb[0].mxu0
      %v8183 = vpop.f32.mrb[0].mxu0
      %8184 = vdwg.mxu0
      %v8185 = vld [vmem:[%s67] sm:$0x3]
      %v8186 = vpack.c.bf16 %v8180, %v8180
      %s8187 = scalar_lea.vmem %s69, 8
      %v8188 = vld [vmem:[%s8187] sm:$0xf]
      %v8189 = vld [vmem:[%s8187 + $0x4] sm:$0xf]
      %v8192 = vunpack.c.l.b16 %v8188
      %v8193 = vunpack.c.l.b16 %v8189
      %v8194 = vpack.c.b16 %v8193, %v8192
      %8196 = vmatprep.subr.bf16.mxu0 0
      %8197 = vmatpush1.bf16.msra.mxu0 %v8194
      %8198 = vmatprep.subr.bf16.mxu0 0
      %8199 = vmatpush1.bf16.msra.mxu0 0
      %8200 = vmatprep.subr.bf16.mxu0 0
      %8201 = vmatpush1.bf16.msra.mxu0 0
      %8202 = vmatprep.subr.bf16.mxu0 0
      %8203 = vmatpush1.bf16.msra.mxu0 0
      %8204 = vmatprep.subr.bf16.mxu0 0
      %8205 = vmatpush1.bf16.msra.mxu0 0
      %8206 = vmatprep.subr.bf16.mxu0 0
      %8207 = vmatpush1.bf16.msra.mxu0 0
      %8208 = vmatprep.subr.bf16.mxu0 0
      %8209 = vmatpush1.bf16.msra.mxu0 0
      %8210 = vmatprep.subr.bf16.mxu0 0
      %8211 = vmatpush1.bf16.msra.mxu0 0
      %8212 = vmatprep.subr.bf16.mxu0 0
      %8213 = vmatpush1.bf16.msra.mxu0 0
      %8214 = vmatprep.subr.bf16.mxu0 0
      %8215 = vmatpush1.bf16.msra.mxu0 0
      %8216 = vmatprep.subr.bf16.mxu0 0
      %8217 = vmatpush1.bf16.msra.mxu0 0
      %8218 = vmatprep.subr.bf16.mxu0 0
      %8219 = vmatpush1.bf16.msra.mxu0 0
      %8220 = vmatprep.subr.bf16.mxu0 0
      %8221 = vmatpush1.bf16.msra.mxu0 0
      %8222 = vmatprep.subr.bf16.mxu0 0
      %8223 = vmatpush1.bf16.msra.mxu0 0
      %8224 = vmatprep.subr.bf16.mxu0 0
      %8225 = vmatpush1.bf16.msra.mxu0 0
      %8226 = vmatprep.subr.bf16.mxu0 0
      %8227 = vmatpush1.bf16.msra.mxu0 0
      %8228 = vmatprep.mubr.bf16.mxu0 0
      %8229 = vmatmul.mubr.bf16.gmra.mrb[0].mxu0 %v8143
      %v8230 = vpop.f32.mrb[0].mxu0
      %v8231 = vadd.f32 0.0, %v8230
      %v8232 = vpop.f32.mrb[0].mxu0
      %v8233 = vpop.f32.mrb[0].mxu0
      %v8234 = vpop.f32.mrb[0].mxu0
      %8235 = vdwg.mxu0
      %s8236 = scalar_lea.vmem %s67, 2
      %v8237 = vld [vmem:[%s8236] sm:$0x3]
      %v8238 = vpack.c.bf16 %v8231, %v8231
      %v8240 = vsel %vm1576, %v8237, 0
      %v8243 = vsel %vm1583, %v8238, 0
      %8245 = vmatprep.subr.bf16.mxu0 0
      %8246 = vmatpush1.bf16.msra.mxu0 %v8243
      %8247 = vmatprep.subr.bf16.mxu0 0
      %8248 = vmatpush1.bf16.msra.mxu0 0
      %8249 = vmatprep.subr.bf16.mxu0 0
      %8250 = vmatpush1.bf16.msra.mxu0 0
      %8251 = vmatprep.subr.bf16.mxu0 0
      %8252 = vmatpush1.bf16.msra.mxu0 0
      %8253 = vmatprep.subr.bf16.mxu0 0
      %8254 = vmatpush1.bf16.msra.mxu0 0
      %8255 = vmatprep.subr.bf16.mxu0 0
      %8256 = vmatpush1.bf16.msra.mxu0 0
      %8257 = vmatprep.subr.bf16.mxu0 0
      %8258 = vmatpush1.bf16.msra.mxu0 0
      %8259 = vmatprep.subr.bf16.mxu0 0
      %8260 = vmatpush1.bf16.msra.mxu0 0
      %8261 = vmatprep.subr.bf16.mxu0 0
      %8262 = vmatpush1.bf16.msra.mxu0 0
      %8263 = vmatprep.subr.bf16.mxu0 0
      %8264 = vmatpush1.bf16.msra.mxu0 0
      %8265 = vmatprep.subr.bf16.mxu0 0
      %8266 = vmatpush1.bf16.msra.mxu0 0
      %8267 = vmatprep.subr.bf16.mxu0 0
      %8268 = vmatpush1.bf16.msra.mxu0 0
      %8269 = vmatprep.subr.bf16.mxu0 0
      %8270 = vmatpush1.bf16.msra.mxu0 0
      %8271 = vmatprep.subr.bf16.mxu0 0
      %8272 = vmatpush1.bf16.msra.mxu0 0
      %8273 = vmatprep.subr.bf16.mxu0 0
      %8274 = vmatpush1.bf16.msra.mxu0 0
      %8275 = vmatprep.subr.bf16.mxu0 0
      %8276 = vmatpush1.bf16.msra.mxu0 0
      %8277 = vmatprep.mubr.bf16.mxu0 0
      %8278 = vmatmul.mubr.bf16.gmra.mrb[0].mxu0 %v8240
      %v8279 = vpop.f32.mrb[0].mxu0
      %v8280 = vadd.f32 0.0, %v8279
      %v8281 = vpop.f32.mrb[0].mxu0
      %v8282 = vpop.f32.mrb[0].mxu0
      %v8283 = vpop.f32.mrb[0].mxu0
      %8284 = vdwg.mxu0
      %v8286 = vsel %vm1576, %v8185, 0
      %v8289 = vsel %vm1583, %v8186, 0
      %8291 = vmatprep.subr.bf16.mxu0 0
      %8292 = vmatpush1.bf16.msra.mxu0 %v8289
      %8293 = vmatprep.subr.bf16.mxu0 0
      %8294 = vmatpush1.bf16.msra.mxu0 0
      %8295 = vmatprep.subr.bf16.mxu0 0
      %8296 = vmatpush1.bf16.msra.mxu0 0
      %8297 = vmatprep.subr.bf16.mxu0 0
      %8298 = vmatpush1.bf16.msra.mxu0 0
      %8299 = vmatprep.subr.bf16.mxu0 0
      %8300 = vmatpush1.bf16.msra.mxu0 0
      %8301 = vmatprep.subr.bf16.mxu0 0
      %8302 = vmatpush1.bf16.msra.mxu0 0
      %8303 = vmatprep.subr.bf16.mxu0 0
      %8304 = vmatpush1.bf16.msra.mxu0 0
      %8305 = vmatprep.subr.bf16.mxu0 0
      %8306 = vmatpush1.bf16.msra.mxu0 0
      %8307 = vmatprep.subr.bf16.mxu0 0
      %8308 = vmatpush1.bf16.msra.mxu0 0
      %8309 = vmatprep.subr.bf16.mxu0 0
      %8310 = vmatpush1.bf16.msra.mxu0 0
      %8311 = vmatprep.subr.bf16.mxu0 0
      %8312 = vmatpush1.bf16.msra.mxu0 0
      %8313 = vmatprep.subr.bf16.mxu0 0
      %8314 = vmatpush1.bf16.msra.mxu0 0
      %8315 = vmatprep.subr.bf16.mxu0 0
      %8316 = vmatpush1.bf16.msra.mxu0 0
      %8317 = vmatprep.subr.bf16.mxu0 0
      %8318 = vmatpush1.bf16.msra.mxu0 0
      %8319 = vmatprep.subr.bf16.mxu0 0
      %8320 = vmatpush1.bf16.msra.mxu0 0
      %8321 = vmatprep.subr.bf16.mxu0 0
      %8322 = vmatpush1.bf16.msra.mxu0 0
      %8323 = vmatprep.mubr.bf16.mxu0 0
      %8324 = vmatmul.mubr.bf16.gmra.mrb[0].mxu0 %v8286
      %v8325 = vpop.f32.mrb[0].mxu0
      %v8326 = vadd.f32 %v8280, %v8325
      %v8327 = vpop.f32.mrb[0].mxu0
      %v8328 = vpop.f32.mrb[0].mxu0
      %v8329 = vpop.f32.mrb[0].mxu0
      %8330 = vdwg.mxu0
      %s8331 = scalar_lea.vmem %s69, 16
      %v8332 = vld [vmem:[%s8331] sm:$0xf]
      %v8333 = vld [vmem:[%s8331 + $0x4] sm:$0xf]
      %v8336 = vunpack.c.l.b16 %v8332
      %v8337 = vunpack.c.l.b16 %v8333
      %v8338 = vpack.c.b16 %v8337, %v8336
      %8340 = vmatprep.subr.bf16.mxu0 0
      %8341 = vmatpush1.bf16.msra.mxu0 %v8338
      %8342 = vmatprep.subr.bf16.mxu0 0
      %8343 = vmatpush1.bf16.msra.mxu0 0
      %8344 = vmatprep.subr.bf16.mxu0 0
      %8345 = vmatpush1.bf16.msra.mxu0 0
      %8346 = vmatprep.subr.bf16.mxu0 0
      %8347 = vmatpush1.bf16.msra.mxu0 0
      %8348 = vmatprep.subr.bf16.mxu0 0
      %8349 = vmatpush1.bf16.msra.mxu0 0
      %8350 = vmatprep.subr.bf16.mxu0 0
      %8351 = vmatpush1.bf16.msra.mxu0 0
      %8352 = vmatprep.subr.bf16.mxu0 0
      %8353 = vmatpush1.bf16.msra.mxu0 0
      %8354 = vmatprep.subr.bf16.mxu0 0
      %8355 = vmatpush1.bf16.msra.mxu0 0
      %8356 = vmatprep.subr.bf16.mxu0 0
      %8357 = vmatpush1.bf16.msra.mxu0 0
      %8358 = vmatprep.subr.bf16.mxu0 0
      %8359 = vmatpush1.bf16.msra.mxu0 0
      %8360 = vmatprep.subr.bf16.mxu0 0
      %8361 = vmatpush1.bf16.msra.mxu0 0
      %8362 = vmatprep.subr.bf16.mxu0 0
      %8363 = vmatpush1.bf16.msra.mxu0 0
      %8364 = vmatprep.subr.bf16.mxu0 0
      %8365 = vmatpush1.bf16.msra.mxu0 0
      %8366 = vmatprep.subr.bf16.mxu0 0
      %8367 = vmatpush1.bf16.msra.mxu0 0
      %8368 = vmatprep.subr.bf16.mxu0 0
      %8369 = vmatpush1.bf16.msra.mxu0 0
      %8370 = vmatprep.subr.bf16.mxu0 0
      %8371 = vmatpush1.bf16.msra.mxu0 0
      %8372 = vmatprep.mubr.bf16.mxu0 0
      %8373 = vmatmul.mubr.bf16.gmra.mrb[0].mxu0 %v8143
      %v8374 = vpop.f32.mrb[0].mxu0
      %v8375 = vadd.f32 0.0, %v8374
      %v8376 = vpop.f32.mrb[0].mxu0
      %v8377 = vpop.f32.mrb[0].mxu0
      %v8378 = vpop.f32.mrb[0].mxu0
      %8379 = vdwg.mxu0
      %s8380 = scalar_lea.vmem %s67, 4
      %v8381 = vld [vmem:[%s8380] sm:$0x3]
      %v8382 = vpack.c.bf16 %v8375, %v8375
      %v8384 = vsel %vm1576, %v8381, 0
      %v8387 = vsel %vm1583, %v8382, 0
      %8389 = vmatprep.subr.bf16.mxu0 0
      %8390 = vmatpush1.bf16.msra.mxu0 %v8387
      %8391 = vmatprep.subr.bf16.mxu0 0
      %8392 = vmatpush1.bf16.msra.mxu0 0
      %8393 = vmatprep.subr.bf16.mxu0 0
      %8394 = vmatpush1.bf16.msra.mxu0 0
      %8395 = vmatprep.subr.bf16.mxu0 0
      %8396 = vmatpush1.bf16.msra.mxu0 0
      %8397 = vmatprep.subr.bf16.mxu0 0
      %8398 = vmatpush1.bf16.msra.mxu0 0
      %8399 = vmatprep.subr.bf16.mxu0 0
      %8400 = vmatpush1.bf16.msra.mxu0 0
      %8401 = vmatprep.subr.bf16.mxu0 0
      %8402 = vmatpush1.bf16.msra.mxu0 0
      %8403 = vmatprep.subr.bf16.mxu0 0
      %8404 = vmatpush1.bf16.msra.mxu0 0
      %8405 = vmatprep.subr.bf16.mxu0 0
      %8406 = vmatpush1.bf16.msra.mxu0 0
      %8407 = vmatprep.subr.bf16.mxu0 0
      %8408 = vmatpush1.bf16.msra.mxu0 0
      %8409 = vmatprep.subr.bf16.mxu0 0
      %8410 = vmatpush1.bf16.msra.mxu0 0
      %8411 = vmatprep.subr.bf16.mxu0 0
      %8412 = vmatpush1.bf16.msra.mxu0 0
      %8413 = vmatprep.subr.bf16.mxu0 0
      %8414 = vmatpush1.bf16.msra.mxu0 0
      %8415 = vmatprep.subr.bf16.mxu0 0
      %8416 = vmatpush1.bf16.msra.mxu0 0
      %8417 = vmatprep.subr.bf16.mxu0 0
      %8418 = vmatpush1.bf16.msra.mxu0 0
      %8419 = vmatprep.subr.bf16.mxu0 0
      %8420 = vmatpush1.bf16.msra.mxu0 0
      %8421 = vmatprep.mubr.bf16.mxu0 0
      %8422 = vmatmul.mubr.bf16.gmra.mrb[0].mxu0 %v8384
      %v8423 = vpop.f32.mrb[0].mxu0
      %v8424 = vadd.f32 0.0, %v8423
      %v8425 = vpop.f32.mrb[0].mxu0
      %v8426 = vpop.f32.mrb[0].mxu0
      %v8427 = vpop.f32.mrb[0].mxu0
      %8428 = vdwg.mxu0
      %v8429 = vadd.f32 %v8326, %v8424
      %s8430 = scalar_lea.vmem %s69, 24
      %v8431 = vld [vmem:[%s8430] sm:$0xf]
      %v8432 = vld [vmem:[%s8430 + $0x4] sm:$0xf]
      %v8435 = vunpack.c.l.b16 %v8431
      %v8436 = vunpack.c.l.b16 %v8432
      %v8437 = vpack.c.b16 %v8436, %v8435
      %8439 = vmatprep.subr.bf16.mxu0 0
      %8440 = vmatpush1.bf16.msra.mxu0 %v8437
      %8441 = vmatprep.subr.bf16.mxu0 0
      %8442 = vmatpush1.bf16.msra.mxu0 0
      %8443 = vmatprep.subr.bf16.mxu0 0
      %8444 = vmatpush1.bf16.msra.mxu0 0
      %8445 = vmatprep.subr.bf16.mxu0 0
      %8446 = vmatpush1.bf16.msra.mxu0 0
      %8447 = vmatprep.subr.bf16.mxu0 0
      %8448 = vmatpush1.bf16.msra.mxu0 0
      %8449 = vmatprep.subr.bf16.mxu0 0
      %8450 = vmatpush1.bf16.msra.mxu0 0
      %8451 = vmatprep.subr.bf16.mxu0 0
      %8452 = vmatpush1.bf16.msra.mxu0 0
      %8453 = vmatprep.subr.bf16.mxu0 0
      %8454 = vmatpush1.bf16.msra.mxu0 0
      %8455 = vmatprep.subr.bf16.mxu0 0
      %8456 = vmatpush1.bf16.msra.mxu0 0
      %8457 = vmatprep.subr.bf16.mxu0 0
      %8458 = vmatpush1.bf16.msra.mxu0 0
      %8459 = vmatprep.subr.bf16.mxu0 0
      %8460 = vmatpush1.bf16.msra.mxu0 0
      %8461 = vmatprep.subr.bf16.mxu0 0
      %8462 = vmatpush1.bf16.msra.mxu0 0
      %8463 = vmatprep.subr.bf16.mxu0 0
      %8464 = vmatpush1.bf16.msra.mxu0 0
      %8465 = vmatprep.subr.bf16.mxu0 0
      %8466 = vmatpush1.bf16.msra.mxu0 0
      %8467 = vmatprep.subr.bf16.mxu0 0
      %8468 = vmatpush1.bf16.msra.mxu0 0
      %8469 = vmatprep.subr.bf16.mxu0 0
      %8470 = vmatpush1.bf16.msra.mxu0 0
      %8471 = vmatprep.mubr.bf16.mxu0 0
      %8472 = vmatmul.mubr.bf16.gmra.mrb[0].mxu0 %v8143
      %v8473 = vpop.f32.mrb[0].mxu0
      %v8474 = vadd.f32 0.0, %v8473
      %v8475 = vpop.f32.mrb[0].mxu0
      %v8476 = vpop.f32.mrb[0].mxu0
      %v8477 = vpop.f32.mrb[0].mxu0
      %8478 = vdwg.mxu0
      %s8479 = scalar_lea.vmem %s67, 6
      %v8480 = vld [vmem:[%s8479] sm:$0x3]
      %v8481 = vpack.c.bf16 %v8474, %v8474
      %v8483 = vsel %vm1576, %v8480, 0
      %v8486 = vsel %vm1583, %v8481, 0
      %8488 = vmatprep.subr.bf16.mxu0 0
      %8489 = vmatpush1.bf16.msra.mxu0 %v8486
      %8490 = vmatprep.subr.bf16.mxu0 0
      %8491 = vmatpush1.bf16.msra.mxu0 0
      %8492 = vmatprep.subr.bf16.mxu0 0
      %8493 = vmatpush1.bf16.msra.mxu0 0
      %8494 = vmatprep.subr.bf16.mxu0 0
      %8495 = vmatpush1.bf16.msra.mxu0 0
      %8496 = vmatprep.subr.bf16.mxu0 0
      %8497 = vmatpush1.bf16.msra.mxu0 0
      %8498 = vmatprep.subr.bf16.mxu0 0
      %8499 = vmatpush1.bf16.msra.mxu0 0
      %8500 = vmatprep.subr.bf16.mxu0 0
      %8501 = vmatpush1.bf16.msra.mxu0 0
      %8502 = vmatprep.subr.bf16.mxu0 0
      %8503 = vmatpush1.bf16.msra.mxu0 0
      %8504 = vmatprep.subr.bf16.mxu0 0
      %8505 = vmatpush1.bf16.msra.mxu0 0
      %8506 = vmatprep.subr.bf16.mxu0 0
      %8507 = vmatpush1.bf16.msra.mxu0 0
      %8508 = vmatprep.subr.bf16.mxu0 0
      %8509 = vmatpush1.bf16.msra.mxu0 0
      %8510 = vmatprep.subr.bf16.mxu0 0
      %8511 = vmatpush1.bf16.msra.mxu0 0
      %8512 = vmatprep.subr.bf16.mxu0 0
      %8513 = vmatpush1.bf16.msra.mxu0 0
      %8514 = vmatprep.subr.bf16.mxu0 0
      %8515 = vmatpush1.bf16.msra.mxu0 0
      %8516 = vmatprep.subr.bf16.mxu0 0
      %8517 = vmatpush1.bf16.msra.mxu0 0
      %8518 = vmatprep.subr.bf16.mxu0 0
      %8519 = vmatpush1.bf16.msra.mxu0 0
      %8520 = vmatprep.mubr.bf16.mxu0 0
      %8521 = vmatmul.mubr.bf16.gmra.mrb[0].mxu0 %v8483
      %v8522 = vpop.f32.mrb[0].mxu0
      %v8523 = vadd.f32 0.0, %v8522
      %v8524 = vpop.f32.mrb[0].mxu0
      %v8525 = vpop.f32.mrb[0].mxu0
      %v8526 = vpop.f32.mrb[0].mxu0
      %8527 = vdwg.mxu0
      %v8528 = vadd.f32 %v8429, %v8523
      %s8529 = scalar_lea.vmem %s69, 32
      %v8530 = vld [vmem:[%s8529] sm:$0xf]
      %v8531 = vld [vmem:[%s8529 + $0x4] sm:$0xf]
      %v8534 = vunpack.c.l.b16 %v8530
      %v8535 = vunpack.c.l.b16 %v8531
      %v8536 = vpack.c.b16 %v8535, %v8534
      %8538 = vmatprep.subr.bf16.mxu0 0
      %8539 = vmatpush1.bf16.msra.mxu0 %v8536
      %8540 = vmatprep.subr.bf16.mxu0 0
      %8541 = vmatpush1.bf16.msra.mxu0 0
      %8542 = vmatprep.subr.bf16.mxu0 0
      %8543 = vmatpush1.bf16.msra.mxu0 0
      %8544 = vmatprep.subr.bf16.mxu0 0
      %8545 = vmatpush1.bf16.msra.mxu0 0
      %8546 = vmatprep.subr.bf16.mxu0 0
      %8547 = vmatpush1.bf16.msra.mxu0 0
      %8548 = vmatprep.subr.bf16.mxu0 0
      %8549 = vmatpush1.bf16.msra.mxu0 0
      %8550 = vmatprep.subr.bf16.mxu0 0
      %8551 = vmatpush1.bf16.msra.mxu0 0
      %8552 = vmatprep.subr.bf16.mxu0 0
      %8553 = vmatpush1.bf16.msra.mxu0 0
      %8554 = vmatprep.subr.bf16.mxu0 0
      %8555 = vmatpush1.bf16.msra.mxu0 0
      %8556 = vmatprep.subr.bf16.mxu0 0
      %8557 = vmatpush1.bf16.msra.mxu0 0
      %8558 = vmatprep.subr.bf16.mxu0 0
      %8559 = vmatpush1.bf16.msra.mxu0 0
      %8560 = vmatprep.subr.bf16.mxu0 0
      %8561 = vmatpush1.bf16.msra.mxu0 0
      %8562 = vmatprep.subr.bf16.mxu0 0
      %8563 = vmatpush1.bf16.msra.mxu0 0
      %8564 = vmatprep.subr.bf16.mxu0 0
      %8565 = vmatpush1.bf16.msra.mxu0 0
      %8566 = vmatprep.subr.bf16.mxu0 0
      %8567 = vmatpush1.bf16.msra.mxu0 0
      %8568 = vmatprep.subr.bf16.mxu0 0
      %8569 = vmatpush1.bf16.msra.mxu0 0
      %8570 = vmatprep.mubr.bf16.mxu0 0
      %8571 = vmatmul.mubr.bf16.gmra.mrb[0].mxu0 %v8143
      %v8572 = vpop.f32.mrb[0].mxu0
      %v8573 = vadd.f32 0.0, %v8572
      %v8574 = vpop.f32.mrb[0].mxu0
      %v8575 = vpop.f32.mrb[0].mxu0
      %v8576 = vpop.f32.mrb[0].mxu0
      %8577 = vdwg.mxu0
      %s8578 = scalar_lea.vmem %s67, 8
      %v8579 = vld [vmem:[%s8578] sm:$0x3]
      %v8580 = vpack.c.bf16 %v8573, %v8573
      %v8582 = vsel %vm1576, %v8579, 0
      %v8585 = vsel %vm1583, %v8580, 0
      %8587 = vmatprep.subr.bf16.mxu0 0
      %8588 = vmatpush1.bf16.msra.mxu0 %v8585
      %8589 = vmatprep.subr.bf16.mxu0 0
      %8590 = vmatpush1.bf16.msra.mxu0 0
      %8591 = vmatprep.subr.bf16.mxu0 0
      %8592 = vmatpush1.bf16.msra.mxu0 0
      %8593 = vmatprep.subr.bf16.mxu0 0
      %8594 = vmatpush1.bf16.msra.mxu0 0
      %8595 = vmatprep.subr.bf16.mxu0 0
      %8596 = vmatpush1.bf16.msra.mxu0 0
      %8597 = vmatprep.subr.bf16.mxu0 0
      %8598 = vmatpush1.bf16.msra.mxu0 0
      %8599 = vmatprep.subr.bf16.mxu0 0
      %8600 = vmatpush1.bf16.msra.mxu0 0
      %8601 = vmatprep.subr.bf16.mxu0 0
      %8602 = vmatpush1.bf16.msra.mxu0 0
      %8603 = vmatprep.subr.bf16.mxu0 0
      %8604 = vmatpush1.bf16.msra.mxu0 0
      %8605 = vmatprep.subr.bf16.mxu0 0
      %8606 = vmatpush1.bf16.msra.mxu0 0
      %8607 = vmatprep.subr.bf16.mxu0 0
      %8608 = vmatpush1.bf16.msra.mxu0 0
      %8609 = vmatprep.subr.bf16.mxu0 0
      %8610 = vmatpush1.bf16.msra.mxu0 0
      %8611 = vmatprep.subr.bf16.mxu0 0
      %8612 = vmatpush1.bf16.msra.mxu0 0
      %8613 = vmatprep.subr.bf16.mxu0 0
      %8614 = vmatpush1.bf16.msra.mxu0 0
      %8615 = vmatprep.subr.bf16.mxu0 0
      %8616 = vmatpush1.bf16.msra.mxu0 0
      %8617 = vmatprep.subr.bf16.mxu0 0
      %8618 = vmatpush1.bf16.msra.mxu0 0
      %8619 = vmatprep.mubr.bf16.mxu0 0
      %8620 = vmatmul.mubr.bf16.gmra.mrb[0].mxu0 %v8582
      %v8621 = vpop.f32.mrb[0].mxu0
      %v8622 = vadd.f32 0.0, %v8621
      %v8623 = vpop.f32.mrb[0].mxu0
      %v8624 = vpop.f32.mrb[0].mxu0
      %v8625 = vpop.f32.mrb[0].mxu0
      %8626 = vdwg.mxu0
      %v8627 = vadd.f32 %v8528, %v8622
      %s8628 = scalar_lea.vmem %s69, 40
      %v8629 = vld [vmem:[%s8628] sm:$0xf]
      %v8630 = vld [vmem:[%s8628 + $0x4] sm:$0xf]
      %v8633 = vunpack.c.l.b16 %v8629
      %v8634 = vunpack.c.l.b16 %v8630
      %v8635 = vpack.c.b16 %v8634, %v8633
      %8637 = vmatprep.subr.bf16.mxu0 0
      %8638 = vmatpush1.bf16.msra.mxu0 %v8635
      %8639 = vmatprep.subr.bf16.mxu0 0
      %8640 = vmatpush1.bf16.msra.mxu0 0
      %8641 = vmatprep.subr.bf16.mxu0 0
      %8642 = vmatpush1.bf16.msra.mxu0 0
      %8643 = vmatprep.subr.bf16.mxu0 0
      %8644 = vmatpush1.bf16.msra.mxu0 0
      %8645 = vmatprep.subr.bf16.mxu0 0
      %8646 = vmatpush1.bf16.msra.mxu0 0
      %8647 = vmatprep.subr.bf16.mxu0 0
      %8648 = vmatpush1.bf16.msra.mxu0 0
      %8649 = vmatprep.subr.bf16.mxu0 0
      %8650 = vmatpush1.bf16.msra.mxu0 0
      %8651 = vmatprep.subr.bf16.mxu0 0
      %8652 = vmatpush1.bf16.msra.mxu0 0
      %8653 = vmatprep.subr.bf16.mxu0 0
      %8654 = vmatpush1.bf16.msra.mxu0 0
      %8655 = vmatprep.subr.bf16.mxu0 0
      %8656 = vmatpush1.bf16.msra.mxu0 0
      %8657 = vmatprep.subr.bf16.mxu0 0
      %8658 = vmatpush1.bf16.msra.mxu0 0
      %8659 = vmatprep.subr.bf16.mxu0 0
      %8660 = vmatpush1.bf16.msra.mxu0 0
      %8661 = vmatprep.subr.bf16.mxu0 0
      %8662 = vmatpush1.bf16.msra.mxu0 0
      %8663 = vmatprep.subr.bf16.mxu0 0
      %8664 = vmatpush1.bf16.msra.mxu0 0
      %8665 = vmatprep.subr.bf16.mxu0 0
      %8666 = vmatpush1.bf16.msra.mxu0 0
      %8667 = vmatprep.subr.bf16.mxu0 0
      %8668 = vmatpush1.bf16.msra.mxu0 0
      %8669 = vmatprep.mubr.bf16.mxu0 0
      %8670 = vmatmul.mubr.bf16.gmra.mrb[0].mxu0 %v8143
      %v8671 = vpop.f32.mrb[0].mxu0
      %v8672 = vadd.f32 0.0, %v8671
      %v8673 = vpop.f32.mrb[0].mxu0
      %v8674 = vpop.f32.mrb[0].mxu0
      %v8675 = vpop.f32.mrb[0].mxu0
      %8676 = vdwg.mxu0
      %s8677 = scalar_lea.vmem %s67, 10
      %v8678 = vld [vmem:[%s8677] sm:$0x3]
      %v8679 = vpack.c.bf16 %v8672, %v8672
      %v8681 = vsel %vm1576, %v8678, 0
      %v8684 = vsel %vm1583, %v8679, 0
      %8686 = vmatprep.subr.bf16.mxu0 0
      %8687 = vmatpush1.bf16.msra.mxu0 %v8684
      %8688 = vmatprep.subr.bf16.mxu0 0
      %8689 = vmatpush1.bf16.msra.mxu0 0
      %8690 = vmatprep.subr.bf16.mxu0 0
      %8691 = vmatpush1.bf16.msra.mxu0 0
      %8692 = vmatprep.subr.bf16.mxu0 0
      %8693 = vmatpush1.bf16.msra.mxu0 0
      %8694 = vmatprep.subr.bf16.mxu0 0
      %8695 = vmatpush1.bf16.msra.mxu0 0
      %8696 = vmatprep.subr.bf16.mxu0 0
      %8697 = vmatpush1.bf16.msra.mxu0 0
      %8698 = vmatprep.subr.bf16.mxu0 0
      %8699 = vmatpush1.bf16.msra.mxu0 0
      %8700 = vmatprep.subr.bf16.mxu0 0
      %8701 = vmatpush1.bf16.msra.mxu0 0
      %8702 = vmatprep.subr.bf16.mxu0 0
      %8703 = vmatpush1.bf16.msra.mxu0 0
      %8704 = vmatprep.subr.bf16.mxu0 0
      %8705 = vmatpush1.bf16.msra.mxu0 0
      %8706 = vmatprep.subr.bf16.mxu0 0
      %8707 = vmatpush1.bf16.msra.mxu0 0
      %8708 = vmatprep.subr.bf16.mxu0 0
      %8709 = vmatpush1.bf16.msra.mxu0 0
      %8710 = vmatprep.subr.bf16.mxu0 0
      %8711 = vmatpush1.bf16.msra.mxu0 0
      %8712 = vmatprep.subr.bf16.mxu0 0
      %8713 = vmatpush1.bf16.msra.mxu0 0
      %8714 = vmatprep.subr.bf16.mxu0 0
      %8715 = vmatpush1.bf16.msra.mxu0 0
      %8716 = vmatprep.subr.bf16.mxu0 0
      %8717 = vmatpush1.bf16.msra.mxu0 0
      %8718 = vmatprep.mubr.bf16.mxu0 0
      %8719 = vmatmul.mubr.bf16.gmra.mrb[0].mxu0 %v8681
      %v8720 = vpop.f32.mrb[0].mxu0
      %v8721 = vadd.f32 0.0, %v8720
      %v8722 = vpop.f32.mrb[0].mxu0
      %v8723 = vpop.f32.mrb[0].mxu0
      %v8724 = vpop.f32.mrb[0].mxu0
      %8725 = vdwg.mxu0
      %v8726 = vadd.f32 %v8627, %v8721
      %s8727 = scalar_lea.vmem %s69, 48
      %v8728 = vld [vmem:[%s8727] sm:$0xf]
      %v8729 = vld [vmem:[%s8727 + $0x4] sm:$0xf]
      %v8732 = vunpack.c.l.b16 %v8728
      %v8733 = vunpack.c.l.b16 %v8729
      %v8734 = vpack.c.b16 %v8733, %v8732
      %8736 = vmatprep.subr.bf16.mxu0 0
      %8737 = vmatpush1.bf16.msra.mxu0 %v8734
      %8738 = vmatprep.subr.bf16.mxu0 0
      %8739 = vmatpush1.bf16.msra.mxu0 0
      %8740 = vmatprep.subr.bf16.mxu0 0
      %8741 = vmatpush1.bf16.msra.mxu0 0
      %8742 = vmatprep.subr.bf16.mxu0 0
      %8743 = vmatpush1.bf16.msra.mxu0 0
      %8744 = vmatprep.subr.bf16.mxu0 0
      %8745 = vmatpush1.bf16.msra.mxu0 0
      %8746 = vmatprep.subr.bf16.mxu0 0
      %8747 = vmatpush1.bf16.msra.mxu0 0
      %8748 = vmatprep.subr.bf16.mxu0 0
      %8749 = vmatpush1.bf16.msra.mxu0 0
      %8750 = vmatprep.subr.bf16.mxu0 0
      %8751 = vmatpush1.bf16.msra.mxu0 0
      %8752 = vmatprep.subr.bf16.mxu0 0
      %8753 = vmatpush1.bf16.msra.mxu0 0
      %8754 = vmatprep.subr.bf16.mxu0 0
      %8755 = vmatpush1.bf16.msra.mxu0 0
      %8756 = vmatprep.subr.bf16.mxu0 0
      %8757 = vmatpush1.bf16.msra.mxu0 0
      %8758 = vmatprep.subr.bf16.mxu0 0
      %8759 = vmatpush1.bf16.msra.mxu0 0
      %8760 = vmatprep.subr.bf16.mxu0 0
      %8761 = vmatpush1.bf16.msra.mxu0 0
      %8762 = vmatprep.subr.bf16.mxu0 0
      %8763 = vmatpush1.bf16.msra.mxu0 0
      %8764 = vmatprep.subr.bf16.mxu0 0
      %8765 = vmatpush1.bf16.msra.mxu0 0
      %8766 = vmatprep.subr.bf16.mxu0 0
      %8767 = vmatpush1.bf16.msra.mxu0 0
      %8768 = vmatprep.mubr.bf16.mxu0 0
      %8769 = vmatmul.mubr.bf16.gmra.mrb[0].mxu0 %v8143
      %v8770 = vpop.f32.mrb[0].mxu0
      %v8771 = vadd.f32 0.0, %v8770
      %v8772 = vpop.f32.mrb[0].mxu0
      %v8773 = vpop.f32.mrb[0].mxu0
      %v8774 = vpop.f32.mrb[0].mxu0
      %8775 = vdwg.mxu0
      %s8776 = scalar_lea.vmem %s67, 12
      %v8777 = vld [vmem:[%s8776] sm:$0x3]
      %v8778 = vpack.c.bf16 %v8771, %v8771
      %v8780 = vsel %vm1576, %v8777, 0
      %v8783 = vsel %vm1583, %v8778, 0
      %8785 = vmatprep.subr.bf16.mxu0 0
      %8786 = vmatpush1.bf16.msra.mxu0 %v8783
      %8787 = vmatprep.subr.bf16.mxu0 0
      %8788 = vmatpush1.bf16.msra.mxu0 0
      %8789 = vmatprep.subr.bf16.mxu0 0
      %8790 = vmatpush1.bf16.msra.mxu0 0
      %8791 = vmatprep.subr.bf16.mxu0 0
      %8792 = vmatpush1.bf16.msra.mxu0 0
      %8793 = vmatprep.subr.bf16.mxu0 0
      %8794 = vmatpush1.bf16.msra.mxu0 0
      %8795 = vmatprep.subr.bf16.mxu0 0
      %8796 = vmatpush1.bf16.msra.mxu0 0
      %8797 = vmatprep.subr.bf16.mxu0 0
      %8798 = vmatpush1.bf16.msra.mxu0 0
      %8799 = vmatprep.subr.bf16.mxu0 0
      %8800 = vmatpush1.bf16.msra.mxu0 0
      %8801 = vmatprep.subr.bf16.mxu0 0
      %8802 = vmatpush1.bf16.msra.mxu0 0
      %8803 = vmatprep.subr.bf16.mxu0 0
      %8804 = vmatpush1.bf16.msra.mxu0 0
      %8805 = vmatprep.subr.bf16.mxu0 0
      %8806 = vmatpush1.bf16.msra.mxu0 0
      %8807 = vmatprep.subr.bf16.mxu0 0
      %8808 = vmatpush1.bf16.msra.mxu0 0
      %8809 = vmatprep.subr.bf16.mxu0 0
      %8810 = vmatpush1.bf16.msra.mxu0 0
      %8811 = vmatprep.subr.bf16.mxu0 0
      %8812 = vmatpush1.bf16.msra.mxu0 0
      %8813 = vmatprep.subr.bf16.mxu0 0
      %8814 = vmatpush1.bf16.msra.mxu0 0
      %8815 = vmatprep.subr.bf16.mxu0 0
      %8816 = vmatpush1.bf16.msra.mxu0 0
      %8817 = vmatprep.mubr.bf16.mxu0 0
      %8818 = vmatmul.mubr.bf16.gmra.mrb[0].mxu0 %v8780
      %v8819 = vpop.f32.mrb[0].mxu0
      %v8820 = vadd.f32 0.0, %v8819
      %v8821 = vpop.f32.mrb[0].mxu0
      %v8822 = vpop.f32.mrb[0].mxu0
      %v8823 = vpop.f32.mrb[0].mxu0
      %8824 = vdwg.mxu0
      %v8825 = vadd.f32 %v8726, %v8820
      %s8826 = scalar_lea.vmem %s69, 56
      %v8827 = vld [vmem:[%s8826] sm:$0xf]
      %v8828 = vld [vmem:[%s8826 + $0x4] sm:$0xf]
      %v8831 = vunpack.c.l.b16 %v8827
      %v8832 = vunpack.c.l.b16 %v8828
      %v8833 = vpack.c.b16 %v8832, %v8831
      %8835 = vmatprep.subr.bf16.mxu0 0
      %8836 = vmatpush1.bf16.msra.mxu0 %v8833
      %8837 = vmatprep.subr.bf16.mxu0 0
      %8838 = vmatpush1.bf16.msra.mxu0 0
      %8839 = vmatprep.subr.bf16.mxu0 0
      %8840 = vmatpush1.bf16.msra.mxu0 0
      %8841 = vmatprep.subr.bf16.mxu0 0
      %8842 = vmatpush1.bf16.msra.mxu0 0
      %8843 = vmatprep.subr.bf16.mxu0 0
      %8844 = vmatpush1.bf16.msra.mxu0 0
      %8845 = vmatprep.subr.bf16.mxu0 0
      %8846 = vmatpush1.bf16.msra.mxu0 0
      %8847 = vmatprep.subr.bf16.mxu0 0
      %8848 = vmatpush1.bf16.msra.mxu0 0
      %8849 = vmatprep.subr.bf16.mxu0 0
      %8850 = vmatpush1.bf16.msra.mxu0 0
      %8851 = vmatprep.subr.bf16.mxu0 0
      %8852 = vmatpush1.bf16.msra.mxu0 0
      %8853 = vmatprep.subr.bf16.mxu0 0
      %8854 = vmatpush1.bf16.msra.mxu0 0
      %8855 = vmatprep.subr.bf16.mxu0 0
      %8856 = vmatpush1.bf16.msra.mxu0 0
      %8857 = vmatprep.subr.bf16.mxu0 0
      %8858 = vmatpush1.bf16.msra.mxu0 0
      %8859 = vmatprep.subr.bf16.mxu0 0
      %8860 = vmatpush1.bf16.msra.mxu0 0
      %8861 = vmatprep.subr.bf16.mxu0 0
      %8862 = vmatpush1.bf16.msra.mxu0 0
      %8863 = vmatprep.subr.bf16.mxu0 0
      %8864 = vmatpush1.bf16.msra.mxu0 0
      %8865 = vmatprep.subr.bf16.mxu0 0
      %8866 = vmatpush1.bf16.msra.mxu0 0
      %8867 = vmatprep.mubr.bf16.mxu0 0
      %8868 = vmatmul.mubr.bf16.gmra.mrb[0].mxu0 %v8143
      %v8869 = vpop.f32.mrb[0].mxu0
      %v8870 = vadd.f32 0.0, %v8869
      %v8871 = vpop.f32.mrb[0].mxu0
      %v8872 = vpop.f32.mrb[0].mxu0
      %v8873 = vpop.f32.mrb[0].mxu0
      %8874 = vdwg.mxu0
      %s8875 = scalar_lea.vmem %s67, 14
      %v8876 = vld [vmem:[%s8875] sm:$0x3]
      %v8877 = vpack.c.bf16 %v8870, %v8870
      %v8879 = vsel %vm1576, %v8876, 0
      %v8882 = vsel %vm1583, %v8877, 0
      %8884 = vmatprep.subr.bf16.mxu0 0
      %8885 = vmatpush1.bf16.msra.mxu0 %v8882
      %8886 = vmatprep.subr.bf16.mxu0 0
      %8887 = vmatpush1.bf16.msra.mxu0 0
      %8888 = vmatprep.subr.bf16.mxu0 0
      %8889 = vmatpush1.bf16.msra.mxu0 0
      %8890 = vmatprep.subr.bf16.mxu0 0
      %8891 = vmatpush1.bf16.msra.mxu0 0
      %8892 = vmatprep.subr.bf16.mxu0 0
      %8893 = vmatpush1.bf16.msra.mxu0 0
      %8894 = vmatprep.subr.bf16.mxu0 0
      %8895 = vmatpush1.bf16.msra.mxu0 0
      %8896 = vmatprep.subr.bf16.mxu0 0
      %8897 = vmatpush1.bf16.msra.mxu0 0
      %8898 = vmatprep.subr.bf16.mxu0 0
      %8899 = vmatpush1.bf16.msra.mxu0 0
      %8900 = vmatprep.subr.bf16.mxu0 0
      %8901 = vmatpush1.bf16.msra.mxu0 0
      %8902 = vmatprep.subr.bf16.mxu0 0
      %8903 = vmatpush1.bf16.msra.mxu0 0
      %8904 = vmatprep.subr.bf16.mxu0 0
      %8905 = vmatpush1.bf16.msra.mxu0 0
      %8906 = vmatprep.subr.bf16.mxu0 0
      %8907 = vmatpush1.bf16.msra.mxu0 0
      %8908 = vmatprep.subr.bf16.mxu0 0
      %8909 = vmatpush1.bf16.msra.mxu0 0
      %8910 = vmatprep.subr.bf16.mxu0 0
      %8911 = vmatpush1.bf16.msra.mxu0 0
      %8912 = vmatprep.subr.bf16.mxu0 0
      %8913 = vmatpush1.bf16.msra.mxu0 0
      %8914 = vmatprep.subr.bf16.mxu0 0
      %8915 = vmatpush1.bf16.msra.mxu0 0
      %8916 = vmatprep.mubr.bf16.mxu0 0
      %8917 = vmatmul.mubr.bf16.gmra.mrb[0].mxu0 %v8879
      %v8918 = vpop.f32.mrb[0].mxu0
      %v8919 = vadd.f32 0.0, %v8918
      %v8920 = vpop.f32.mrb[0].mxu0
      %v8921 = vpop.f32.mrb[0].mxu0
      %v8922 = vpop.f32.mrb[0].mxu0
      %8923 = vdwg.mxu0
      %v8924 = vadd.f32 %v8825, %v8919
      %s8925 = scalar_lea.vmem %s69, 64
      %v8926 = vld [vmem:[%s8925] sm:$0xf]
      %v8927 = vld [vmem:[%s8925 + $0x4] sm:$0xf]
      %v8930 = vunpack.c.l.b16 %v8926
      %v8931 = vunpack.c.l.b16 %v8927
      %v8932 = vpack.c.b16 %v8931, %v8930
      %8934 = vmatprep.subr.bf16.mxu0 0
      %8935 = vmatpush1.bf16.msra.mxu0 %v8932
      %8936 = vmatprep.subr.bf16.mxu0 0
      %8937 = vmatpush1.bf16.msra.mxu0 0
      %8938 = vmatprep.subr.bf16.mxu0 0
      %8939 = vmatpush1.bf16.msra.mxu0 0
      %8940 = vmatprep.subr.bf16.mxu0 0
      %8941 = vmatpush1.bf16.msra.mxu0 0
      %8942 = vmatprep.subr.bf16.mxu0 0
      %8943 = vmatpush1.bf16.msra.mxu0 0
      %8944 = vmatprep.subr.bf16.mxu0 0
      %8945 = vmatpush1.bf16.msra.mxu0 0
      %8946 = vmatprep.subr.bf16.mxu0 0
      %8947 = vmatpush1.bf16.msra.mxu0 0
      %8948 = vmatprep.subr.bf16.mxu0 0
      %8949 = vmatpush1.bf16.msra.mxu0 0
      %8950 = vmatprep.subr.bf16.mxu0 0
      %8951 = vmatpush1.bf16.msra.mxu0 0
      %8952 = vmatprep.subr.bf16.mxu0 0
      %8953 = vmatpush1.bf16.msra.mxu0 0
      %8954 = vmatprep.subr.bf16.mxu0 0
      %8955 = vmatpush1.bf16.msra.mxu0 0
      %8956 = vmatprep.subr.bf16.mxu0 0
      %8957 = vmatpush1.bf16.msra.mxu0 0
      %8958 = vmatprep.subr.bf16.mxu0 0
      %8959 = vmatpush1.bf16.msra.mxu0 0
      %8960 = vmatprep.subr.bf16.mxu0 0
      %8961 = vmatpush1.bf16.msra.mxu0 0
      %8962 = vmatprep.subr.bf16.mxu0 0
      %8963 = vmatpush1.bf16.msra.mxu0 0
      %8964 = vmatprep.subr.bf16.mxu0 0
      %8965 = vmatpush1.bf16.msra.mxu0 0
      %8966 = vmatprep.mubr.bf16.mxu0 0
      %8967 = vmatmul.mubr.bf16.gmra.mrb[0].mxu0 %v8143
      %v8968 = vpop.f32.mrb[0].mxu0
      %v8969 = vadd.f32 0.0, %v8968
      %v8970 = vpop.f32.mrb[0].mxu0
      %v8971 = vpop.f32.mrb[0].mxu0
      %v8972 = vpop.f32.mrb[0].mxu0
      %8973 = vdwg.mxu0
      %s8974 = scalar_lea.vmem %s67, 16
      %v8975 = vld [vmem:[%s8974] sm:$0x3]
      %v8976 = vpack.c.bf16 %v8969, %v8969
      %v8978 = vsel %vm1576, %v8975, 0
      %v8981 = vsel %vm1583, %v8976, 0
      %8983 = vmatprep.subr.bf16.mxu0 0
      %8984 = vmatpush1.bf16.msra.mxu0 %v8981
      %8985 = vmatprep.subr.bf16.mxu0 0
      %8986 = vmatpush1.bf16.msra.mxu0 0
      %8987 = vmatprep.subr.bf16.mxu0 0
      %8988 = vmatpush1.bf16.msra.mxu0 0
      %8989 = vmatprep.subr.bf16.mxu0 0
      %8990 = vmatpush1.bf16.msra.mxu0 0
      %8991 = vmatprep.subr.bf16.mxu0 0
      %8992 = vmatpush1.bf16.msra.mxu0 0
      %8993 = vmatprep.subr.bf16.mxu0 0
      %8994 = vmatpush1.bf16.msra.mxu0 0
      %8995 = vmatprep.subr.bf16.mxu0 0
      %8996 = vmatpush1.bf16.msra.mxu0 0
      %8997 = vmatprep.subr.bf16.mxu0 0
      %8998 = vmatpush1.bf16.msra.mxu0 0
      %8999 = vmatprep.subr.bf16.mxu0 0
      %9000 = vmatpush1.bf16.msra.mxu0 0
      %9001 = vmatprep.subr.bf16.mxu0 0
      %9002 = vmatpush1.bf16.msra.mxu0 0
      %9003 = vmatprep.subr.bf16.mxu0 0
      %9004 = vmatpush1.bf16.msra.mxu0 0
      %9005 = vmatprep.subr.bf16.mxu0 0
      %9006 = vmatpush1.bf16.msra.mxu0 0
      %9007 = vmatprep.subr.bf16.mxu0 0
      %9008 = vmatpush1.bf16.msra.mxu0 0
      %9009 = vmatprep.subr.bf16.mxu0 0
      %9010 = vmatpush1.bf16.msra.mxu0 0
      %9011 = vmatprep.subr.bf16.mxu0 0
      %9012 = vmatpush1.bf16.msra.mxu0 0
      %9013 = vmatprep.subr.bf16.mxu0 0
      %9014 = vmatpush1.bf16.msra.mxu0 0
      %9015 = vmatprep.mubr.bf16.mxu0 0
      %9016 = vmatmul.mubr.bf16.gmra.mrb[0].mxu0 %v8978
      %v9017 = vpop.f32.mrb[0].mxu0
      %v9018 = vadd.f32 0.0, %v9017
      %v9019 = vpop.f32.mrb[0].mxu0
      %v9020 = vpop.f32.mrb[0].mxu0
      %v9021 = vpop.f32.mrb[0].mxu0
      %9022 = vdwg.mxu0
      %v9023 = vadd.f32 %v8924, %v9018
      %v9024 = vld [vmem:[%s71] sm:$0xf]
      %9026 = vset.pattern.permute.xlu0 0
      %9027 = vperm.xlu0 %9026, %v9024
      %v9028 = vpop.permute.xlu0 %9027
      %v9030 = vadd.f32 %v9023, %v9028
      %v9031 = vmax.f32 %v9030, 0.0
      %v9032 = vld [vmem:[%s73] sm:$0xf]
      %v9033 = vld [vmem:[%s73 + $0x4] sm:$0xf]
      %v9034 = vld [vmem:[%s73 + $0x8] sm:$0xf]
      %v9035 = vld [vmem:[%s73 + $0xc] sm:$0xf]
      %v9036 = vpack.c.bf16 %v9031, %v9031
      %v9037 = vld [vmem:[%s75] sm:$0xff]
      %v9038 = vld [vmem:[%s75 + $0x8] sm:$0xff]
      %v9039 = vld [vmem:[%s75 + $0x10] sm:$0xff]
      %v9040 = vld [vmem:[%s75 + $0x18] sm:$0xff]
      %9042 = vset.pattern.permute.xlu0 0
      %9043 = vperm.xlu0 %9042, %v9037
      %v9044 = vpop.permute.xlu0 %9043
      %9047 = vset.pattern.permute.xlu0 0
      %9048 = vperm.xlu0 %9047, %v9038
      %v9049 = vpop.permute.xlu0 %9048
      %9052 = vset.pattern.permute.xlu0 0
      %9053 = vperm.xlu0 %9052, %v9039
      %v9054 = vpop.permute.xlu0 %9053
      %9057 = vset.pattern.permute.xlu0 0
      %9058 = vperm.xlu0 %9057, %v9040
      %v9059 = vpop.permute.xlu0 %9058
      %v9065 = vunpack.c.l.b16 %v9032
      %v9066 = vunpack.c.l.b16 %v9033
      %v9067 = vunpack.c.l.b16 %v9034
      %v9068 = vunpack.c.l.b16 %v9035
      %v9069 = vpack.c.b16 %v9066, %v9065
      %v9070 = vpack.c.b16 %v9068, %v9067
      %v9072 = vsel %vm1576, %v9069, 0
      %v9075 = vsel %vm1576, %v9070, 0
      %v9078 = vsel %vm1583, %v9036, 0
      %9080 = vmatprep.subr.bf16.mxu0 0
      %9081 = vmatpush1.bf16.msra.mxu0 %v9078
      %9082 = vmatprep.subr.bf16.mxu0 0
      %9083 = vmatpush1.bf16.msra.mxu0 0
      %9084 = vmatprep.subr.bf16.mxu0 0
      %9085 = vmatpush1.bf16.msra.mxu0 0
      %9086 = vmatprep.subr.bf16.mxu0 0
      %9087 = vmatpush1.bf16.msra.mxu0 0
      %9088 = vmatprep.subr.bf16.mxu0 0
      %9089 = vmatpush1.bf16.msra.mxu0 0
      %9090 = vmatprep.subr.bf16.mxu0 0
      %9091 = vmatpush1.bf16.msra.mxu0 0
      %9092 = vmatprep.subr.bf16.mxu0 0
      %9093 = vmatpush1.bf16.msra.mxu0 0
      %9094 = vmatprep.subr.bf16.mxu0 0
      %9095 = vmatpush1.bf16.msra.mxu0 0
      %9096 = vmatprep.subr.bf16.mxu0 0
      %9097 = vmatpush1.bf16.msra.mxu0 0
      %9098 = vmatprep.subr.bf16.mxu0 0
      %9099 = vmatpush1.bf16.msra.mxu0 0
      %9100 = vmatprep.subr.bf16.mxu0 0
      %9101 = vmatpush1.bf16.msra.mxu0 0
      %9102 = vmatprep.subr.bf16.mxu0 0
      %9103 = vmatpush1.bf16.msra.mxu0 0
      %9104 = vmatprep.subr.bf16.mxu0 0
      %9105 = vmatpush1.bf16.msra.mxu0 0
      %9106 = vmatprep.subr.bf16.mxu0 0
      %9107 = vmatpush1.bf16.msra.mxu0 0
      %9108 = vmatprep.subr.bf16.mxu0 0
      %9109 = vmatpush1.bf16.msra.mxu0 0
      %9110 = vmatprep.subr.bf16.mxu0 0
      %9111 = vmatpush1.bf16.msra.mxu0 0
      %9112 = vmatprep.mubr.bf16.mxu0 0
      %9113 = vmatmul.mubr.bf16.gmra.mrb[0].mxu0 %v9072
      %v9114 = vpop.f32.mrb[0].mxu0
      %v9115 = vadd.f32 %v9044, %v9114
      %v9116 = vpop.f32.mrb[0].mxu0
      %v9117 = vpop.f32.mrb[0].mxu0
      %v9118 = vadd.f32 %v9049, %v9117
      %v9119 = vpop.f32.mrb[0].mxu0
      %9120 = vmatprep.mubr.bf16.mxu0 0
      %9121 = vmatmul.mubr.bf16.gmra.mrb[0].mxu0 %v9075
      %v9122 = vpop.f32.mrb[0].mxu0
      %v9123 = vadd.f32 %v9054, %v9122
      %v9124 = vpop.f32.mrb[0].mxu0
      %v9125 = vpop.f32.mrb[0].mxu0
      %v9126 = vadd.f32 %v9059, %v9125
      %v9127 = vpop.f32.mrb[0].mxu0
      %9128 = vdwg.mxu0
      %v9129 = vmax.f32 %v9115, 0.0
      %v9130 = vmax.f32 %v9118, 0.0
      %v9131 = vmax.f32 %v9123, 0.0
      %v9132 = vmax.f32 %v9126, 0.0
      %v9133 = vld [vmem:[%s77] sm:$0xf]
      %v9134 = vld [vmem:[%s77 + $0x4] sm:$0x1]
      %v9135 = vpack.c.bf16 %v9130, %v9129
      %v9136 = vpack.c.bf16 %v9132, %v9131
      %v9139 = vunpack.c.l.b16 %v9133
      %v9140 = vunpack.c.l.b16 %v9134
      %v9141 = vpack.c.b16 %v9140, %v9139
      %v9143 = vsel %vm3442, %v9141, 0
      %9145 = vmatprep.subr.bf16.mxu0 0
      %9146 = vmatpush1.bf16.msra.mxu0 %v9135
      %9147 = vmatprep.subr.bf16.mxu0 0
      %9148 = vmatpush1.bf16.msra.mxu0 %v9136
      %9149 = vmatprep.subr.bf16.mxu0 0
      %9150 = vmatpush1.bf16.msra.mxu0 0
      %9151 = vmatprep.subr.bf16.mxu0 0
      %9152 = vmatpush1.bf16.msra.mxu0 0
      %9153 = vmatprep.subr.bf16.mxu0 0
      %9154 = vmatpush1.bf16.msra.mxu0 0
      %9155 = vmatprep.subr.bf16.mxu0 0
      %9156 = vmatpush1.bf16.msra.mxu0 0
      %9157 = vmatprep.subr.bf16.mxu0 0
      %9158 = vmatpush1.bf16.msra.mxu0 0
      %9159 = vmatprep.subr.bf16.mxu0 0
      %9160 = vmatpush1.bf16.msra.mxu0 0
      %9161 = vmatprep.subr.bf16.mxu0 0
      %9162 = vmatpush1.bf16.msra.mxu0 0
      %9163 = vmatprep.subr.bf16.mxu0 0
      %9164 = vmatpush1.bf16.msra.mxu0 0
      %9165 = vmatprep.subr.bf16.mxu0 0
      %9166 = vmatpush1.bf16.msra.mxu0 0
      %9167 = vmatprep.subr.bf16.mxu0 0
      %9168 = vmatpush1.bf16.msra.mxu0 0
      %9169 = vmatprep.subr.bf16.mxu0 0
      %9170 = vmatpush1.bf16.msra.mxu0 0
      %9171 = vmatprep.subr.bf16.mxu0 0
      %9172 = vmatpush1.bf16.msra.mxu0 0
      %9173 = vmatprep.subr.bf16.mxu0 0
      %9174 = vmatpush1.bf16.msra.mxu0 0
      %9175 = vmatprep.subr.bf16.mxu0 0
      %9176 = vmatpush1.bf16.msra.mxu0 0
      %9177 = vmatprep.mubr.bf16.mxu0 0
      %9178 = vmatmul.mubr.bf16.gmra.mrb[0].mxu0 %v9143
      %v9179 = vpop.f32.mrb[0].mxu0
      %v9180 = vadd.f32 0.0, %v9179
      %v9181 = vpop.f32.mrb[0].mxu0
      %v9182 = vpop.f32.mrb[0].mxu0
      %v9183 = vadd.f32 0.0, %v9182
      %v9184 = vpop.f32.mrb[0].mxu0
      %9185 = vdwg.mxu0
      %v9186 = vsel %vm1576, %v9180, 0.0
      %9187 = vadd.xlane.f32.xlu0 %v9186
      %v9188 = vpop.xlane.xlu0 %9187
      %vm9189 = vcmask 25600
      %v9190 = vsel %vm9189, %v9183, 0.0
      %9191 = vadd.xlane.f32.xlu0 %v9190
      %v9192 = vpop.xlane.xlu0 %9191
      %v9193 = vmul.f32 %v9188, 0.25
      %v9194 = vmul.f32 %v9192, 0.25
      %v9195 = vld [vmem:[%s79] sm:$0xff]
      %v9196 = vld [vmem:[%s79 + $0x8] sm:$0x3]
      %v9197 = vadd.f32 %v9193, %v9195
      %v9198 = vadd.f32 %v9194, %v9196
      %vm9199 = vcmask 7168
      %9200 = vst.msk [vmem:[%s1210] sm:$0xff] %vm9199, %v9197
      %vm9201 = vcmask 1024
      %9202 = vst.msk [vmem:[%s1210 + $0x8] sm:$0x3] %vm9201, %v9198
      %p9203 = scmp.lt.s32.totalorder %s92, 1
      %s9204 = scalar_select %p9203, %s92, 1
      %s9205 = smul.addr %s9204, 2
      %s9206 = smul.addr %s9205, 8
      %s9207 = scalar_lea.vmem %s81, %s9206
      // Predicated region
      $region181: #{main_classifier_forward.1} parent=179 // pred_check
        %p9208 = pneg %p955
      $region182: #{main_classifier_forward.1} parent=179 // pred_check_branch
        %9210 = sbr.rel (%p9208) target = $region184
      $region183: #{main_classifier_forward.1} parent=179 // pred_region
        _
      $region184: #{main_classifier_forward.1} parent=179 // pred_fallthru
        _
    $region180: #{main_classifier_forward.1} parent=5 // pred_fallthru
      _
    %p9211 = scmp.le.s32.totalorder 2, %s87
    // Predicated region
    $region185: #{main_classifier_forward.1} parent=5 // pred_check
      %p9212 = pneg %p9211
    $region186: #{main_classifier_forward.1} parent=5 // pred_check_branch
      %9214 = sbr.rel (%p9212) target = $region188
    $region187: #{main_classifier_forward.1} parent=5 // pred_region
      %s9215 = ssub.s32 %s87, 2
      // Predicated region
      $region189: #{main_classifier_forward.1} parent=187 // pred_check
        %p9216 = pneg %p961
      $region190: #{main_classifier_forward.1} parent=187 // pred_check_branch
        %9218 = sbr.rel (%p9216) target = $region192
      $region191: #{main_classifier_forward.1} parent=187 // pred_region
        %p9219 = scmp.lt.s32.totalorder %s93, 1
        %s9220 = scalar_select %p9219, %s93, 1
        %s9221 = smul.addr %s9220, 2
        %s9222 = smul.addr %s9221, 8
        %s9223 = scalar_lea.vmem %s81, %s9222
      $region192: #{main_classifier_forward.1} parent=187 // pred_fallthru
        _
    $region188: #{main_classifier_forward.1} parent=5 // pred_fallthru
      _
  $region6: #{main_classifier_forward.1} parent=0 // loop_footer
    %s91 = sadd.s32 1, %s87
  $region7: #{main_classifier_forward.1} parent=0 // loop_footer_branch
    %86 = sbr.rel target = $region3
  $region8: #{main_classifier_forward.1} parent=0 // loop_exit
    _

</llo_original>
